<compile_context>
chip_gen: v7x
topology: tpu7x:2x2x1
jax: 0.10.0
libtpu: 0.0.40
codegen_flags: <defaults>
</compile_context>

<pallas_src>
import functools

import jax
import jax.numpy as jnp
from jax.experimental import pallas as pl
from jax.experimental.pallas import tpu as pltpu

# ----------------------------- model config ---------------------------------
C0 = 32          # conv feature-extractor channels
D = 64           # transformer hidden dim (== feature_dim of the encoder)
H = 4            # attention heads
DH = D // H      # head dim
FF = 128         # feed-forward dim
N_LAYERS = 2     # transformer layers
K0, S0 = 10, 5   # conv0 kernel / stride (cin = 1)
K1, S1 = 3, 2    # conv1 kernel / stride (cin = C0)
EPS = 1e-5


# ------------------------------- fused kernel --------------------------------


def _audio_encoder_kernel(x_ref, convw_ref, fpw_ref, fvec_ref,
                          w_in_ref, w_out_ref, tvec_ref, o_ref,
                          *, n_layers, n_heads, eps):
    """Whole wav2vec2-style forward for one batch element, fully in VMEM."""
    f32 = jnp.float32

    def ln(v, g, b):
        mu = jnp.mean(v, axis=-1, keepdims=True)
        var = jnp.mean(jnp.square(v - mu), axis=-1, keepdims=True)
        return (v - mu) * jax.lax.rsqrt(var + eps) * g + b

    # ---------------- conv0 (kernel 10, stride 5) ----------------------------
    # x arrives pre-reshaped as [T_even, K0]; even output rows t = 0,2,... are
    # exactly the rows of xp, odd rows t = 1,3,... are [xp[u, 5:] | xp[u+1, :5]].
    xp = x_ref[0].astype(f32)                      # [T_even, K0]
    t_even = xp.shape[0]
    t_odd = t_even - 1
    t1 = 2 * t_even - 1                            # total conv0 output length
    t2 = t_even - 1                                # conv1 output length

    w0 = convw_ref[0:K0, :]                        # [K0, C0]
    h_even = jnp.dot(xp, w0, preferred_element_type=f32)                      # [t_even, C0]
    h_odd = (jnp.dot(xp[0:t_odd, S0:K0], w0[S0:K0, :], preferred_element_type=f32)
             + jnp.dot(xp[1:t_even, 0:S0], w0[0:S0, :], preferred_element_type=f32))  # [t_odd, C0]

    # GroupNorm (num_groups == channels): per-channel stats over all t1 rows.
    gn_g = fvec_ref[0:1, 0:C0]
    gn_b = fvec_ref[1:2, 0:C0]
    inv_n = 1.0 / float(t1)
    mu = (jnp.sum(h_even, axis=0, keepdims=True)
          + jnp.sum(h_odd, axis=0, keepdims=True)) * inv_n
    var = (jnp.sum(jnp.square(h_even - mu), axis=0, keepdims=True)
           + jnp.sum(jnp.square(h_odd - mu), axis=0, keepdims=True)) * inv_n
    rstd = jax.lax.rsqrt(var + eps)
    h_even = jax.nn.gelu((h_even - mu) * rstd * gn_g + gn_b, approximate=True)
    h_odd = jax.nn.gelu((h_odd - mu) * rstd * gn_g + gn_b, approximate=True)

    # ---------------- conv1 (kernel 3, stride 2) ------------------------------
    # output row t uses conv0 rows (2t, 2t+1, 2t+2) = (even[t], odd[t], even[t+1])
    w1k = convw_ref[K0:K0 + K1 * C0, :]            # [K1*C0, C0], k-outer
    h1 = (jnp.dot(h_even[0:t2, :], w1k[0:C0, :], preferred_element_type=f32)
          + jnp.dot(h_odd[0:t2, :], w1k[C0:2 * C0, :], preferred_element_type=f32)
          + jnp.dot(h_even[1:t2 + 1, :], w1k[2 * C0:3 * C0, :],
                    preferred_element_type=f32))                               # [t2, C0]
    h1 = jax.nn.gelu(h1, approximate=True)

    # ---------------- feature projection + encoder LayerNorm ------------------
    h1 = ln(h1, fvec_ref[2:3, 0:C0], fvec_ref[3:4, 0:C0])
    h = jnp.dot(h1, fpw_ref[...], preferred_element_type=f32) + fvec_ref[4:5, 0:D]
    h = ln(h, fvec_ref[5:6, 0:D], fvec_ref[6:7, 0:D])                          # [t2, D]

    # TODO(synk): wav2vec2 grouped-conv positional embedding (kernel=128) omitted.

    # ---------------- transformer layers (post-LN, fused QKV) -----------------
    dh = D // n_heads
    scale = 1.0 / (dh ** 0.5)
    for l in range(n_layers):                      # static unroll (2 layers)
        w_l = w_in_ref[l]                          # [D, 3D + D + FF]
        vec = tvec_ref[l]                          # [8, 3D]
        wqkv = w_l[:, 0:3 * D]
        wo = w_l[:, 3 * D:4 * D]
        w1f = w_l[:, 4 * D:4 * D + FF]
        w2f = w_out_ref[l]                         # [FF, D]
        bqkv = vec[0:1, 0:3 * D]
        bo = vec[1:2, 0:D]
        ln1g, ln1b = vec[2:3, 0:D], vec[3:4, 0:D]
        b1 = vec[4:5, 0:FF]
        b2 = vec[5:6, 0:D]
        ln2g, ln2b = vec[6:7, 0:D], vec[7:8, 0:D]

        # fused QKV projection: one [T, D] @ [D, 3D] MXU pass
        qkv = jnp.dot(h, wqkv, preferred_element_type=f32) + bqkv              # [t2, 3D]
        q = qkv[:, 0:D] * scale
        k = qkv[:, D:2 * D]
        v = qkv[:, 2 * D:3 * D]

        heads = []
        for hh in range(n_heads):
            sl = slice(hh * dh, (hh + 1) * dh)
            s = jax.lax.dot_general(q[:, sl], k[:, sl],
                                    (((1,), (1,)), ((), ())),
                                    preferred_element_type=f32)                # [t2, t2]
            s = s - jnp.max(s, axis=-1, keepdims=True)
            p = jnp.exp(s)
            p = p * pl.reciprocal(jnp.sum(p, axis=-1, keepdims=True), approx=True)
            heads.append(jnp.dot(p, v[:, sl], preferred_element_type=f32))     # [t2, dh]
        # concat heads along lanes -> ONE K=D output-projection matmul
        o_heads = jnp.concatenate(heads, axis=-1)                              # [t2, D]
        attn = jnp.dot(o_heads, wo, preferred_element_type=f32) + bo

        h = ln(h + attn, ln1g, ln1b)               # residual + LN1 fused
        ff = jax.nn.gelu(jnp.dot(h, w1f, preferred_element_type=f32) + b1,
                         approximate=True)
        ff = jnp.dot(ff, w2f, preferred_element_type=f32) + b2
        h = ln(h + ff, ln2g, ln2b)                 # residual + LN2 fused

    # mean over time folded into the kernel epilogue (torch.mean(features, dim=1))
    o_ref[0] = jnp.mean(h, axis=0, keepdims=True).astype(o_ref.dtype)


# -------------------------------- wrapper ------------------------------------


@jax.jit
def audio_encoder_forward(params, x):
    """x: raw waveform [B, T_raw] -> features [B, D] (mean over time)."""
    B, t_raw = x.shape
    assert K0 == 2 * S0 and t_raw % K0 == 0, "synthetic config assumes K0 = 2*S0, T_raw % K0 == 0"
    t_even = t_raw // K0                           # even conv0 positions; T1 = 2*t_even - 1

    # free contiguous reshape; all im2col happens inside the kernel
    xr = x.reshape(B, t_even, K0)

    kernel = functools.partial(_audio_encoder_kernel,
                               n_layers=N_LAYERS, n_heads=H, eps=EPS)

    def const(shape):
        return pl.BlockSpec(shape, lambda i: (0,) * len(shape))

    out = pl.pallas_call(
        kernel,
        out_shape=jax.ShapeDtypeStruct((B, 1, D), x.dtype),
        grid=(B,),
        in_specs=[
            pl.BlockSpec((1, t_even, K0), lambda i: (i, 0, 0)),   # raw waveform patches
            const((K0 + K1 * C0, C0)),                            # conv0_w | conv1_w packed
            const((C0, D)),                                       # feature-projection weight
            const((8, D)),                                        # frontend vectors packed
            const((N_LAYERS, D, 4 * D + FF)),                     # wqkv | wo | w1 packed
            const((N_LAYERS, FF, D)),                             # w2
            const((N_LAYERS, 8, 3 * D)),                          # biases / LN params packed
        ],
        out_specs=pl.BlockSpec((1, 1, D), lambda i: (i, 0, 0)),
        compiler_params=pltpu.CompilerParams(dimension_semantics=("parallel",)),
    )(xr, params["conv_w"], params["fp_w"], params["fvec"],
      params["w_in"], params["w_out"], params["tvec"])
    return out[:, 0, :]


# -------------------------------- params -------------------------------------


def init_params(key):
    def w(k, shape, scale=0.02):
        return scale * jax.random.normal(k, shape, dtype=jnp.float32)

    keys = iter(jax.random.split(key, 16))

    conv0_w = w(next(keys), (K0, C0))
    conv1_w = w(next(keys), (K1 * C0, C0))
    conv_w = jnp.concatenate([conv0_w, conv1_w], axis=0)            # [K0 + K1*C0, C0]

    fp_w = w(next(keys), (C0, D))

    # frontend vectors packed as rows of an [8, D] array:
    #   0 gn_g | 1 gn_b | 2 fp_ln_g | 3 fp_ln_b | 4 fp_b | 5 enc_ln_g | 6 enc_ln_b
    fvec = jnp.zeros((8, D), jnp.float32)
    fvec = fvec.at[0, :C0].set(1.0)   # gn gamma
    fvec = fvec.at[2, :C0].set(1.0)   # feature-projection LN gamma
    fvec = fvec.at[5, :D].set(1.0)    # encoder LN gamma

    # per-layer matrices packed along the last axis: [wqkv | wo | w1]
    w_in = jnp.stack([
        jnp.concatenate([w(next(keys), (D, 3 * D)),
                         w(next(keys), (D, D)),
                         w(next(keys), (D, FF))], axis=-1)
        for _ in range(N_LAYERS)])                                   # [L, D, 4D + FF]
    w_out = jnp.stack([w(next(keys), (FF, D)) for _ in range(N_LAYERS)])  # [L, FF, D]

    # per-layer vectors packed as rows of [8, 3D]:
    #   0 bqkv | 1 bo | 2 ln1_g | 3 ln1_b | 4 b1 | 5 b2 | 6 ln2_g | 7 ln2_b
    tvec = jnp.zeros((N_LAYERS, 8, 3 * D), jnp.float32)
    tvec = tvec.at[:, 2, :D].set(1.0)  # ln1 gamma
    tvec = tvec.at[:, 6, :D].set(1.0)  # ln2 gamma

    return {"conv_w": conv_w, "fp_w": fp_w, "fvec": fvec,
            "w_in": w_in, "w_out": w_out, "tvec": tvec}


if __name__ == "__main__":
    key = jax.random.PRNGKey(0)
    pkey, xkey = jax.random.split(key)
    params = init_params(pkey)

    # raw audio waveform [batch_size, sequence_length]
    x = jax.random.normal(xkey, (2, 640), dtype=jnp.float32)

    feats = audio_encoder_forward(params, x)
    feats = jax.block_until_ready(feats)

    assert feats.shape == (2, D), feats.shape
    assert feats.dtype == jnp.float32
    assert bool(jnp.all(jnp.isfinite(feats)))
    print("KERNEL_OK")
</pallas_src>

<mosaic_0001>
module attributes {stable_mosaic.version = 11 : i64} {
  func.func @_audio_encoder_kernel(%arg0: i32, %arg1: memref<1x64x10xf32, #tpu.memory_space<vmem>>, %arg2: memref<106x32xf32, #tpu.memory_space<vmem>>, %arg3: memref<32x64xf32, #tpu.memory_space<vmem>>, %arg4: memref<8x64xf32, #tpu.memory_space<vmem>>, %arg5: memref<2x64x384xf32, #tpu.memory_space<vmem>>, %arg6: memref<2x128x64xf32, #tpu.memory_space<vmem>>, %arg7: memref<2x8x192xf32, #tpu.memory_space<vmem>>, %arg8: memref<1x1x64xf32, #tpu.memory_space<vmem>>) attributes {dimension_semantics = [#tpu.dimension_semantics<parallel>], iteration_bounds = array<i64: 2>, scalar_prefetch = 0 : i64, scratch_operands = 0 : i64, tpu.core_type = #tpu.core_type<tc>, window_params = [{transform_indices = @transform_0, window_bounds = array<i64: 1, 64, 10>}, {pipeline_mode = #tpu.pipeline_mode<synchronous>, transform_indices = @transform_1, window_bounds = array<i64: 106, 32>}, {pipeline_mode = #tpu.pipeline_mode<synchronous>, transform_indices = @transform_2, window_bounds = array<i64: 32, 64>}, {pipeline_mode = #tpu.pipeline_mode<synchronous>, transform_indices = @transform_3, window_bounds = array<i64: 8, 64>}, {pipeline_mode = #tpu.pipeline_mode<synchronous>, transform_indices = @transform_4, window_bounds = array<i64: 2, 64, 384>}, {pipeline_mode = #tpu.pipeline_mode<synchronous>, transform_indices = @transform_5, window_bounds = array<i64: 2, 128, 64>}, {pipeline_mode = #tpu.pipeline_mode<synchronous>, transform_indices = @transform_6, window_bounds = array<i64: 2, 8, 192>}, {transform_indices = @transform_7, window_bounds = array<i64: 1, 1, 64>}]} {
    %c0 = arith.constant 0 : index
    %c0_0 = arith.constant 0 : index
    %c0_1 = arith.constant 0 : index
    %0 = vector.load %arg1[%c0, %c0_0, %c0_1] : memref<1x64x10xf32, #tpu.memory_space<vmem>>, vector<1x64x10xf32>
    %1 = vector.shape_cast %0 : vector<1x64x10xf32> to vector<64x10xf32>
    %c0_2 = arith.constant 0 : index
    %c0_3 = arith.constant 0 : index
    %2 = vector.load %arg2[%c0_2, %c0_3] : memref<106x32xf32, #tpu.memory_space<vmem>>, vector<10x32xf32>
    %cst = arith.constant dense<0.000000e+00> : vector<64x32xf32>
    %3 = tpu.matmul %1, %2, %cst {dimension_numbers = #tpu.dot_dimension_numbers<[1], [0], [0], [1], [0, 0, 1, 1], [], []>} : vector<64x10xf32>, vector<10x32xf32>, vector<64x32xf32> -> vector<64x32xf32>
    %4 = vector.extract_strided_slice %1 {offsets = [0, 5], sizes = [63, 5], strides = [1, 1]} : vector<64x10xf32> to vector<63x5xf32>
    %5 = vector.extract_strided_slice %2 {offsets = [5, 0], sizes = [5, 32], strides = [1, 1]} : vector<10x32xf32> to vector<5x32xf32>
    %cst_4 = arith.constant dense<0.000000e+00> : vector<63x32xf32>
    %6 = tpu.matmul %4, %5, %cst_4 {dimension_numbers = #tpu.dot_dimension_numbers<[1], [0], [0], [1], [0, 0, 1, 1], [], []>} : vector<63x5xf32>, vector<5x32xf32>, vector<63x32xf32> -> vector<63x32xf32>
    %7 = vector.extract_strided_slice %1 {offsets = [1, 0], sizes = [63, 5], strides = [1, 1]} : vector<64x10xf32> to vector<63x5xf32>
    %8 = vector.extract_strided_slice %2 {offsets = [0, 0], sizes = [5, 32], strides = [1, 1]} : vector<10x32xf32> to vector<5x32xf32>
    %cst_5 = arith.constant dense<0.000000e+00> : vector<63x32xf32>
    %9 = tpu.matmul %7, %8, %cst_5 {dimension_numbers = #tpu.dot_dimension_numbers<[1], [0], [0], [1], [0, 0, 1, 1], [], []>} : vector<63x5xf32>, vector<5x32xf32>, vector<63x32xf32> -> vector<63x32xf32>
    %10 = arith.addf %6, %9 : vector<63x32xf32>
    %c0_6 = arith.constant 0 : index
    %c0_7 = arith.constant 0 : index
    %11 = vector.load %arg4[%c0_6, %c0_7] : memref<8x64xf32, #tpu.memory_space<vmem>>, vector<1x32xf32>
    %c1 = arith.constant 1 : index
    %c0_8 = arith.constant 0 : index
    %12 = vector.load %arg4[%c1, %c0_8] : memref<8x64xf32, #tpu.memory_space<vmem>>, vector<1x32xf32>
    %cst_9 = arith.constant dense<0.000000e+00> : vector<32xf32>
    %13 = vector.multi_reduction <add>, %3, %cst_9 [0] : vector<64x32xf32> to vector<32xf32>
    %14 = vector.shape_cast %13 : vector<32xf32> to vector<1x32xf32>
    %cst_10 = arith.constant dense<0.000000e+00> : vector<32xf32>
    %15 = vector.multi_reduction <add>, %10, %cst_10 [0] : vector<63x32xf32> to vector<32xf32>
    %16 = vector.shape_cast %15 : vector<32xf32> to vector<1x32xf32>
    %17 = arith.addf %14, %16 : vector<1x32xf32>
    %cst_11 = arith.constant 0.00787401571 : f32
    %18 = vector.broadcast %cst_11 : f32 to vector<1x32xf32>
    %19 = arith.mulf %17, %18 : vector<1x32xf32>
    %20 = vector.broadcast %19 : vector<1x32xf32> to vector<64x32xf32>
    %21 = arith.subf %3, %20 : vector<64x32xf32>
    %22 = arith.mulf %21, %21 : vector<64x32xf32>
    %cst_12 = arith.constant dense<0.000000e+00> : vector<32xf32>
    %23 = vector.multi_reduction <add>, %22, %cst_12 [0] : vector<64x32xf32> to vector<32xf32>
    %24 = vector.shape_cast %23 : vector<32xf32> to vector<1x32xf32>
    %25 = vector.broadcast %19 : vector<1x32xf32> to vector<63x32xf32>
    %26 = arith.subf %10, %25 : vector<63x32xf32>
    %27 = arith.mulf %26, %26 : vector<63x32xf32>
    %cst_13 = arith.constant dense<0.000000e+00> : vector<32xf32>
    %28 = vector.multi_reduction <add>, %27, %cst_13 [0] : vector<63x32xf32> to vector<32xf32>
    %29 = vector.shape_cast %28 : vector<32xf32> to vector<1x32xf32>
    %30 = arith.addf %24, %29 : vector<1x32xf32>
    %cst_14 = arith.constant 0.00787401571 : f32
    %31 = vector.broadcast %cst_14 : f32 to vector<1x32xf32>
    %32 = arith.mulf %30, %31 : vector<1x32xf32>
    %cst_15 = arith.constant 9.99999974E-6 : f32
    %33 = vector.broadcast %cst_15 : f32 to vector<1x32xf32>
    %34 = arith.addf %32, %33 : vector<1x32xf32>
    %35 = math.rsqrt %34 : vector<1x32xf32>
    %36 = vector.broadcast %19 : vector<1x32xf32> to vector<64x32xf32>
    %37 = arith.subf %3, %36 : vector<64x32xf32>
    %38 = vector.broadcast %35 : vector<1x32xf32> to vector<64x32xf32>
    %39 = arith.mulf %37, %38 : vector<64x32xf32>
    %40 = vector.broadcast %11 : vector<1x32xf32> to vector<64x32xf32>
    %41 = arith.mulf %39, %40 : vector<64x32xf32>
    %42 = vector.broadcast %12 : vector<1x32xf32> to vector<64x32xf32>
    %43 = arith.addf %41, %42 : vector<64x32xf32>
    %44 = arith.mulf %43, %43 : vector<64x32xf32>
    %45 = arith.mulf %43, %44 : vector<64x32xf32>
    %cst_16 = arith.constant 4.471500e-02 : f32
    %46 = vector.broadcast %cst_16 : f32 to vector<64x32xf32>
    %47 = arith.mulf %46, %45 : vector<64x32xf32>
    %48 = arith.addf %43, %47 : vector<64x32xf32>
    %cst_17 = arith.constant 0.797884583 : f32
    %49 = vector.broadcast %cst_17 : f32 to vector<64x32xf32>
    %50 = arith.mulf %49, %48 : vector<64x32xf32>
    %51 = math.tanh %50 : vector<64x32xf32>
    %cst_18 = arith.constant 1.000000e+00 : f32
    %52 = vector.broadcast %cst_18 : f32 to vector<64x32xf32>
    %53 = arith.addf %52, %51 : vector<64x32xf32>
    %cst_19 = arith.constant 5.000000e-01 : f32
    %54 = vector.broadcast %cst_19 : f32 to vector<64x32xf32>
    %55 = arith.mulf %54, %53 : vector<64x32xf32>
    %56 = arith.mulf %43, %55 : vector<64x32xf32>
    %57 = vector.broadcast %19 : vector<1x32xf32> to vector<63x32xf32>
    %58 = arith.subf %10, %57 : vector<63x32xf32>
    %59 = vector.broadcast %35 : vector<1x32xf32> to vector<63x32xf32>
    %60 = arith.mulf %58, %59 : vector<63x32xf32>
    %61 = vector.broadcast %11 : vector<1x32xf32> to vector<63x32xf32>
    %62 = arith.mulf %60, %61 : vector<63x32xf32>
    %63 = vector.broadcast %12 : vector<1x32xf32> to vector<63x32xf32>
    %64 = arith.addf %62, %63 : vector<63x32xf32>
    %65 = arith.mulf %64, %64 : vector<63x32xf32>
    %66 = arith.mulf %64, %65 : vector<63x32xf32>
    %cst_20 = arith.constant 4.471500e-02 : f32
    %67 = vector.broadcast %cst_20 : f32 to vector<63x32xf32>
    %68 = arith.mulf %67, %66 : vector<63x32xf32>
    %69 = arith.addf %64, %68 : vector<63x32xf32>
    %cst_21 = arith.constant 0.797884583 : f32
    %70 = vector.broadcast %cst_21 : f32 to vector<63x32xf32>
    %71 = arith.mulf %70, %69 : vector<63x32xf32>
    %72 = math.tanh %71 : vector<63x32xf32>
    %cst_22 = arith.constant 1.000000e+00 : f32
    %73 = vector.broadcast %cst_22 : f32 to vector<63x32xf32>
    %74 = arith.addf %73, %72 : vector<63x32xf32>
    %cst_23 = arith.constant 5.000000e-01 : f32
    %75 = vector.broadcast %cst_23 : f32 to vector<63x32xf32>
    %76 = arith.mulf %75, %74 : vector<63x32xf32>
    %77 = arith.mulf %64, %76 : vector<63x32xf32>
    %c10 = arith.constant 10 : index
    %c0_24 = arith.constant 0 : index
    %78 = vector.load %arg2[%c10, %c0_24] : memref<106x32xf32, #tpu.memory_space<vmem>>, vector<96x32xf32>
    %79 = vector.extract_strided_slice %56 {offsets = [0, 0], sizes = [63, 32], strides = [1, 1]} : vector<64x32xf32> to vector<63x32xf32>
    %80 = vector.extract_strided_slice %78 {offsets = [0, 0], sizes = [32, 32], strides = [1, 1]} : vector<96x32xf32> to vector<32x32xf32>
    %cst_25 = arith.constant dense<0.000000e+00> : vector<63x32xf32>
    %81 = tpu.matmul %79, %80, %cst_25 {dimension_numbers = #tpu.dot_dimension_numbers<[1], [0], [0], [1], [0, 0, 1, 1], [], []>} : vector<63x32xf32>, vector<32x32xf32>, vector<63x32xf32> -> vector<63x32xf32>
    %82 = vector.extract_strided_slice %78 {offsets = [32, 0], sizes = [32, 32], strides = [1, 1]} : vector<96x32xf32> to vector<32x32xf32>
    %cst_26 = arith.constant dense<0.000000e+00> : vector<63x32xf32>
    %83 = tpu.matmul %77, %82, %cst_26 {dimension_numbers = #tpu.dot_dimension_numbers<[1], [0], [0], [1], [0, 0, 1, 1], [], []>} : vector<63x32xf32>, vector<32x32xf32>, vector<63x32xf32> -> vector<63x32xf32>
    %84 = arith.addf %81, %83 : vector<63x32xf32>
    %85 = vector.extract_strided_slice %56 {offsets = [1, 0], sizes = [63, 32], strides = [1, 1]} : vector<64x32xf32> to vector<63x32xf32>
    %86 = vector.extract_strided_slice %78 {offsets = [64, 0], sizes = [32, 32], strides = [1, 1]} : vector<96x32xf32> to vector<32x32xf32>
    %cst_27 = arith.constant dense<0.000000e+00> : vector<63x32xf32>
    %87 = tpu.matmul %85, %86, %cst_27 {dimension_numbers = #tpu.dot_dimension_numbers<[1], [0], [0], [1], [0, 0, 1, 1], [], []>} : vector<63x32xf32>, vector<32x32xf32>, vector<63x32xf32> -> vector<63x32xf32>
    %88 = arith.addf %84, %87 : vector<63x32xf32>
    %89 = arith.mulf %88, %88 : vector<63x32xf32>
    %90 = arith.mulf %88, %89 : vector<63x32xf32>
    %cst_28 = arith.constant 4.471500e-02 : f32
    %91 = vector.broadcast %cst_28 : f32 to vector<63x32xf32>
    %92 = arith.mulf %91, %90 : vector<63x32xf32>
    %93 = arith.addf %88, %92 : vector<63x32xf32>
    %cst_29 = arith.constant 0.797884583 : f32
    %94 = vector.broadcast %cst_29 : f32 to vector<63x32xf32>
    %95 = arith.mulf %94, %93 : vector<63x32xf32>
    %96 = math.tanh %95 : vector<63x32xf32>
    %cst_30 = arith.constant 1.000000e+00 : f32
    %97 = vector.broadcast %cst_30 : f32 to vector<63x32xf32>
    %98 = arith.addf %97, %96 : vector<63x32xf32>
    %cst_31 = arith.constant 5.000000e-01 : f32
    %99 = vector.broadcast %cst_31 : f32 to vector<63x32xf32>
    %100 = arith.mulf %99, %98 : vector<63x32xf32>
    %101 = arith.mulf %88, %100 : vector<63x32xf32>
    %c2 = arith.constant 2 : index
    %c0_32 = arith.constant 0 : index
    %102 = vector.load %arg4[%c2, %c0_32] : memref<8x64xf32, #tpu.memory_space<vmem>>, vector<1x32xf32>
    %c3 = arith.constant 3 : index
    %c0_33 = arith.constant 0 : index
    %103 = vector.load %arg4[%c3, %c0_33] : memref<8x64xf32, #tpu.memory_space<vmem>>, vector<1x32xf32>
    %cst_34 = arith.constant dense<0.000000e+00> : vector<63xf32>
    %104 = vector.multi_reduction <add>, %101, %cst_34 [1] : vector<63x32xf32> to vector<63xf32>
    %105 = vector.shape_cast %104 : vector<63xf32> to vector<63x1xf32>
    %cst_35 = arith.constant 3.200000e+01 : f32
    %106 = vector.broadcast %cst_35 : f32 to vector<63x1xf32>
    %107 = arith.divf %105, %106 : vector<63x1xf32>
    %108 = vector.broadcast %107 : vector<63x1xf32> to vector<63x32xf32>
    %109 = arith.subf %101, %108 : vector<63x32xf32>
    %110 = arith.mulf %109, %109 : vector<63x32xf32>
    %cst_36 = arith.constant dense<0.000000e+00> : vector<63xf32>
    %111 = vector.multi_reduction <add>, %110, %cst_36 [1] : vector<63x32xf32> to vector<63xf32>
    %112 = vector.shape_cast %111 : vector<63xf32> to vector<63x1xf32>
    %cst_37 = arith.constant 3.200000e+01 : f32
    %113 = vector.broadcast %cst_37 : f32 to vector<63x1xf32>
    %114 = arith.divf %112, %113 : vector<63x1xf32>
    %115 = vector.broadcast %107 : vector<63x1xf32> to vector<63x32xf32>
    %116 = arith.subf %101, %115 : vector<63x32xf32>
    %cst_38 = arith.constant 9.99999974E-6 : f32
    %117 = vector.broadcast %cst_38 : f32 to vector<63x1xf32>
    %118 = arith.addf %114, %117 : vector<63x1xf32>
    %119 = math.rsqrt %118 : vector<63x1xf32>
    %120 = vector.broadcast %119 : vector<63x1xf32> to vector<63x32xf32>
    %121 = arith.mulf %116, %120 : vector<63x32xf32>
    %122 = vector.broadcast %102 : vector<1x32xf32> to vector<63x32xf32>
    %123 = arith.mulf %121, %122 : vector<63x32xf32>
    %124 = vector.broadcast %103 : vector<1x32xf32> to vector<63x32xf32>
    %125 = arith.addf %123, %124 : vector<63x32xf32>
    %c0_39 = arith.constant 0 : index
    %c0_40 = arith.constant 0 : index
    %126 = vector.load %arg3[%c0_39, %c0_40] : memref<32x64xf32, #tpu.memory_space<vmem>>, vector<32x64xf32>
    %cst_41 = arith.constant dense<0.000000e+00> : vector<63x64xf32>
    %127 = tpu.matmul %125, %126, %cst_41 {dimension_numbers = #tpu.dot_dimension_numbers<[1], [0], [0], [1], [0, 0, 1, 1], [], []>} : vector<63x32xf32>, vector<32x64xf32>, vector<63x64xf32> -> vector<63x64xf32>
    %c4 = arith.constant 4 : index
    %c0_42 = arith.constant 0 : index
    %128 = vector.load %arg4[%c4, %c0_42] : memref<8x64xf32, #tpu.memory_space<vmem>>, vector<1x64xf32>
    %129 = vector.broadcast %128 : vector<1x64xf32> to vector<63x64xf32>
    %130 = arith.addf %127, %129 : vector<63x64xf32>
    %c5 = arith.constant 5 : index
    %c0_43 = arith.constant 0 : index
    %131 = vector.load %arg4[%c5, %c0_43] : memref<8x64xf32, #tpu.memory_space<vmem>>, vector<1x64xf32>
    %c6 = arith.constant 6 : index
    %c0_44 = arith.constant 0 : index
    %132 = vector.load %arg4[%c6, %c0_44] : memref<8x64xf32, #tpu.memory_space<vmem>>, vector<1x64xf32>
    %cst_45 = arith.constant dense<0.000000e+00> : vector<63xf32>
    %133 = vector.multi_reduction <add>, %130, %cst_45 [1] : vector<63x64xf32> to vector<63xf32>
    %134 = vector.shape_cast %133 : vector<63xf32> to vector<63x1xf32>
    %cst_46 = arith.constant 6.400000e+01 : f32
    %135 = vector.broadcast %cst_46 : f32 to vector<63x1xf32>
    %136 = arith.divf %134, %135 : vector<63x1xf32>
    %137 = vector.broadcast %136 : vector<63x1xf32> to vector<63x64xf32>
    %138 = arith.subf %130, %137 : vector<63x64xf32>
    %139 = arith.mulf %138, %138 : vector<63x64xf32>
    %cst_47 = arith.constant dense<0.000000e+00> : vector<63xf32>
    %140 = vector.multi_reduction <add>, %139, %cst_47 [1] : vector<63x64xf32> to vector<63xf32>
    %141 = vector.shape_cast %140 : vector<63xf32> to vector<63x1xf32>
    %cst_48 = arith.constant 6.400000e+01 : f32
    %142 = vector.broadcast %cst_48 : f32 to vector<63x1xf32>
    %143 = arith.divf %141, %142 : vector<63x1xf32>
    %144 = vector.broadcast %136 : vector<63x1xf32> to vector<63x64xf32>
    %145 = arith.subf %130, %144 : vector<63x64xf32>
    %cst_49 = arith.constant 9.99999974E-6 : f32
    %146 = vector.broadcast %cst_49 : f32 to vector<63x1xf32>
    %147 = arith.addf %143, %146 : vector<63x1xf32>
    %148 = math.rsqrt %147 : vector<63x1xf32>
    %149 = vector.broadcast %148 : vector<63x1xf32> to vector<63x64xf32>
    %150 = arith.mulf %145, %149 : vector<63x64xf32>
    %151 = vector.broadcast %131 : vector<1x64xf32> to vector<63x64xf32>
    %152 = arith.mulf %150, %151 : vector<63x64xf32>
    %153 = vector.broadcast %132 : vector<1x64xf32> to vector<63x64xf32>
    %154 = arith.addf %152, %153 : vector<63x64xf32>
    %c0_50 = arith.constant 0 : index
    %c0_51 = arith.constant 0 : index
    %c0_52 = arith.constant 0 : index
    %155 = vector.load %arg5[%c0_50, %c0_51, %c0_52] : memref<2x64x384xf32, #tpu.memory_space<vmem>>, vector<1x64x384xf32>
    %156 = vector.shape_cast %155 : vector<1x64x384xf32> to vector<64x384xf32>
    %c0_53 = arith.constant 0 : index
    %c0_54 = arith.constant 0 : index
    %c0_55 = arith.constant 0 : index
    %157 = vector.load %arg7[%c0_53, %c0_54, %c0_55] : memref<2x8x192xf32, #tpu.memory_space<vmem>>, vector<1x8x192xf32>
    %158 = vector.shape_cast %157 : vector<1x8x192xf32> to vector<8x192xf32>
    %159 = vector.extract_strided_slice %156 {offsets = [0, 0], sizes = [64, 192], strides = [1, 1]} : vector<64x384xf32> to vector<64x192xf32>
    %160 = vector.extract_strided_slice %156 {offsets = [0, 192], sizes = [64, 64], strides = [1, 1]} : vector<64x384xf32> to vector<64x64xf32>
    %161 = vector.extract_strided_slice %156 {offsets = [0, 256], sizes = [64, 128], strides = [1, 1]} : vector<64x384xf32> to vector<64x128xf32>
    %c0_56 = arith.constant 0 : index
    %c0_57 = arith.constant 0 : index
    %c0_58 = arith.constant 0 : index
    %162 = vector.load %arg6[%c0_56, %c0_57, %c0_58] : memref<2x128x64xf32, #tpu.memory_space<vmem>>, vector<1x128x64xf32>
    %163 = vector.shape_cast %162 : vector<1x128x64xf32> to vector<128x64xf32>
    %164 = vector.extract_strided_slice %158 {offsets = [0, 0], sizes = [1, 192], strides = [1, 1]} : vector<8x192xf32> to vector<1x192xf32>
    %165 = vector.extract_strided_slice %158 {offsets = [1, 0], sizes = [1, 64], strides = [1, 1]} : vector<8x192xf32> to vector<1x64xf32>
    %166 = vector.extract_strided_slice %158 {offsets = [2, 0], sizes = [1, 64], strides = [1, 1]} : vector<8x192xf32> to vector<1x64xf32>
    %167 = vector.extract_strided_slice %158 {offsets = [3, 0], sizes = [1, 64], strides = [1, 1]} : vector<8x192xf32> to vector<1x64xf32>
    %168 = vector.extract_strided_slice %158 {offsets = [4, 0], sizes = [1, 128], strides = [1, 1]} : vector<8x192xf32> to vector<1x128xf32>
    %169 = vector.extract_strided_slice %158 {offsets = [5, 0], sizes = [1, 64], strides = [1, 1]} : vector<8x192xf32> to vector<1x64xf32>
    %170 = vector.extract_strided_slice %158 {offsets = [6, 0], sizes = [1, 64], strides = [1, 1]} : vector<8x192xf32> to vector<1x64xf32>
    %171 = vector.extract_strided_slice %158 {offsets = [7, 0], sizes = [1, 64], strides = [1, 1]} : vector<8x192xf32> to vector<1x64xf32>
    %cst_59 = arith.constant dense<0.000000e+00> : vector<63x192xf32>
    %172 = tpu.matmul %154, %159, %cst_59 {dimension_numbers = #tpu.dot_dimension_numbers<[1], [0], [0], [1], [0, 0, 1, 1], [], []>} : vector<63x64xf32>, vector<64x192xf32>, vector<63x192xf32> -> vector<63x192xf32>
    %173 = vector.broadcast %164 : vector<1x192xf32> to vector<63x192xf32>
    %174 = arith.addf %172, %173 : vector<63x192xf32>
    %175 = vector.extract_strided_slice %174 {offsets = [0, 0], sizes = [63, 64], strides = [1, 1]} : vector<63x192xf32> to vector<63x64xf32>
    %cst_60 = arith.constant 2.500000e-01 : f32
    %176 = vector.broadcast %cst_60 : f32 to vector<63x64xf32>
    %177 = arith.mulf %175, %176 : vector<63x64xf32>
    %178 = vector.extract_strided_slice %174 {offsets = [0, 64], sizes = [63, 64], strides = [1, 1]} : vector<63x192xf32> to vector<63x64xf32>
    %179 = vector.extract_strided_slice %174 {offsets = [0, 128], sizes = [63, 64], strides = [1, 1]} : vector<63x192xf32> to vector<63x64xf32>
    %180 = vector.extract_strided_slice %177 {offsets = [0, 0], sizes = [63, 16], strides = [1, 1]} : vector<63x64xf32> to vector<63x16xf32>
    %181 = vector.extract_strided_slice %178 {offsets = [0, 0], sizes = [63, 16], strides = [1, 1]} : vector<63x64xf32> to vector<63x16xf32>
    %cst_61 = arith.constant dense<0.000000e+00> : vector<63x63xf32>
    %182 = tpu.matmul %180, %181, %cst_61 {dimension_numbers = #tpu.dot_dimension_numbers<[1], [1], [0], [0], [0, 0, 1, 0], [], []>} : vector<63x16xf32>, vector<63x16xf32>, vector<63x63xf32> -> vector<63x63xf32>
    %cst_62 = arith.constant dense<0xFF800000> : vector<63xf32>
    %183 = vector.multi_reduction <maximumf>, %182, %cst_62 [1] : vector<63x63xf32> to vector<63xf32>
    %184 = vector.shape_cast %183 : vector<63xf32> to vector<63x1xf32>
    %185 = vector.broadcast %184 : vector<63x1xf32> to vector<63x63xf32>
    %186 = arith.subf %182, %185 : vector<63x63xf32>
    %187 = math.exp %186 : vector<63x63xf32>
    %cst_63 = arith.constant dense<0.000000e+00> : vector<63xf32>
    %188 = vector.multi_reduction <add>, %187, %cst_63 [1] : vector<63x63xf32> to vector<63xf32>
    %189 = vector.shape_cast %188 : vector<63xf32> to vector<63x1xf32>
    %190 = tpu.reciprocal %189 {approx = true} : vector<63x1xf32> -> vector<63x1xf32>
    %191 = vector.broadcast %190 : vector<63x1xf32> to vector<63x63xf32>
    %192 = arith.mulf %187, %191 : vector<63x63xf32>
    %193 = vector.extract_strided_slice %179 {offsets = [0, 0], sizes = [63, 16], strides = [1, 1]} : vector<63x64xf32> to vector<63x16xf32>
    %cst_64 = arith.constant dense<0.000000e+00> : vector<63x16xf32>
    %194 = tpu.matmul %192, %193, %cst_64 {dimension_numbers = #tpu.dot_dimension_numbers<[1], [0], [0], [1], [0, 0, 1, 1], [], []>} : vector<63x63xf32>, vector<63x16xf32>, vector<63x16xf32> -> vector<63x16xf32>
    %195 = vector.extract_strided_slice %177 {offsets = [0, 16], sizes = [63, 16], strides = [1, 1]} : vector<63x64xf32> to vector<63x16xf32>
    %196 = vector.extract_strided_slice %178 {offsets = [0, 16], sizes = [63, 16], strides = [1, 1]} : vector<63x64xf32> to vector<63x16xf32>
    %cst_65 = arith.constant dense<0.000000e+00> : vector<63x63xf32>
    %197 = tpu.matmul %195, %196, %cst_65 {dimension_numbers = #tpu.dot_dimension_numbers<[1], [1], [0], [0], [0, 0, 1, 0], [], []>} : vector<63x16xf32>, vector<63x16xf32>, vector<63x63xf32> -> vector<63x63xf32>
    %cst_66 = arith.constant dense<0xFF800000> : vector<63xf32>
    %198 = vector.multi_reduction <maximumf>, %197, %cst_66 [1] : vector<63x63xf32> to vector<63xf32>
    %199 = vector.shape_cast %198 : vector<63xf32> to vector<63x1xf32>
    %200 = vector.broadcast %199 : vector<63x1xf32> to vector<63x63xf32>
    %201 = arith.subf %197, %200 : vector<63x63xf32>
    %202 = math.exp %201 : vector<63x63xf32>
    %cst_67 = arith.constant dense<0.000000e+00> : vector<63xf32>
    %203 = vector.multi_reduction <add>, %202, %cst_67 [1] : vector<63x63xf32> to vector<63xf32>
    %204 = vector.shape_cast %203 : vector<63xf32> to vector<63x1xf32>
    %205 = tpu.reciprocal %204 {approx = true} : vector<63x1xf32> -> vector<63x1xf32>
    %206 = vector.broadcast %205 : vector<63x1xf32> to vector<63x63xf32>
    %207 = arith.mulf %202, %206 : vector<63x63xf32>
    %208 = vector.extract_strided_slice %179 {offsets = [0, 16], sizes = [63, 16], strides = [1, 1]} : vector<63x64xf32> to vector<63x16xf32>
    %cst_68 = arith.constant dense<0.000000e+00> : vector<63x16xf32>
    %209 = tpu.matmul %207, %208, %cst_68 {dimension_numbers = #tpu.dot_dimension_numbers<[1], [0], [0], [1], [0, 0, 1, 1], [], []>} : vector<63x63xf32>, vector<63x16xf32>, vector<63x16xf32> -> vector<63x16xf32>
    %210 = vector.extract_strided_slice %177 {offsets = [0, 32], sizes = [63, 16], strides = [1, 1]} : vector<63x64xf32> to vector<63x16xf32>
    %211 = vector.extract_strided_slice %178 {offsets = [0, 32], sizes = [63, 16], strides = [1, 1]} : vector<63x64xf32> to vector<63x16xf32>
    %cst_69 = arith.constant dense<0.000000e+00> : vector<63x63xf32>
    %212 = tpu.matmul %210, %211, %cst_69 {dimension_numbers = #tpu.dot_dimension_numbers<[1], [1], [0], [0], [0, 0, 1, 0], [], []>} : vector<63x16xf32>, vector<63x16xf32>, vector<63x63xf32> -> vector<63x63xf32>
    %cst_70 = arith.constant dense<0xFF800000> : vector<63xf32>
    %213 = vector.multi_reduction <maximumf>, %212, %cst_70 [1] : vector<63x63xf32> to vector<63xf32>
    %214 = vector.shape_cast %213 : vector<63xf32> to vector<63x1xf32>
    %215 = vector.broadcast %214 : vector<63x1xf32> to vector<63x63xf32>
    %216 = arith.subf %212, %215 : vector<63x63xf32>
    %217 = math.exp %216 : vector<63x63xf32>
    %cst_71 = arith.constant dense<0.000000e+00> : vector<63xf32>
    %218 = vector.multi_reduction <add>, %217, %cst_71 [1] : vector<63x63xf32> to vector<63xf32>
    %219 = vector.shape_cast %218 : vector<63xf32> to vector<63x1xf32>
    %220 = tpu.reciprocal %219 {approx = true} : vector<63x1xf32> -> vector<63x1xf32>
    %221 = vector.broadcast %220 : vector<63x1xf32> to vector<63x63xf32>
    %222 = arith.mulf %217, %221 : vector<63x63xf32>
    %223 = vector.extract_strided_slice %179 {offsets = [0, 32], sizes = [63, 16], strides = [1, 1]} : vector<63x64xf32> to vector<63x16xf32>
    %cst_72 = arith.constant dense<0.000000e+00> : vector<63x16xf32>
    %224 = tpu.matmul %222, %223, %cst_72 {dimension_numbers = #tpu.dot_dimension_numbers<[1], [0], [0], [1], [0, 0, 1, 1], [], []>} : vector<63x63xf32>, vector<63x16xf32>, vector<63x16xf32> -> vector<63x16xf32>
    %225 = vector.extract_strided_slice %177 {offsets = [0, 48], sizes = [63, 16], strides = [1, 1]} : vector<63x64xf32> to vector<63x16xf32>
    %226 = vector.extract_strided_slice %178 {offsets = [0, 48], sizes = [63, 16], strides = [1, 1]} : vector<63x64xf32> to vector<63x16xf32>
    %cst_73 = arith.constant dense<0.000000e+00> : vector<63x63xf32>
    %227 = tpu.matmul %225, %226, %cst_73 {dimension_numbers = #tpu.dot_dimension_numbers<[1], [1], [0], [0], [0, 0, 1, 0], [], []>} : vector<63x16xf32>, vector<63x16xf32>, vector<63x63xf32> -> vector<63x63xf32>
    %cst_74 = arith.constant dense<0xFF800000> : vector<63xf32>
    %228 = vector.multi_reduction <maximumf>, %227, %cst_74 [1] : vector<63x63xf32> to vector<63xf32>
    %229 = vector.shape_cast %228 : vector<63xf32> to vector<63x1xf32>
    %230 = vector.broadcast %229 : vector<63x1xf32> to vector<63x63xf32>
    %231 = arith.subf %227, %230 : vector<63x63xf32>
    %232 = math.exp %231 : vector<63x63xf32>
    %cst_75 = arith.constant dense<0.000000e+00> : vector<63xf32>
    %233 = vector.multi_reduction <add>, %232, %cst_75 [1] : vector<63x63xf32> to vector<63xf32>
    %234 = vector.shape_cast %233 : vector<63xf32> to vector<63x1xf32>
    %235 = tpu.reciprocal %234 {approx = true} : vector<63x1xf32> -> vector<63x1xf32>
    %236 = vector.broadcast %235 : vector<63x1xf32> to vector<63x63xf32>
    %237 = arith.mulf %232, %236 : vector<63x63xf32>
    %238 = vector.extract_strided_slice %179 {offsets = [0, 48], sizes = [63, 16], strides = [1, 1]} : vector<63x64xf32> to vector<63x16xf32>
    %cst_76 = arith.constant dense<0.000000e+00> : vector<63x16xf32>
    %239 = tpu.matmul %237, %238, %cst_76 {dimension_numbers = #tpu.dot_dimension_numbers<[1], [0], [0], [1], [0, 0, 1, 1], [], []>} : vector<63x63xf32>, vector<63x16xf32>, vector<63x16xf32> -> vector<63x16xf32>
    %240 = tpu.concatenate %194, %209, %224, %239 in 1 : vector<63x16xf32>, vector<63x16xf32>, vector<63x16xf32>, vector<63x16xf32> -> vector<63x64xf32>
    %cst_77 = arith.constant dense<0.000000e+00> : vector<63x64xf32>
    %241 = tpu.matmul %240, %160, %cst_77 {dimension_numbers = #tpu.dot_dimension_numbers<[1], [0], [0], [1], [0, 0, 1, 1], [], []>} : vector<63x64xf32>, vector<64x64xf32>, vector<63x64xf32> -> vector<63x64xf32>
    %242 = vector.broadcast %165 : vector<1x64xf32> to vector<63x64xf32>
    %243 = arith.addf %241, %242 : vector<63x64xf32>
    %244 = arith.addf %154, %243 : vector<63x64xf32>
    %cst_78 = arith.constant dense<0.000000e+00> : vector<63xf32>
    %245 = vector.multi_reduction <add>, %244, %cst_78 [1] : vector<63x64xf32> to vector<63xf32>
    %246 = vector.shape_cast %245 : vector<63xf32> to vector<63x1xf32>
    %cst_79 = arith.constant 6.400000e+01 : f32
    %247 = vector.broadcast %cst_79 : f32 to vector<63x1xf32>
    %248 = arith.divf %246, %247 : vector<63x1xf32>
    %249 = vector.broadcast %248 : vector<63x1xf32> to vector<63x64xf32>
    %250 = arith.subf %244, %249 : vector<63x64xf32>
    %251 = arith.mulf %250, %250 : vector<63x64xf32>
    %cst_80 = arith.constant dense<0.000000e+00> : vector<63xf32>
    %252 = vector.multi_reduction <add>, %251, %cst_80 [1] : vector<63x64xf32> to vector<63xf32>
    %253 = vector.shape_cast %252 : vector<63xf32> to vector<63x1xf32>
    %cst_81 = arith.constant 6.400000e+01 : f32
    %254 = vector.broadcast %cst_81 : f32 to vector<63x1xf32>
    %255 = arith.divf %253, %254 : vector<63x1xf32>
    %256 = vector.broadcast %248 : vector<63x1xf32> to vector<63x64xf32>
    %257 = arith.subf %244, %256 : vector<63x64xf32>
    %cst_82 = arith.constant 9.99999974E-6 : f32
    %258 = vector.broadcast %cst_82 : f32 to vector<63x1xf32>
    %259 = arith.addf %255, %258 : vector<63x1xf32>
    %260 = math.rsqrt %259 : vector<63x1xf32>
    %261 = vector.broadcast %260 : vector<63x1xf32> to vector<63x64xf32>
    %262 = arith.mulf %257, %261 : vector<63x64xf32>
    %263 = vector.broadcast %166 : vector<1x64xf32> to vector<63x64xf32>
    %264 = arith.mulf %262, %263 : vector<63x64xf32>
    %265 = vector.broadcast %167 : vector<1x64xf32> to vector<63x64xf32>
    %266 = arith.addf %264, %265 : vector<63x64xf32>
    %cst_83 = arith.constant dense<0.000000e+00> : vector<63x128xf32>
    %267 = tpu.matmul %266, %161, %cst_83 {dimension_numbers = #tpu.dot_dimension_numbers<[1], [0], [0], [1], [0, 0, 1, 1], [], []>} : vector<63x64xf32>, vector<64x128xf32>, vector<63x128xf32> -> vector<63x128xf32>
    %268 = vector.broadcast %168 : vector<1x128xf32> to vector<63x128xf32>
    %269 = arith.addf %267, %268 : vector<63x128xf32>
    %270 = arith.mulf %269, %269 : vector<63x128xf32>
    %271 = arith.mulf %269, %270 : vector<63x128xf32>
    %cst_84 = arith.constant 4.471500e-02 : f32
    %272 = vector.broadcast %cst_84 : f32 to vector<63x128xf32>
    %273 = arith.mulf %272, %271 : vector<63x128xf32>
    %274 = arith.addf %269, %273 : vector<63x128xf32>
    %cst_85 = arith.constant 0.797884583 : f32
    %275 = vector.broadcast %cst_85 : f32 to vector<63x128xf32>
    %276 = arith.mulf %275, %274 : vector<63x128xf32>
    %277 = math.tanh %276 : vector<63x128xf32>
    %cst_86 = arith.constant 1.000000e+00 : f32
    %278 = vector.broadcast %cst_86 : f32 to vector<63x128xf32>
    %279 = arith.addf %278, %277 : vector<63x128xf32>
    %cst_87 = arith.constant 5.000000e-01 : f32
    %280 = vector.broadcast %cst_87 : f32 to vector<63x128xf32>
    %281 = arith.mulf %280, %279 : vector<63x128xf32>
    %282 = arith.mulf %269, %281 : vector<63x128xf32>
    %cst_88 = arith.constant dense<0.000000e+00> : vector<63x64xf32>
    %283 = tpu.matmul %282, %163, %cst_88 {dimension_numbers = #tpu.dot_dimension_numbers<[1], [0], [0], [1], [0, 0, 1, 1], [], []>} : vector<63x128xf32>, vector<128x64xf32>, vector<63x64xf32> -> vector<63x64xf32>
    %284 = vector.broadcast %169 : vector<1x64xf32> to vector<63x64xf32>
    %285 = arith.addf %283, %284 : vector<63x64xf32>
    %286 = arith.addf %266, %285 : vector<63x64xf32>
    %cst_89 = arith.constant dense<0.000000e+00> : vector<63xf32>
    %287 = vector.multi_reduction <add>, %286, %cst_89 [1] : vector<63x64xf32> to vector<63xf32>
    %288 = vector.shape_cast %287 : vector<63xf32> to vector<63x1xf32>
    %cst_90 = arith.constant 6.400000e+01 : f32
    %289 = vector.broadcast %cst_90 : f32 to vector<63x1xf32>
    %290 = arith.divf %288, %289 : vector<63x1xf32>
    %291 = vector.broadcast %290 : vector<63x1xf32> to vector<63x64xf32>
    %292 = arith.subf %286, %291 : vector<63x64xf32>
    %293 = arith.mulf %292, %292 : vector<63x64xf32>
    %cst_91 = arith.constant dense<0.000000e+00> : vector<63xf32>
    %294 = vector.multi_reduction <add>, %293, %cst_91 [1] : vector<63x64xf32> to vector<63xf32>
    %295 = vector.shape_cast %294 : vector<63xf32> to vector<63x1xf32>
    %cst_92 = arith.constant 6.400000e+01 : f32
    %296 = vector.broadcast %cst_92 : f32 to vector<63x1xf32>
    %297 = arith.divf %295, %296 : vector<63x1xf32>
    %298 = vector.broadcast %290 : vector<63x1xf32> to vector<63x64xf32>
    %299 = arith.subf %286, %298 : vector<63x64xf32>
    %cst_93 = arith.constant 9.99999974E-6 : f32
    %300 = vector.broadcast %cst_93 : f32 to vector<63x1xf32>
    %301 = arith.addf %297, %300 : vector<63x1xf32>
    %302 = math.rsqrt %301 : vector<63x1xf32>
    %303 = vector.broadcast %302 : vector<63x1xf32> to vector<63x64xf32>
    %304 = arith.mulf %299, %303 : vector<63x64xf32>
    %305 = vector.broadcast %170 : vector<1x64xf32> to vector<63x64xf32>
    %306 = arith.mulf %304, %305 : vector<63x64xf32>
    %307 = vector.broadcast %171 : vector<1x64xf32> to vector<63x64xf32>
    %308 = arith.addf %306, %307 : vector<63x64xf32>
    %c1_94 = arith.constant 1 : index
    %c0_95 = arith.constant 0 : index
    %c0_96 = arith.constant 0 : index
    %309 = vector.load %arg5[%c1_94, %c0_95, %c0_96] : memref<2x64x384xf32, #tpu.memory_space<vmem>>, vector<1x64x384xf32>
    %310 = vector.shape_cast %309 : vector<1x64x384xf32> to vector<64x384xf32>
    %c1_97 = arith.constant 1 : index
    %c0_98 = arith.constant 0 : index
    %c0_99 = arith.constant 0 : index
    %311 = vector.load %arg7[%c1_97, %c0_98, %c0_99] : memref<2x8x192xf32, #tpu.memory_space<vmem>>, vector<1x8x192xf32>
    %312 = vector.shape_cast %311 : vector<1x8x192xf32> to vector<8x192xf32>
    %313 = vector.extract_strided_slice %310 {offsets = [0, 0], sizes = [64, 192], strides = [1, 1]} : vector<64x384xf32> to vector<64x192xf32>
    %314 = vector.extract_strided_slice %310 {offsets = [0, 192], sizes = [64, 64], strides = [1, 1]} : vector<64x384xf32> to vector<64x64xf32>
    %315 = vector.extract_strided_slice %310 {offsets = [0, 256], sizes = [64, 128], strides = [1, 1]} : vector<64x384xf32> to vector<64x128xf32>
    %c1_100 = arith.constant 1 : index
    %c0_101 = arith.constant 0 : index
    %c0_102 = arith.constant 0 : index
    %316 = vector.load %arg6[%c1_100, %c0_101, %c0_102] : memref<2x128x64xf32, #tpu.memory_space<vmem>>, vector<1x128x64xf32>
    %317 = vector.shape_cast %316 : vector<1x128x64xf32> to vector<128x64xf32>
    %318 = vector.extract_strided_slice %312 {offsets = [0, 0], sizes = [1, 192], strides = [1, 1]} : vector<8x192xf32> to vector<1x192xf32>
    %319 = vector.extract_strided_slice %312 {offsets = [1, 0], sizes = [1, 64], strides = [1, 1]} : vector<8x192xf32> to vector<1x64xf32>
    %320 = vector.extract_strided_slice %312 {offsets = [2, 0], sizes = [1, 64], strides = [1, 1]} : vector<8x192xf32> to vector<1x64xf32>
    %321 = vector.extract_strided_slice %312 {offsets = [3, 0], sizes = [1, 64], strides = [1, 1]} : vector<8x192xf32> to vector<1x64xf32>
    %322 = vector.extract_strided_slice %312 {offsets = [4, 0], sizes = [1, 128], strides = [1, 1]} : vector<8x192xf32> to vector<1x128xf32>
    %323 = vector.extract_strided_slice %312 {offsets = [5, 0], sizes = [1, 64], strides = [1, 1]} : vector<8x192xf32> to vector<1x64xf32>
    %324 = vector.extract_strided_slice %312 {offsets = [6, 0], sizes = [1, 64], strides = [1, 1]} : vector<8x192xf32> to vector<1x64xf32>
    %325 = vector.extract_strided_slice %312 {offsets = [7, 0], sizes = [1, 64], strides = [1, 1]} : vector<8x192xf32> to vector<1x64xf32>
    %cst_103 = arith.constant dense<0.000000e+00> : vector<63x192xf32>
    %326 = tpu.matmul %308, %313, %cst_103 {dimension_numbers = #tpu.dot_dimension_numbers<[1], [0], [0], [1], [0, 0, 1, 1], [], []>} : vector<63x64xf32>, vector<64x192xf32>, vector<63x192xf32> -> vector<63x192xf32>
    %327 = vector.broadcast %318 : vector<1x192xf32> to vector<63x192xf32>
    %328 = arith.addf %326, %327 : vector<63x192xf32>
    %329 = vector.extract_strided_slice %328 {offsets = [0, 0], sizes = [63, 64], strides = [1, 1]} : vector<63x192xf32> to vector<63x64xf32>
    %cst_104 = arith.constant 2.500000e-01 : f32
    %330 = vector.broadcast %cst_104 : f32 to vector<63x64xf32>
    %331 = arith.mulf %329, %330 : vector<63x64xf32>
    %332 = vector.extract_strided_slice %328 {offsets = [0, 64], sizes = [63, 64], strides = [1, 1]} : vector<63x192xf32> to vector<63x64xf32>
    %333 = vector.extract_strided_slice %328 {offsets = [0, 128], sizes = [63, 64], strides = [1, 1]} : vector<63x192xf32> to vector<63x64xf32>
    %334 = vector.extract_strided_slice %331 {offsets = [0, 0], sizes = [63, 16], strides = [1, 1]} : vector<63x64xf32> to vector<63x16xf32>
    %335 = vector.extract_strided_slice %332 {offsets = [0, 0], sizes = [63, 16], strides = [1, 1]} : vector<63x64xf32> to vector<63x16xf32>
    %cst_105 = arith.constant dense<0.000000e+00> : vector<63x63xf32>
    %336 = tpu.matmul %334, %335, %cst_105 {dimension_numbers = #tpu.dot_dimension_numbers<[1], [1], [0], [0], [0, 0, 1, 0], [], []>} : vector<63x16xf32>, vector<63x16xf32>, vector<63x63xf32> -> vector<63x63xf32>
    %cst_106 = arith.constant dense<0xFF800000> : vector<63xf32>
    %337 = vector.multi_reduction <maximumf>, %336, %cst_106 [1] : vector<63x63xf32> to vector<63xf32>
    %338 = vector.shape_cast %337 : vector<63xf32> to vector<63x1xf32>
    %339 = vector.broadcast %338 : vector<63x1xf32> to vector<63x63xf32>
    %340 = arith.subf %336, %339 : vector<63x63xf32>
    %341 = math.exp %340 : vector<63x63xf32>
    %cst_107 = arith.constant dense<0.000000e+00> : vector<63xf32>
    %342 = vector.multi_reduction <add>, %341, %cst_107 [1] : vector<63x63xf32> to vector<63xf32>
    %343 = vector.shape_cast %342 : vector<63xf32> to vector<63x1xf32>
    %344 = tpu.reciprocal %343 {approx = true} : vector<63x1xf32> -> vector<63x1xf32>
    %345 = vector.broadcast %344 : vector<63x1xf32> to vector<63x63xf32>
    %346 = arith.mulf %341, %345 : vector<63x63xf32>
    %347 = vector.extract_strided_slice %333 {offsets = [0, 0], sizes = [63, 16], strides = [1, 1]} : vector<63x64xf32> to vector<63x16xf32>
    %cst_108 = arith.constant dense<0.000000e+00> : vector<63x16xf32>
    %348 = tpu.matmul %346, %347, %cst_108 {dimension_numbers = #tpu.dot_dimension_numbers<[1], [0], [0], [1], [0, 0, 1, 1], [], []>} : vector<63x63xf32>, vector<63x16xf32>, vector<63x16xf32> -> vector<63x16xf32>
    %349 = vector.extract_strided_slice %331 {offsets = [0, 16], sizes = [63, 16], strides = [1, 1]} : vector<63x64xf32> to vector<63x16xf32>
    %350 = vector.extract_strided_slice %332 {offsets = [0, 16], sizes = [63, 16], strides = [1, 1]} : vector<63x64xf32> to vector<63x16xf32>
    %cst_109 = arith.constant dense<0.000000e+00> : vector<63x63xf32>
    %351 = tpu.matmul %349, %350, %cst_109 {dimension_numbers = #tpu.dot_dimension_numbers<[1], [1], [0], [0], [0, 0, 1, 0], [], []>} : vector<63x16xf32>, vector<63x16xf32>, vector<63x63xf32> -> vector<63x63xf32>
    %cst_110 = arith.constant dense<0xFF800000> : vector<63xf32>
    %352 = vector.multi_reduction <maximumf>, %351, %cst_110 [1] : vector<63x63xf32> to vector<63xf32>
    %353 = vector.shape_cast %352 : vector<63xf32> to vector<63x1xf32>
    %354 = vector.broadcast %353 : vector<63x1xf32> to vector<63x63xf32>
    %355 = arith.subf %351, %354 : vector<63x63xf32>
    %356 = math.exp %355 : vector<63x63xf32>
    %cst_111 = arith.constant dense<0.000000e+00> : vector<63xf32>
    %357 = vector.multi_reduction <add>, %356, %cst_111 [1] : vector<63x63xf32> to vector<63xf32>
    %358 = vector.shape_cast %357 : vector<63xf32> to vector<63x1xf32>
    %359 = tpu.reciprocal %358 {approx = true} : vector<63x1xf32> -> vector<63x1xf32>
    %360 = vector.broadcast %359 : vector<63x1xf32> to vector<63x63xf32>
    %361 = arith.mulf %356, %360 : vector<63x63xf32>
    %362 = vector.extract_strided_slice %333 {offsets = [0, 16], sizes = [63, 16], strides = [1, 1]} : vector<63x64xf32> to vector<63x16xf32>
    %cst_112 = arith.constant dense<0.000000e+00> : vector<63x16xf32>
    %363 = tpu.matmul %361, %362, %cst_112 {dimension_numbers = #tpu.dot_dimension_numbers<[1], [0], [0], [1], [0, 0, 1, 1], [], []>} : vector<63x63xf32>, vector<63x16xf32>, vector<63x16xf32> -> vector<63x16xf32>
    %364 = vector.extract_strided_slice %331 {offsets = [0, 32], sizes = [63, 16], strides = [1, 1]} : vector<63x64xf32> to vector<63x16xf32>
    %365 = vector.extract_strided_slice %332 {offsets = [0, 32], sizes = [63, 16], strides = [1, 1]} : vector<63x64xf32> to vector<63x16xf32>
    %cst_113 = arith.constant dense<0.000000e+00> : vector<63x63xf32>
    %366 = tpu.matmul %364, %365, %cst_113 {dimension_numbers = #tpu.dot_dimension_numbers<[1], [1], [0], [0], [0, 0, 1, 0], [], []>} : vector<63x16xf32>, vector<63x16xf32>, vector<63x63xf32> -> vector<63x63xf32>
    %cst_114 = arith.constant dense<0xFF800000> : vector<63xf32>
    %367 = vector.multi_reduction <maximumf>, %366, %cst_114 [1] : vector<63x63xf32> to vector<63xf32>
    %368 = vector.shape_cast %367 : vector<63xf32> to vector<63x1xf32>
    %369 = vector.broadcast %368 : vector<63x1xf32> to vector<63x63xf32>
    %370 = arith.subf %366, %369 : vector<63x63xf32>
    %371 = math.exp %370 : vector<63x63xf32>
    %cst_115 = arith.constant dense<0.000000e+00> : vector<63xf32>
    %372 = vector.multi_reduction <add>, %371, %cst_115 [1] : vector<63x63xf32> to vector<63xf32>
    %373 = vector.shape_cast %372 : vector<63xf32> to vector<63x1xf32>
    %374 = tpu.reciprocal %373 {approx = true} : vector<63x1xf32> -> vector<63x1xf32>
    %375 = vector.broadcast %374 : vector<63x1xf32> to vector<63x63xf32>
    %376 = arith.mulf %371, %375 : vector<63x63xf32>
    %377 = vector.extract_strided_slice %333 {offsets = [0, 32], sizes = [63, 16], strides = [1, 1]} : vector<63x64xf32> to vector<63x16xf32>
    %cst_116 = arith.constant dense<0.000000e+00> : vector<63x16xf32>
    %378 = tpu.matmul %376, %377, %cst_116 {dimension_numbers = #tpu.dot_dimension_numbers<[1], [0], [0], [1], [0, 0, 1, 1], [], []>} : vector<63x63xf32>, vector<63x16xf32>, vector<63x16xf32> -> vector<63x16xf32>
    %379 = vector.extract_strided_slice %331 {offsets = [0, 48], sizes = [63, 16], strides = [1, 1]} : vector<63x64xf32> to vector<63x16xf32>
    %380 = vector.extract_strided_slice %332 {offsets = [0, 48], sizes = [63, 16], strides = [1, 1]} : vector<63x64xf32> to vector<63x16xf32>
    %cst_117 = arith.constant dense<0.000000e+00> : vector<63x63xf32>
    %381 = tpu.matmul %379, %380, %cst_117 {dimension_numbers = #tpu.dot_dimension_numbers<[1], [1], [0], [0], [0, 0, 1, 0], [], []>} : vector<63x16xf32>, vector<63x16xf32>, vector<63x63xf32> -> vector<63x63xf32>
    %cst_118 = arith.constant dense<0xFF800000> : vector<63xf32>
    %382 = vector.multi_reduction <maximumf>, %381, %cst_118 [1] : vector<63x63xf32> to vector<63xf32>
    %383 = vector.shape_cast %382 : vector<63xf32> to vector<63x1xf32>
    %384 = vector.broadcast %383 : vector<63x1xf32> to vector<63x63xf32>
    %385 = arith.subf %381, %384 : vector<63x63xf32>
    %386 = math.exp %385 : vector<63x63xf32>
    %cst_119 = arith.constant dense<0.000000e+00> : vector<63xf32>
    %387 = vector.multi_reduction <add>, %386, %cst_119 [1] : vector<63x63xf32> to vector<63xf32>
    %388 = vector.shape_cast %387 : vector<63xf32> to vector<63x1xf32>
    %389 = tpu.reciprocal %388 {approx = true} : vector<63x1xf32> -> vector<63x1xf32>
    %390 = vector.broadcast %389 : vector<63x1xf32> to vector<63x63xf32>
    %391 = arith.mulf %386, %390 : vector<63x63xf32>
    %392 = vector.extract_strided_slice %333 {offsets = [0, 48], sizes = [63, 16], strides = [1, 1]} : vector<63x64xf32> to vector<63x16xf32>
    %cst_120 = arith.constant dense<0.000000e+00> : vector<63x16xf32>
    %393 = tpu.matmul %391, %392, %cst_120 {dimension_numbers = #tpu.dot_dimension_numbers<[1], [0], [0], [1], [0, 0, 1, 1], [], []>} : vector<63x63xf32>, vector<63x16xf32>, vector<63x16xf32> -> vector<63x16xf32>
    %394 = tpu.concatenate %348, %363, %378, %393 in 1 : vector<63x16xf32>, vector<63x16xf32>, vector<63x16xf32>, vector<63x16xf32> -> vector<63x64xf32>
    %cst_121 = arith.constant dense<0.000000e+00> : vector<63x64xf32>
    %395 = tpu.matmul %394, %314, %cst_121 {dimension_numbers = #tpu.dot_dimension_numbers<[1], [0], [0], [1], [0, 0, 1, 1], [], []>} : vector<63x64xf32>, vector<64x64xf32>, vector<63x64xf32> -> vector<63x64xf32>
    %396 = vector.broadcast %319 : vector<1x64xf32> to vector<63x64xf32>
    %397 = arith.addf %395, %396 : vector<63x64xf32>
    %398 = arith.addf %308, %397 : vector<63x64xf32>
    %cst_122 = arith.constant dense<0.000000e+00> : vector<63xf32>
    %399 = vector.multi_reduction <add>, %398, %cst_122 [1] : vector<63x64xf32> to vector<63xf32>
    %400 = vector.shape_cast %399 : vector<63xf32> to vector<63x1xf32>
    %cst_123 = arith.constant 6.400000e+01 : f32
    %401 = vector.broadcast %cst_123 : f32 to vector<63x1xf32>
    %402 = arith.divf %400, %401 : vector<63x1xf32>
    %403 = vector.broadcast %402 : vector<63x1xf32> to vector<63x64xf32>
    %404 = arith.subf %398, %403 : vector<63x64xf32>
    %405 = arith.mulf %404, %404 : vector<63x64xf32>
    %cst_124 = arith.constant dense<0.000000e+00> : vector<63xf32>
    %406 = vector.multi_reduction <add>, %405, %cst_124 [1] : vector<63x64xf32> to vector<63xf32>
    %407 = vector.shape_cast %406 : vector<63xf32> to vector<63x1xf32>
    %cst_125 = arith.constant 6.400000e+01 : f32
    %408 = vector.broadcast %cst_125 : f32 to vector<63x1xf32>
    %409 = arith.divf %407, %408 : vector<63x1xf32>
    %410 = vector.broadcast %402 : vector<63x1xf32> to vector<63x64xf32>
    %411 = arith.subf %398, %410 : vector<63x64xf32>
    %cst_126 = arith.constant 9.99999974E-6 : f32
    %412 = vector.broadcast %cst_126 : f32 to vector<63x1xf32>
    %413 = arith.addf %409, %412 : vector<63x1xf32>
    %414 = math.rsqrt %413 : vector<63x1xf32>
    %415 = vector.broadcast %414 : vector<63x1xf32> to vector<63x64xf32>
    %416 = arith.mulf %411, %415 : vector<63x64xf32>
    %417 = vector.broadcast %320 : vector<1x64xf32> to vector<63x64xf32>
    %418 = arith.mulf %416, %417 : vector<63x64xf32>
    %419 = vector.broadcast %321 : vector<1x64xf32> to vector<63x64xf32>
    %420 = arith.addf %418, %419 : vector<63x64xf32>
    %cst_127 = arith.constant dense<0.000000e+00> : vector<63x128xf32>
    %421 = tpu.matmul %420, %315, %cst_127 {dimension_numbers = #tpu.dot_dimension_numbers<[1], [0], [0], [1], [0, 0, 1, 1], [], []>} : vector<63x64xf32>, vector<64x128xf32>, vector<63x128xf32> -> vector<63x128xf32>
    %422 = vector.broadcast %322 : vector<1x128xf32> to vector<63x128xf32>
    %423 = arith.addf %421, %422 : vector<63x128xf32>
    %424 = arith.mulf %423, %423 : vector<63x128xf32>
    %425 = arith.mulf %423, %424 : vector<63x128xf32>
    %cst_128 = arith.constant 4.471500e-02 : f32
    %426 = vector.broadcast %cst_128 : f32 to vector<63x128xf32>
    %427 = arith.mulf %426, %425 : vector<63x128xf32>
    %428 = arith.addf %423, %427 : vector<63x128xf32>
    %cst_129 = arith.constant 0.797884583 : f32
    %429 = vector.broadcast %cst_129 : f32 to vector<63x128xf32>
    %430 = arith.mulf %429, %428 : vector<63x128xf32>
    %431 = math.tanh %430 : vector<63x128xf32>
    %cst_130 = arith.constant 1.000000e+00 : f32
    %432 = vector.broadcast %cst_130 : f32 to vector<63x128xf32>
    %433 = arith.addf %432, %431 : vector<63x128xf32>
    %cst_131 = arith.constant 5.000000e-01 : f32
    %434 = vector.broadcast %cst_131 : f32 to vector<63x128xf32>
    %435 = arith.mulf %434, %433 : vector<63x128xf32>
    %436 = arith.mulf %423, %435 : vector<63x128xf32>
    %cst_132 = arith.constant dense<0.000000e+00> : vector<63x64xf32>
    %437 = tpu.matmul %436, %317, %cst_132 {dimension_numbers = #tpu.dot_dimension_numbers<[1], [0], [0], [1], [0, 0, 1, 1], [], []>} : vector<63x128xf32>, vector<128x64xf32>, vector<63x64xf32> -> vector<63x64xf32>
    %438 = vector.broadcast %323 : vector<1x64xf32> to vector<63x64xf32>
    %439 = arith.addf %437, %438 : vector<63x64xf32>
    %440 = arith.addf %420, %439 : vector<63x64xf32>
    %cst_133 = arith.constant dense<0.000000e+00> : vector<63xf32>
    %441 = vector.multi_reduction <add>, %440, %cst_133 [1] : vector<63x64xf32> to vector<63xf32>
    %442 = vector.shape_cast %441 : vector<63xf32> to vector<63x1xf32>
    %cst_134 = arith.constant 6.400000e+01 : f32
    %443 = vector.broadcast %cst_134 : f32 to vector<63x1xf32>
    %444 = arith.divf %442, %443 : vector<63x1xf32>
    %445 = vector.broadcast %444 : vector<63x1xf32> to vector<63x64xf32>
    %446 = arith.subf %440, %445 : vector<63x64xf32>
    %447 = arith.mulf %446, %446 : vector<63x64xf32>
    %cst_135 = arith.constant dense<0.000000e+00> : vector<63xf32>
    %448 = vector.multi_reduction <add>, %447, %cst_135 [1] : vector<63x64xf32> to vector<63xf32>
    %449 = vector.shape_cast %448 : vector<63xf32> to vector<63x1xf32>
    %cst_136 = arith.constant 6.400000e+01 : f32
    %450 = vector.broadcast %cst_136 : f32 to vector<63x1xf32>
    %451 = arith.divf %449, %450 : vector<63x1xf32>
    %452 = vector.broadcast %444 : vector<63x1xf32> to vector<63x64xf32>
    %453 = arith.subf %440, %452 : vector<63x64xf32>
    %cst_137 = arith.constant 9.99999974E-6 : f32
    %454 = vector.broadcast %cst_137 : f32 to vector<63x1xf32>
    %455 = arith.addf %451, %454 : vector<63x1xf32>
    %456 = math.rsqrt %455 : vector<63x1xf32>
    %457 = vector.broadcast %456 : vector<63x1xf32> to vector<63x64xf32>
    %458 = arith.mulf %453, %457 : vector<63x64xf32>
    %459 = vector.broadcast %324 : vector<1x64xf32> to vector<63x64xf32>
    %460 = arith.mulf %458, %459 : vector<63x64xf32>
    %461 = vector.broadcast %325 : vector<1x64xf32> to vector<63x64xf32>
    %462 = arith.addf %460, %461 : vector<63x64xf32>
    %cst_138 = arith.constant dense<0.000000e+00> : vector<64xf32>
    %463 = vector.multi_reduction <add>, %462, %cst_138 [0] : vector<63x64xf32> to vector<64xf32>
    %464 = vector.shape_cast %463 : vector<64xf32> to vector<1x64xf32>
    %cst_139 = arith.constant 6.300000e+01 : f32
    %465 = vector.broadcast %cst_139 : f32 to vector<1x64xf32>
    %466 = arith.divf %464, %465 : vector<1x64xf32>
    %c0_140 = arith.constant 0 : index
    %c0_141 = arith.constant 0 : index
    %c0_142 = arith.constant 0 : index
    %467 = vector.load %arg8[%c0_140, %c0_141, %c0_142] : memref<1x1x64xf32, #tpu.memory_space<vmem>>, vector<1x1x64xf32>
    %468 = vector.shape_cast %467 : vector<1x1x64xf32> to vector<1x64xf32>
    %469 = vector.shape_cast %466 : vector<1x64xf32> to vector<1x1x64xf32>
    tpu.vector_store %arg8[%c0_140, %c0_141, %c0_142], %469 {strides = array<i32>} : memref<1x1x64xf32, #tpu.memory_space<vmem>>, vector<1x1x64xf32>,
    return
  }
  func.func @transform_0(%arg0: i32) -> (i32, i32, i32) {
    %c0_i32 = arith.constant 0 : i32
    %c0_i32_0 = arith.constant 0 : i32
    %c0_i32_1 = arith.constant 0 : i32
    return %arg0, %c0_i32, %c0_i32_0 : i32, i32, i32
  }
  func.func @transform_1(%arg0: i32) -> (i32, i32) {
    %c0_i32 = arith.constant 0 : i32
    %c0_i32_0 = arith.constant 0 : i32
    %c0_i32_1 = arith.constant 0 : i32
    return %c0_i32, %c0_i32_0 : i32, i32
  }
  func.func @transform_2(%arg0: i32) -> (i32, i32) {
    %c0_i32 = arith.constant 0 : i32
    %c0_i32_0 = arith.constant 0 : i32
    %c0_i32_1 = arith.constant 0 : i32
    return %c0_i32, %c0_i32_0 : i32, i32
  }
  func.func @transform_3(%arg0: i32) -> (i32, i32) {
    %c0_i32 = arith.constant 0 : i32
    %c0_i32_0 = arith.constant 0 : i32
    %c0_i32_1 = arith.constant 0 : i32
    return %c0_i32, %c0_i32_0 : i32, i32
  }
  func.func @transform_4(%arg0: i32) -> (i32, i32, i32) {
    %c0_i32 = arith.constant 0 : i32
    %c0_i32_0 = arith.constant 0 : i32
    %c0_i32_1 = arith.constant 0 : i32
    %c0_i32_2 = arith.constant 0 : i32
    return %c0_i32, %c0_i32_0, %c0_i32_1 : i32, i32, i32
  }
  func.func @transform_5(%arg0: i32) -> (i32, i32, i32) {
    %c0_i32 = arith.constant 0 : i32
    %c0_i32_0 = arith.constant 0 : i32
    %c0_i32_1 = arith.constant 0 : i32
    %c0_i32_2 = arith.constant 0 : i32
    return %c0_i32, %c0_i32_0, %c0_i32_1 : i32, i32, i32
  }
  func.func @transform_6(%arg0: i32) -> (i32, i32, i32) {
    %c0_i32 = arith.constant 0 : i32
    %c0_i32_0 = arith.constant 0 : i32
    %c0_i32_1 = arith.constant 0 : i32
    %c0_i32_2 = arith.constant 0 : i32
    return %c0_i32, %c0_i32_0, %c0_i32_1 : i32, i32, i32
  }
  func.func @transform_7(%arg0: i32) -> (i32, i32, i32) {
    %c0_i32 = arith.constant 0 : i32
    %c0_i32_0 = arith.constant 0 : i32
    %c0_i32_1 = arith.constant 0 : i32
    return %arg0, %c0_i32, %c0_i32_0 : i32, i32, i32
  }
}

</mosaic_0001>

<llo_original>
// kernel: audio_encoder_forward.1
$region0: #{audio_encoder_forward.1}
  #allocation0 [shape = 'u32[]', space=smem, size = 0x4, offset = 0x4, fixed_abs, tag = 'smem constant byte address 0x4 - core index']
  #allocation1 [shape = 'u32[144,128]{1,0:T(1,128)}', space=vmem, size = 0x12000, scoped, tag = 'internal scratch']
  %s0 = inlined_call_operand.vmem [shape: f32[2,64,10], index: 0, kind: input, shape index: {}]
  %s1 = inlined_call_operand.vmem [shape: f32[106,32], index: 1, kind: input, shape index: {}]
  %s2 = inlined_call_operand.vmem [shape: f32[32,64], index: 2, kind: input, shape index: {}]
  %s3 = inlined_call_operand.vmem [shape: f32[8,64], index: 3, kind: input, shape index: {}]
  %s4 = inlined_call_operand.vmem [shape: f32[2,64,384], index: 4, kind: input, shape index: {}]
  %s5 = inlined_call_operand.vmem [shape: f32[2,128,64], index: 5, kind: input, shape index: {}]
  %s6 = inlined_call_operand.vmem [shape: f32[2,8,192], index: 6, kind: input, shape index: {}]
  %s7 = inlined_call_operand.hbm [shape: f32[2,1,64], index: 7, kind: output, shape index: {}]
  %s8 = sld [smem:[#allocation0]]
  $region61: #{audio_encoder_forward.1} parent=0
    _
  %s10 = ssub.s32 1, %s8
  %s11 = scalar_select 0, %s10, %s8
  $region1: #{audio_encoder_forward.1} parent=0
    #allocation2 [shape = 'u8[1024]{0}', space=vmem, size = 0x400, scoped, tag = 'output window, operand 0']
    #allocation3 [shape = 's32[2]{0}', space=sflag, size = 0x8, scoped, tag = 'scoped memory for audio_encoder_forward.1']
    %12 = vsyncpa [#allocation3], 0
    %s13 = scalar_lea.sflag [#allocation3], 1
    %14 = vsyncpa %s13, 0
    loop: start=0, step=1, limit=4
    $region2: #{audio_encoder_forward.1} parent=1 // loop_pre_header
      _
    $region3: #{audio_encoder_forward.1} parent=1 // loop_header
      %s16 = sphi 0, %s20
      %p17 = scmp.ge.s32.totalorder %s16, 4
      %s26 = sphi 0, %s28
      %s29 = sphi 0, %s26
      %s30 = sphi 0, %s29
      %s46 = sphi 0, %s30
      %s50 = sphi 0, %s50
      %s52 = sphi 0, %s50
      %s53 = sphi 0, %s52
      %s67 = sphi 0, %s53
      %s71 = sphi 0, %s71
      %s73 = sphi 0, %s71
      %s74 = sphi 0, %s73
      %s88 = sphi 0, %s74
      %s92 = sphi 0, %s92
      %s94 = sphi 0, %s92
      %s95 = sphi 0, %s94
      %s109 = sphi 0, %s95
      %s113 = sphi 0, %s113
      %s115 = sphi 0, %s113
      %s116 = sphi 0, %s115
      %s130 = sphi 0, %s116
      %s134 = sphi 0, %s134
      %s136 = sphi 0, %s134
      %s137 = sphi 0, %s136
      %s151 = sphi 0, %s137
      %s155 = sphi 0, %s155
      %s157 = sphi 0, %s155
      %s158 = sphi 0, %s157
      %s172 = sphi 0, %s158
      %s178 = sphi 0, %s180
      %s181 = sphi 0, %s178
      %s182 = sphi 0, %s181
      %s198 = sphi 0, %s182
    $region4: #{audio_encoder_forward.1} parent=1 // loop_header_branch
      %19 = sbr.rel (%p17) target = $region8
    $region5: #{audio_encoder_forward.1} parent=1 // loop_body
      %s21 = ssub.s32 %s16, 1
      %s22 = ssub.s32 %s16, 2
      %s23 = sadd.s32 %s16, 1
      %s24 = ssub.s32 %s16, %s23
      %p25 = scmp.eq.s32.totalorder %s24, 0
      %s27 = sadd.s32 %s26, 1
      %s28 = scalar_select %p25, %s26, %s27
      %p31 = pneg %p25
      %p32 = scmp.eq.s32.totalorder %s16, 1
      %p33 = por %p31, %p32
      %p34 = scmp.ne.s32.totalorder %s26, %s29
      %p35 = scmp.eq.s32.totalorder %s16, 0
      %p36 = por %p34, %p35
      %p37 = scmp.ne.s32.totalorder %s26, %s29
      %p38 = scmp.eq.s32.totalorder %s21, 1
      %p39 = por %p37, %p38
      %p40 = scmp.ne.s32.totalorder %s29, %s30
      %p41 = scmp.eq.s32.totalorder %s21, 0
      %p42 = por %p40, %p41
      %p43 = scmp.ne.s32.totalorder %s29, %s30
      %p44 = scmp.eq.s32.totalorder %s22, 1
      %p45 = por %p43, %p44
      %p47 = scmp.ne.s32.totalorder %s30, %s46
      %p48 = scmp.eq.s32.totalorder %s22, 0
      %p49 = por %p47, %p48
      %s51 = sadd.s32 %s50, 1
      %p54 = scmp.eq.s32.totalorder %s16, 1
      %p55 = scmp.ne.s32.totalorder %s50, %s52
      %p56 = scmp.eq.s32.totalorder %s16, 0
      %p57 = por %p55, %p56
      %p58 = scmp.ne.s32.totalorder %s50, %s52
      %p59 = scmp.eq.s32.totalorder %s21, 1
      %p60 = por %p58, %p59
      %p61 = scmp.ne.s32.totalorder %s52, %s53
      %p62 = scmp.eq.s32.totalorder %s21, 0
      %p63 = por %p61, %p62
      %p64 = scmp.ne.s32.totalorder %s52, %s53
      %p65 = scmp.eq.s32.totalorder %s22, 1
      %p66 = por %p64, %p65
      %p68 = scmp.ne.s32.totalorder %s53, %s67
      %p69 = scmp.eq.s32.totalorder %s22, 0
      %p70 = por %p68, %p69
      %s72 = sadd.s32 %s71, 1
      %p75 = scmp.eq.s32.totalorder %s16, 1
      %p76 = scmp.ne.s32.totalorder %s71, %s73
      %p77 = scmp.eq.s32.totalorder %s16, 0
      %p78 = por %p76, %p77
      %p79 = scmp.ne.s32.totalorder %s71, %s73
      %p80 = scmp.eq.s32.totalorder %s21, 1
      %p81 = por %p79, %p80
      %p82 = scmp.ne.s32.totalorder %s73, %s74
      %p83 = scmp.eq.s32.totalorder %s21, 0
      %p84 = por %p82, %p83
      %p85 = scmp.ne.s32.totalorder %s73, %s74
      %p86 = scmp.eq.s32.totalorder %s22, 1
      %p87 = por %p85, %p86
      %p89 = scmp.ne.s32.totalorder %s74, %s88
      %p90 = scmp.eq.s32.totalorder %s22, 0
      %p91 = por %p89, %p90
      %s93 = sadd.s32 %s92, 1
      %p96 = scmp.eq.s32.totalorder %s16, 1
      %p97 = scmp.ne.s32.totalorder %s92, %s94
      %p98 = scmp.eq.s32.totalorder %s16, 0
      %p99 = por %p97, %p98
      %p100 = scmp.ne.s32.totalorder %s92, %s94
      %p101 = scmp.eq.s32.totalorder %s21, 1
      %p102 = por %p100, %p101
      %p103 = scmp.ne.s32.totalorder %s94, %s95
      %p104 = scmp.eq.s32.totalorder %s21, 0
      %p105 = por %p103, %p104
      %p106 = scmp.ne.s32.totalorder %s94, %s95
      %p107 = scmp.eq.s32.totalorder %s22, 1
      %p108 = por %p106, %p107
      %p110 = scmp.ne.s32.totalorder %s95, %s109
      %p111 = scmp.eq.s32.totalorder %s22, 0
      %p112 = por %p110, %p111
      %s114 = sadd.s32 %s113, 1
      %p117 = scmp.eq.s32.totalorder %s16, 1
      %p118 = scmp.ne.s32.totalorder %s113, %s115
      %p119 = scmp.eq.s32.totalorder %s16, 0
      %p120 = por %p118, %p119
      %p121 = scmp.ne.s32.totalorder %s113, %s115
      %p122 = scmp.eq.s32.totalorder %s21, 1
      %p123 = por %p121, %p122
      %p124 = scmp.ne.s32.totalorder %s115, %s116
      %p125 = scmp.eq.s32.totalorder %s21, 0
      %p126 = por %p124, %p125
      %p127 = scmp.ne.s32.totalorder %s115, %s116
      %p128 = scmp.eq.s32.totalorder %s22, 1
      %p129 = por %p127, %p128
      %p131 = scmp.ne.s32.totalorder %s116, %s130
      %p132 = scmp.eq.s32.totalorder %s22, 0
      %p133 = por %p131, %p132
      %s135 = sadd.s32 %s134, 1
      %p138 = scmp.eq.s32.totalorder %s16, 1
      %p139 = scmp.ne.s32.totalorder %s134, %s136
      %p140 = scmp.eq.s32.totalorder %s16, 0
      %p141 = por %p139, %p140
      %p142 = scmp.ne.s32.totalorder %s134, %s136
      %p143 = scmp.eq.s32.totalorder %s21, 1
      %p144 = por %p142, %p143
      %p145 = scmp.ne.s32.totalorder %s136, %s137
      %p146 = scmp.eq.s32.totalorder %s21, 0
      %p147 = por %p145, %p146
      %p148 = scmp.ne.s32.totalorder %s136, %s137
      %p149 = scmp.eq.s32.totalorder %s22, 1
      %p150 = por %p148, %p149
      %p152 = scmp.ne.s32.totalorder %s137, %s151
      %p153 = scmp.eq.s32.totalorder %s22, 0
      %p154 = por %p152, %p153
      %s156 = sadd.s32 %s155, 1
      %p159 = scmp.eq.s32.totalorder %s16, 1
      %p160 = scmp.ne.s32.totalorder %s155, %s157
      %p161 = scmp.eq.s32.totalorder %s16, 0
      %p162 = por %p160, %p161
      %p163 = scmp.ne.s32.totalorder %s155, %s157
      %p164 = scmp.eq.s32.totalorder %s21, 1
      %p165 = por %p163, %p164
      %p166 = scmp.ne.s32.totalorder %s157, %s158
      %p167 = scmp.eq.s32.totalorder %s21, 0
      %p168 = por %p166, %p167
      %p169 = scmp.ne.s32.totalorder %s157, %s158
      %p170 = scmp.eq.s32.totalorder %s22, 1
      %p171 = por %p169, %p170
      %p173 = scmp.ne.s32.totalorder %s158, %s172
      %p174 = scmp.eq.s32.totalorder %s22, 0
      %p175 = por %p173, %p174
      %s176 = ssub.s32 %s16, %s23
      %p177 = scmp.eq.s32.totalorder %s176, 0
      %s179 = sadd.s32 %s178, 1
      %s180 = scalar_select %p177, %s178, %s179
      %p183 = pneg %p177
      %p184 = scmp.eq.s32.totalorder %s16, 1
      %p185 = por %p183, %p184
      %p186 = scmp.ne.s32.totalorder %s178, %s181
      %p187 = scmp.eq.s32.totalorder %s16, 0
      %p188 = por %p186, %p187
      %p189 = scmp.ne.s32.totalorder %s178, %s181
      %p190 = scmp.eq.s32.totalorder %s21, 1
      %p191 = por %p189, %p190
      %p192 = scmp.ne.s32.totalorder %s181, %s182
      %p193 = scmp.eq.s32.totalorder %s21, 0
      %p194 = por %p192, %p193
      %p195 = scmp.ne.s32.totalorder %s181, %s182
      %p196 = scmp.eq.s32.totalorder %s22, 1
      %p197 = por %p195, %p196
      %p199 = scmp.ne.s32.totalorder %s182, %s198
      %p200 = scmp.eq.s32.totalorder %s22, 0
      %p201 = por %p199, %p200
      %p202 = scmp.le.s32.totalorder 1, %s16
      %p203 = scmp.lt.s32.totalorder %s16, 3
      %p204 = pnand %p202, %p203
      %p205 = pneg %p204
      // Predicated region
      $region9: #{audio_encoder_forward.1} parent=5 // pred_check
        _
      $region10: #{audio_encoder_forward.1} parent=5 // pred_check_branch
        %207 = sbr.rel (%p204) target = $region12
      $region11: #{audio_encoder_forward.1} parent=5 // pred_region
        %s208 = ssub.s32 %s16, 1
        // Predicated region
        $region13: #{audio_encoder_forward.1} parent=11 // pred_check
          %p209 = pneg %p63
        $region14: #{audio_encoder_forward.1} parent=11 // pred_check_branch
          %211 = sbr.rel (%p209) target = $region16
        $region15: #{audio_encoder_forward.1} parent=11 // pred_region
          _
        $region16: #{audio_encoder_forward.1} parent=11 // pred_fallthru
          _
        // Predicated region
        $region17: #{audio_encoder_forward.1} parent=11 // pred_check
          %p212 = pneg %p84
        $region18: #{audio_encoder_forward.1} parent=11 // pred_check_branch
          %214 = sbr.rel (%p212) target = $region20
        $region19: #{audio_encoder_forward.1} parent=11 // pred_region
          _
        $region20: #{audio_encoder_forward.1} parent=11 // pred_fallthru
          _
        // Predicated region
        $region21: #{audio_encoder_forward.1} parent=11 // pred_check
          %p215 = pneg %p105
        $region22: #{audio_encoder_forward.1} parent=11 // pred_check_branch
          %217 = sbr.rel (%p215) target = $region24
        $region23: #{audio_encoder_forward.1} parent=11 // pred_region
          _
        $region24: #{audio_encoder_forward.1} parent=11 // pred_fallthru
          _
        // Predicated region
        $region25: #{audio_encoder_forward.1} parent=11 // pred_check
          %p218 = pneg %p126
        $region26: #{audio_encoder_forward.1} parent=11 // pred_check_branch
          %220 = sbr.rel (%p218) target = $region28
        $region27: #{audio_encoder_forward.1} parent=11 // pred_region
          _
        $region28: #{audio_encoder_forward.1} parent=11 // pred_fallthru
          _
        // Predicated region
        $region29: #{audio_encoder_forward.1} parent=11 // pred_check
          %p221 = pneg %p147
        $region30: #{audio_encoder_forward.1} parent=11 // pred_check_branch
          %223 = sbr.rel (%p221) target = $region32
        $region31: #{audio_encoder_forward.1} parent=11 // pred_region
          _
        $region32: #{audio_encoder_forward.1} parent=11 // pred_fallthru
          _
        // Predicated region
        $region33: #{audio_encoder_forward.1} parent=11 // pred_check
          %p224 = pneg %p168
        $region34: #{audio_encoder_forward.1} parent=11 // pred_check_branch
          %226 = sbr.rel (%p224) target = $region36
        $region35: #{audio_encoder_forward.1} parent=11 // pred_region
          _
        $region36: #{audio_encoder_forward.1} parent=11 // pred_fallthru
          _
      $region12: #{audio_encoder_forward.1} parent=5 // pred_fallthru
        _
      %p227 = scmp.lt.s32.totalorder %s16, 2
      // Predicated region
      $region37: #{audio_encoder_forward.1} parent=5 // pred_check
        %p228 = pneg %p227
      $region38: #{audio_encoder_forward.1} parent=5 // pred_check_branch
        %230 = sbr.rel (%p228) target = $region40
      $region39: #{audio_encoder_forward.1} parent=5 // pred_region
        // Predicated region
        $region41: #{audio_encoder_forward.1} parent=39 // pred_check
          %p231 = pneg %p36
        $region42: #{audio_encoder_forward.1} parent=39 // pred_check_branch
          %233 = sbr.rel (%p231) target = $region44
        $region43: #{audio_encoder_forward.1} parent=39 // pred_region
          %p234 = scmp.lt.s32.totalorder %s16, 1
          %s235 = scalar_select %p234, %s16, 1
          %s236 = smul.addr %s235, 8
          %s237 = smul.addr %s236, 8
          %s238 = scalar_lea.vmem %s0, %s237
        $region44: #{audio_encoder_forward.1} parent=39 // pred_fallthru
          _
      $region40: #{audio_encoder_forward.1} parent=5 // pred_fallthru
        _
      %p239 = scmp.le.s32.totalorder 1, %s16
      %p240 = scmp.lt.s32.totalorder %s16, 3
      %p241 = pnand %p239, %p240
      %p242 = pneg %p241
      // Predicated region
      $region45: #{audio_encoder_forward.1} parent=5 // pred_check
        _
      $region46: #{audio_encoder_forward.1} parent=5 // pred_check_branch
        %244 = sbr.rel (%p241) target = $region48
      $region47: #{audio_encoder_forward.1} parent=5 // pred_region
        %s245 = ssub.s32 %s16, 1
        %p246 = scmp.lt.s32.totalorder %s21, 1
        %s247 = scalar_select %p246, %s21, 1
        %s248 = smul.addr %s247, 8
        %s249 = smul.addr %s248, 8
        %s250 = scalar_lea.vmem %s0, %s249
        %p251 = pneg %p42
        %p252 = pneg %p39
        %p253 = pneg %p63
        %p254 = pneg %p60
        %p255 = pneg %p84
        %p256 = pneg %p81
        %p257 = pneg %p105
        %p258 = pneg %p102
        %p259 = pneg %p126
        %p260 = pneg %p123
        %p261 = pneg %p147
        %p262 = pneg %p144
        %p263 = pneg %p168
        %p264 = pneg %p165
        %p265 = pneg %p194
        %p266 = pneg %p191
        %s267 = sand.u32 %s181, 1
        %s268 = scalar_lea.sflag [#allocation3], %s267
        %s269 = sand.u32 %s181, 1
        %s270 = scalar_lea.vmem [#allocation2], %s269
        %p271 = scmp.lt.s32.totalorder %s21, 1
        %s272 = scalar_select %p271, %s21, 1
        %s273 = smul.addr %s272, 8
        %s274 = smul.addr %s273, 8
        %s275 = scalar_lea.vmem %s0, %s274
        %v276 = vld [vmem:[%s275] sm:$0xff]
        %v277 = vld [vmem:[%s275 + $0x8] sm:$0xff]
        %v278 = vld [vmem:[%s275 + $0x10] sm:$0xff]
        %v279 = vld [vmem:[%s275 + $0x18] sm:$0xff]
        %v280 = vld [vmem:[%s275 + $0x20] sm:$0xff]
        %v281 = vld [vmem:[%s275 + $0x28] sm:$0xff]
        %v282 = vld [vmem:[%s275 + $0x30] sm:$0xff]
        %v283 = vld [vmem:[%s275 + $0x38] sm:$0xff]
        %v284 = vld [vmem:[%s1] sm:$0xff]
        %v285 = vld [vmem:[%s1 + $0x8] sm:$0x3]
        %vm286 = vcmask 80896
        %v288 = vsel %vm286, %v276, 0
        %v291 = vsel %vm286, %v277, 0
        %v294 = vsel %vm286, %v278, 0
        %v297 = vsel %vm286, %v279, 0
        %v300 = vsel %vm286, %v280, 0
        %v303 = vsel %vm286, %v281, 0
        %v306 = vsel %vm286, %v282, 0
        %v309 = vsel %vm286, %v283, 0
        %vm311 = vcmask 1041408
        %v313 = vsel %vm311, %v285, 0
        %315 = vmatprep.subr.mxu0 0.0
        %316 = vmatpush1.msra.mxu0 %v284
        %317 = vmatprep.subr.mxu0 0.0
        %318 = vmatpush1.msra.mxu0 %v313
        %319 = vmatprep.subr.mxu0 0.0
        %320 = vmatpush1.msra.mxu0 0.0
        %321 = vmatprep.subr.mxu0 0.0
        %322 = vmatpush1.msra.mxu0 0.0
        %323 = vmatprep.subr.mxu0 0.0
        %324 = vmatpush1.msra.mxu0 0.0
        %325 = vmatprep.subr.mxu0 0.0
        %326 = vmatpush1.msra.mxu0 0.0
        %327 = vmatprep.subr.mxu0 0.0
        %328 = vmatpush1.msra.mxu0 0.0
        %329 = vmatprep.subr.mxu0 0.0
        %330 = vmatpush1.msra.mxu0 0.0
        %331 = vmatprep.subr.mxu0 0.0
        %332 = vmatpush1.msra.mxu0 0.0
        %333 = vmatprep.subr.mxu0 0.0
        %334 = vmatpush1.msra.mxu0 0.0
        %335 = vmatprep.subr.mxu0 0.0
        %336 = vmatpush1.msra.mxu0 0.0
        %337 = vmatprep.subr.mxu0 0.0
        %338 = vmatpush1.msra.mxu0 0.0
        %339 = vmatprep.subr.mxu0 0.0
        %340 = vmatpush1.msra.mxu0 0.0
        %341 = vmatprep.subr.mxu0 0.0
        %342 = vmatpush1.msra.mxu0 0.0
        %343 = vmatprep.subr.mxu0 0.0
        %344 = vmatpush1.msra.mxu0 0.0
        %345 = vmatprep.subr.mxu0 0.0
        %346 = vmatpush1.msra.mxu0 0.0
        %347 = vmatprep.subr.mxu0 0.0
        %348 = vmatpush1.msra.mxu0 0.0
        %349 = vmatprep.subr.mxu0 0.0
        %350 = vmatpush1.msra.mxu0 0.0
        %351 = vmatprep.subr.mxu0 0.0
        %352 = vmatpush1.msra.mxu0 0.0
        %353 = vmatprep.subr.mxu0 0.0
        %354 = vmatpush1.msra.mxu0 0.0
        %355 = vmatprep.subr.mxu0 0.0
        %356 = vmatpush1.msra.mxu0 0.0
        %357 = vmatprep.subr.mxu0 0.0
        %358 = vmatpush1.msra.mxu0 0.0
        %359 = vmatprep.subr.mxu0 0.0
        %360 = vmatpush1.msra.mxu0 0.0
        %361 = vmatprep.subr.mxu0 0.0
        %362 = vmatpush1.msra.mxu0 0.0
        %363 = vmatprep.subr.mxu0 0.0
        %364 = vmatpush1.msra.mxu0 0.0
        %365 = vmatprep.subr.mxu0 0.0
        %366 = vmatpush1.msra.mxu0 0.0
        %367 = vmatprep.subr.mxu0 0.0
        %368 = vmatpush1.msra.mxu0 0.0
        %369 = vmatprep.subr.mxu0 0.0
        %370 = vmatpush1.msra.mxu0 0.0
        %371 = vmatprep.subr.mxu0 0.0
        %372 = vmatpush1.msra.mxu0 0.0
        %373 = vmatprep.subr.mxu0 0.0
        %374 = vmatpush1.msra.mxu0 0.0
        %375 = vmatprep.subr.mxu0 0.0
        %376 = vmatpush1.msra.mxu0 0.0
        %377 = vmatprep.subr.mxu0 0.0
        %378 = vmatpush1.msra.mxu0 0.0
        %379 = vmatprep.mubr.f32.mxu0 0.0
        %380 = vmatmul.mubr.f32.gmra.mrb[0].mxu0 %v288
        %v381 = vpop.f32.mrb[0].mxu0
        %v382 = vadd.f32 0.0, %v381
        %v383 = vpop.f32.mrb[0].mxu0
        %384 = vmatprep.mubr.f32.mxu0 0.0
        %385 = vmatmul.mubr.f32.gmra.mrb[0].mxu0 %v291
        %v386 = vpop.f32.mrb[0].mxu0
        %v387 = vadd.f32 0.0, %v386
        %v388 = vpop.f32.mrb[0].mxu0
        %389 = vmatprep.mubr.f32.mxu0 0.0
        %390 = vmatmul.mubr.f32.gmra.mrb[0].mxu0 %v294
        %v391 = vpop.f32.mrb[0].mxu0
        %v392 = vadd.f32 0.0, %v391
        %v393 = vpop.f32.mrb[0].mxu0
        %394 = vmatprep.mubr.f32.mxu0 0.0
        %395 = vmatmul.mubr.f32.gmra.mrb[0].mxu0 %v297
        %v396 = vpop.f32.mrb[0].mxu0
        %v397 = vadd.f32 0.0, %v396
        %v398 = vpop.f32.mrb[0].mxu0
        %399 = vmatprep.mubr.f32.mxu0 0.0
        %400 = vmatmul.mubr.f32.gmra.mrb[0].mxu0 %v300
        %v401 = vpop.f32.mrb[0].mxu0
        %v402 = vadd.f32 0.0, %v401
        %v403 = vpop.f32.mrb[0].mxu0
        %404 = vmatprep.mubr.f32.mxu0 0.0
        %405 = vmatmul.mubr.f32.gmra.mrb[0].mxu0 %v303
        %v406 = vpop.f32.mrb[0].mxu0
        %v407 = vadd.f32 0.0, %v406
        %v408 = vpop.f32.mrb[0].mxu0
        %409 = vmatprep.mubr.f32.mxu0 0.0
        %410 = vmatmul.mubr.f32.gmra.mrb[0].mxu0 %v306
        %v411 = vpop.f32.mrb[0].mxu0
        %v412 = vadd.f32 0.0, %v411
        %v413 = vpop.f32.mrb[0].mxu0
        %414 = vmatprep.mubr.f32.mxu0 0.0
        %415 = vmatmul.mubr.f32.gmra.mrb[0].mxu0 %v309
        %v416 = vpop.f32.mrb[0].mxu0
        %v417 = vadd.f32 0.0, %v416
        %v418 = vpop.f32.mrb[0].mxu0
        %419 = vdwg.mxu0
        %vm420 = vcmask 1046528
        %v421 = vrot.slane %v276, 1
        %v422 = vrot.slane %v277, 1
        %v423 = vsel %vm420, %v421, %v422
        %v424 = vrot.slane %v278, 1
        %v425 = vsel %vm420, %v422, %v424
        %v426 = vrot.slane %v279, 1
        %v427 = vsel %vm420, %v424, %v426
        %v428 = vrot.slane %v280, 1
        %v429 = vsel %vm420, %v426, %v428
        %v430 = vrot.slane %v281, 1
        %v431 = vsel %vm420, %v428, %v430
        %v432 = vrot.slane %v282, 1
        %v433 = vsel %vm420, %v430, %v432
        %v434 = vrot.slane %v283, 1
        %v435 = vsel %vm420, %v432, %v434
        %vm436 = vcmask 39936
        %v437 = vsel %vm436, %v423, 0
        %v439 = vsel %vm436, %v425, 0
        %v441 = vsel %vm436, %v427, 0
        %v443 = vsel %vm436, %v429, 0
        %v445 = vsel %vm436, %v431, 0
        %v447 = vsel %vm436, %v433, 0
        %v449 = vsel %vm436, %v435, 0
        %v451 = vsel %vm436, %v434, 0
        %vm453 = vcmask 1044480
        %v455 = vsel %vm453, %v284, 0
        %457 = vmatprep.subr.mxu0 0.0
        %458 = vmatpush1.msra.mxu0 %v455
        %459 = vmatprep.subr.mxu0 0.0
        %460 = vmatpush1.msra.mxu0 0.0
        %461 = vmatprep.subr.mxu0 0.0
        %462 = vmatpush1.msra.mxu0 0.0
        %463 = vmatprep.subr.mxu0 0.0
        %464 = vmatpush1.msra.mxu0 0.0
        %465 = vmatprep.subr.mxu0 0.0
        %466 = vmatpush1.msra.mxu0 0.0
        %467 = vmatprep.subr.mxu0 0.0
        %468 = vmatpush1.msra.mxu0 0.0
        %469 = vmatprep.subr.mxu0 0.0
        %470 = vmatpush1.msra.mxu0 0.0
        %471 = vmatprep.subr.mxu0 0.0
        %472 = vmatpush1.msra.mxu0 0.0
        %473 = vmatprep.subr.mxu0 0.0
        %474 = vmatpush1.msra.mxu0 0.0
        %475 = vmatprep.subr.mxu0 0.0
        %476 = vmatpush1.msra.mxu0 0.0
        %477 = vmatprep.subr.mxu0 0.0
        %478 = vmatpush1.msra.mxu0 0.0
        %479 = vmatprep.subr.mxu0 0.0
        %480 = vmatpush1.msra.mxu0 0.0
        %481 = vmatprep.subr.mxu0 0.0
        %482 = vmatpush1.msra.mxu0 0.0
        %483 = vmatprep.subr.mxu0 0.0
        %484 = vmatpush1.msra.mxu0 0.0
        %485 = vmatprep.subr.mxu0 0.0
        %486 = vmatpush1.msra.mxu0 0.0
        %487 = vmatprep.subr.mxu0 0.0
        %488 = vmatpush1.msra.mxu0 0.0
        %489 = vmatprep.subr.mxu0 0.0
        %490 = vmatpush1.msra.mxu0 0.0
        %491 = vmatprep.subr.mxu0 0.0
        %492 = vmatpush1.msra.mxu0 0.0
        %493 = vmatprep.subr.mxu0 0.0
        %494 = vmatpush1.msra.mxu0 0.0
        %495 = vmatprep.subr.mxu0 0.0
        %496 = vmatpush1.msra.mxu0 0.0
        %497 = vmatprep.subr.mxu0 0.0
        %498 = vmatpush1.msra.mxu0 0.0
        %499 = vmatprep.subr.mxu0 0.0
        %500 = vmatpush1.msra.mxu0 0.0
        %501 = vmatprep.subr.mxu0 0.0
        %502 = vmatpush1.msra.mxu0 0.0
        %503 = vmatprep.subr.mxu0 0.0
        %504 = vmatpush1.msra.mxu0 0.0
        %505 = vmatprep.subr.mxu0 0.0
        %506 = vmatpush1.msra.mxu0 0.0
        %507 = vmatprep.subr.mxu0 0.0
        %508 = vmatpush1.msra.mxu0 0.0
        %509 = vmatprep.subr.mxu0 0.0
        %510 = vmatpush1.msra.mxu0 0.0
        %511 = vmatprep.subr.mxu0 0.0
        %512 = vmatpush1.msra.mxu0 0.0
        %513 = vmatprep.subr.mxu0 0.0
        %514 = vmatpush1.msra.mxu0 0.0
        %515 = vmatprep.subr.mxu0 0.0
        %516 = vmatpush1.msra.mxu0 0.0
        %517 = vmatprep.subr.mxu0 0.0
        %518 = vmatpush1.msra.mxu0 0.0
        %519 = vmatprep.subr.mxu0 0.0
        %520 = vmatpush1.msra.mxu0 0.0
        %521 = vmatprep.mubr.f32.mxu0 0.0
        %522 = vmatmul.mubr.f32.gmra.mrb[0].mxu0 %v437
        %v523 = vpop.f32.mrb[0].mxu0
        %v524 = vadd.f32 0.0, %v523
        %v525 = vpop.f32.mrb[0].mxu0
        %526 = vmatprep.mubr.f32.mxu0 0.0
        %527 = vmatmul.mubr.f32.gmra.mrb[0].mxu0 %v439
        %v528 = vpop.f32.mrb[0].mxu0
        %v529 = vadd.f32 0.0, %v528
        %v530 = vpop.f32.mrb[0].mxu0
        %531 = vmatprep.mubr.f32.mxu0 0.0
        %532 = vmatmul.mubr.f32.gmra.mrb[0].mxu0 %v441
        %v533 = vpop.f32.mrb[0].mxu0
        %v534 = vadd.f32 0.0, %v533
        %v535 = vpop.f32.mrb[0].mxu0
        %536 = vmatprep.mubr.f32.mxu0 0.0
        %537 = vmatmul.mubr.f32.gmra.mrb[0].mxu0 %v443
        %v538 = vpop.f32.mrb[0].mxu0
        %v539 = vadd.f32 0.0, %v538
        %v540 = vpop.f32.mrb[0].mxu0
        %541 = vmatprep.mubr.f32.mxu0 0.0
        %542 = vmatmul.mubr.f32.gmra.mrb[0].mxu0 %v445
        %v543 = vpop.f32.mrb[0].mxu0
        %v544 = vadd.f32 0.0, %v543
        %v545 = vpop.f32.mrb[0].mxu0
        %546 = vmatprep.mubr.f32.mxu0 0.0
        %547 = vmatmul.mubr.f32.gmra.mrb[0].mxu0 %v447
        %v548 = vpop.f32.mrb[0].mxu0
        %v549 = vadd.f32 0.0, %v548
        %v550 = vpop.f32.mrb[0].mxu0
        %551 = vmatprep.mubr.f32.mxu0 0.0
        %552 = vmatmul.mubr.f32.gmra.mrb[0].mxu0 %v449
        %v553 = vpop.f32.mrb[0].mxu0
        %v554 = vadd.f32 0.0, %v553
        %v555 = vpop.f32.mrb[0].mxu0
        %556 = vmatprep.mubr.f32.mxu0 0.0
        %557 = vmatmul.mubr.f32.gmra.mrb[0].mxu0 %v451
        %v558 = vpop.f32.mrb[0].mxu0
        %v559 = vadd.f32 0.0, %v558
        %v560 = vpop.f32.mrb[0].mxu0
        %561 = vdwg.mxu0
        %562 = vrot.lane.b32.xlu0 %v276, 123
        %v563 = vpop.permute.xlu0 %562
        %564 = vrot.lane.b32.xlu0 %v277, 123
        %v565 = vpop.permute.xlu0 %564
        %566 = vrot.lane.b32.xlu0 %v278, 123
        %v567 = vpop.permute.xlu0 %566
        %568 = vrot.lane.b32.xlu0 %v279, 123
        %v569 = vpop.permute.xlu0 %568
        %570 = vrot.lane.b32.xlu0 %v280, 123
        %v571 = vpop.permute.xlu0 %570
        %572 = vrot.lane.b32.xlu0 %v281, 123
        %v573 = vpop.permute.xlu0 %572
        %574 = vrot.lane.b32.xlu0 %v282, 123
        %v575 = vpop.permute.xlu0 %574
        %576 = vrot.lane.b32.xlu0 %v283, 123
        %v577 = vpop.permute.xlu0 %576
        %vm578 = vcmask 1042432
        %v579 = vrot.slane %v284, 5
        %v580 = vrot.slane %v285, 5
        %v581 = vsel %vm578, %v579, %v580
        %v582 = vsel %vm436, %v563, 0
        %v584 = vsel %vm436, %v565, 0
        %v586 = vsel %vm436, %v567, 0
        %v588 = vsel %vm436, %v569, 0
        %v590 = vsel %vm436, %v571, 0
        %v592 = vsel %vm436, %v573, 0
        %v594 = vsel %vm436, %v575, 0
        %v596 = vsel %vm436, %v577, 0
        %v598 = vsel %vm453, %v581, 0
        %600 = vmatprep.subr.mxu0 0.0
        %601 = vmatpush1.msra.mxu0 %v598
        %602 = vmatprep.subr.mxu0 0.0
        %603 = vmatpush1.msra.mxu0 0.0
        %604 = vmatprep.subr.mxu0 0.0
        %605 = vmatpush1.msra.mxu0 0.0
        %606 = vmatprep.subr.mxu0 0.0
        %607 = vmatpush1.msra.mxu0 0.0
        %608 = vmatprep.subr.mxu0 0.0
        %609 = vmatpush1.msra.mxu0 0.0
        %610 = vmatprep.subr.mxu0 0.0
        %611 = vmatpush1.msra.mxu0 0.0
        %612 = vmatprep.subr.mxu0 0.0
        %613 = vmatpush1.msra.mxu0 0.0
        %614 = vmatprep.subr.mxu0 0.0
        %615 = vmatpush1.msra.mxu0 0.0
        %616 = vmatprep.subr.mxu0 0.0
        %617 = vmatpush1.msra.mxu0 0.0
        %618 = vmatprep.subr.mxu0 0.0
        %619 = vmatpush1.msra.mxu0 0.0
        %620 = vmatprep.subr.mxu0 0.0
        %621 = vmatpush1.msra.mxu0 0.0
        %622 = vmatprep.subr.mxu0 0.0
        %623 = vmatpush1.msra.mxu0 0.0
        %624 = vmatprep.subr.mxu0 0.0
        %625 = vmatpush1.msra.mxu0 0.0
        %626 = vmatprep.subr.mxu0 0.0
        %627 = vmatpush1.msra.mxu0 0.0
        %628 = vmatprep.subr.mxu0 0.0
        %629 = vmatpush1.msra.mxu0 0.0
        %630 = vmatprep.subr.mxu0 0.0
        %631 = vmatpush1.msra.mxu0 0.0
        %632 = vmatprep.subr.mxu0 0.0
        %633 = vmatpush1.msra.mxu0 0.0
        %634 = vmatprep.subr.mxu0 0.0
        %635 = vmatpush1.msra.mxu0 0.0
        %636 = vmatprep.subr.mxu0 0.0
        %637 = vmatpush1.msra.mxu0 0.0
        %638 = vmatprep.subr.mxu0 0.0
        %639 = vmatpush1.msra.mxu0 0.0
        %640 = vmatprep.subr.mxu0 0.0
        %641 = vmatpush1.msra.mxu0 0.0
        %642 = vmatprep.subr.mxu0 0.0
        %643 = vmatpush1.msra.mxu0 0.0
        %644 = vmatprep.subr.mxu0 0.0
        %645 = vmatpush1.msra.mxu0 0.0
        %646 = vmatprep.subr.mxu0 0.0
        %647 = vmatpush1.msra.mxu0 0.0
        %648 = vmatprep.subr.mxu0 0.0
        %649 = vmatpush1.msra.mxu0 0.0
        %650 = vmatprep.subr.mxu0 0.0
        %651 = vmatpush1.msra.mxu0 0.0
        %652 = vmatprep.subr.mxu0 0.0
        %653 = vmatpush1.msra.mxu0 0.0
        %654 = vmatprep.subr.mxu0 0.0
        %655 = vmatpush1.msra.mxu0 0.0
        %656 = vmatprep.subr.mxu0 0.0
        %657 = vmatpush1.msra.mxu0 0.0
        %658 = vmatprep.subr.mxu0 0.0
        %659 = vmatpush1.msra.mxu0 0.0
        %660 = vmatprep.subr.mxu0 0.0
        %661 = vmatpush1.msra.mxu0 0.0
        %662 = vmatprep.subr.mxu0 0.0
        %663 = vmatpush1.msra.mxu0 0.0
        %664 = vmatprep.mubr.f32.mxu0 0.0
        %665 = vmatmul.mubr.f32.gmra.mrb[0].mxu0 %v582
        %v666 = vpop.f32.mrb[0].mxu0
        %v667 = vadd.f32 %v524, %v666
        %v668 = vpop.f32.mrb[0].mxu0
        %669 = vmatprep.mubr.f32.mxu0 0.0
        %670 = vmatmul.mubr.f32.gmra.mrb[0].mxu0 %v584
        %v671 = vpop.f32.mrb[0].mxu0
        %v672 = vadd.f32 %v529, %v671
        %v673 = vpop.f32.mrb[0].mxu0
        %674 = vmatprep.mubr.f32.mxu0 0.0
        %675 = vmatmul.mubr.f32.gmra.mrb[0].mxu0 %v586
        %v676 = vpop.f32.mrb[0].mxu0
        %v677 = vadd.f32 %v534, %v676
        %v678 = vpop.f32.mrb[0].mxu0
        %679 = vmatprep.mubr.f32.mxu0 0.0
        %680 = vmatmul.mubr.f32.gmra.mrb[0].mxu0 %v588
        %v681 = vpop.f32.mrb[0].mxu0
        %v682 = vadd.f32 %v539, %v681
        %v683 = vpop.f32.mrb[0].mxu0
        %684 = vmatprep.mubr.f32.mxu0 0.0
        %685 = vmatmul.mubr.f32.gmra.mrb[0].mxu0 %v590
        %v686 = vpop.f32.mrb[0].mxu0
        %v687 = vadd.f32 %v544, %v686
        %v688 = vpop.f32.mrb[0].mxu0
        %689 = vmatprep.mubr.f32.mxu0 0.0
        %690 = vmatmul.mubr.f32.gmra.mrb[0].mxu0 %v592
        %v691 = vpop.f32.mrb[0].mxu0
        %v692 = vadd.f32 %v549, %v691
        %v693 = vpop.f32.mrb[0].mxu0
        %694 = vmatprep.mubr.f32.mxu0 0.0
        %695 = vmatmul.mubr.f32.gmra.mrb[0].mxu0 %v594
        %v696 = vpop.f32.mrb[0].mxu0
        %v697 = vadd.f32 %v554, %v696
        %v698 = vpop.f32.mrb[0].mxu0
        %699 = vmatprep.mubr.f32.mxu0 0.0
        %700 = vmatmul.mubr.f32.gmra.mrb[0].mxu0 %v596
        %v701 = vpop.f32.mrb[0].mxu0
        %v702 = vadd.f32 %v559, %v701
        %v703 = vpop.f32.mrb[0].mxu0
        %704 = vdwg.mxu0
        %v705 = vld [vmem:[%s3] sm:$0x1]
        %v706 = vld [vmem:[%s3 + $0x1] sm:$0x1]
        %vm707 = vcmask 261120
        %v708 = vsel %vm707, %v382, 0.0
        %v709 = vsel %vm707, %v387, 0.0
        %v710 = vadd.f32 %v708, %v709
        %v711 = vsel %vm707, %v392, 0.0
        %v712 = vadd.f32 %v710, %v711
        %v713 = vsel %vm707, %v397, 0.0
        %v714 = vadd.f32 %v712, %v713
        %v715 = vsel %vm707, %v402, 0.0
        %v716 = vadd.f32 %v714, %v715
        %v717 = vsel %vm707, %v407, 0.0
        %v718 = vadd.f32 %v716, %v717
        %v719 = vsel %vm707, %v412, 0.0
        %v720 = vadd.f32 %v718, %v719
        %v721 = vsel %vm707, %v417, 0.0
        %v722 = vadd.f32 %v720, %v721
        %v723 = vrot.slane %v722, 4
        %v724 = vadd.f32 %v722, %v723
        %v725 = vrot.slane %v724, 2
        %v726 = vadd.f32 %v724, %v725
        %v727 = vrot.slane %v726, 1
        %v728 = vadd.f32 %v726, %v727
        %v729 = vsel %vm707, %v667, 0.0
        %v730 = vsel %vm707, %v672, 0.0
        %v731 = vadd.f32 %v729, %v730
        %v732 = vsel %vm707, %v677, 0.0
        %v733 = vadd.f32 %v731, %v732
        %v734 = vsel %vm707, %v682, 0.0
        %v735 = vadd.f32 %v733, %v734
        %v736 = vsel %vm707, %v687, 0.0
        %v737 = vadd.f32 %v735, %v736
        %v738 = vsel %vm707, %v692, 0.0
        %v739 = vadd.f32 %v737, %v738
        %v740 = vsel %vm707, %v697, 0.0
        %v741 = vadd.f32 %v739, %v740
        %vm742 = vcmask 260096
        %v743 = vsel %vm742, %v702, 0.0
        %v744 = vadd.f32 %v741, %v743
        %v745 = vrot.slane %v744, 4
        %v746 = vadd.f32 %v744, %v745
        %v747 = vrot.slane %v746, 2
        %v748 = vadd.f32 %v746, %v747
        %v749 = vrot.slane %v748, 1
        %v750 = vadd.f32 %v748, %v749
        %v751 = vadd.f32 %v728, %v750
        %v752 = vmul.f32 %v751, 0.007874016
        %v753 = vsub.f32 %v382, %v752
        %v754 = vsub.f32 %v387, %v752
        %v755 = vsub.f32 %v392, %v752
        %v756 = vsub.f32 %v397, %v752
        %v757 = vsub.f32 %v402, %v752
        %v758 = vsub.f32 %v407, %v752
        %v759 = vsub.f32 %v412, %v752
        %v760 = vsub.f32 %v417, %v752
        %v761 = vmul.f32 %v753, %v753
        %v762 = vmul.f32 %v754, %v754
        %v763 = vmul.f32 %v755, %v755
        %v764 = vmul.f32 %v756, %v756
        %v765 = vmul.f32 %v757, %v757
        %v766 = vmul.f32 %v758, %v758
        %v767 = vmul.f32 %v759, %v759
        %v768 = vmul.f32 %v760, %v760
        %v769 = vsel %vm707, %v761, 0.0
        %v770 = vsel %vm707, %v762, 0.0
        %v771 = vadd.f32 %v769, %v770
        %v772 = vsel %vm707, %v763, 0.0
        %v773 = vadd.f32 %v771, %v772
        %v774 = vsel %vm707, %v764, 0.0
        %v775 = vadd.f32 %v773, %v774
        %v776 = vsel %vm707, %v765, 0.0
        %v777 = vadd.f32 %v775, %v776
        %v778 = vsel %vm707, %v766, 0.0
        %v779 = vadd.f32 %v777, %v778
        %v780 = vsel %vm707, %v767, 0.0
        %v781 = vadd.f32 %v779, %v780
        %v782 = vsel %vm707, %v768, 0.0
        %v783 = vadd.f32 %v781, %v782
        %v784 = vrot.slane %v783, 4
        %v785 = vadd.f32 %v783, %v784
        %v786 = vrot.slane %v785, 2
        %v787 = vadd.f32 %v785, %v786
        %v788 = vrot.slane %v787, 1
        %v789 = vadd.f32 %v787, %v788
        %v790 = vsub.f32 %v667, %v752
        %v791 = vsub.f32 %v672, %v752
        %v792 = vsub.f32 %v677, %v752
        %v793 = vsub.f32 %v682, %v752
        %v794 = vsub.f32 %v687, %v752
        %v795 = vsub.f32 %v692, %v752
        %v796 = vsub.f32 %v697, %v752
        %v797 = vsub.f32 %v702, %v752
        %v798 = vmul.f32 %v790, %v790
        %v799 = vmul.f32 %v791, %v791
        %v800 = vmul.f32 %v792, %v792
        %v801 = vmul.f32 %v793, %v793
        %v802 = vmul.f32 %v794, %v794
        %v803 = vmul.f32 %v795, %v795
        %v804 = vmul.f32 %v796, %v796
        %v805 = vmul.f32 %v797, %v797
        %v806 = vsel %vm707, %v798, 0.0
        %v807 = vsel %vm707, %v799, 0.0
        %v808 = vadd.f32 %v806, %v807
        %v809 = vsel %vm707, %v800, 0.0
        %v810 = vadd.f32 %v808, %v809
        %v811 = vsel %vm707, %v801, 0.0
        %v812 = vadd.f32 %v810, %v811
        %v813 = vsel %vm707, %v802, 0.0
        %v814 = vadd.f32 %v812, %v813
        %v815 = vsel %vm707, %v803, 0.0
        %v816 = vadd.f32 %v814, %v815
        %v817 = vsel %vm707, %v804, 0.0
        %v818 = vadd.f32 %v816, %v817
        %v819 = vsel %vm742, %v805, 0.0
        %v820 = vadd.f32 %v818, %v819
        %v821 = vrot.slane %v820, 4
        %v822 = vadd.f32 %v820, %v821
        %v823 = vrot.slane %v822, 2
        %v824 = vadd.f32 %v822, %v823
        %v825 = vrot.slane %v824, 1
        %v826 = vadd.f32 %v824, %v825
        %v827 = vadd.f32 %v789, %v826
        %v828 = vmul.f32 %v827, 0.007874016
        %v829 = vadd.f32 %v828, 1e-05
        %v830 = vrsqrt.pop %v829
        %v831 = vmul.f32 %v753, %v830
        %v832 = vmul.f32 %v754, %v830
        %v833 = vmul.f32 %v755, %v830
        %v834 = vmul.f32 %v756, %v830
        %v835 = vmul.f32 %v757, %v830
        %v836 = vmul.f32 %v758, %v830
        %v837 = vmul.f32 %v759, %v830
        %v838 = vmul.f32 %v760, %v830
        %v839 = vlaneseq
        %v840 = vshrl.u32 %v839, 7
        %v841 = vsub.s32 0, %v840
        %v842 = vrot.slane %v705, %v841
        %v843 = vmul.f32 %v831, %v842
        %v844 = vmul.f32 %v832, %v842
        %v845 = vmul.f32 %v833, %v842
        %v846 = vmul.f32 %v834, %v842
        %v847 = vmul.f32 %v835, %v842
        %v848 = vmul.f32 %v836, %v842
        %v849 = vmul.f32 %v837, %v842
        %v850 = vmul.f32 %v838, %v842
        %v851 = vlaneseq
        %v852 = vshrl.u32 %v851, 7
        %v853 = vsub.s32 0, %v852
        %v854 = vrot.slane %v706, %v853
        %v855 = vadd.f32 %v843, %v854
        %v856 = vadd.f32 %v844, %v854
        %v857 = vadd.f32 %v845, %v854
        %v858 = vadd.f32 %v846, %v854
        %v859 = vadd.f32 %v847, %v854
        %v860 = vadd.f32 %v848, %v854
        %v861 = vadd.f32 %v849, %v854
        %v862 = vadd.f32 %v850, %v854
        %v863 = vmul.f32 %v855, %v855
        %v864 = vmul.f32 %v856, %v856
        %v865 = vmul.f32 %v857, %v857
        %v866 = vmul.f32 %v858, %v858
        %v867 = vmul.f32 %v859, %v859
        %v868 = vmul.f32 %v860, %v860
        %v869 = vmul.f32 %v861, %v861
        %v870 = vmul.f32 %v862, %v862
        %v871 = vmul.f32 %v855, %v863
        %v872 = vmul.f32 %v856, %v864
        %v873 = vmul.f32 %v857, %v865
        %v874 = vmul.f32 %v858, %v866
        %v875 = vmul.f32 %v859, %v867
        %v876 = vmul.f32 %v860, %v868
        %v877 = vmul.f32 %v861, %v869
        %v878 = vmul.f32 %v862, %v870
        %v879 = vmul.f32 %v871, 0.044715
        %v880 = vmul.f32 %v872, 0.044715
        %v881 = vmul.f32 %v873, 0.044715
        %v882 = vmul.f32 %v874, 0.044715
        %v883 = vmul.f32 %v875, 0.044715
        %v884 = vmul.f32 %v876, 0.044715
        %v885 = vmul.f32 %v877, 0.044715
        %v886 = vmul.f32 %v878, 0.044715
        %v887 = vadd.f32 %v855, %v879
        %v888 = vadd.f32 %v856, %v880
        %v889 = vadd.f32 %v857, %v881
        %v890 = vadd.f32 %v858, %v882
        %v891 = vadd.f32 %v859, %v883
        %v892 = vadd.f32 %v860, %v884
        %v893 = vadd.f32 %v861, %v885
        %v894 = vadd.f32 %v862, %v886
        %v895 = vmul.f32 %v887, 0.7978846
        %v896 = vmul.f32 %v888, 0.7978846
        %v897 = vmul.f32 %v889, 0.7978846
        %v898 = vmul.f32 %v890, 0.7978846
        %v899 = vmul.f32 %v891, 0.7978846
        %v900 = vmul.f32 %v892, 0.7978846
        %v901 = vmul.f32 %v893, 0.7978846
        %v902 = vmul.f32 %v894, 0.7978846
        %v903 = vtanh.pop %v895
        %v904 = vtanh.pop %v896
        %v905 = vtanh.pop %v897
        %v906 = vtanh.pop %v898
        %v907 = vtanh.pop %v899
        %v908 = vtanh.pop %v900
        %v909 = vtanh.pop %v901
        %v910 = vtanh.pop %v902
        %v911 = vadd.f32 %v903, 1.0
        %v912 = vadd.f32 %v904, 1.0
        %v913 = vadd.f32 %v905, 1.0
        %v914 = vadd.f32 %v906, 1.0
        %v915 = vadd.f32 %v907, 1.0
        %v916 = vadd.f32 %v908, 1.0
        %v917 = vadd.f32 %v909, 1.0
        %v918 = vadd.f32 %v910, 1.0
        %v919 = vmul.f32 %v911, 0.5
        %v920 = vmul.f32 %v912, 0.5
        %v921 = vmul.f32 %v913, 0.5
        %v922 = vmul.f32 %v914, 0.5
        %v923 = vmul.f32 %v915, 0.5
        %v924 = vmul.f32 %v916, 0.5
        %v925 = vmul.f32 %v917, 0.5
        %v926 = vmul.f32 %v918, 0.5
        %v927 = vmul.f32 %v855, %v919
        %v928 = vmul.f32 %v856, %v920
        %v929 = vmul.f32 %v857, %v921
        %v930 = vmul.f32 %v858, %v922
        %v931 = vmul.f32 %v859, %v923
        %v932 = vmul.f32 %v860, %v924
        %v933 = vmul.f32 %v861, %v925
        %v934 = vmul.f32 %v862, %v926
        %v935 = vmul.f32 %v790, %v830
        %v936 = vmul.f32 %v791, %v830
        %v937 = vmul.f32 %v792, %v830
        %v938 = vmul.f32 %v793, %v830
        %v939 = vmul.f32 %v794, %v830
        %v940 = vmul.f32 %v795, %v830
        %v941 = vmul.f32 %v796, %v830
        %v942 = vmul.f32 %v797, %v830
        %v943 = vmul.f32 %v935, %v842
        %v944 = vmul.f32 %v936, %v842
        %v945 = vmul.f32 %v937, %v842
        %v946 = vmul.f32 %v938, %v842
        %v947 = vmul.f32 %v939, %v842
        %v948 = vmul.f32 %v940, %v842
        %v949 = vmul.f32 %v941, %v842
        %v950 = vmul.f32 %v942, %v842
        %v951 = vadd.f32 %v943, %v854
        %v952 = vadd.f32 %v944, %v854
        %v953 = vadd.f32 %v945, %v854
        %v954 = vadd.f32 %v946, %v854
        %v955 = vadd.f32 %v947, %v854
        %v956 = vadd.f32 %v948, %v854
        %v957 = vadd.f32 %v949, %v854
        %v958 = vadd.f32 %v950, %v854
        %v959 = vmul.f32 %v951, %v951
        %v960 = vmul.f32 %v952, %v952
        %v961 = vmul.f32 %v953, %v953
        %v962 = vmul.f32 %v954, %v954
        %v963 = vmul.f32 %v955, %v955
        %v964 = vmul.f32 %v956, %v956
        %v965 = vmul.f32 %v957, %v957
        %v966 = vmul.f32 %v958, %v958
        %v967 = vmul.f32 %v951, %v959
        %v968 = vmul.f32 %v952, %v960
        %v969 = vmul.f32 %v953, %v961
        %v970 = vmul.f32 %v954, %v962
        %v971 = vmul.f32 %v955, %v963
        %v972 = vmul.f32 %v956, %v964
        %v973 = vmul.f32 %v957, %v965
        %v974 = vmul.f32 %v958, %v966
        %v975 = vmul.f32 %v967, 0.044715
        %v976 = vmul.f32 %v968, 0.044715
        %v977 = vmul.f32 %v969, 0.044715
        %v978 = vmul.f32 %v970, 0.044715
        %v979 = vmul.f32 %v971, 0.044715
        %v980 = vmul.f32 %v972, 0.044715
        %v981 = vmul.f32 %v973, 0.044715
        %v982 = vmul.f32 %v974, 0.044715
        %v983 = vadd.f32 %v951, %v975
        %v984 = vadd.f32 %v952, %v976
        %v985 = vadd.f32 %v953, %v977
        %v986 = vadd.f32 %v954, %v978
        %v987 = vadd.f32 %v955, %v979
        %v988 = vadd.f32 %v956, %v980
        %v989 = vadd.f32 %v957, %v981
        %v990 = vadd.f32 %v958, %v982
        %v991 = vmul.f32 %v983, 0.7978846
        %v992 = vmul.f32 %v984, 0.7978846
        %v993 = vmul.f32 %v985, 0.7978846
        %v994 = vmul.f32 %v986, 0.7978846
        %v995 = vmul.f32 %v987, 0.7978846
        %v996 = vmul.f32 %v988, 0.7978846
        %v997 = vmul.f32 %v989, 0.7978846
        %v998 = vmul.f32 %v990, 0.7978846
        %v999 = vtanh.pop %v991
        %v1000 = vtanh.pop %v992
        %v1001 = vtanh.pop %v993
        %v1002 = vtanh.pop %v994
        %v1003 = vtanh.pop %v995
        %v1004 = vtanh.pop %v996
        %v1005 = vtanh.pop %v997
        %v1006 = vtanh.pop %v998
        %v1007 = vadd.f32 %v999, 1.0
        %v1008 = vadd.f32 %v1000, 1.0
        %v1009 = vadd.f32 %v1001, 1.0
        %v1010 = vadd.f32 %v1002, 1.0
        %v1011 = vadd.f32 %v1003, 1.0
        %v1012 = vadd.f32 %v1004, 1.0
        %v1013 = vadd.f32 %v1005, 1.0
        %v1014 = vadd.f32 %v1006, 1.0
        %v1015 = vmul.f32 %v1007, 0.5
        %v1016 = vmul.f32 %v1008, 0.5
        %v1017 = vmul.f32 %v1009, 0.5
        %v1018 = vmul.f32 %v1010, 0.5
        %v1019 = vmul.f32 %v1011, 0.5
        %v1020 = vmul.f32 %v1012, 0.5
        %v1021 = vmul.f32 %v1013, 0.5
        %v1022 = vmul.f32 %v1014, 0.5
        %v1023 = vmul.f32 %v951, %v1015
        %v1024 = vmul.f32 %v952, %v1016
        %v1025 = vmul.f32 %v953, %v1017
        %v1026 = vmul.f32 %v954, %v1018
        %v1027 = vmul.f32 %v955, %v1019
        %v1028 = vmul.f32 %v956, %v1020
        %v1029 = vmul.f32 %v957, %v1021
        %v1030 = vmul.f32 %v958, %v1022
        %v1031 = vld [vmem:[%s1 + $0xa] sm:$0xff]
        %v1032 = vld [vmem:[%s1 + $0x12] sm:$0xff]
        %v1033 = vld [vmem:[%s1 + $0x1a] sm:$0xff]
        %v1034 = vld [vmem:[%s1 + $0x22] sm:$0xff]
        %v1035 = vld [vmem:[%s1 + $0x2a] sm:$0xff]
        %v1036 = vld [vmem:[%s1 + $0x32] sm:$0xff]
        %v1037 = vld [vmem:[%s1 + $0x3a] sm:$0xff]
        %v1038 = vld [vmem:[%s1 + $0x42] sm:$0xff]
        %v1039 = vld [vmem:[%s1 + $0x4a] sm:$0xff]
        %v1040 = vld [vmem:[%s1 + $0x52] sm:$0xff]
        %v1041 = vld [vmem:[%s1 + $0x5a] sm:$0xff]
        %v1042 = vld [vmem:[%s1 + $0x62] sm:$0xff]
        %v1044 = vsel %vm707, %v1023, 0
        %v1047 = vsel %vm707, %v1024, 0
        %v1050 = vsel %vm707, %v1025, 0
        %v1053 = vsel %vm707, %v1026, 0
        %v1056 = vsel %vm707, %v1027, 0
        %v1059 = vsel %vm707, %v1028, 0
        %v1062 = vsel %vm707, %v1029, 0
        %v1065 = vsel %vm707, %v1030, 0
        %1067 = vmatprep.subr.mxu0 0.0
        %1068 = vmatpush1.msra.mxu0 %v1035
        %1069 = vmatprep.subr.mxu0 0.0
        %1070 = vmatpush1.msra.mxu0 %v1036
        %1071 = vmatprep.subr.mxu0 0.0
        %1072 = vmatpush1.msra.mxu0 %v1037
        %1073 = vmatprep.subr.mxu0 0.0
        %1074 = vmatpush1.msra.mxu0 %v1038
        %1075 = vmatprep.subr.mxu0 0.0
        %1076 = vmatpush1.msra.mxu0 0.0
        %1077 = vmatprep.subr.mxu0 0.0
        %1078 = vmatpush1.msra.mxu0 0.0
        %1079 = vmatprep.subr.mxu0 0.0
        %1080 = vmatpush1.msra.mxu0 0.0
        %1081 = vmatprep.subr.mxu0 0.0
        %1082 = vmatpush1.msra.mxu0 0.0
        %1083 = vmatprep.subr.mxu0 0.0
        %1084 = vmatpush1.msra.mxu0 0.0
        %1085 = vmatprep.subr.mxu0 0.0
        %1086 = vmatpush1.msra.mxu0 0.0
        %1087 = vmatprep.subr.mxu0 0.0
        %1088 = vmatpush1.msra.mxu0 0.0
        %1089 = vmatprep.subr.mxu0 0.0
        %1090 = vmatpush1.msra.mxu0 0.0
        %1091 = vmatprep.subr.mxu0 0.0
        %1092 = vmatpush1.msra.mxu0 0.0
        %1093 = vmatprep.subr.mxu0 0.0
        %1094 = vmatpush1.msra.mxu0 0.0
        %1095 = vmatprep.subr.mxu0 0.0
        %1096 = vmatpush1.msra.mxu0 0.0
        %1097 = vmatprep.subr.mxu0 0.0
        %1098 = vmatpush1.msra.mxu0 0.0
        %1099 = vmatprep.subr.mxu0 0.0
        %1100 = vmatpush1.msra.mxu0 0.0
        %1101 = vmatprep.subr.mxu0 0.0
        %1102 = vmatpush1.msra.mxu0 0.0
        %1103 = vmatprep.subr.mxu0 0.0
        %1104 = vmatpush1.msra.mxu0 0.0
        %1105 = vmatprep.subr.mxu0 0.0
        %1106 = vmatpush1.msra.mxu0 0.0
        %1107 = vmatprep.subr.mxu0 0.0
        %1108 = vmatpush1.msra.mxu0 0.0
        %1109 = vmatprep.subr.mxu0 0.0
        %1110 = vmatpush1.msra.mxu0 0.0
        %1111 = vmatprep.subr.mxu0 0.0
        %1112 = vmatpush1.msra.mxu0 0.0
        %1113 = vmatprep.subr.mxu0 0.0
        %1114 = vmatpush1.msra.mxu0 0.0
        %1115 = vmatprep.subr.mxu0 0.0
        %1116 = vmatpush1.msra.mxu0 0.0
        %1117 = vmatprep.subr.mxu0 0.0
        %1118 = vmatpush1.msra.mxu0 0.0
        %1119 = vmatprep.subr.mxu0 0.0
        %1120 = vmatpush1.msra.mxu0 0.0
        %1121 = vmatprep.subr.mxu0 0.0
        %1122 = vmatpush1.msra.mxu0 0.0
        %1123 = vmatprep.subr.mxu0 0.0
        %1124 = vmatpush1.msra.mxu0 0.0
        %1125 = vmatprep.subr.mxu0 0.0
        %1126 = vmatpush1.msra.mxu0 0.0
        %1127 = vmatprep.subr.mxu0 0.0
        %1128 = vmatpush1.msra.mxu0 0.0
        %1129 = vmatprep.subr.mxu0 0.0
        %1130 = vmatpush1.msra.mxu0 0.0
        %1131 = vmatprep.mubr.f32.mxu0 0.0
        %1132 = vmatmul.mubr.f32.gmra.mrb[0].mxu0 %v1044
        %v1133 = vpop.f32.mrb[0].mxu0
        %v1134 = vadd.f32 0.0, %v1133
        %v1135 = vpop.f32.mrb[0].mxu0
        %1136 = vmatprep.mubr.f32.mxu0 0.0
        %1137 = vmatmul.mubr.f32.gmra.mrb[0].mxu0 %v1047
        %v1138 = vpop.f32.mrb[0].mxu0
        %v1139 = vadd.f32 0.0, %v1138
        %v1140 = vpop.f32.mrb[0].mxu0
        %1141 = vmatprep.mubr.f32.mxu0 0.0
        %1142 = vmatmul.mubr.f32.gmra.mrb[0].mxu0 %v1050
        %v1143 = vpop.f32.mrb[0].mxu0
        %v1144 = vadd.f32 0.0, %v1143
        %v1145 = vpop.f32.mrb[0].mxu0
        %1146 = vmatprep.mubr.f32.mxu0 0.0
        %1147 = vmatmul.mubr.f32.gmra.mrb[0].mxu0 %v1053
        %v1148 = vpop.f32.mrb[0].mxu0
        %v1149 = vadd.f32 0.0, %v1148
        %v1150 = vpop.f32.mrb[0].mxu0
        %1151 = vmatprep.mubr.f32.mxu0 0.0
        %1152 = vmatmul.mubr.f32.gmra.mrb[0].mxu0 %v1056
        %v1153 = vpop.f32.mrb[0].mxu0
        %v1154 = vadd.f32 0.0, %v1153
        %v1155 = vpop.f32.mrb[0].mxu0
        %1156 = vmatprep.mubr.f32.mxu0 0.0
        %1157 = vmatmul.mubr.f32.gmra.mrb[0].mxu0 %v1059
        %v1158 = vpop.f32.mrb[0].mxu0
        %v1159 = vadd.f32 0.0, %v1158
        %v1160 = vpop.f32.mrb[0].mxu0
        %1161 = vmatprep.mubr.f32.mxu0 0.0
        %1162 = vmatmul.mubr.f32.gmra.mrb[0].mxu0 %v1062
        %v1163 = vpop.f32.mrb[0].mxu0
        %v1164 = vadd.f32 0.0, %v1163
        %v1165 = vpop.f32.mrb[0].mxu0
        %1166 = vmatprep.mubr.f32.mxu0 0.0
        %1167 = vmatmul.mubr.f32.gmra.mrb[0].mxu0 %v1065
        %v1168 = vpop.f32.mrb[0].mxu0
        %v1169 = vadd.f32 0.0, %v1168
        %v1170 = vpop.f32.mrb[0].mxu0
        %1171 = vdwg.mxu0
        %v1173 = vsel %vm707, %v927, 0
        %v1176 = vsel %vm707, %v928, 0
        %v1179 = vsel %vm707, %v929, 0
        %v1182 = vsel %vm707, %v930, 0
        %v1185 = vsel %vm707, %v931, 0
        %v1188 = vsel %vm707, %v932, 0
        %v1191 = vsel %vm707, %v933, 0
        %v1194 = vsel %vm707, %v934, 0
        %1196 = vmatprep.subr.mxu0 0.0
        %1197 = vmatpush1.msra.mxu0 %v1031
        %1198 = vmatprep.subr.mxu0 0.0
        %1199 = vmatpush1.msra.mxu0 %v1032
        %1200 = vmatprep.subr.mxu0 0.0
        %1201 = vmatpush1.msra.mxu0 %v1033
        %1202 = vmatprep.subr.mxu0 0.0
        %1203 = vmatpush1.msra.mxu0 %v1034
        %1204 = vmatprep.subr.mxu0 0.0
        %1205 = vmatpush1.msra.mxu0 0.0
        %1206 = vmatprep.subr.mxu0 0.0
        %1207 = vmatpush1.msra.mxu0 0.0
        %1208 = vmatprep.subr.mxu0 0.0
        %1209 = vmatpush1.msra.mxu0 0.0
        %1210 = vmatprep.subr.mxu0 0.0
        %1211 = vmatpush1.msra.mxu0 0.0
        %1212 = vmatprep.subr.mxu0 0.0
        %1213 = vmatpush1.msra.mxu0 0.0
        %1214 = vmatprep.subr.mxu0 0.0
        %1215 = vmatpush1.msra.mxu0 0.0
        %1216 = vmatprep.subr.mxu0 0.0
        %1217 = vmatpush1.msra.mxu0 0.0
        %1218 = vmatprep.subr.mxu0 0.0
        %1219 = vmatpush1.msra.mxu0 0.0
        %1220 = vmatprep.subr.mxu0 0.0
        %1221 = vmatpush1.msra.mxu0 0.0
        %1222 = vmatprep.subr.mxu0 0.0
        %1223 = vmatpush1.msra.mxu0 0.0
        %1224 = vmatprep.subr.mxu0 0.0
        %1225 = vmatpush1.msra.mxu0 0.0
        %1226 = vmatprep.subr.mxu0 0.0
        %1227 = vmatpush1.msra.mxu0 0.0
        %1228 = vmatprep.subr.mxu0 0.0
        %1229 = vmatpush1.msra.mxu0 0.0
        %1230 = vmatprep.subr.mxu0 0.0
        %1231 = vmatpush1.msra.mxu0 0.0
        %1232 = vmatprep.subr.mxu0 0.0
        %1233 = vmatpush1.msra.mxu0 0.0
        %1234 = vmatprep.subr.mxu0 0.0
        %1235 = vmatpush1.msra.mxu0 0.0
        %1236 = vmatprep.subr.mxu0 0.0
        %1237 = vmatpush1.msra.mxu0 0.0
        %1238 = vmatprep.subr.mxu0 0.0
        %1239 = vmatpush1.msra.mxu0 0.0
        %1240 = vmatprep.subr.mxu0 0.0
        %1241 = vmatpush1.msra.mxu0 0.0
        %1242 = vmatprep.subr.mxu0 0.0
        %1243 = vmatpush1.msra.mxu0 0.0
        %1244 = vmatprep.subr.mxu0 0.0
        %1245 = vmatpush1.msra.mxu0 0.0
        %1246 = vmatprep.subr.mxu0 0.0
        %1247 = vmatpush1.msra.mxu0 0.0
        %1248 = vmatprep.subr.mxu0 0.0
        %1249 = vmatpush1.msra.mxu0 0.0
        %1250 = vmatprep.subr.mxu0 0.0
        %1251 = vmatpush1.msra.mxu0 0.0
        %1252 = vmatprep.subr.mxu0 0.0
        %1253 = vmatpush1.msra.mxu0 0.0
        %1254 = vmatprep.subr.mxu0 0.0
        %1255 = vmatpush1.msra.mxu0 0.0
        %1256 = vmatprep.subr.mxu0 0.0
        %1257 = vmatpush1.msra.mxu0 0.0
        %1258 = vmatprep.subr.mxu0 0.0
        %1259 = vmatpush1.msra.mxu0 0.0
        %1260 = vmatprep.mubr.f32.mxu0 0.0
        %1261 = vmatmul.mubr.f32.gmra.mrb[0].mxu0 %v1173
        %v1262 = vpop.f32.mrb[0].mxu0
        %v1263 = vadd.f32 %v1134, %v1262
        %v1264 = vpop.f32.mrb[0].mxu0
        %1265 = vmatprep.mubr.f32.mxu0 0.0
        %1266 = vmatmul.mubr.f32.gmra.mrb[0].mxu0 %v1176
        %v1267 = vpop.f32.mrb[0].mxu0
        %v1268 = vadd.f32 %v1139, %v1267
        %v1269 = vpop.f32.mrb[0].mxu0
        %1270 = vmatprep.mubr.f32.mxu0 0.0
        %1271 = vmatmul.mubr.f32.gmra.mrb[0].mxu0 %v1179
        %v1272 = vpop.f32.mrb[0].mxu0
        %v1273 = vadd.f32 %v1144, %v1272
        %v1274 = vpop.f32.mrb[0].mxu0
        %1275 = vmatprep.mubr.f32.mxu0 0.0
        %1276 = vmatmul.mubr.f32.gmra.mrb[0].mxu0 %v1182
        %v1277 = vpop.f32.mrb[0].mxu0
        %v1278 = vadd.f32 %v1149, %v1277
        %v1279 = vpop.f32.mrb[0].mxu0
        %1280 = vmatprep.mubr.f32.mxu0 0.0
        %1281 = vmatmul.mubr.f32.gmra.mrb[0].mxu0 %v1185
        %v1282 = vpop.f32.mrb[0].mxu0
        %v1283 = vadd.f32 %v1154, %v1282
        %v1284 = vpop.f32.mrb[0].mxu0
        %1285 = vmatprep.mubr.f32.mxu0 0.0
        %1286 = vmatmul.mubr.f32.gmra.mrb[0].mxu0 %v1188
        %v1287 = vpop.f32.mrb[0].mxu0
        %v1288 = vadd.f32 %v1159, %v1287
        %v1289 = vpop.f32.mrb[0].mxu0
        %1290 = vmatprep.mubr.f32.mxu0 0.0
        %1291 = vmatmul.mubr.f32.gmra.mrb[0].mxu0 %v1191
        %v1292 = vpop.f32.mrb[0].mxu0
        %v1293 = vadd.f32 %v1164, %v1292
        %v1294 = vpop.f32.mrb[0].mxu0
        %1295 = vmatprep.mubr.f32.mxu0 0.0
        %1296 = vmatmul.mubr.f32.gmra.mrb[0].mxu0 %v1194
        %v1297 = vpop.f32.mrb[0].mxu0
        %v1298 = vadd.f32 %v1169, %v1297
        %v1299 = vpop.f32.mrb[0].mxu0
        %1300 = vdwg.mxu0
        %v1301 = vrot.slane %v927, 1
        %v1302 = vrot.slane %v928, 1
        %v1303 = vsel %vm420, %v1301, %v1302
        %v1304 = vrot.slane %v929, 1
        %v1305 = vsel %vm420, %v1302, %v1304
        %v1306 = vrot.slane %v930, 1
        %v1307 = vsel %vm420, %v1304, %v1306
        %v1308 = vrot.slane %v931, 1
        %v1309 = vsel %vm420, %v1306, %v1308
        %v1310 = vrot.slane %v932, 1
        %v1311 = vsel %vm420, %v1308, %v1310
        %v1312 = vrot.slane %v933, 1
        %v1313 = vsel %vm420, %v1310, %v1312
        %v1314 = vrot.slane %v934, 1
        %v1315 = vsel %vm420, %v1312, %v1314
        %v1316 = vsel %vm707, %v1303, 0
        %v1318 = vsel %vm707, %v1305, 0
        %v1320 = vsel %vm707, %v1307, 0
        %v1322 = vsel %vm707, %v1309, 0
        %v1324 = vsel %vm707, %v1311, 0
        %v1326 = vsel %vm707, %v1313, 0
        %v1328 = vsel %vm707, %v1315, 0
        %v1330 = vsel %vm707, %v1314, 0
        %1332 = vmatprep.subr.mxu0 0.0
        %1333 = vmatpush1.msra.mxu0 %v1039
        %1334 = vmatprep.subr.mxu0 0.0
        %1335 = vmatpush1.msra.mxu0 %v1040
        %1336 = vmatprep.subr.mxu0 0.0
        %1337 = vmatpush1.msra.mxu0 %v1041
        %1338 = vmatprep.subr.mxu0 0.0
        %1339 = vmatpush1.msra.mxu0 %v1042
        %1340 = vmatprep.subr.mxu0 0.0
        %1341 = vmatpush1.msra.mxu0 0.0
        %1342 = vmatprep.subr.mxu0 0.0
        %1343 = vmatpush1.msra.mxu0 0.0
        %1344 = vmatprep.subr.mxu0 0.0
        %1345 = vmatpush1.msra.mxu0 0.0
        %1346 = vmatprep.subr.mxu0 0.0
        %1347 = vmatpush1.msra.mxu0 0.0
        %1348 = vmatprep.subr.mxu0 0.0
        %1349 = vmatpush1.msra.mxu0 0.0
        %1350 = vmatprep.subr.mxu0 0.0
        %1351 = vmatpush1.msra.mxu0 0.0
        %1352 = vmatprep.subr.mxu0 0.0
        %1353 = vmatpush1.msra.mxu0 0.0
        %1354 = vmatprep.subr.mxu0 0.0
        %1355 = vmatpush1.msra.mxu0 0.0
        %1356 = vmatprep.subr.mxu0 0.0
        %1357 = vmatpush1.msra.mxu0 0.0
        %1358 = vmatprep.subr.mxu0 0.0
        %1359 = vmatpush1.msra.mxu0 0.0
        %1360 = vmatprep.subr.mxu0 0.0
        %1361 = vmatpush1.msra.mxu0 0.0
        %1362 = vmatprep.subr.mxu0 0.0
        %1363 = vmatpush1.msra.mxu0 0.0
        %1364 = vmatprep.subr.mxu0 0.0
        %1365 = vmatpush1.msra.mxu0 0.0
        %1366 = vmatprep.subr.mxu0 0.0
        %1367 = vmatpush1.msra.mxu0 0.0
        %1368 = vmatprep.subr.mxu0 0.0
        %1369 = vmatpush1.msra.mxu0 0.0
        %1370 = vmatprep.subr.mxu0 0.0
        %1371 = vmatpush1.msra.mxu0 0.0
        %1372 = vmatprep.subr.mxu0 0.0
        %1373 = vmatpush1.msra.mxu0 0.0
        %1374 = vmatprep.subr.mxu0 0.0
        %1375 = vmatpush1.msra.mxu0 0.0
        %1376 = vmatprep.subr.mxu0 0.0
        %1377 = vmatpush1.msra.mxu0 0.0
        %1378 = vmatprep.subr.mxu0 0.0
        %1379 = vmatpush1.msra.mxu0 0.0
        %1380 = vmatprep.subr.mxu0 0.0
        %1381 = vmatpush1.msra.mxu0 0.0
        %1382 = vmatprep.subr.mxu0 0.0
        %1383 = vmatpush1.msra.mxu0 0.0
        %1384 = vmatprep.subr.mxu0 0.0
        %1385 = vmatpush1.msra.mxu0 0.0
        %1386 = vmatprep.subr.mxu0 0.0
        %1387 = vmatpush1.msra.mxu0 0.0
        %1388 = vmatprep.subr.mxu0 0.0
        %1389 = vmatpush1.msra.mxu0 0.0
        %1390 = vmatprep.subr.mxu0 0.0
        %1391 = vmatpush1.msra.mxu0 0.0
        %1392 = vmatprep.subr.mxu0 0.0
        %1393 = vmatpush1.msra.mxu0 0.0
        %1394 = vmatprep.subr.mxu0 0.0
        %1395 = vmatpush1.msra.mxu0 0.0
        %1396 = vmatprep.mubr.f32.mxu0 0.0
        %1397 = vmatmul.mubr.f32.gmra.mrb[0].mxu0 %v1316
        %v1398 = vpop.f32.mrb[0].mxu0
        %v1399 = vadd.f32 0.0, %v1398
        %v1400 = vpop.f32.mrb[0].mxu0
        %1401 = vmatprep.mubr.f32.mxu0 0.0
        %1402 = vmatmul.mubr.f32.gmra.mrb[0].mxu0 %v1318
        %v1403 = vpop.f32.mrb[0].mxu0
        %v1404 = vadd.f32 0.0, %v1403
        %v1405 = vpop.f32.mrb[0].mxu0
        %1406 = vmatprep.mubr.f32.mxu0 0.0
        %1407 = vmatmul.mubr.f32.gmra.mrb[0].mxu0 %v1320
        %v1408 = vpop.f32.mrb[0].mxu0
        %v1409 = vadd.f32 0.0, %v1408
        %v1410 = vpop.f32.mrb[0].mxu0
        %1411 = vmatprep.mubr.f32.mxu0 0.0
        %1412 = vmatmul.mubr.f32.gmra.mrb[0].mxu0 %v1322
        %v1413 = vpop.f32.mrb[0].mxu0
        %v1414 = vadd.f32 0.0, %v1413
        %v1415 = vpop.f32.mrb[0].mxu0
        %1416 = vmatprep.mubr.f32.mxu0 0.0
        %1417 = vmatmul.mubr.f32.gmra.mrb[0].mxu0 %v1324
        %v1418 = vpop.f32.mrb[0].mxu0
        %v1419 = vadd.f32 0.0, %v1418
        %v1420 = vpop.f32.mrb[0].mxu0
        %1421 = vmatprep.mubr.f32.mxu0 0.0
        %1422 = vmatmul.mubr.f32.gmra.mrb[0].mxu0 %v1326
        %v1423 = vpop.f32.mrb[0].mxu0
        %v1424 = vadd.f32 0.0, %v1423
        %v1425 = vpop.f32.mrb[0].mxu0
        %1426 = vmatprep.mubr.f32.mxu0 0.0
        %1427 = vmatmul.mubr.f32.gmra.mrb[0].mxu0 %v1328
        %v1428 = vpop.f32.mrb[0].mxu0
        %v1429 = vadd.f32 0.0, %v1428
        %v1430 = vpop.f32.mrb[0].mxu0
        %1431 = vmatprep.mubr.f32.mxu0 0.0
        %1432 = vmatmul.mubr.f32.gmra.mrb[0].mxu0 %v1330
        %v1433 = vpop.f32.mrb[0].mxu0
        %v1434 = vadd.f32 0.0, %v1433
        %v1435 = vpop.f32.mrb[0].mxu0
        %1436 = vdwg.mxu0
        %v1437 = vadd.f32 %v1263, %v1399
        %v1438 = vadd.f32 %v1268, %v1404
        %v1439 = vadd.f32 %v1273, %v1409
        %v1440 = vadd.f32 %v1278, %v1414
        %v1441 = vadd.f32 %v1283, %v1419
        %v1442 = vadd.f32 %v1288, %v1424
        %v1443 = vadd.f32 %v1293, %v1429
        %v1444 = vadd.f32 %v1298, %v1434
        %v1445 = vmul.f32 %v1437, %v1437
        %v1446 = vmul.f32 %v1438, %v1438
        %v1447 = vmul.f32 %v1439, %v1439
        %v1448 = vmul.f32 %v1440, %v1440
        %v1449 = vmul.f32 %v1441, %v1441
        %v1450 = vmul.f32 %v1442, %v1442
        %v1451 = vmul.f32 %v1443, %v1443
        %v1452 = vmul.f32 %v1444, %v1444
        %v1453 = vmul.f32 %v1437, %v1445
        %v1454 = vmul.f32 %v1438, %v1446
        %v1455 = vmul.f32 %v1439, %v1447
        %v1456 = vmul.f32 %v1440, %v1448
        %v1457 = vmul.f32 %v1441, %v1449
        %v1458 = vmul.f32 %v1442, %v1450
        %v1459 = vmul.f32 %v1443, %v1451
        %v1460 = vmul.f32 %v1444, %v1452
        %v1461 = vmul.f32 %v1453, 0.044715
        %v1462 = vmul.f32 %v1454, 0.044715
        %v1463 = vmul.f32 %v1455, 0.044715
        %v1464 = vmul.f32 %v1456, 0.044715
        %v1465 = vmul.f32 %v1457, 0.044715
        %v1466 = vmul.f32 %v1458, 0.044715
        %v1467 = vmul.f32 %v1459, 0.044715
        %v1468 = vmul.f32 %v1460, 0.044715
        %v1469 = vadd.f32 %v1437, %v1461
        %v1470 = vadd.f32 %v1438, %v1462
        %v1471 = vadd.f32 %v1439, %v1463
        %v1472 = vadd.f32 %v1440, %v1464
        %v1473 = vadd.f32 %v1441, %v1465
        %v1474 = vadd.f32 %v1442, %v1466
        %v1475 = vadd.f32 %v1443, %v1467
        %v1476 = vadd.f32 %v1444, %v1468
        %v1477 = vmul.f32 %v1469, 0.7978846
        %v1478 = vmul.f32 %v1470, 0.7978846
        %v1479 = vmul.f32 %v1471, 0.7978846
        %v1480 = vmul.f32 %v1472, 0.7978846
        %v1481 = vmul.f32 %v1473, 0.7978846
        %v1482 = vmul.f32 %v1474, 0.7978846
        %v1483 = vmul.f32 %v1475, 0.7978846
        %v1484 = vmul.f32 %v1476, 0.7978846
        %v1485 = vtanh.pop %v1477
        %v1486 = vtanh.pop %v1478
        %v1487 = vtanh.pop %v1479
        %v1488 = vtanh.pop %v1480
        %v1489 = vtanh.pop %v1481
        %v1490 = vtanh.pop %v1482
        %v1491 = vtanh.pop %v1483
        %v1492 = vtanh.pop %v1484
        %v1493 = vadd.f32 %v1485, 1.0
        %v1494 = vadd.f32 %v1486, 1.0
        %v1495 = vadd.f32 %v1487, 1.0
        %v1496 = vadd.f32 %v1488, 1.0
        %v1497 = vadd.f32 %v1489, 1.0
        %v1498 = vadd.f32 %v1490, 1.0
        %v1499 = vadd.f32 %v1491, 1.0
        %v1500 = vadd.f32 %v1492, 1.0
        %v1501 = vmul.f32 %v1493, 0.5
        %v1502 = vmul.f32 %v1494, 0.5
        %v1503 = vmul.f32 %v1495, 0.5
        %v1504 = vmul.f32 %v1496, 0.5
        %v1505 = vmul.f32 %v1497, 0.5
        %v1506 = vmul.f32 %v1498, 0.5
        %v1507 = vmul.f32 %v1499, 0.5
        %v1508 = vmul.f32 %v1500, 0.5
        %v1509 = vmul.f32 %v1437, %v1501
        %v1510 = vmul.f32 %v1438, %v1502
        %v1511 = vmul.f32 %v1439, %v1503
        %v1512 = vmul.f32 %v1440, %v1504
        %v1513 = vmul.f32 %v1441, %v1505
        %v1514 = vmul.f32 %v1442, %v1506
        %v1515 = vmul.f32 %v1443, %v1507
        %v1516 = vmul.f32 %v1444, %v1508
        %v1517 = vld [vmem:[%s3 + $0x2] sm:$0x1]
        %v1518 = vld [vmem:[%s3 + $0x3] sm:$0x1]
        %v1519 = vsel %vm707, %v1509, 0.0
        %1520 = vadd.xlane.f32.xlu0 %v1519
        %v1521 = vpop.xlane.xlu0 %1520
        %v1522 = vsel %vm707, %v1510, 0.0
        %1523 = vadd.xlane.f32.xlu0 %v1522
        %v1524 = vpop.xlane.xlu0 %1523
        %v1525 = vsel %vm707, %v1511, 0.0
        %1526 = vadd.xlane.f32.xlu0 %v1525
        %v1527 = vpop.xlane.xlu0 %1526
        %v1528 = vsel %vm707, %v1512, 0.0
        %1529 = vadd.xlane.f32.xlu0 %v1528
        %v1530 = vpop.xlane.xlu0 %1529
        %v1531 = vsel %vm707, %v1513, 0.0
        %1532 = vadd.xlane.f32.xlu0 %v1531
        %v1533 = vpop.xlane.xlu0 %1532
        %v1534 = vsel %vm707, %v1514, 0.0
        %1535 = vadd.xlane.f32.xlu0 %v1534
        %v1536 = vpop.xlane.xlu0 %1535
        %v1537 = vsel %vm707, %v1515, 0.0
        %1538 = vadd.xlane.f32.xlu0 %v1537
        %v1539 = vpop.xlane.xlu0 %1538
        %v1540 = vsel %vm742, %v1516, 0.0
        %1541 = vadd.xlane.f32.xlu0 %v1540
        %v1542 = vpop.xlane.xlu0 %1541
        %v1543 = vrcp.pop 32.0
        %v1544 = vmul.f32 %v1521, %v1543
        %v1545 = vmul.f32 %v1524, %v1543
        %v1546 = vmul.f32 %v1527, %v1543
        %v1547 = vmul.f32 %v1530, %v1543
        %v1548 = vmul.f32 %v1533, %v1543
        %v1549 = vmul.f32 %v1536, %v1543
        %v1550 = vmul.f32 %v1539, %v1543
        %v1551 = vmul.f32 %v1542, %v1543
        %v1552 = vsub.f32 %v1509, %v1544
        %v1553 = vsub.f32 %v1510, %v1545
        %v1554 = vsub.f32 %v1511, %v1546
        %v1555 = vsub.f32 %v1512, %v1547
        %v1556 = vsub.f32 %v1513, %v1548
        %v1557 = vsub.f32 %v1514, %v1549
        %v1558 = vsub.f32 %v1515, %v1550
        %v1559 = vsub.f32 %v1516, %v1551
        %v1560 = vmul.f32 %v1552, %v1552
        %v1561 = vmul.f32 %v1553, %v1553
        %v1562 = vmul.f32 %v1554, %v1554
        %v1563 = vmul.f32 %v1555, %v1555
        %v1564 = vmul.f32 %v1556, %v1556
        %v1565 = vmul.f32 %v1557, %v1557
        %v1566 = vmul.f32 %v1558, %v1558
        %v1567 = vmul.f32 %v1559, %v1559
        %v1568 = vsel %vm707, %v1560, 0.0
        %1569 = vadd.xlane.f32.xlu0 %v1568
        %v1570 = vpop.xlane.xlu0 %1569
        %v1571 = vsel %vm707, %v1561, 0.0
        %1572 = vadd.xlane.f32.xlu0 %v1571
        %v1573 = vpop.xlane.xlu0 %1572
        %v1574 = vsel %vm707, %v1562, 0.0
        %1575 = vadd.xlane.f32.xlu0 %v1574
        %v1576 = vpop.xlane.xlu0 %1575
        %v1577 = vsel %vm707, %v1563, 0.0
        %1578 = vadd.xlane.f32.xlu0 %v1577
        %v1579 = vpop.xlane.xlu0 %1578
        %v1580 = vsel %vm707, %v1564, 0.0
        %1581 = vadd.xlane.f32.xlu0 %v1580
        %v1582 = vpop.xlane.xlu0 %1581
        %v1583 = vsel %vm707, %v1565, 0.0
        %1584 = vadd.xlane.f32.xlu0 %v1583
        %v1585 = vpop.xlane.xlu0 %1584
        %v1586 = vsel %vm707, %v1566, 0.0
        %1587 = vadd.xlane.f32.xlu0 %v1586
        %v1588 = vpop.xlane.xlu0 %1587
        %v1589 = vsel %vm742, %v1567, 0.0
        %1590 = vadd.xlane.f32.xlu0 %v1589
        %v1591 = vpop.xlane.xlu0 %1590
        %v1592 = vmul.f32 %v1570, %v1543
        %v1593 = vmul.f32 %v1573, %v1543
        %v1594 = vmul.f32 %v1576, %v1543
        %v1595 = vmul.f32 %v1579, %v1543
        %v1596 = vmul.f32 %v1582, %v1543
        %v1597 = vmul.f32 %v1585, %v1543
        %v1598 = vmul.f32 %v1588, %v1543
        %v1599 = vmul.f32 %v1591, %v1543
        %v1600 = vadd.f32 %v1592, 1e-05
        %v1601 = vadd.f32 %v1593, 1e-05
        %v1602 = vadd.f32 %v1594, 1e-05
        %v1603 = vadd.f32 %v1595, 1e-05
        %v1604 = vadd.f32 %v1596, 1e-05
        %v1605 = vadd.f32 %v1597, 1e-05
        %v1606 = vadd.f32 %v1598, 1e-05
        %v1607 = vadd.f32 %v1599, 1e-05
        %v1608 = vrsqrt.pop %v1600
        %v1609 = vrsqrt.pop %v1601
        %v1610 = vrsqrt.pop %v1602
        %v1611 = vrsqrt.pop %v1603
        %v1612 = vrsqrt.pop %v1604
        %v1613 = vrsqrt.pop %v1605
        %v1614 = vrsqrt.pop %v1606
        %v1615 = vrsqrt.pop %v1607
        %v1616 = vmul.f32 %v1552, %v1608
        %v1617 = vmul.f32 %v1553, %v1609
        %v1618 = vmul.f32 %v1554, %v1610
        %v1619 = vmul.f32 %v1555, %v1611
        %v1620 = vmul.f32 %v1556, %v1612
        %v1621 = vmul.f32 %v1557, %v1613
        %v1622 = vmul.f32 %v1558, %v1614
        %v1623 = vmul.f32 %v1559, %v1615
        %v1624 = vlaneseq
        %v1625 = vshrl.u32 %v1624, 7
        %v1626 = vsub.s32 0, %v1625
        %v1627 = vrot.slane %v1517, %v1626
        %v1628 = vmul.f32 %v1616, %v1627
        %v1629 = vmul.f32 %v1617, %v1627
        %v1630 = vmul.f32 %v1618, %v1627
        %v1631 = vmul.f32 %v1619, %v1627
        %v1632 = vmul.f32 %v1620, %v1627
        %v1633 = vmul.f32 %v1621, %v1627
        %v1634 = vmul.f32 %v1622, %v1627
        %v1635 = vmul.f32 %v1623, %v1627
        %v1636 = vlaneseq
        %v1637 = vshrl.u32 %v1636, 7
        %v1638 = vsub.s32 0, %v1637
        %v1639 = vrot.slane %v1518, %v1638
        %v1640 = vadd.f32 %v1628, %v1639
        %v1641 = vadd.f32 %v1629, %v1639
        %v1642 = vadd.f32 %v1630, %v1639
        %v1643 = vadd.f32 %v1631, %v1639
        %v1644 = vadd.f32 %v1632, %v1639
        %v1645 = vadd.f32 %v1633, %v1639
        %v1646 = vadd.f32 %v1634, %v1639
        %v1647 = vadd.f32 %v1635, %v1639
        %v1648 = vld [vmem:[%s2] sm:$0xff]
        %v1649 = vld [vmem:[%s2 + $0x8] sm:$0xff]
        %v1650 = vld [vmem:[%s2 + $0x10] sm:$0xff]
        %v1651 = vld [vmem:[%s2 + $0x18] sm:$0xff]
        %v1652 = vld [vmem:[%s3 + $0x4] sm:$0x1]
        %v1653 = vlaneseq
        %v1654 = vshrl.u32 %v1653, 7
        %v1655 = vsub.s32 0, %v1654
        %v1656 = vrot.slane %v1652, %v1655
        %v1658 = vsel %vm707, %v1640, 0
        %v1661 = vsel %vm707, %v1641, 0
        %v1664 = vsel %vm707, %v1642, 0
        %v1667 = vsel %vm707, %v1643, 0
        %v1670 = vsel %vm707, %v1644, 0
        %v1673 = vsel %vm707, %v1645, 0
        %v1676 = vsel %vm707, %v1646, 0
        %v1679 = vsel %vm707, %v1647, 0
        %1681 = vmatprep.subr.mxu0 0.0
        %1682 = vmatpush1.msra.mxu0 %v1648
        %1683 = vmatprep.subr.mxu0 0.0
        %1684 = vmatpush1.msra.mxu0 %v1649
        %1685 = vmatprep.subr.mxu0 0.0
        %1686 = vmatpush1.msra.mxu0 %v1650
        %1687 = vmatprep.subr.mxu0 0.0
        %1688 = vmatpush1.msra.mxu0 %v1651
        %1689 = vmatprep.subr.mxu0 0.0
        %1690 = vmatpush1.msra.mxu0 0.0
        %1691 = vmatprep.subr.mxu0 0.0
        %1692 = vmatpush1.msra.mxu0 0.0
        %1693 = vmatprep.subr.mxu0 0.0
        %1694 = vmatpush1.msra.mxu0 0.0
        %1695 = vmatprep.subr.mxu0 0.0
        %1696 = vmatpush1.msra.mxu0 0.0
        %1697 = vmatprep.subr.mxu0 0.0
        %1698 = vmatpush1.msra.mxu0 0.0
        %1699 = vmatprep.subr.mxu0 0.0
        %1700 = vmatpush1.msra.mxu0 0.0
        %1701 = vmatprep.subr.mxu0 0.0
        %1702 = vmatpush1.msra.mxu0 0.0
        %1703 = vmatprep.subr.mxu0 0.0
        %1704 = vmatpush1.msra.mxu0 0.0
        %1705 = vmatprep.subr.mxu0 0.0
        %1706 = vmatpush1.msra.mxu0 0.0
        %1707 = vmatprep.subr.mxu0 0.0
        %1708 = vmatpush1.msra.mxu0 0.0
        %1709 = vmatprep.subr.mxu0 0.0
        %1710 = vmatpush1.msra.mxu0 0.0
        %1711 = vmatprep.subr.mxu0 0.0
        %1712 = vmatpush1.msra.mxu0 0.0
        %1713 = vmatprep.subr.mxu0 0.0
        %1714 = vmatpush1.msra.mxu0 0.0
        %1715 = vmatprep.subr.mxu0 0.0
        %1716 = vmatpush1.msra.mxu0 0.0
        %1717 = vmatprep.subr.mxu0 0.0
        %1718 = vmatpush1.msra.mxu0 0.0
        %1719 = vmatprep.subr.mxu0 0.0
        %1720 = vmatpush1.msra.mxu0 0.0
        %1721 = vmatprep.subr.mxu0 0.0
        %1722 = vmatpush1.msra.mxu0 0.0
        %1723 = vmatprep.subr.mxu0 0.0
        %1724 = vmatpush1.msra.mxu0 0.0
        %1725 = vmatprep.subr.mxu0 0.0
        %1726 = vmatpush1.msra.mxu0 0.0
        %1727 = vmatprep.subr.mxu0 0.0
        %1728 = vmatpush1.msra.mxu0 0.0
        %1729 = vmatprep.subr.mxu0 0.0
        %1730 = vmatpush1.msra.mxu0 0.0
        %1731 = vmatprep.subr.mxu0 0.0
        %1732 = vmatpush1.msra.mxu0 0.0
        %1733 = vmatprep.subr.mxu0 0.0
        %1734 = vmatpush1.msra.mxu0 0.0
        %1735 = vmatprep.subr.mxu0 0.0
        %1736 = vmatpush1.msra.mxu0 0.0
        %1737 = vmatprep.subr.mxu0 0.0
        %1738 = vmatpush1.msra.mxu0 0.0
        %1739 = vmatprep.subr.mxu0 0.0
        %1740 = vmatpush1.msra.mxu0 0.0
        %1741 = vmatprep.subr.mxu0 0.0
        %1742 = vmatpush1.msra.mxu0 0.0
        %1743 = vmatprep.subr.mxu0 0.0
        %1744 = vmatpush1.msra.mxu0 0.0
        %1745 = vmatprep.mubr.f32.mxu0 0.0
        %1746 = vmatmul.mubr.f32.gmra.mrb[0].mxu0 %v1658
        %v1747 = vpop.f32.mrb[0].mxu0
        %v1748 = vadd.f32 %v1656, %v1747
        %v1749 = vpop.f32.mrb[0].mxu0
        %1750 = vmatprep.mubr.f32.mxu0 0.0
        %1751 = vmatmul.mubr.f32.gmra.mrb[0].mxu0 %v1661
        %v1752 = vpop.f32.mrb[0].mxu0
        %v1753 = vadd.f32 %v1656, %v1752
        %v1754 = vpop.f32.mrb[0].mxu0
        %1755 = vmatprep.mubr.f32.mxu0 0.0
        %1756 = vmatmul.mubr.f32.gmra.mrb[0].mxu0 %v1664
        %v1757 = vpop.f32.mrb[0].mxu0
        %v1758 = vadd.f32 %v1656, %v1757
        %v1759 = vpop.f32.mrb[0].mxu0
        %1760 = vmatprep.mubr.f32.mxu0 0.0
        %1761 = vmatmul.mubr.f32.gmra.mrb[0].mxu0 %v1667
        %v1762 = vpop.f32.mrb[0].mxu0
        %v1763 = vadd.f32 %v1656, %v1762
        %v1764 = vpop.f32.mrb[0].mxu0
        %1765 = vmatprep.mubr.f32.mxu0 0.0
        %1766 = vmatmul.mubr.f32.gmra.mrb[0].mxu0 %v1670
        %v1767 = vpop.f32.mrb[0].mxu0
        %v1768 = vadd.f32 %v1656, %v1767
        %v1769 = vpop.f32.mrb[0].mxu0
        %1770 = vmatprep.mubr.f32.mxu0 0.0
        %1771 = vmatmul.mubr.f32.gmra.mrb[0].mxu0 %v1673
        %v1772 = vpop.f32.mrb[0].mxu0
        %v1773 = vadd.f32 %v1656, %v1772
        %v1774 = vpop.f32.mrb[0].mxu0
        %1775 = vmatprep.mubr.f32.mxu0 0.0
        %1776 = vmatmul.mubr.f32.gmra.mrb[0].mxu0 %v1676
        %v1777 = vpop.f32.mrb[0].mxu0
        %v1778 = vadd.f32 %v1656, %v1777
        %v1779 = vpop.f32.mrb[0].mxu0
        %1780 = vmatprep.mubr.f32.mxu0 0.0
        %1781 = vmatmul.mubr.f32.gmra.mrb[0].mxu0 %v1679
        %v1782 = vpop.f32.mrb[0].mxu0
        %v1783 = vadd.f32 %v1656, %v1782
        %v1784 = vpop.f32.mrb[0].mxu0
        %1785 = vdwg.mxu0
        %v1786 = vld [vmem:[%s3 + $0x5] sm:$0x1]
        %v1787 = vld [vmem:[%s3 + $0x6] sm:$0x1]
        %vm1788 = vcmask 523264
        %v1789 = vsel %vm1788, %v1748, 0.0
        %1790 = vadd.xlane.f32.xlu0 %v1789
        %v1791 = vpop.xlane.xlu0 %1790
        %v1792 = vsel %vm1788, %v1753, 0.0
        %1793 = vadd.xlane.f32.xlu0 %v1792
        %v1794 = vpop.xlane.xlu0 %1793
        %v1795 = vsel %vm1788, %v1758, 0.0
        %1796 = vadd.xlane.f32.xlu0 %v1795
        %v1797 = vpop.xlane.xlu0 %1796
        %v1798 = vsel %vm1788, %v1763, 0.0
        %1799 = vadd.xlane.f32.xlu0 %v1798
        %v1800 = vpop.xlane.xlu0 %1799
        %v1801 = vsel %vm1788, %v1768, 0.0
        %1802 = vadd.xlane.f32.xlu0 %v1801
        %v1803 = vpop.xlane.xlu0 %1802
        %v1804 = vsel %vm1788, %v1773, 0.0
        %1805 = vadd.xlane.f32.xlu0 %v1804
        %v1806 = vpop.xlane.xlu0 %1805
        %v1807 = vsel %vm1788, %v1778, 0.0
        %1808 = vadd.xlane.f32.xlu0 %v1807
        %v1809 = vpop.xlane.xlu0 %1808
        %vm1810 = vcmask 522240
        %v1811 = vsel %vm1810, %v1783, 0.0
        %1812 = vadd.xlane.f32.xlu0 %v1811
        %v1813 = vpop.xlane.xlu0 %1812
        %v1814 = vrcp.pop 64.0
        %v1815 = vmul.f32 %v1791, %v1814
        %v1816 = vmul.f32 %v1794, %v1814
        %v1817 = vmul.f32 %v1797, %v1814
        %v1818 = vmul.f32 %v1800, %v1814
        %v1819 = vmul.f32 %v1803, %v1814
        %v1820 = vmul.f32 %v1806, %v1814
        %v1821 = vmul.f32 %v1809, %v1814
        %v1822 = vmul.f32 %v1813, %v1814
        %v1823 = vsub.f32 %v1748, %v1815
        %v1824 = vsub.f32 %v1753, %v1816
        %v1825 = vsub.f32 %v1758, %v1817
        %v1826 = vsub.f32 %v1763, %v1818
        %v1827 = vsub.f32 %v1768, %v1819
        %v1828 = vsub.f32 %v1773, %v1820
        %v1829 = vsub.f32 %v1778, %v1821
        %v1830 = vsub.f32 %v1783, %v1822
        %v1831 = vmul.f32 %v1823, %v1823
        %v1832 = vmul.f32 %v1824, %v1824
        %v1833 = vmul.f32 %v1825, %v1825
        %v1834 = vmul.f32 %v1826, %v1826
        %v1835 = vmul.f32 %v1827, %v1827
        %v1836 = vmul.f32 %v1828, %v1828
        %v1837 = vmul.f32 %v1829, %v1829
        %v1838 = vmul.f32 %v1830, %v1830
        %v1839 = vsel %vm1788, %v1831, 0.0
        %1840 = vadd.xlane.f32.xlu0 %v1839
        %v1841 = vpop.xlane.xlu0 %1840
        %v1842 = vsel %vm1788, %v1832, 0.0
        %1843 = vadd.xlane.f32.xlu0 %v1842
        %v1844 = vpop.xlane.xlu0 %1843
        %v1845 = vsel %vm1788, %v1833, 0.0
        %1846 = vadd.xlane.f32.xlu0 %v1845
        %v1847 = vpop.xlane.xlu0 %1846
        %v1848 = vsel %vm1788, %v1834, 0.0
        %1849 = vadd.xlane.f32.xlu0 %v1848
        %v1850 = vpop.xlane.xlu0 %1849
        %v1851 = vsel %vm1788, %v1835, 0.0
        %1852 = vadd.xlane.f32.xlu0 %v1851
        %v1853 = vpop.xlane.xlu0 %1852
        %v1854 = vsel %vm1788, %v1836, 0.0
        %1855 = vadd.xlane.f32.xlu0 %v1854
        %v1856 = vpop.xlane.xlu0 %1855
        %v1857 = vsel %vm1788, %v1837, 0.0
        %1858 = vadd.xlane.f32.xlu0 %v1857
        %v1859 = vpop.xlane.xlu0 %1858
        %v1860 = vsel %vm1810, %v1838, 0.0
        %1861 = vadd.xlane.f32.xlu0 %v1860
        %v1862 = vpop.xlane.xlu0 %1861
        %v1863 = vmul.f32 %v1841, %v1814
        %v1864 = vmul.f32 %v1844, %v1814
        %v1865 = vmul.f32 %v1847, %v1814
        %v1866 = vmul.f32 %v1850, %v1814
        %v1867 = vmul.f32 %v1853, %v1814
        %v1868 = vmul.f32 %v1856, %v1814
        %v1869 = vmul.f32 %v1859, %v1814
        %v1870 = vmul.f32 %v1862, %v1814
        %v1871 = vadd.f32 %v1863, 1e-05
        %v1872 = vadd.f32 %v1864, 1e-05
        %v1873 = vadd.f32 %v1865, 1e-05
        %v1874 = vadd.f32 %v1866, 1e-05
        %v1875 = vadd.f32 %v1867, 1e-05
        %v1876 = vadd.f32 %v1868, 1e-05
        %v1877 = vadd.f32 %v1869, 1e-05
        %v1878 = vadd.f32 %v1870, 1e-05
        %v1879 = vrsqrt.pop %v1871
        %v1880 = vrsqrt.pop %v1872
        %v1881 = vrsqrt.pop %v1873
        %v1882 = vrsqrt.pop %v1874
        %v1883 = vrsqrt.pop %v1875
        %v1884 = vrsqrt.pop %v1876
        %v1885 = vrsqrt.pop %v1877
        %v1886 = vrsqrt.pop %v1878
        %v1887 = vmul.f32 %v1823, %v1879
        %v1888 = vmul.f32 %v1824, %v1880
        %v1889 = vmul.f32 %v1825, %v1881
        %v1890 = vmul.f32 %v1826, %v1882
        %v1891 = vmul.f32 %v1827, %v1883
        %v1892 = vmul.f32 %v1828, %v1884
        %v1893 = vmul.f32 %v1829, %v1885
        %v1894 = vmul.f32 %v1830, %v1886
        %v1895 = vlaneseq
        %v1896 = vshrl.u32 %v1895, 7
        %v1897 = vsub.s32 0, %v1896
        %v1898 = vrot.slane %v1786, %v1897
        %v1899 = vmul.f32 %v1887, %v1898
        %v1900 = vmul.f32 %v1888, %v1898
        %v1901 = vmul.f32 %v1889, %v1898
        %v1902 = vmul.f32 %v1890, %v1898
        %v1903 = vmul.f32 %v1891, %v1898
        %v1904 = vmul.f32 %v1892, %v1898
        %v1905 = vmul.f32 %v1893, %v1898
        %v1906 = vmul.f32 %v1894, %v1898
        %v1907 = vlaneseq
        %v1908 = vshrl.u32 %v1907, 7
        %v1909 = vsub.s32 0, %v1908
        %v1910 = vrot.slane %v1787, %v1909
        %v1911 = vadd.f32 %v1899, %v1910
        %v1912 = vadd.f32 %v1900, %v1910
        %v1913 = vadd.f32 %v1901, %v1910
        %v1914 = vadd.f32 %v1902, %v1910
        %v1915 = vadd.f32 %v1903, %v1910
        %v1916 = vadd.f32 %v1904, %v1910
        %v1917 = vadd.f32 %v1905, %v1910
        %v1918 = vadd.f32 %v1906, %v1910
        %v1919 = vld [vmem:[%s4] sm:$0xff]
        %v1920 = vld [vmem:[%s4 + $0x8] sm:$0xff]
        %v1921 = vld [vmem:[%s4 + $0x10] sm:$0xff]
        %v1922 = vld [vmem:[%s4 + $0x18] sm:$0xff]
        %v1923 = vld [vmem:[%s4 + $0x20] sm:$0xff]
        %v1924 = vld [vmem:[%s4 + $0x28] sm:$0xff]
        %v1925 = vld [vmem:[%s4 + $0x30] sm:$0xff]
        %v1926 = vld [vmem:[%s4 + $0x38] sm:$0xff]
        %v1927 = vld [vmem:[%s4 + $0x40] sm:$0xff]
        %v1928 = vld [vmem:[%s4 + $0x48] sm:$0xff]
        %v1929 = vld [vmem:[%s4 + $0x50] sm:$0xff]
        %v1930 = vld [vmem:[%s4 + $0x58] sm:$0xff]
        %v1931 = vld [vmem:[%s4 + $0x60] sm:$0xff]
        %v1932 = vld [vmem:[%s4 + $0x68] sm:$0xff]
        %v1933 = vld [vmem:[%s4 + $0x70] sm:$0xff]
        %v1934 = vld [vmem:[%s4 + $0x78] sm:$0xff]
        %v1935 = vld [vmem:[%s4 + $0x80] sm:$0xff]
        %v1936 = vld [vmem:[%s4 + $0x88] sm:$0xff]
        %v1937 = vld [vmem:[%s4 + $0x90] sm:$0xff]
        %v1938 = vld [vmem:[%s4 + $0x98] sm:$0xff]
        %v1939 = vld [vmem:[%s4 + $0xa0] sm:$0xff]
        %v1940 = vld [vmem:[%s4 + $0xa8] sm:$0xff]
        %v1941 = vld [vmem:[%s4 + $0xb0] sm:$0xff]
        %v1942 = vld [vmem:[%s4 + $0xb8] sm:$0xff]
        %v1943 = vld [vmem:[%s6] sm:$0xff]
        %v1944 = vld [vmem:[%s6 + $0x8] sm:$0xff]
        %v1945 = vld [vmem:[%s5] sm:$0xff]
        %v1946 = vld [vmem:[%s5 + $0x8] sm:$0xff]
        %v1947 = vld [vmem:[%s5 + $0x10] sm:$0xff]
        %v1948 = vld [vmem:[%s5 + $0x18] sm:$0xff]
        %v1949 = vld [vmem:[%s5 + $0x20] sm:$0xff]
        %v1950 = vld [vmem:[%s5 + $0x28] sm:$0xff]
        %v1951 = vld [vmem:[%s5 + $0x30] sm:$0xff]
        %v1952 = vld [vmem:[%s5 + $0x38] sm:$0xff]
        %v1953 = vld [vmem:[%s5 + $0x40] sm:$0xff]
        %v1954 = vld [vmem:[%s5 + $0x48] sm:$0xff]
        %v1955 = vld [vmem:[%s5 + $0x50] sm:$0xff]
        %v1956 = vld [vmem:[%s5 + $0x58] sm:$0xff]
        %v1957 = vld [vmem:[%s5 + $0x60] sm:$0xff]
        %v1958 = vld [vmem:[%s5 + $0x68] sm:$0xff]
        %v1959 = vld [vmem:[%s5 + $0x70] sm:$0xff]
        %v1960 = vld [vmem:[%s5 + $0x78] sm:$0xff]
        %v1961 = vlaneseq
        %v1962 = vshrl.u32 %v1961, 7
        %v1963 = vsub.s32 0, %v1962
        %v1964 = vrot.slane %v1943, %v1963
        %v1965 = vlaneseq
        %v1966 = vshrl.u32 %v1965, 7
        %v1967 = vsub.s32 0, %v1966
        %v1968 = vrot.slane %v1944, %v1967
        %v1970 = vsel %vm1788, %v1911, 0
        %v1973 = vsel %vm1788, %v1912, 0
        %v1976 = vsel %vm1788, %v1913, 0
        %v1979 = vsel %vm1788, %v1914, 0
        %v1982 = vsel %vm1788, %v1915, 0
        %v1985 = vsel %vm1788, %v1916, 0
        %v1988 = vsel %vm1788, %v1917, 0
        %v1991 = vsel %vm1788, %v1918, 0
        %1993 = vmatprep.subr.mxu0 %v1920
        %1994 = vmatpush1.msra.mxu0 %v1919
        %1995 = vmatprep.subr.mxu0 %v1923
        %1996 = vmatpush1.msra.mxu0 %v1922
        %1997 = vmatprep.subr.mxu0 %v1926
        %1998 = vmatpush1.msra.mxu0 %v1925
        %1999 = vmatprep.subr.mxu0 %v1929
        %2000 = vmatpush1.msra.mxu0 %v1928
        %2001 = vmatprep.subr.mxu0 %v1932
        %2002 = vmatpush1.msra.mxu0 %v1931
        %2003 = vmatprep.subr.mxu0 %v1935
        %2004 = vmatpush1.msra.mxu0 %v1934
        %2005 = vmatprep.subr.mxu0 %v1938
        %2006 = vmatpush1.msra.mxu0 %v1937
        %2007 = vmatprep.subr.mxu0 %v1941
        %2008 = vmatpush1.msra.mxu0 %v1940
        %2009 = vmatprep.subr.mxu0 0.0
        %2010 = vmatpush1.msra.mxu0 0.0
        %2011 = vmatprep.subr.mxu0 0.0
        %2012 = vmatpush1.msra.mxu0 0.0
        %2013 = vmatprep.subr.mxu0 0.0
        %2014 = vmatpush1.msra.mxu0 0.0
        %2015 = vmatprep.subr.mxu0 0.0
        %2016 = vmatpush1.msra.mxu0 0.0
        %2017 = vmatprep.subr.mxu0 0.0
        %2018 = vmatpush1.msra.mxu0 0.0
        %2019 = vmatprep.subr.mxu0 0.0
        %2020 = vmatpush1.msra.mxu0 0.0
        %2021 = vmatprep.subr.mxu0 0.0
        %2022 = vmatpush1.msra.mxu0 0.0
        %2023 = vmatprep.subr.mxu0 0.0
        %2024 = vmatpush1.msra.mxu0 0.0
        %2025 = vmatprep.subr.mxu0 0.0
        %2026 = vmatpush1.msra.mxu0 0.0
        %2027 = vmatprep.subr.mxu0 0.0
        %2028 = vmatpush1.msra.mxu0 0.0
        %2029 = vmatprep.subr.mxu0 0.0
        %2030 = vmatpush1.msra.mxu0 0.0
        %2031 = vmatprep.subr.mxu0 0.0
        %2032 = vmatpush1.msra.mxu0 0.0
        %2033 = vmatprep.subr.mxu0 0.0
        %2034 = vmatpush1.msra.mxu0 0.0
        %2035 = vmatprep.subr.mxu0 0.0
        %2036 = vmatpush1.msra.mxu0 0.0
        %2037 = vmatprep.subr.mxu0 0.0
        %2038 = vmatpush1.msra.mxu0 0.0
        %2039 = vmatprep.subr.mxu0 0.0
        %2040 = vmatpush1.msra.mxu0 0.0
        %2041 = vmatprep.subr.mxu0 0.0
        %2042 = vmatpush1.msra.mxu0 0.0
        %2043 = vmatprep.subr.mxu0 0.0
        %2044 = vmatpush1.msra.mxu0 0.0
        %2045 = vmatprep.subr.mxu0 0.0
        %2046 = vmatpush1.msra.mxu0 0.0
        %2047 = vmatprep.subr.mxu0 0.0
        %2048 = vmatpush1.msra.mxu0 0.0
        %2049 = vmatprep.subr.mxu0 0.0
        %2050 = vmatpush1.msra.mxu0 0.0
        %2051 = vmatprep.subr.mxu0 0.0
        %2052 = vmatpush1.msra.mxu0 0.0
        %2053 = vmatprep.subr.mxu0 0.0
        %2054 = vmatpush1.msra.mxu0 0.0
        %2055 = vmatprep.subr.mxu0 0.0
        %2056 = vmatpush1.msra.mxu0 0.0
        %2057 = vmatprep.mubr.f32.mxu0 0.0
        %2058 = vmatmul.mubr.f32.gmra.mrb[0].mxu0 %v1970
        %v2059 = vpop.f32.mrb[0].mxu0
        %v2060 = vadd.f32 %v1964, %v2059
        %v2061 = vpop.f32.mrb[0].mxu0
        %v2062 = vadd.f32 %v1968, %v2061
        %2063 = vmatprep.mubr.f32.mxu0 0.0
        %2064 = vmatmul.mubr.f32.gmra.mrb[0].mxu0 %v1973
        %v2065 = vpop.f32.mrb[0].mxu0
        %v2066 = vadd.f32 %v1964, %v2065
        %v2067 = vpop.f32.mrb[0].mxu0
        %v2068 = vadd.f32 %v1968, %v2067
        %2069 = vmatprep.mubr.f32.mxu0 0.0
        %2070 = vmatmul.mubr.f32.gmra.mrb[0].mxu0 %v1976
        %v2071 = vpop.f32.mrb[0].mxu0
        %v2072 = vadd.f32 %v1964, %v2071
        %v2073 = vpop.f32.mrb[0].mxu0
        %v2074 = vadd.f32 %v1968, %v2073
        %2075 = vmatprep.mubr.f32.mxu0 0.0
        %2076 = vmatmul.mubr.f32.gmra.mrb[0].mxu0 %v1979
        %v2077 = vpop.f32.mrb[0].mxu0
        %v2078 = vadd.f32 %v1964, %v2077
        %v2079 = vpop.f32.mrb[0].mxu0
        %v2080 = vadd.f32 %v1968, %v2079
        %2081 = vmatprep.mubr.f32.mxu0 0.0
        %2082 = vmatmul.mubr.f32.gmra.mrb[0].mxu0 %v1982
        %v2083 = vpop.f32.mrb[0].mxu0
        %v2084 = vadd.f32 %v1964, %v2083
        %v2085 = vpop.f32.mrb[0].mxu0
        %v2086 = vadd.f32 %v1968, %v2085
        %2087 = vmatprep.mubr.f32.mxu0 0.0
        %2088 = vmatmul.mubr.f32.gmra.mrb[0].mxu0 %v1985
        %v2089 = vpop.f32.mrb[0].mxu0
        %v2090 = vadd.f32 %v1964, %v2089
        %v2091 = vpop.f32.mrb[0].mxu0
        %v2092 = vadd.f32 %v1968, %v2091
        %2093 = vmatprep.mubr.f32.mxu0 0.0
        %2094 = vmatmul.mubr.f32.gmra.mrb[0].mxu0 %v1988
        %v2095 = vpop.f32.mrb[0].mxu0
        %v2096 = vadd.f32 %v1964, %v2095
        %v2097 = vpop.f32.mrb[0].mxu0
        %v2098 = vadd.f32 %v1968, %v2097
        %2099 = vmatprep.mubr.f32.mxu0 0.0
        %2100 = vmatmul.mubr.f32.gmra.mrb[0].mxu0 %v1991
        %v2101 = vpop.f32.mrb[0].mxu0
        %v2102 = vadd.f32 %v1964, %v2101
        %v2103 = vpop.f32.mrb[0].mxu0
        %v2104 = vadd.f32 %v1968, %v2103
        %2105 = vdwg.mxu0
        %v2106 = vmul.f32 %v2060, 0.25
        %v2107 = vmul.f32 %v2066, 0.25
        %v2108 = vmul.f32 %v2072, 0.25
        %v2109 = vmul.f32 %v2078, 0.25
        %v2110 = vmul.f32 %v2084, 0.25
        %v2111 = vmul.f32 %v2090, 0.25
        %v2112 = vmul.f32 %v2096, 0.25
        %v2113 = vmul.f32 %v2102, 0.25
        %2122 = vrot.lane.b32.xlu0 %v2060, 64
        %v2123 = vpop.permute.xlu0 %2122
        %2124 = vrot.lane.b32.xlu0 %v2066, 64
        %v2125 = vpop.permute.xlu0 %2124
        %2126 = vrot.lane.b32.xlu0 %v2072, 64
        %v2127 = vpop.permute.xlu0 %2126
        %2128 = vrot.lane.b32.xlu0 %v2078, 64
        %v2129 = vpop.permute.xlu0 %2128
        %2130 = vrot.lane.b32.xlu0 %v2084, 64
        %v2131 = vpop.permute.xlu0 %2130
        %2132 = vrot.lane.b32.xlu0 %v2090, 64
        %v2133 = vpop.permute.xlu0 %2132
        %2134 = vrot.lane.b32.xlu0 %v2096, 64
        %v2135 = vpop.permute.xlu0 %2134
        %2136 = vrot.lane.b32.xlu0 %v2102, 64
        %v2137 = vpop.permute.xlu0 %2136
        %vm2138 = vcmask 130048
        %v2140 = vsel %vm2138, %v2106, 0
        %v2143 = vsel %vm2138, %v2107, 0
        %v2146 = vsel %vm2138, %v2108, 0
        %v2149 = vsel %vm2138, %v2109, 0
        %v2152 = vsel %vm2138, %v2110, 0
        %v2155 = vsel %vm2138, %v2111, 0
        %v2158 = vsel %vm2138, %v2112, 0
        %v2161 = vsel %vm2138, %v2113, 0
        %v2163 = vsel %vm2138, %v2123, 0
        %v2165 = vsel %vm2138, %v2125, 0
        %v2167 = vsel %vm2138, %v2127, 0
        %v2169 = vsel %vm2138, %v2129, 0
        %v2171 = vsel %vm2138, %v2131, 0
        %v2173 = vsel %vm2138, %v2133, 0
        %v2175 = vsel %vm2138, %v2135, 0
        %v2177 = vsel %vm2138, %v2137, 0
        %2179 = vmatprep.subr.mxu0 0.0
        %2180 = vmatpush1.xpose.msra.mxu0 %v2163
        %2181 = vmatprep.subr.mxu0 0.0
        %2182 = vmatpush1.xpose.msra.mxu0 %v2165
        %2183 = vmatprep.subr.mxu0 0.0
        %2184 = vmatpush1.xpose.msra.mxu0 %v2167
        %2185 = vmatprep.subr.mxu0 0.0
        %2186 = vmatpush1.xpose.msra.mxu0 %v2169
        %2187 = vmatprep.subr.mxu0 0.0
        %2188 = vmatpush1.xpose.msra.mxu0 %v2171
        %2189 = vmatprep.subr.mxu0 0.0
        %2190 = vmatpush1.xpose.msra.mxu0 %v2173
        %2191 = vmatprep.subr.mxu0 0.0
        %2192 = vmatpush1.xpose.msra.mxu0 %v2175
        %2193 = vmatprep.subr.mxu0 0.0
        %2194 = vmatpush1.xpose.msra.mxu0 %v2177
        %2195 = vmatprep.subr.mxu0 0.0
        %2196 = vmatpush1.xpose.msra.mxu0 0.0
        %2197 = vmatprep.subr.mxu0 0.0
        %2198 = vmatpush1.xpose.msra.mxu0 0.0
        %2199 = vmatprep.subr.mxu0 0.0
        %2200 = vmatpush1.xpose.msra.mxu0 0.0
        %2201 = vmatprep.subr.mxu0 0.0
        %2202 = vmatpush1.xpose.msra.mxu0 0.0
        %2203 = vmatprep.subr.mxu0 0.0
        %2204 = vmatpush1.xpose.msra.mxu0 0.0
        %2205 = vmatprep.subr.mxu0 0.0
        %2206 = vmatpush1.xpose.msra.mxu0 0.0
        %2207 = vmatprep.subr.mxu0 0.0
        %2208 = vmatpush1.xpose.msra.mxu0 0.0
        %2209 = vmatprep.subr.mxu0 0.0
        %2210 = vmatpush1.xpose.msra.mxu0 0.0
        %2211 = vmatprep.subr.mxu0 0.0
        %2212 = vmatpush1.xpose.msra.mxu0 0.0
        %2213 = vmatprep.subr.mxu0 0.0
        %2214 = vmatpush1.xpose.msra.mxu0 0.0
        %2215 = vmatprep.subr.mxu0 0.0
        %2216 = vmatpush1.xpose.msra.mxu0 0.0
        %2217 = vmatprep.subr.mxu0 0.0
        %2218 = vmatpush1.xpose.msra.mxu0 0.0
        %2219 = vmatprep.subr.mxu0 0.0
        %2220 = vmatpush1.xpose.msra.mxu0 0.0
        %2221 = vmatprep.subr.mxu0 0.0
        %2222 = vmatpush1.xpose.msra.mxu0 0.0
        %2223 = vmatprep.subr.mxu0 0.0
        %2224 = vmatpush1.xpose.msra.mxu0 0.0
        %2225 = vmatprep.subr.mxu0 0.0
        %2226 = vmatpush1.xpose.msra.mxu0 0.0
        %2227 = vmatprep.subr.mxu0 0.0
        %2228 = vmatpush1.xpose.msra.mxu0 0.0
        %2229 = vmatprep.subr.mxu0 0.0
        %2230 = vmatpush1.xpose.msra.mxu0 0.0
        %2231 = vmatprep.subr.mxu0 0.0
        %2232 = vmatpush1.xpose.msra.mxu0 0.0
        %2233 = vmatprep.subr.mxu0 0.0
        %2234 = vmatpush1.xpose.msra.mxu0 0.0
        %2235 = vmatprep.subr.mxu0 0.0
        %2236 = vmatpush1.xpose.msra.mxu0 0.0
        %2237 = vmatprep.subr.mxu0 0.0
        %2238 = vmatpush1.xpose.msra.mxu0 0.0
        %2239 = vmatprep.subr.mxu0 0.0
        %2240 = vmatpush1.xpose.msra.mxu0 0.0
        %2241 = vmatprep.subr.mxu0 0.0
        %2242 = vmatpush1.xpose.msra.mxu0 0.0
        %2243 = vmatprep.mubr.f32.mxu0 0.0
        %2244 = vmatmul.mubr.f32.gmra.mrb[0].mxu0 %v2140
        %v2245 = vpop.f32.mrb[0].mxu0
        %v2246 = vadd.f32 0.0, %v2245
        %v2247 = vpop.f32.mrb[0].mxu0
        %2248 = vmatprep.mubr.f32.mxu0 0.0
        %2249 = vmatmul.mubr.f32.gmra.mrb[0].mxu0 %v2143
        %v2250 = vpop.f32.mrb[0].mxu0
        %v2251 = vadd.f32 0.0, %v2250
        %v2252 = vpop.f32.mrb[0].mxu0
        %2253 = vmatprep.mubr.f32.mxu0 0.0
        %2254 = vmatmul.mubr.f32.gmra.mrb[0].mxu0 %v2146
        %v2255 = vpop.f32.mrb[0].mxu0
        %v2256 = vadd.f32 0.0, %v2255
        %v2257 = vpop.f32.mrb[0].mxu0
        %2258 = vmatprep.mubr.f32.mxu0 0.0
        %2259 = vmatmul.mubr.f32.gmra.mrb[0].mxu0 %v2149
        %v2260 = vpop.f32.mrb[0].mxu0
        %v2261 = vadd.f32 0.0, %v2260
        %v2262 = vpop.f32.mrb[0].mxu0
        %2263 = vmatprep.mubr.f32.mxu0 0.0
        %2264 = vmatmul.mubr.f32.gmra.mrb[0].mxu0 %v2152
        %v2265 = vpop.f32.mrb[0].mxu0
        %v2266 = vadd.f32 0.0, %v2265
        %v2267 = vpop.f32.mrb[0].mxu0
        %2268 = vmatprep.mubr.f32.mxu0 0.0
        %2269 = vmatmul.mubr.f32.gmra.mrb[0].mxu0 %v2155
        %v2270 = vpop.f32.mrb[0].mxu0
        %v2271 = vadd.f32 0.0, %v2270
        %v2272 = vpop.f32.mrb[0].mxu0
        %2273 = vmatprep.mubr.f32.mxu0 0.0
        %2274 = vmatmul.mubr.f32.gmra.mrb[0].mxu0 %v2158
        %v2275 = vpop.f32.mrb[0].mxu0
        %v2276 = vadd.f32 0.0, %v2275
        %v2277 = vpop.f32.mrb[0].mxu0
        %2278 = vmatprep.mubr.f32.mxu0 0.0
        %2279 = vmatmul.mubr.f32.gmra.mrb[0].mxu0 %v2161
        %v2280 = vpop.f32.mrb[0].mxu0
        %v2281 = vadd.f32 0.0, %v2280
        %v2282 = vpop.f32.mrb[0].mxu0
        %2283 = vdwg.mxu0
        %vm2284 = vcmask 515072
        %v2285 = vsel %vm2284, %v2246, -inf
        %2286 = vmax.xlane.f32.xlu0 %v2285
        %v2287 = vpop.xlane.xlu0 %2286
        %v2288 = vsel %vm2284, %v2251, -inf
        %2289 = vmax.xlane.f32.xlu0 %v2288
        %v2290 = vpop.xlane.xlu0 %2289
        %v2291 = vsel %vm2284, %v2256, -inf
        %2292 = vmax.xlane.f32.xlu0 %v2291
        %v2293 = vpop.xlane.xlu0 %2292
        %v2294 = vsel %vm2284, %v2261, -inf
        %2295 = vmax.xlane.f32.xlu0 %v2294
        %v2296 = vpop.xlane.xlu0 %2295
        %v2297 = vsel %vm2284, %v2266, -inf
        %2298 = vmax.xlane.f32.xlu0 %v2297
        %v2299 = vpop.xlane.xlu0 %2298
        %v2300 = vsel %vm2284, %v2271, -inf
        %2301 = vmax.xlane.f32.xlu0 %v2300
        %v2302 = vpop.xlane.xlu0 %2301
        %v2303 = vsel %vm2284, %v2276, -inf
        %2304 = vmax.xlane.f32.xlu0 %v2303
        %v2305 = vpop.xlane.xlu0 %2304
        %vm2306 = vcmask 514048
        %v2307 = vsel %vm2306, %v2281, -inf
        %2308 = vmax.xlane.f32.xlu0 %v2307
        %v2309 = vpop.xlane.xlu0 %2308
        %v2310 = vsub.f32 %v2246, %v2287
        %v2311 = vsub.f32 %v2251, %v2290
        %v2312 = vsub.f32 %v2256, %v2293
        %v2313 = vsub.f32 %v2261, %v2296
        %v2314 = vsub.f32 %v2266, %v2299
        %v2315 = vsub.f32 %v2271, %v2302
        %v2316 = vsub.f32 %v2276, %v2305
        %v2317 = vsub.f32 %v2281, %v2309
        %v2318 = vmul.f32 %v2310, 1.442695
        %v2319 = vpow.pop %v2318
        %v2320 = vmul.f32 %v2311, 1.442695
        %v2321 = vpow.pop %v2320
        %v2322 = vmul.f32 %v2312, 1.442695
        %v2323 = vpow.pop %v2322
        %v2324 = vmul.f32 %v2313, 1.442695
        %v2325 = vpow.pop %v2324
        %v2326 = vmul.f32 %v2314, 1.442695
        %v2327 = vpow.pop %v2326
        %v2328 = vmul.f32 %v2315, 1.442695
        %v2329 = vpow.pop %v2328
        %v2330 = vmul.f32 %v2316, 1.442695
        %v2331 = vpow.pop %v2330
        %v2332 = vmul.f32 %v2317, 1.442695
        %v2333 = vpow.pop %v2332
        %v2334 = vsel %vm2284, %v2319, 0.0
        %2335 = vadd.xlane.f32.xlu0 %v2334
        %v2336 = vpop.xlane.xlu0 %2335
        %v2337 = vsel %vm2284, %v2321, 0.0
        %2338 = vadd.xlane.f32.xlu0 %v2337
        %v2339 = vpop.xlane.xlu0 %2338
        %v2340 = vsel %vm2284, %v2323, 0.0
        %2341 = vadd.xlane.f32.xlu0 %v2340
        %v2342 = vpop.xlane.xlu0 %2341
        %v2343 = vsel %vm2284, %v2325, 0.0
        %2344 = vadd.xlane.f32.xlu0 %v2343
        %v2345 = vpop.xlane.xlu0 %2344
        %v2346 = vsel %vm2284, %v2327, 0.0
        %2347 = vadd.xlane.f32.xlu0 %v2346
        %v2348 = vpop.xlane.xlu0 %2347
        %v2349 = vsel %vm2284, %v2329, 0.0
        %2350 = vadd.xlane.f32.xlu0 %v2349
        %v2351 = vpop.xlane.xlu0 %2350
        %v2352 = vsel %vm2284, %v2331, 0.0
        %2353 = vadd.xlane.f32.xlu0 %v2352
        %v2354 = vpop.xlane.xlu0 %2353
        %v2355 = vsel %vm2306, %v2333, 0.0
        %2356 = vadd.xlane.f32.xlu0 %v2355
        %v2357 = vpop.xlane.xlu0 %2356
        %v2358 = vrcp.pop %v2336
        %v2359 = vrcp.pop %v2339
        %v2360 = vrcp.pop %v2342
        %v2361 = vrcp.pop %v2345
        %v2362 = vrcp.pop %v2348
        %v2363 = vrcp.pop %v2351
        %v2364 = vrcp.pop %v2354
        %v2365 = vrcp.pop %v2357
        %v2366 = vmul.f32 %v2319, %v2358
        %v2367 = vmul.f32 %v2321, %v2359
        %v2368 = vmul.f32 %v2323, %v2360
        %v2369 = vmul.f32 %v2325, %v2361
        %v2370 = vmul.f32 %v2327, %v2362
        %v2371 = vmul.f32 %v2329, %v2363
        %v2372 = vmul.f32 %v2331, %v2364
        %v2373 = vmul.f32 %v2333, %v2365
        %v2375 = vsel %vm2284, %v2366, 0
        %v2378 = vsel %vm2284, %v2367, 0
        %v2381 = vsel %vm2284, %v2368, 0
        %v2384 = vsel %vm2284, %v2369, 0
        %v2387 = vsel %vm2284, %v2370, 0
        %v2390 = vsel %vm2284, %v2371, 0
        %v2393 = vsel %vm2284, %v2372, 0
        %v2396 = vsel %vm2284, %v2373, 0
        %v2399 = vsel %vm420, %v2104, 0
        %2401 = vmatprep.subr.mxu0 0.0
        %2402 = vmatpush1.msra.mxu0 %v2062
        %2403 = vmatprep.subr.mxu0 0.0
        %2404 = vmatpush1.msra.mxu0 %v2068
        %2405 = vmatprep.subr.mxu0 0.0
        %2406 = vmatpush1.msra.mxu0 %v2074
        %2407 = vmatprep.subr.mxu0 0.0
        %2408 = vmatpush1.msra.mxu0 %v2080
        %2409 = vmatprep.subr.mxu0 0.0
        %2410 = vmatpush1.msra.mxu0 %v2086
        %2411 = vmatprep.subr.mxu0 0.0
        %2412 = vmatpush1.msra.mxu0 %v2092
        %2413 = vmatprep.subr.mxu0 0.0
        %2414 = vmatpush1.msra.mxu0 %v2098
        %2415 = vmatprep.subr.mxu0 0.0
        %2416 = vmatpush1.msra.mxu0 %v2399
        %2417 = vmatprep.subr.mxu0 0.0
        %2418 = vmatpush1.msra.mxu0 0.0
        %2419 = vmatprep.subr.mxu0 0.0
        %2420 = vmatpush1.msra.mxu0 0.0
        %2421 = vmatprep.subr.mxu0 0.0
        %2422 = vmatpush1.msra.mxu0 0.0
        %2423 = vmatprep.subr.mxu0 0.0
        %2424 = vmatpush1.msra.mxu0 0.0
        %2425 = vmatprep.subr.mxu0 0.0
        %2426 = vmatpush1.msra.mxu0 0.0
        %2427 = vmatprep.subr.mxu0 0.0
        %2428 = vmatpush1.msra.mxu0 0.0
        %2429 = vmatprep.subr.mxu0 0.0
        %2430 = vmatpush1.msra.mxu0 0.0
        %2431 = vmatprep.subr.mxu0 0.0
        %2432 = vmatpush1.msra.mxu0 0.0
        %2433 = vmatprep.subr.mxu0 0.0
        %2434 = vmatpush1.msra.mxu0 0.0
        %2435 = vmatprep.subr.mxu0 0.0
        %2436 = vmatpush1.msra.mxu0 0.0
        %2437 = vmatprep.subr.mxu0 0.0
        %2438 = vmatpush1.msra.mxu0 0.0
        %2439 = vmatprep.subr.mxu0 0.0
        %2440 = vmatpush1.msra.mxu0 0.0
        %2441 = vmatprep.subr.mxu0 0.0
        %2442 = vmatpush1.msra.mxu0 0.0
        %2443 = vmatprep.subr.mxu0 0.0
        %2444 = vmatpush1.msra.mxu0 0.0
        %2445 = vmatprep.subr.mxu0 0.0
        %2446 = vmatpush1.msra.mxu0 0.0
        %2447 = vmatprep.subr.mxu0 0.0
        %2448 = vmatpush1.msra.mxu0 0.0
        %2449 = vmatprep.subr.mxu0 0.0
        %2450 = vmatpush1.msra.mxu0 0.0
        %2451 = vmatprep.subr.mxu0 0.0
        %2452 = vmatpush1.msra.mxu0 0.0
        %2453 = vmatprep.subr.mxu0 0.0
        %2454 = vmatpush1.msra.mxu0 0.0
        %2455 = vmatprep.subr.mxu0 0.0
        %2456 = vmatpush1.msra.mxu0 0.0
        %2457 = vmatprep.subr.mxu0 0.0
        %2458 = vmatpush1.msra.mxu0 0.0
        %2459 = vmatprep.subr.mxu0 0.0
        %2460 = vmatpush1.msra.mxu0 0.0
        %2461 = vmatprep.subr.mxu0 0.0
        %2462 = vmatpush1.msra.mxu0 0.0
        %2463 = vmatprep.subr.mxu0 0.0
        %2464 = vmatpush1.msra.mxu0 0.0
        %2465 = vmatprep.mubr.f32.mxu0 0.0
        %2466 = vmatmul.mubr.f32.gmra.mrb[0].mxu0 %v2375
        %v2467 = vpop.f32.mrb[0].mxu0
        %v2468 = vadd.f32 0.0, %v2467
        %v2469 = vpop.f32.mrb[0].mxu0
        %2470 = vmatprep.mubr.f32.mxu0 0.0
        %2471 = vmatmul.mubr.f32.gmra.mrb[0].mxu0 %v2378
        %v2472 = vpop.f32.mrb[0].mxu0
        %v2473 = vadd.f32 0.0, %v2472
        %v2474 = vpop.f32.mrb[0].mxu0
        %2475 = vmatprep.mubr.f32.mxu0 0.0
        %2476 = vmatmul.mubr.f32.gmra.mrb[0].mxu0 %v2381
        %v2477 = vpop.f32.mrb[0].mxu0
        %v2478 = vadd.f32 0.0, %v2477
        %v2479 = vpop.f32.mrb[0].mxu0
        %2480 = vmatprep.mubr.f32.mxu0 0.0
        %2481 = vmatmul.mubr.f32.gmra.mrb[0].mxu0 %v2384
        %v2482 = vpop.f32.mrb[0].mxu0
        %v2483 = vadd.f32 0.0, %v2482
        %v2484 = vpop.f32.mrb[0].mxu0
        %2485 = vmatprep.mubr.f32.mxu0 0.0
        %2486 = vmatmul.mubr.f32.gmra.mrb[0].mxu0 %v2387
        %v2487 = vpop.f32.mrb[0].mxu0
        %v2488 = vadd.f32 0.0, %v2487
        %v2489 = vpop.f32.mrb[0].mxu0
        %2490 = vmatprep.mubr.f32.mxu0 0.0
        %2491 = vmatmul.mubr.f32.gmra.mrb[0].mxu0 %v2390
        %v2492 = vpop.f32.mrb[0].mxu0
        %v2493 = vadd.f32 0.0, %v2492
        %v2494 = vpop.f32.mrb[0].mxu0
        %2495 = vmatprep.mubr.f32.mxu0 0.0
        %2496 = vmatmul.mubr.f32.gmra.mrb[0].mxu0 %v2393
        %v2497 = vpop.f32.mrb[0].mxu0
        %v2498 = vadd.f32 0.0, %v2497
        %v2499 = vpop.f32.mrb[0].mxu0
        %2500 = vmatprep.mubr.f32.mxu0 0.0
        %2501 = vmatmul.mubr.f32.gmra.mrb[0].mxu0 %v2396
        %v2502 = vpop.f32.mrb[0].mxu0
        %v2503 = vadd.f32 0.0, %v2502
        %v2504 = vpop.f32.mrb[0].mxu0
        %2505 = vdwg.mxu0
        %2506 = vrot.lane.b32.xlu0 %v2106, 112
        %v2507 = vpop.permute.xlu0 %2506
        %2508 = vrot.lane.b32.xlu0 %v2107, 112
        %v2509 = vpop.permute.xlu0 %2508
        %2510 = vrot.lane.b32.xlu0 %v2108, 112
        %v2511 = vpop.permute.xlu0 %2510
        %2512 = vrot.lane.b32.xlu0 %v2109, 112
        %v2513 = vpop.permute.xlu0 %2512
        %2514 = vrot.lane.b32.xlu0 %v2110, 112
        %v2515 = vpop.permute.xlu0 %2514
        %2516 = vrot.lane.b32.xlu0 %v2111, 112
        %v2517 = vpop.permute.xlu0 %2516
        %2518 = vrot.lane.b32.xlu0 %v2112, 112
        %v2519 = vpop.permute.xlu0 %2518
        %2520 = vrot.lane.b32.xlu0 %v2113, 112
        %v2521 = vpop.permute.xlu0 %2520
        %2522 = vrot.lane.b32.xlu0 %v2060, 48
        %v2523 = vpop.permute.xlu0 %2522
        %2524 = vrot.lane.b32.xlu0 %v2066, 48
        %v2525 = vpop.permute.xlu0 %2524
        %2526 = vrot.lane.b32.xlu0 %v2072, 48
        %v2527 = vpop.permute.xlu0 %2526
        %2528 = vrot.lane.b32.xlu0 %v2078, 48
        %v2529 = vpop.permute.xlu0 %2528
        %2530 = vrot.lane.b32.xlu0 %v2084, 48
        %v2531 = vpop.permute.xlu0 %2530
        %2532 = vrot.lane.b32.xlu0 %v2090, 48
        %v2533 = vpop.permute.xlu0 %2532
        %2534 = vrot.lane.b32.xlu0 %v2096, 48
        %v2535 = vpop.permute.xlu0 %2534
        %2536 = vrot.lane.b32.xlu0 %v2102, 48
        %v2537 = vpop.permute.xlu0 %2536
        %v2538 = vsel %vm2138, %v2507, 0
        %v2540 = vsel %vm2138, %v2509, 0
        %v2542 = vsel %vm2138, %v2511, 0
        %v2544 = vsel %vm2138, %v2513, 0
        %v2546 = vsel %vm2138, %v2515, 0
        %v2548 = vsel %vm2138, %v2517, 0
        %v2550 = vsel %vm2138, %v2519, 0
        %v2552 = vsel %vm2138, %v2521, 0
        %v2554 = vsel %vm2138, %v2523, 0
        %v2556 = vsel %vm2138, %v2525, 0
        %v2558 = vsel %vm2138, %v2527, 0
        %v2560 = vsel %vm2138, %v2529, 0
        %v2562 = vsel %vm2138, %v2531, 0
        %v2564 = vsel %vm2138, %v2533, 0
        %v2566 = vsel %vm2138, %v2535, 0
        %v2568 = vsel %vm2138, %v2537, 0
        %2570 = vmatprep.subr.mxu0 0.0
        %2571 = vmatpush1.xpose.msra.mxu0 %v2554
        %2572 = vmatprep.subr.mxu0 0.0
        %2573 = vmatpush1.xpose.msra.mxu0 %v2556
        %2574 = vmatprep.subr.mxu0 0.0
        %2575 = vmatpush1.xpose.msra.mxu0 %v2558
        %2576 = vmatprep.subr.mxu0 0.0
        %2577 = vmatpush1.xpose.msra.mxu0 %v2560
        %2578 = vmatprep.subr.mxu0 0.0
        %2579 = vmatpush1.xpose.msra.mxu0 %v2562
        %2580 = vmatprep.subr.mxu0 0.0
        %2581 = vmatpush1.xpose.msra.mxu0 %v2564
        %2582 = vmatprep.subr.mxu0 0.0
        %2583 = vmatpush1.xpose.msra.mxu0 %v2566
        %2584 = vmatprep.subr.mxu0 0.0
        %2585 = vmatpush1.xpose.msra.mxu0 %v2568
        %2586 = vmatprep.subr.mxu0 0.0
        %2587 = vmatpush1.xpose.msra.mxu0 0.0
        %2588 = vmatprep.subr.mxu0 0.0
        %2589 = vmatpush1.xpose.msra.mxu0 0.0
        %2590 = vmatprep.subr.mxu0 0.0
        %2591 = vmatpush1.xpose.msra.mxu0 0.0
        %2592 = vmatprep.subr.mxu0 0.0
        %2593 = vmatpush1.xpose.msra.mxu0 0.0
        %2594 = vmatprep.subr.mxu0 0.0
        %2595 = vmatpush1.xpose.msra.mxu0 0.0
        %2596 = vmatprep.subr.mxu0 0.0
        %2597 = vmatpush1.xpose.msra.mxu0 0.0
        %2598 = vmatprep.subr.mxu0 0.0
        %2599 = vmatpush1.xpose.msra.mxu0 0.0
        %2600 = vmatprep.subr.mxu0 0.0
        %2601 = vmatpush1.xpose.msra.mxu0 0.0
        %2602 = vmatprep.subr.mxu0 0.0
        %2603 = vmatpush1.xpose.msra.mxu0 0.0
        %2604 = vmatprep.subr.mxu0 0.0
        %2605 = vmatpush1.xpose.msra.mxu0 0.0
        %2606 = vmatprep.subr.mxu0 0.0
        %2607 = vmatpush1.xpose.msra.mxu0 0.0
        %2608 = vmatprep.subr.mxu0 0.0
        %2609 = vmatpush1.xpose.msra.mxu0 0.0
        %2610 = vmatprep.subr.mxu0 0.0
        %2611 = vmatpush1.xpose.msra.mxu0 0.0
        %2612 = vmatprep.subr.mxu0 0.0
        %2613 = vmatpush1.xpose.msra.mxu0 0.0
        %2614 = vmatprep.subr.mxu0 0.0
        %2615 = vmatpush1.xpose.msra.mxu0 0.0
        %2616 = vmatprep.subr.mxu0 0.0
        %2617 = vmatpush1.xpose.msra.mxu0 0.0
        %2618 = vmatprep.subr.mxu0 0.0
        %2619 = vmatpush1.xpose.msra.mxu0 0.0
        %2620 = vmatprep.subr.mxu0 0.0
        %2621 = vmatpush1.xpose.msra.mxu0 0.0
        %2622 = vmatprep.subr.mxu0 0.0
        %2623 = vmatpush1.xpose.msra.mxu0 0.0
        %2624 = vmatprep.subr.mxu0 0.0
        %2625 = vmatpush1.xpose.msra.mxu0 0.0
        %2626 = vmatprep.subr.mxu0 0.0
        %2627 = vmatpush1.xpose.msra.mxu0 0.0
        %2628 = vmatprep.subr.mxu0 0.0
        %2629 = vmatpush1.xpose.msra.mxu0 0.0
        %2630 = vmatprep.subr.mxu0 0.0
        %2631 = vmatpush1.xpose.msra.mxu0 0.0
        %2632 = vmatprep.subr.mxu0 0.0
        %2633 = vmatpush1.xpose.msra.mxu0 0.0
        %2634 = vmatprep.mubr.f32.mxu0 0.0
        %2635 = vmatmul.mubr.f32.gmra.mrb[0].mxu0 %v2538
        %v2636 = vpop.f32.mrb[0].mxu0
        %v2637 = vadd.f32 0.0, %v2636
        %v2638 = vpop.f32.mrb[0].mxu0
        %2639 = vmatprep.mubr.f32.mxu0 0.0
        %2640 = vmatmul.mubr.f32.gmra.mrb[0].mxu0 %v2540
        %v2641 = vpop.f32.mrb[0].mxu0
        %v2642 = vadd.f32 0.0, %v2641
        %v2643 = vpop.f32.mrb[0].mxu0
        %2644 = vmatprep.mubr.f32.mxu0 0.0
        %2645 = vmatmul.mubr.f32.gmra.mrb[0].mxu0 %v2542
        %v2646 = vpop.f32.mrb[0].mxu0
        %v2647 = vadd.f32 0.0, %v2646
        %v2648 = vpop.f32.mrb[0].mxu0
        %2649 = vmatprep.mubr.f32.mxu0 0.0
        %2650 = vmatmul.mubr.f32.gmra.mrb[0].mxu0 %v2544
        %v2651 = vpop.f32.mrb[0].mxu0
        %v2652 = vadd.f32 0.0, %v2651
        %v2653 = vpop.f32.mrb[0].mxu0
        %2654 = vmatprep.mubr.f32.mxu0 0.0
        %2655 = vmatmul.mubr.f32.gmra.mrb[0].mxu0 %v2546
        %v2656 = vpop.f32.mrb[0].mxu0
        %v2657 = vadd.f32 0.0, %v2656
        %v2658 = vpop.f32.mrb[0].mxu0
        %2659 = vmatprep.mubr.f32.mxu0 0.0
        %2660 = vmatmul.mubr.f32.gmra.mrb[0].mxu0 %v2548
        %v2661 = vpop.f32.mrb[0].mxu0
        %v2662 = vadd.f32 0.0, %v2661
        %v2663 = vpop.f32.mrb[0].mxu0
        %2664 = vmatprep.mubr.f32.mxu0 0.0
        %2665 = vmatmul.mubr.f32.gmra.mrb[0].mxu0 %v2550
        %v2666 = vpop.f32.mrb[0].mxu0
        %v2667 = vadd.f32 0.0, %v2666
        %v2668 = vpop.f32.mrb[0].mxu0
        %2669 = vmatprep.mubr.f32.mxu0 0.0
        %2670 = vmatmul.mubr.f32.gmra.mrb[0].mxu0 %v2552
        %v2671 = vpop.f32.mrb[0].mxu0
        %v2672 = vadd.f32 0.0, %v2671
        %v2673 = vpop.f32.mrb[0].mxu0
        %2674 = vdwg.mxu0
        %v2675 = vsel %vm2284, %v2637, -inf
        %2676 = vmax.xlane.f32.xlu0 %v2675
        %v2677 = vpop.xlane.xlu0 %2676
        %v2678 = vsel %vm2284, %v2642, -inf
        %2679 = vmax.xlane.f32.xlu0 %v2678
        %v2680 = vpop.xlane.xlu0 %2679
        %v2681 = vsel %vm2284, %v2647, -inf
        %2682 = vmax.xlane.f32.xlu0 %v2681
        %v2683 = vpop.xlane.xlu0 %2682
        %v2684 = vsel %vm2284, %v2652, -inf
        %2685 = vmax.xlane.f32.xlu0 %v2684
        %v2686 = vpop.xlane.xlu0 %2685
        %v2687 = vsel %vm2284, %v2657, -inf
        %2688 = vmax.xlane.f32.xlu0 %v2687
        %v2689 = vpop.xlane.xlu0 %2688
        %v2690 = vsel %vm2284, %v2662, -inf
        %2691 = vmax.xlane.f32.xlu0 %v2690
        %v2692 = vpop.xlane.xlu0 %2691
        %v2693 = vsel %vm2284, %v2667, -inf
        %2694 = vmax.xlane.f32.xlu0 %v2693
        %v2695 = vpop.xlane.xlu0 %2694
        %v2696 = vsel %vm2306, %v2672, -inf
        %2697 = vmax.xlane.f32.xlu0 %v2696
        %v2698 = vpop.xlane.xlu0 %2697
        %v2699 = vsub.f32 %v2637, %v2677
        %v2700 = vsub.f32 %v2642, %v2680
        %v2701 = vsub.f32 %v2647, %v2683
        %v2702 = vsub.f32 %v2652, %v2686
        %v2703 = vsub.f32 %v2657, %v2689
        %v2704 = vsub.f32 %v2662, %v2692
        %v2705 = vsub.f32 %v2667, %v2695
        %v2706 = vsub.f32 %v2672, %v2698
        %v2707 = vmul.f32 %v2699, 1.442695
        %v2708 = vpow.pop %v2707
        %v2709 = vmul.f32 %v2700, 1.442695
        %v2710 = vpow.pop %v2709
        %v2711 = vmul.f32 %v2701, 1.442695
        %v2712 = vpow.pop %v2711
        %v2713 = vmul.f32 %v2702, 1.442695
        %v2714 = vpow.pop %v2713
        %v2715 = vmul.f32 %v2703, 1.442695
        %v2716 = vpow.pop %v2715
        %v2717 = vmul.f32 %v2704, 1.442695
        %v2718 = vpow.pop %v2717
        %v2719 = vmul.f32 %v2705, 1.442695
        %v2720 = vpow.pop %v2719
        %v2721 = vmul.f32 %v2706, 1.442695
        %v2722 = vpow.pop %v2721
        %v2723 = vsel %vm2284, %v2708, 0.0
        %2724 = vadd.xlane.f32.xlu0 %v2723
        %v2725 = vpop.xlane.xlu0 %2724
        %v2726 = vsel %vm2284, %v2710, 0.0
        %2727 = vadd.xlane.f32.xlu0 %v2726
        %v2728 = vpop.xlane.xlu0 %2727
        %v2729 = vsel %vm2284, %v2712, 0.0
        %2730 = vadd.xlane.f32.xlu0 %v2729
        %v2731 = vpop.xlane.xlu0 %2730
        %v2732 = vsel %vm2284, %v2714, 0.0
        %2733 = vadd.xlane.f32.xlu0 %v2732
        %v2734 = vpop.xlane.xlu0 %2733
        %v2735 = vsel %vm2284, %v2716, 0.0
        %2736 = vadd.xlane.f32.xlu0 %v2735
        %v2737 = vpop.xlane.xlu0 %2736
        %v2738 = vsel %vm2284, %v2718, 0.0
        %2739 = vadd.xlane.f32.xlu0 %v2738
        %v2740 = vpop.xlane.xlu0 %2739
        %v2741 = vsel %vm2284, %v2720, 0.0
        %2742 = vadd.xlane.f32.xlu0 %v2741
        %v2743 = vpop.xlane.xlu0 %2742
        %v2744 = vsel %vm2306, %v2722, 0.0
        %2745 = vadd.xlane.f32.xlu0 %v2744
        %v2746 = vpop.xlane.xlu0 %2745
        %v2747 = vrcp.pop %v2725
        %v2748 = vrcp.pop %v2728
        %v2749 = vrcp.pop %v2731
        %v2750 = vrcp.pop %v2734
        %v2751 = vrcp.pop %v2737
        %v2752 = vrcp.pop %v2740
        %v2753 = vrcp.pop %v2743
        %v2754 = vrcp.pop %v2746
        %v2755 = vmul.f32 %v2708, %v2747
        %v2756 = vmul.f32 %v2710, %v2748
        %v2757 = vmul.f32 %v2712, %v2749
        %v2758 = vmul.f32 %v2714, %v2750
        %v2759 = vmul.f32 %v2716, %v2751
        %v2760 = vmul.f32 %v2718, %v2752
        %v2761 = vmul.f32 %v2720, %v2753
        %v2762 = vmul.f32 %v2722, %v2754
        %2770 = vrot.lane.b32.xlu0 %v2062, 112
        %v2771 = vpop.permute.xlu0 %2770
        %2772 = vrot.lane.b32.xlu0 %v2068, 112
        %v2773 = vpop.permute.xlu0 %2772
        %2774 = vrot.lane.b32.xlu0 %v2074, 112
        %v2775 = vpop.permute.xlu0 %2774
        %2776 = vrot.lane.b32.xlu0 %v2080, 112
        %v2777 = vpop.permute.xlu0 %2776
        %2778 = vrot.lane.b32.xlu0 %v2086, 112
        %v2779 = vpop.permute.xlu0 %2778
        %2780 = vrot.lane.b32.xlu0 %v2092, 112
        %v2781 = vpop.permute.xlu0 %2780
        %2782 = vrot.lane.b32.xlu0 %v2098, 112
        %v2783 = vpop.permute.xlu0 %2782
        %2784 = vrot.lane.b32.xlu0 %v2104, 112
        %v2785 = vpop.permute.xlu0 %2784
        %v2794 = vsel %vm2284, %v2755, 0
        %v2797 = vsel %vm2284, %v2756, 0
        %v2800 = vsel %vm2284, %v2757, 0
        %v2803 = vsel %vm2284, %v2758, 0
        %v2806 = vsel %vm2284, %v2759, 0
        %v2809 = vsel %vm2284, %v2760, 0
        %v2812 = vsel %vm2284, %v2761, 0
        %v2815 = vsel %vm2284, %v2762, 0
        %v2817 = vsel %vm420, %v2785, 0
        %2819 = vmatprep.subr.mxu0 0.0
        %2820 = vmatpush1.msra.mxu0 %v2771
        %2821 = vmatprep.subr.mxu0 0.0
        %2822 = vmatpush1.msra.mxu0 %v2773
        %2823 = vmatprep.subr.mxu0 0.0
        %2824 = vmatpush1.msra.mxu0 %v2775
        %2825 = vmatprep.subr.mxu0 0.0
        %2826 = vmatpush1.msra.mxu0 %v2777
        %2827 = vmatprep.subr.mxu0 0.0
        %2828 = vmatpush1.msra.mxu0 %v2779
        %2829 = vmatprep.subr.mxu0 0.0
        %2830 = vmatpush1.msra.mxu0 %v2781
        %2831 = vmatprep.subr.mxu0 0.0
        %2832 = vmatpush1.msra.mxu0 %v2783
        %2833 = vmatprep.subr.mxu0 0.0
        %2834 = vmatpush1.msra.mxu0 %v2817
        %2835 = vmatprep.subr.mxu0 0.0
        %2836 = vmatpush1.msra.mxu0 0.0
        %2837 = vmatprep.subr.mxu0 0.0
        %2838 = vmatpush1.msra.mxu0 0.0
        %2839 = vmatprep.subr.mxu0 0.0
        %2840 = vmatpush1.msra.mxu0 0.0
        %2841 = vmatprep.subr.mxu0 0.0
        %2842 = vmatpush1.msra.mxu0 0.0
        %2843 = vmatprep.subr.mxu0 0.0
        %2844 = vmatpush1.msra.mxu0 0.0
        %2845 = vmatprep.subr.mxu0 0.0
        %2846 = vmatpush1.msra.mxu0 0.0
        %2847 = vmatprep.subr.mxu0 0.0
        %2848 = vmatpush1.msra.mxu0 0.0
        %2849 = vmatprep.subr.mxu0 0.0
        %2850 = vmatpush1.msra.mxu0 0.0
        %2851 = vmatprep.subr.mxu0 0.0
        %2852 = vmatpush1.msra.mxu0 0.0
        %2853 = vmatprep.subr.mxu0 0.0
        %2854 = vmatpush1.msra.mxu0 0.0
        %2855 = vmatprep.subr.mxu0 0.0
        %2856 = vmatpush1.msra.mxu0 0.0
        %2857 = vmatprep.subr.mxu0 0.0
        %2858 = vmatpush1.msra.mxu0 0.0
        %2859 = vmatprep.subr.mxu0 0.0
        %2860 = vmatpush1.msra.mxu0 0.0
        %2861 = vmatprep.subr.mxu0 0.0
        %2862 = vmatpush1.msra.mxu0 0.0
        %2863 = vmatprep.subr.mxu0 0.0
        %2864 = vmatpush1.msra.mxu0 0.0
        %2865 = vmatprep.subr.mxu0 0.0
        %2866 = vmatpush1.msra.mxu0 0.0
        %2867 = vmatprep.subr.mxu0 0.0
        %2868 = vmatpush1.msra.mxu0 0.0
        %2869 = vmatprep.subr.mxu0 0.0
        %2870 = vmatpush1.msra.mxu0 0.0
        %2871 = vmatprep.subr.mxu0 0.0
        %2872 = vmatpush1.msra.mxu0 0.0
        %2873 = vmatprep.subr.mxu0 0.0
        %2874 = vmatpush1.msra.mxu0 0.0
        %2875 = vmatprep.subr.mxu0 0.0
        %2876 = vmatpush1.msra.mxu0 0.0
        %2877 = vmatprep.subr.mxu0 0.0
        %2878 = vmatpush1.msra.mxu0 0.0
        %2879 = vmatprep.subr.mxu0 0.0
        %2880 = vmatpush1.msra.mxu0 0.0
        %2881 = vmatprep.subr.mxu0 0.0
        %2882 = vmatpush1.msra.mxu0 0.0
        %2883 = vmatprep.mubr.f32.mxu0 0.0
        %2884 = vmatmul.mubr.f32.gmra.mrb[0].mxu0 %v2794
        %v2885 = vpop.f32.mrb[0].mxu0
        %v2886 = vadd.f32 0.0, %v2885
        %v2887 = vpop.f32.mrb[0].mxu0
        %2888 = vmatprep.mubr.f32.mxu0 0.0
        %2889 = vmatmul.mubr.f32.gmra.mrb[0].mxu0 %v2797
        %v2890 = vpop.f32.mrb[0].mxu0
        %v2891 = vadd.f32 0.0, %v2890
        %v2892 = vpop.f32.mrb[0].mxu0
        %2893 = vmatprep.mubr.f32.mxu0 0.0
        %2894 = vmatmul.mubr.f32.gmra.mrb[0].mxu0 %v2800
        %v2895 = vpop.f32.mrb[0].mxu0
        %v2896 = vadd.f32 0.0, %v2895
        %v2897 = vpop.f32.mrb[0].mxu0
        %2898 = vmatprep.mubr.f32.mxu0 0.0
        %2899 = vmatmul.mubr.f32.gmra.mrb[0].mxu0 %v2803
        %v2900 = vpop.f32.mrb[0].mxu0
        %v2901 = vadd.f32 0.0, %v2900
        %v2902 = vpop.f32.mrb[0].mxu0
        %2903 = vmatprep.mubr.f32.mxu0 0.0
        %2904 = vmatmul.mubr.f32.gmra.mrb[0].mxu0 %v2806
        %v2905 = vpop.f32.mrb[0].mxu0
        %v2906 = vadd.f32 0.0, %v2905
        %v2907 = vpop.f32.mrb[0].mxu0
        %2908 = vmatprep.mubr.f32.mxu0 0.0
        %2909 = vmatmul.mubr.f32.gmra.mrb[0].mxu0 %v2809
        %v2910 = vpop.f32.mrb[0].mxu0
        %v2911 = vadd.f32 0.0, %v2910
        %v2912 = vpop.f32.mrb[0].mxu0
        %2913 = vmatprep.mubr.f32.mxu0 0.0
        %2914 = vmatmul.mubr.f32.gmra.mrb[0].mxu0 %v2812
        %v2915 = vpop.f32.mrb[0].mxu0
        %v2916 = vadd.f32 0.0, %v2915
        %v2917 = vpop.f32.mrb[0].mxu0
        %2918 = vmatprep.mubr.f32.mxu0 0.0
        %2919 = vmatmul.mubr.f32.gmra.mrb[0].mxu0 %v2815
        %v2920 = vpop.f32.mrb[0].mxu0
        %v2921 = vadd.f32 0.0, %v2920
        %v2922 = vpop.f32.mrb[0].mxu0
        %2923 = vdwg.mxu0
        %2924 = vrot.lane.b32.xlu0 %v2106, 96
        %v2925 = vpop.permute.xlu0 %2924
        %2926 = vrot.lane.b32.xlu0 %v2107, 96
        %v2927 = vpop.permute.xlu0 %2926
        %2928 = vrot.lane.b32.xlu0 %v2108, 96
        %v2929 = vpop.permute.xlu0 %2928
        %2930 = vrot.lane.b32.xlu0 %v2109, 96
        %v2931 = vpop.permute.xlu0 %2930
        %2932 = vrot.lane.b32.xlu0 %v2110, 96
        %v2933 = vpop.permute.xlu0 %2932
        %2934 = vrot.lane.b32.xlu0 %v2111, 96
        %v2935 = vpop.permute.xlu0 %2934
        %2936 = vrot.lane.b32.xlu0 %v2112, 96
        %v2937 = vpop.permute.xlu0 %2936
        %2938 = vrot.lane.b32.xlu0 %v2113, 96
        %v2939 = vpop.permute.xlu0 %2938
        %2940 = vrot.lane.b32.xlu0 %v2060, 32
        %v2941 = vpop.permute.xlu0 %2940
        %2942 = vrot.lane.b32.xlu0 %v2066, 32
        %v2943 = vpop.permute.xlu0 %2942
        %2944 = vrot.lane.b32.xlu0 %v2072, 32
        %v2945 = vpop.permute.xlu0 %2944
        %2946 = vrot.lane.b32.xlu0 %v2078, 32
        %v2947 = vpop.permute.xlu0 %2946
        %2948 = vrot.lane.b32.xlu0 %v2084, 32
        %v2949 = vpop.permute.xlu0 %2948
        %2950 = vrot.lane.b32.xlu0 %v2090, 32
        %v2951 = vpop.permute.xlu0 %2950
        %2952 = vrot.lane.b32.xlu0 %v2096, 32
        %v2953 = vpop.permute.xlu0 %2952
        %2954 = vrot.lane.b32.xlu0 %v2102, 32
        %v2955 = vpop.permute.xlu0 %2954
        %v2956 = vsel %vm2138, %v2925, 0
        %v2958 = vsel %vm2138, %v2927, 0
        %v2960 = vsel %vm2138, %v2929, 0
        %v2962 = vsel %vm2138, %v2931, 0
        %v2964 = vsel %vm2138, %v2933, 0
        %v2966 = vsel %vm2138, %v2935, 0
        %v2968 = vsel %vm2138, %v2937, 0
        %v2970 = vsel %vm2138, %v2939, 0
        %v2972 = vsel %vm2138, %v2941, 0
        %v2974 = vsel %vm2138, %v2943, 0
        %v2976 = vsel %vm2138, %v2945, 0
        %v2978 = vsel %vm2138, %v2947, 0
        %v2980 = vsel %vm2138, %v2949, 0
        %v2982 = vsel %vm2138, %v2951, 0
        %v2984 = vsel %vm2138, %v2953, 0
        %v2986 = vsel %vm2138, %v2955, 0
        %2988 = vmatprep.subr.mxu0 0.0
        %2989 = vmatpush1.xpose.msra.mxu0 %v2972
        %2990 = vmatprep.subr.mxu0 0.0
        %2991 = vmatpush1.xpose.msra.mxu0 %v2974
        %2992 = vmatprep.subr.mxu0 0.0
        %2993 = vmatpush1.xpose.msra.mxu0 %v2976
        %2994 = vmatprep.subr.mxu0 0.0
        %2995 = vmatpush1.xpose.msra.mxu0 %v2978
        %2996 = vmatprep.subr.mxu0 0.0
        %2997 = vmatpush1.xpose.msra.mxu0 %v2980
        %2998 = vmatprep.subr.mxu0 0.0
        %2999 = vmatpush1.xpose.msra.mxu0 %v2982
        %3000 = vmatprep.subr.mxu0 0.0
        %3001 = vmatpush1.xpose.msra.mxu0 %v2984
        %3002 = vmatprep.subr.mxu0 0.0
        %3003 = vmatpush1.xpose.msra.mxu0 %v2986
        %3004 = vmatprep.subr.mxu0 0.0
        %3005 = vmatpush1.xpose.msra.mxu0 0.0
        %3006 = vmatprep.subr.mxu0 0.0
        %3007 = vmatpush1.xpose.msra.mxu0 0.0
        %3008 = vmatprep.subr.mxu0 0.0
        %3009 = vmatpush1.xpose.msra.mxu0 0.0
        %3010 = vmatprep.subr.mxu0 0.0
        %3011 = vmatpush1.xpose.msra.mxu0 0.0
        %3012 = vmatprep.subr.mxu0 0.0
        %3013 = vmatpush1.xpose.msra.mxu0 0.0
        %3014 = vmatprep.subr.mxu0 0.0
        %3015 = vmatpush1.xpose.msra.mxu0 0.0
        %3016 = vmatprep.subr.mxu0 0.0
        %3017 = vmatpush1.xpose.msra.mxu0 0.0
        %3018 = vmatprep.subr.mxu0 0.0
        %3019 = vmatpush1.xpose.msra.mxu0 0.0
        %3020 = vmatprep.subr.mxu0 0.0
        %3021 = vmatpush1.xpose.msra.mxu0 0.0
        %3022 = vmatprep.subr.mxu0 0.0
        %3023 = vmatpush1.xpose.msra.mxu0 0.0
        %3024 = vmatprep.subr.mxu0 0.0
        %3025 = vmatpush1.xpose.msra.mxu0 0.0
        %3026 = vmatprep.subr.mxu0 0.0
        %3027 = vmatpush1.xpose.msra.mxu0 0.0
        %3028 = vmatprep.subr.mxu0 0.0
        %3029 = vmatpush1.xpose.msra.mxu0 0.0
        %3030 = vmatprep.subr.mxu0 0.0
        %3031 = vmatpush1.xpose.msra.mxu0 0.0
        %3032 = vmatprep.subr.mxu0 0.0
        %3033 = vmatpush1.xpose.msra.mxu0 0.0
        %3034 = vmatprep.subr.mxu0 0.0
        %3035 = vmatpush1.xpose.msra.mxu0 0.0
        %3036 = vmatprep.subr.mxu0 0.0
        %3037 = vmatpush1.xpose.msra.mxu0 0.0
        %3038 = vmatprep.subr.mxu0 0.0
        %3039 = vmatpush1.xpose.msra.mxu0 0.0
        %3040 = vmatprep.subr.mxu0 0.0
        %3041 = vmatpush1.xpose.msra.mxu0 0.0
        %3042 = vmatprep.subr.mxu0 0.0
        %3043 = vmatpush1.xpose.msra.mxu0 0.0
        %3044 = vmatprep.subr.mxu0 0.0
        %3045 = vmatpush1.xpose.msra.mxu0 0.0
        %3046 = vmatprep.subr.mxu0 0.0
        %3047 = vmatpush1.xpose.msra.mxu0 0.0
        %3048 = vmatprep.subr.mxu0 0.0
        %3049 = vmatpush1.xpose.msra.mxu0 0.0
        %3050 = vmatprep.subr.mxu0 0.0
        %3051 = vmatpush1.xpose.msra.mxu0 0.0
        %3052 = vmatprep.mubr.f32.mxu0 0.0
        %3053 = vmatmul.mubr.f32.gmra.mrb[0].mxu0 %v2956
        %v3054 = vpop.f32.mrb[0].mxu0
        %v3055 = vadd.f32 0.0, %v3054
        %v3056 = vpop.f32.mrb[0].mxu0
        %3057 = vmatprep.mubr.f32.mxu0 0.0
        %3058 = vmatmul.mubr.f32.gmra.mrb[0].mxu0 %v2958
        %v3059 = vpop.f32.mrb[0].mxu0
        %v3060 = vadd.f32 0.0, %v3059
        %v3061 = vpop.f32.mrb[0].mxu0
        %3062 = vmatprep.mubr.f32.mxu0 0.0
        %3063 = vmatmul.mubr.f32.gmra.mrb[0].mxu0 %v2960
        %v3064 = vpop.f32.mrb[0].mxu0
        %v3065 = vadd.f32 0.0, %v3064
        %v3066 = vpop.f32.mrb[0].mxu0
        %3067 = vmatprep.mubr.f32.mxu0 0.0
        %3068 = vmatmul.mubr.f32.gmra.mrb[0].mxu0 %v2962
        %v3069 = vpop.f32.mrb[0].mxu0
        %v3070 = vadd.f32 0.0, %v3069
        %v3071 = vpop.f32.mrb[0].mxu0
        %3072 = vmatprep.mubr.f32.mxu0 0.0
        %3073 = vmatmul.mubr.f32.gmra.mrb[0].mxu0 %v2964
        %v3074 = vpop.f32.mrb[0].mxu0
        %v3075 = vadd.f32 0.0, %v3074
        %v3076 = vpop.f32.mrb[0].mxu0
        %3077 = vmatprep.mubr.f32.mxu0 0.0
        %3078 = vmatmul.mubr.f32.gmra.mrb[0].mxu0 %v2966
        %v3079 = vpop.f32.mrb[0].mxu0
        %v3080 = vadd.f32 0.0, %v3079
        %v3081 = vpop.f32.mrb[0].mxu0
        %3082 = vmatprep.mubr.f32.mxu0 0.0
        %3083 = vmatmul.mubr.f32.gmra.mrb[0].mxu0 %v2968
        %v3084 = vpop.f32.mrb[0].mxu0
        %v3085 = vadd.f32 0.0, %v3084
        %v3086 = vpop.f32.mrb[0].mxu0
        %3087 = vmatprep.mubr.f32.mxu0 0.0
        %3088 = vmatmul.mubr.f32.gmra.mrb[0].mxu0 %v2970
        %v3089 = vpop.f32.mrb[0].mxu0
        %v3090 = vadd.f32 0.0, %v3089
        %v3091 = vpop.f32.mrb[0].mxu0
        %3092 = vdwg.mxu0
        %v3093 = vsel %vm2284, %v3055, -inf
        %3094 = vmax.xlane.f32.xlu0 %v3093
        %v3095 = vpop.xlane.xlu0 %3094
        %v3096 = vsel %vm2284, %v3060, -inf
        %3097 = vmax.xlane.f32.xlu0 %v3096
        %v3098 = vpop.xlane.xlu0 %3097
        %v3099 = vsel %vm2284, %v3065, -inf
        %3100 = vmax.xlane.f32.xlu0 %v3099
        %v3101 = vpop.xlane.xlu0 %3100
        %v3102 = vsel %vm2284, %v3070, -inf
        %3103 = vmax.xlane.f32.xlu0 %v3102
        %v3104 = vpop.xlane.xlu0 %3103
        %v3105 = vsel %vm2284, %v3075, -inf
        %3106 = vmax.xlane.f32.xlu0 %v3105
        %v3107 = vpop.xlane.xlu0 %3106
        %v3108 = vsel %vm2284, %v3080, -inf
        %3109 = vmax.xlane.f32.xlu0 %v3108
        %v3110 = vpop.xlane.xlu0 %3109
        %v3111 = vsel %vm2284, %v3085, -inf
        %3112 = vmax.xlane.f32.xlu0 %v3111
        %v3113 = vpop.xlane.xlu0 %3112
        %v3114 = vsel %vm2306, %v3090, -inf
        %3115 = vmax.xlane.f32.xlu0 %v3114
        %v3116 = vpop.xlane.xlu0 %3115
        %v3117 = vsub.f32 %v3055, %v3095
        %v3118 = vsub.f32 %v3060, %v3098
        %v3119 = vsub.f32 %v3065, %v3101
        %v3120 = vsub.f32 %v3070, %v3104
        %v3121 = vsub.f32 %v3075, %v3107
        %v3122 = vsub.f32 %v3080, %v3110
        %v3123 = vsub.f32 %v3085, %v3113
        %v3124 = vsub.f32 %v3090, %v3116
        %v3125 = vmul.f32 %v3117, 1.442695
        %v3126 = vpow.pop %v3125
        %v3127 = vmul.f32 %v3118, 1.442695
        %v3128 = vpow.pop %v3127
        %v3129 = vmul.f32 %v3119, 1.442695
        %v3130 = vpow.pop %v3129
        %v3131 = vmul.f32 %v3120, 1.442695
        %v3132 = vpow.pop %v3131
        %v3133 = vmul.f32 %v3121, 1.442695
        %v3134 = vpow.pop %v3133
        %v3135 = vmul.f32 %v3122, 1.442695
        %v3136 = vpow.pop %v3135
        %v3137 = vmul.f32 %v3123, 1.442695
        %v3138 = vpow.pop %v3137
        %v3139 = vmul.f32 %v3124, 1.442695
        %v3140 = vpow.pop %v3139
        %v3141 = vsel %vm2284, %v3126, 0.0
        %3142 = vadd.xlane.f32.xlu0 %v3141
        %v3143 = vpop.xlane.xlu0 %3142
        %v3144 = vsel %vm2284, %v3128, 0.0
        %3145 = vadd.xlane.f32.xlu0 %v3144
        %v3146 = vpop.xlane.xlu0 %3145
        %v3147 = vsel %vm2284, %v3130, 0.0
        %3148 = vadd.xlane.f32.xlu0 %v3147
        %v3149 = vpop.xlane.xlu0 %3148
        %v3150 = vsel %vm2284, %v3132, 0.0
        %3151 = vadd.xlane.f32.xlu0 %v3150
        %v3152 = vpop.xlane.xlu0 %3151
        %v3153 = vsel %vm2284, %v3134, 0.0
        %3154 = vadd.xlane.f32.xlu0 %v3153
        %v3155 = vpop.xlane.xlu0 %3154
        %v3156 = vsel %vm2284, %v3136, 0.0
        %3157 = vadd.xlane.f32.xlu0 %v3156
        %v3158 = vpop.xlane.xlu0 %3157
        %v3159 = vsel %vm2284, %v3138, 0.0
        %3160 = vadd.xlane.f32.xlu0 %v3159
        %v3161 = vpop.xlane.xlu0 %3160
        %v3162 = vsel %vm2306, %v3140, 0.0
        %3163 = vadd.xlane.f32.xlu0 %v3162
        %v3164 = vpop.xlane.xlu0 %3163
        %v3165 = vrcp.pop %v3143
        %v3166 = vrcp.pop %v3146
        %v3167 = vrcp.pop %v3149
        %v3168 = vrcp.pop %v3152
        %v3169 = vrcp.pop %v3155
        %v3170 = vrcp.pop %v3158
        %v3171 = vrcp.pop %v3161
        %v3172 = vrcp.pop %v3164
        %v3173 = vmul.f32 %v3126, %v3165
        %v3174 = vmul.f32 %v3128, %v3166
        %v3175 = vmul.f32 %v3130, %v3167
        %v3176 = vmul.f32 %v3132, %v3168
        %v3177 = vmul.f32 %v3134, %v3169
        %v3178 = vmul.f32 %v3136, %v3170
        %v3179 = vmul.f32 %v3138, %v3171
        %v3180 = vmul.f32 %v3140, %v3172
        %3181 = vrot.lane.b32.xlu0 %v2062, 96
        %v3182 = vpop.permute.xlu0 %3181
        %3183 = vrot.lane.b32.xlu0 %v2068, 96
        %v3184 = vpop.permute.xlu0 %3183
        %3185 = vrot.lane.b32.xlu0 %v2074, 96
        %v3186 = vpop.permute.xlu0 %3185
        %3187 = vrot.lane.b32.xlu0 %v2080, 96
        %v3188 = vpop.permute.xlu0 %3187
        %3189 = vrot.lane.b32.xlu0 %v2086, 96
        %v3190 = vpop.permute.xlu0 %3189
        %3191 = vrot.lane.b32.xlu0 %v2092, 96
        %v3192 = vpop.permute.xlu0 %3191
        %3193 = vrot.lane.b32.xlu0 %v2098, 96
        %v3194 = vpop.permute.xlu0 %3193
        %3195 = vrot.lane.b32.xlu0 %v2104, 96
        %v3196 = vpop.permute.xlu0 %3195
        %v3205 = vsel %vm2284, %v3173, 0
        %v3208 = vsel %vm2284, %v3174, 0
        %v3211 = vsel %vm2284, %v3175, 0
        %v3214 = vsel %vm2284, %v3176, 0
        %v3217 = vsel %vm2284, %v3177, 0
        %v3220 = vsel %vm2284, %v3178, 0
        %v3223 = vsel %vm2284, %v3179, 0
        %v3226 = vsel %vm2284, %v3180, 0
        %v3228 = vsel %vm420, %v3196, 0
        %3230 = vmatprep.subr.mxu0 0.0
        %3231 = vmatpush1.msra.mxu0 %v3182
        %3232 = vmatprep.subr.mxu0 0.0
        %3233 = vmatpush1.msra.mxu0 %v3184
        %3234 = vmatprep.subr.mxu0 0.0
        %3235 = vmatpush1.msra.mxu0 %v3186
        %3236 = vmatprep.subr.mxu0 0.0
        %3237 = vmatpush1.msra.mxu0 %v3188
        %3238 = vmatprep.subr.mxu0 0.0
        %3239 = vmatpush1.msra.mxu0 %v3190
        %3240 = vmatprep.subr.mxu0 0.0
        %3241 = vmatpush1.msra.mxu0 %v3192
        %3242 = vmatprep.subr.mxu0 0.0
        %3243 = vmatpush1.msra.mxu0 %v3194
        %3244 = vmatprep.subr.mxu0 0.0
        %3245 = vmatpush1.msra.mxu0 %v3228
        %3246 = vmatprep.subr.mxu0 0.0
        %3247 = vmatpush1.msra.mxu0 0.0
        %3248 = vmatprep.subr.mxu0 0.0
        %3249 = vmatpush1.msra.mxu0 0.0
        %3250 = vmatprep.subr.mxu0 0.0
        %3251 = vmatpush1.msra.mxu0 0.0
        %3252 = vmatprep.subr.mxu0 0.0
        %3253 = vmatpush1.msra.mxu0 0.0
        %3254 = vmatprep.subr.mxu0 0.0
        %3255 = vmatpush1.msra.mxu0 0.0
        %3256 = vmatprep.subr.mxu0 0.0
        %3257 = vmatpush1.msra.mxu0 0.0
        %3258 = vmatprep.subr.mxu0 0.0
        %3259 = vmatpush1.msra.mxu0 0.0
        %3260 = vmatprep.subr.mxu0 0.0
        %3261 = vmatpush1.msra.mxu0 0.0
        %3262 = vmatprep.subr.mxu0 0.0
        %3263 = vmatpush1.msra.mxu0 0.0
        %3264 = vmatprep.subr.mxu0 0.0
        %3265 = vmatpush1.msra.mxu0 0.0
        %3266 = vmatprep.subr.mxu0 0.0
        %3267 = vmatpush1.msra.mxu0 0.0
        %3268 = vmatprep.subr.mxu0 0.0
        %3269 = vmatpush1.msra.mxu0 0.0
        %3270 = vmatprep.subr.mxu0 0.0
        %3271 = vmatpush1.msra.mxu0 0.0
        %3272 = vmatprep.subr.mxu0 0.0
        %3273 = vmatpush1.msra.mxu0 0.0
        %3274 = vmatprep.subr.mxu0 0.0
        %3275 = vmatpush1.msra.mxu0 0.0
        %3276 = vmatprep.subr.mxu0 0.0
        %3277 = vmatpush1.msra.mxu0 0.0
        %3278 = vmatprep.subr.mxu0 0.0
        %3279 = vmatpush1.msra.mxu0 0.0
        %3280 = vmatprep.subr.mxu0 0.0
        %3281 = vmatpush1.msra.mxu0 0.0
        %3282 = vmatprep.subr.mxu0 0.0
        %3283 = vmatpush1.msra.mxu0 0.0
        %3284 = vmatprep.subr.mxu0 0.0
        %3285 = vmatpush1.msra.mxu0 0.0
        %3286 = vmatprep.subr.mxu0 0.0
        %3287 = vmatpush1.msra.mxu0 0.0
        %3288 = vmatprep.subr.mxu0 0.0
        %3289 = vmatpush1.msra.mxu0 0.0
        %3290 = vmatprep.subr.mxu0 0.0
        %3291 = vmatpush1.msra.mxu0 0.0
        %3292 = vmatprep.subr.mxu0 0.0
        %3293 = vmatpush1.msra.mxu0 0.0
        %3294 = vmatprep.mubr.f32.mxu0 0.0
        %3295 = vmatmul.mubr.f32.gmra.mrb[0].mxu0 %v3205
        %v3296 = vpop.f32.mrb[0].mxu0
        %v3297 = vadd.f32 0.0, %v3296
        %v3298 = vpop.f32.mrb[0].mxu0
        %3299 = vmatprep.mubr.f32.mxu0 0.0
        %3300 = vmatmul.mubr.f32.gmra.mrb[0].mxu0 %v3208
        %v3301 = vpop.f32.mrb[0].mxu0
        %v3302 = vadd.f32 0.0, %v3301
        %v3303 = vpop.f32.mrb[0].mxu0
        %3304 = vmatprep.mubr.f32.mxu0 0.0
        %3305 = vmatmul.mubr.f32.gmra.mrb[0].mxu0 %v3211
        %v3306 = vpop.f32.mrb[0].mxu0
        %v3307 = vadd.f32 0.0, %v3306
        %v3308 = vpop.f32.mrb[0].mxu0
        %3309 = vmatprep.mubr.f32.mxu0 0.0
        %3310 = vmatmul.mubr.f32.gmra.mrb[0].mxu0 %v3214
        %v3311 = vpop.f32.mrb[0].mxu0
        %v3312 = vadd.f32 0.0, %v3311
        %v3313 = vpop.f32.mrb[0].mxu0
        %3314 = vmatprep.mubr.f32.mxu0 0.0
        %3315 = vmatmul.mubr.f32.gmra.mrb[0].mxu0 %v3217
        %v3316 = vpop.f32.mrb[0].mxu0
        %v3317 = vadd.f32 0.0, %v3316
        %v3318 = vpop.f32.mrb[0].mxu0
        %3319 = vmatprep.mubr.f32.mxu0 0.0
        %3320 = vmatmul.mubr.f32.gmra.mrb[0].mxu0 %v3220
        %v3321 = vpop.f32.mrb[0].mxu0
        %v3322 = vadd.f32 0.0, %v3321
        %v3323 = vpop.f32.mrb[0].mxu0
        %3324 = vmatprep.mubr.f32.mxu0 0.0
        %3325 = vmatmul.mubr.f32.gmra.mrb[0].mxu0 %v3223
        %v3326 = vpop.f32.mrb[0].mxu0
        %v3327 = vadd.f32 0.0, %v3326
        %v3328 = vpop.f32.mrb[0].mxu0
        %3329 = vmatprep.mubr.f32.mxu0 0.0
        %3330 = vmatmul.mubr.f32.gmra.mrb[0].mxu0 %v3226
        %v3331 = vpop.f32.mrb[0].mxu0
        %v3332 = vadd.f32 0.0, %v3331
        %v3333 = vpop.f32.mrb[0].mxu0
        %3334 = vdwg.mxu0
        %3335 = vrot.lane.b32.xlu0 %v2106, 80
        %v3336 = vpop.permute.xlu0 %3335
        %3337 = vrot.lane.b32.xlu0 %v2107, 80
        %v3338 = vpop.permute.xlu0 %3337
        %3339 = vrot.lane.b32.xlu0 %v2108, 80
        %v3340 = vpop.permute.xlu0 %3339
        %3341 = vrot.lane.b32.xlu0 %v2109, 80
        %v3342 = vpop.permute.xlu0 %3341
        %3343 = vrot.lane.b32.xlu0 %v2110, 80
        %v3344 = vpop.permute.xlu0 %3343
        %3345 = vrot.lane.b32.xlu0 %v2111, 80
        %v3346 = vpop.permute.xlu0 %3345
        %3347 = vrot.lane.b32.xlu0 %v2112, 80
        %v3348 = vpop.permute.xlu0 %3347
        %3349 = vrot.lane.b32.xlu0 %v2113, 80
        %v3350 = vpop.permute.xlu0 %3349
        %3351 = vrot.lane.b32.xlu0 %v2060, 16
        %v3352 = vpop.permute.xlu0 %3351
        %3353 = vrot.lane.b32.xlu0 %v2066, 16
        %v3354 = vpop.permute.xlu0 %3353
        %3355 = vrot.lane.b32.xlu0 %v2072, 16
        %v3356 = vpop.permute.xlu0 %3355
        %3357 = vrot.lane.b32.xlu0 %v2078, 16
        %v3358 = vpop.permute.xlu0 %3357
        %3359 = vrot.lane.b32.xlu0 %v2084, 16
        %v3360 = vpop.permute.xlu0 %3359
        %3361 = vrot.lane.b32.xlu0 %v2090, 16
        %v3362 = vpop.permute.xlu0 %3361
        %3363 = vrot.lane.b32.xlu0 %v2096, 16
        %v3364 = vpop.permute.xlu0 %3363
        %3365 = vrot.lane.b32.xlu0 %v2102, 16
        %v3366 = vpop.permute.xlu0 %3365
        %v3367 = vsel %vm2138, %v3336, 0
        %v3369 = vsel %vm2138, %v3338, 0
        %v3371 = vsel %vm2138, %v3340, 0
        %v3373 = vsel %vm2138, %v3342, 0
        %v3375 = vsel %vm2138, %v3344, 0
        %v3377 = vsel %vm2138, %v3346, 0
        %v3379 = vsel %vm2138, %v3348, 0
        %v3381 = vsel %vm2138, %v3350, 0
        %v3383 = vsel %vm2138, %v3352, 0
        %v3385 = vsel %vm2138, %v3354, 0
        %v3387 = vsel %vm2138, %v3356, 0
        %v3389 = vsel %vm2138, %v3358, 0
        %v3391 = vsel %vm2138, %v3360, 0
        %v3393 = vsel %vm2138, %v3362, 0
        %v3395 = vsel %vm2138, %v3364, 0
        %v3397 = vsel %vm2138, %v3366, 0
        %3399 = vmatprep.subr.mxu0 0.0
        %3400 = vmatpush1.xpose.msra.mxu0 %v3383
        %3401 = vmatprep.subr.mxu0 0.0
        %3402 = vmatpush1.xpose.msra.mxu0 %v3385
        %3403 = vmatprep.subr.mxu0 0.0
        %3404 = vmatpush1.xpose.msra.mxu0 %v3387
        %3405 = vmatprep.subr.mxu0 0.0
        %3406 = vmatpush1.xpose.msra.mxu0 %v3389
        %3407 = vmatprep.subr.mxu0 0.0
        %3408 = vmatpush1.xpose.msra.mxu0 %v3391
        %3409 = vmatprep.subr.mxu0 0.0
        %3410 = vmatpush1.xpose.msra.mxu0 %v3393
        %3411 = vmatprep.subr.mxu0 0.0
        %3412 = vmatpush1.xpose.msra.mxu0 %v3395
        %3413 = vmatprep.subr.mxu0 0.0
        %3414 = vmatpush1.xpose.msra.mxu0 %v3397
        %3415 = vmatprep.subr.mxu0 0.0
        %3416 = vmatpush1.xpose.msra.mxu0 0.0
        %3417 = vmatprep.subr.mxu0 0.0
        %3418 = vmatpush1.xpose.msra.mxu0 0.0
        %3419 = vmatprep.subr.mxu0 0.0
        %3420 = vmatpush1.xpose.msra.mxu0 0.0
        %3421 = vmatprep.subr.mxu0 0.0
        %3422 = vmatpush1.xpose.msra.mxu0 0.0
        %3423 = vmatprep.subr.mxu0 0.0
        %3424 = vmatpush1.xpose.msra.mxu0 0.0
        %3425 = vmatprep.subr.mxu0 0.0
        %3426 = vmatpush1.xpose.msra.mxu0 0.0
        %3427 = vmatprep.subr.mxu0 0.0
        %3428 = vmatpush1.xpose.msra.mxu0 0.0
        %3429 = vmatprep.subr.mxu0 0.0
        %3430 = vmatpush1.xpose.msra.mxu0 0.0
        %3431 = vmatprep.subr.mxu0 0.0
        %3432 = vmatpush1.xpose.msra.mxu0 0.0
        %3433 = vmatprep.subr.mxu0 0.0
        %3434 = vmatpush1.xpose.msra.mxu0 0.0
        %3435 = vmatprep.subr.mxu0 0.0
        %3436 = vmatpush1.xpose.msra.mxu0 0.0
        %3437 = vmatprep.subr.mxu0 0.0
        %3438 = vmatpush1.xpose.msra.mxu0 0.0
        %3439 = vmatprep.subr.mxu0 0.0
        %3440 = vmatpush1.xpose.msra.mxu0 0.0
        %3441 = vmatprep.subr.mxu0 0.0
        %3442 = vmatpush1.xpose.msra.mxu0 0.0
        %3443 = vmatprep.subr.mxu0 0.0
        %3444 = vmatpush1.xpose.msra.mxu0 0.0
        %3445 = vmatprep.subr.mxu0 0.0
        %3446 = vmatpush1.xpose.msra.mxu0 0.0
        %3447 = vmatprep.subr.mxu0 0.0
        %3448 = vmatpush1.xpose.msra.mxu0 0.0
        %3449 = vmatprep.subr.mxu0 0.0
        %3450 = vmatpush1.xpose.msra.mxu0 0.0
        %3451 = vmatprep.subr.mxu0 0.0
        %3452 = vmatpush1.xpose.msra.mxu0 0.0
        %3453 = vmatprep.subr.mxu0 0.0
        %3454 = vmatpush1.xpose.msra.mxu0 0.0
        %3455 = vmatprep.subr.mxu0 0.0
        %3456 = vmatpush1.xpose.msra.mxu0 0.0
        %3457 = vmatprep.subr.mxu0 0.0
        %3458 = vmatpush1.xpose.msra.mxu0 0.0
        %3459 = vmatprep.subr.mxu0 0.0
        %3460 = vmatpush1.xpose.msra.mxu0 0.0
        %3461 = vmatprep.subr.mxu0 0.0
        %3462 = vmatpush1.xpose.msra.mxu0 0.0
        %3463 = vmatprep.mubr.f32.mxu0 0.0
        %3464 = vmatmul.mubr.f32.gmra.mrb[0].mxu0 %v3367
        %v3465 = vpop.f32.mrb[0].mxu0
        %v3466 = vadd.f32 0.0, %v3465
        %v3467 = vpop.f32.mrb[0].mxu0
        %3468 = vmatprep.mubr.f32.mxu0 0.0
        %3469 = vmatmul.mubr.f32.gmra.mrb[0].mxu0 %v3369
        %v3470 = vpop.f32.mrb[0].mxu0
        %v3471 = vadd.f32 0.0, %v3470
        %v3472 = vpop.f32.mrb[0].mxu0
        %3473 = vmatprep.mubr.f32.mxu0 0.0
        %3474 = vmatmul.mubr.f32.gmra.mrb[0].mxu0 %v3371
        %v3475 = vpop.f32.mrb[0].mxu0
        %v3476 = vadd.f32 0.0, %v3475
        %v3477 = vpop.f32.mrb[0].mxu0
        %3478 = vmatprep.mubr.f32.mxu0 0.0
        %3479 = vmatmul.mubr.f32.gmra.mrb[0].mxu0 %v3373
        %v3480 = vpop.f32.mrb[0].mxu0
        %v3481 = vadd.f32 0.0, %v3480
        %v3482 = vpop.f32.mrb[0].mxu0
        %3483 = vmatprep.mubr.f32.mxu0 0.0
        %3484 = vmatmul.mubr.f32.gmra.mrb[0].mxu0 %v3375
        %v3485 = vpop.f32.mrb[0].mxu0
        %v3486 = vadd.f32 0.0, %v3485
        %v3487 = vpop.f32.mrb[0].mxu0
        %3488 = vmatprep.mubr.f32.mxu0 0.0
        %3489 = vmatmul.mubr.f32.gmra.mrb[0].mxu0 %v3377
        %v3490 = vpop.f32.mrb[0].mxu0
        %v3491 = vadd.f32 0.0, %v3490
        %v3492 = vpop.f32.mrb[0].mxu0
        %3493 = vmatprep.mubr.f32.mxu0 0.0
        %3494 = vmatmul.mubr.f32.gmra.mrb[0].mxu0 %v3379
        %v3495 = vpop.f32.mrb[0].mxu0
        %v3496 = vadd.f32 0.0, %v3495
        %v3497 = vpop.f32.mrb[0].mxu0
        %3498 = vmatprep.mubr.f32.mxu0 0.0
        %3499 = vmatmul.mubr.f32.gmra.mrb[0].mxu0 %v3381
        %v3500 = vpop.f32.mrb[0].mxu0
        %v3501 = vadd.f32 0.0, %v3500
        %v3502 = vpop.f32.mrb[0].mxu0
        %3503 = vdwg.mxu0
        %v3504 = vsel %vm2284, %v3466, -inf
        %3505 = vmax.xlane.f32.xlu0 %v3504
        %v3506 = vpop.xlane.xlu0 %3505
        %v3507 = vsel %vm2284, %v3471, -inf
        %3508 = vmax.xlane.f32.xlu0 %v3507
        %v3509 = vpop.xlane.xlu0 %3508
        %v3510 = vsel %vm2284, %v3476, -inf
        %3511 = vmax.xlane.f32.xlu0 %v3510
        %v3512 = vpop.xlane.xlu0 %3511
        %v3513 = vsel %vm2284, %v3481, -inf
        %3514 = vmax.xlane.f32.xlu0 %v3513
        %v3515 = vpop.xlane.xlu0 %3514
        %v3516 = vsel %vm2284, %v3486, -inf
        %3517 = vmax.xlane.f32.xlu0 %v3516
        %v3518 = vpop.xlane.xlu0 %3517
        %v3519 = vsel %vm2284, %v3491, -inf
        %3520 = vmax.xlane.f32.xlu0 %v3519
        %v3521 = vpop.xlane.xlu0 %3520
        %v3522 = vsel %vm2284, %v3496, -inf
        %3523 = vmax.xlane.f32.xlu0 %v3522
        %v3524 = vpop.xlane.xlu0 %3523
        %v3525 = vsel %vm2306, %v3501, -inf
        %3526 = vmax.xlane.f32.xlu0 %v3525
        %v3527 = vpop.xlane.xlu0 %3526
        %v3528 = vsub.f32 %v3466, %v3506
        %v3529 = vsub.f32 %v3471, %v3509
        %v3530 = vsub.f32 %v3476, %v3512
        %v3531 = vsub.f32 %v3481, %v3515
        %v3532 = vsub.f32 %v3486, %v3518
        %v3533 = vsub.f32 %v3491, %v3521
        %v3534 = vsub.f32 %v3496, %v3524
        %v3535 = vsub.f32 %v3501, %v3527
        %v3536 = vmul.f32 %v3528, 1.442695
        %v3537 = vpow.pop %v3536
        %v3538 = vmul.f32 %v3529, 1.442695
        %v3539 = vpow.pop %v3538
        %v3540 = vmul.f32 %v3530, 1.442695
        %v3541 = vpow.pop %v3540
        %v3542 = vmul.f32 %v3531, 1.442695
        %v3543 = vpow.pop %v3542
        %v3544 = vmul.f32 %v3532, 1.442695
        %v3545 = vpow.pop %v3544
        %v3546 = vmul.f32 %v3533, 1.442695
        %v3547 = vpow.pop %v3546
        %v3548 = vmul.f32 %v3534, 1.442695
        %v3549 = vpow.pop %v3548
        %v3550 = vmul.f32 %v3535, 1.442695
        %v3551 = vpow.pop %v3550
        %v3552 = vsel %vm2284, %v3537, 0.0
        %3553 = vadd.xlane.f32.xlu0 %v3552
        %v3554 = vpop.xlane.xlu0 %3553
        %v3555 = vsel %vm2284, %v3539, 0.0
        %3556 = vadd.xlane.f32.xlu0 %v3555
        %v3557 = vpop.xlane.xlu0 %3556
        %v3558 = vsel %vm2284, %v3541, 0.0
        %3559 = vadd.xlane.f32.xlu0 %v3558
        %v3560 = vpop.xlane.xlu0 %3559
        %v3561 = vsel %vm2284, %v3543, 0.0
        %3562 = vadd.xlane.f32.xlu0 %v3561
        %v3563 = vpop.xlane.xlu0 %3562
        %v3564 = vsel %vm2284, %v3545, 0.0
        %3565 = vadd.xlane.f32.xlu0 %v3564
        %v3566 = vpop.xlane.xlu0 %3565
        %v3567 = vsel %vm2284, %v3547, 0.0
        %3568 = vadd.xlane.f32.xlu0 %v3567
        %v3569 = vpop.xlane.xlu0 %3568
        %v3570 = vsel %vm2284, %v3549, 0.0
        %3571 = vadd.xlane.f32.xlu0 %v3570
        %v3572 = vpop.xlane.xlu0 %3571
        %v3573 = vsel %vm2306, %v3551, 0.0
        %3574 = vadd.xlane.f32.xlu0 %v3573
        %v3575 = vpop.xlane.xlu0 %3574
        %v3576 = vrcp.pop %v3554
        %v3577 = vrcp.pop %v3557
        %v3578 = vrcp.pop %v3560
        %v3579 = vrcp.pop %v3563
        %v3580 = vrcp.pop %v3566
        %v3581 = vrcp.pop %v3569
        %v3582 = vrcp.pop %v3572
        %v3583 = vrcp.pop %v3575
        %v3584 = vmul.f32 %v3537, %v3576
        %v3585 = vmul.f32 %v3539, %v3577
        %v3586 = vmul.f32 %v3541, %v3578
        %v3587 = vmul.f32 %v3543, %v3579
        %v3588 = vmul.f32 %v3545, %v3580
        %v3589 = vmul.f32 %v3547, %v3581
        %v3590 = vmul.f32 %v3549, %v3582
        %v3591 = vmul.f32 %v3551, %v3583
        %3592 = vrot.lane.b32.xlu0 %v2062, 80
        %v3593 = vpop.permute.xlu0 %3592
        %3594 = vrot.lane.b32.xlu0 %v2068, 80
        %v3595 = vpop.permute.xlu0 %3594
        %3596 = vrot.lane.b32.xlu0 %v2074, 80
        %v3597 = vpop.permute.xlu0 %3596
        %3598 = vrot.lane.b32.xlu0 %v2080, 80
        %v3599 = vpop.permute.xlu0 %3598
        %3600 = vrot.lane.b32.xlu0 %v2086, 80
        %v3601 = vpop.permute.xlu0 %3600
        %3602 = vrot.lane.b32.xlu0 %v2092, 80
        %v3603 = vpop.permute.xlu0 %3602
        %3604 = vrot.lane.b32.xlu0 %v2098, 80
        %v3605 = vpop.permute.xlu0 %3604
        %3606 = vrot.lane.b32.xlu0 %v2104, 80
        %v3607 = vpop.permute.xlu0 %3606
        %v3616 = vsel %vm2284, %v3584, 0
        %v3619 = vsel %vm2284, %v3585, 0
        %v3622 = vsel %vm2284, %v3586, 0
        %v3625 = vsel %vm2284, %v3587, 0
        %v3628 = vsel %vm2284, %v3588, 0
        %v3631 = vsel %vm2284, %v3589, 0
        %v3634 = vsel %vm2284, %v3590, 0
        %v3637 = vsel %vm2284, %v3591, 0
        %v3639 = vsel %vm420, %v3607, 0
        %3641 = vmatprep.subr.mxu0 0.0
        %3642 = vmatpush1.msra.mxu0 %v3593
        %3643 = vmatprep.subr.mxu0 0.0
        %3644 = vmatpush1.msra.mxu0 %v3595
        %3645 = vmatprep.subr.mxu0 0.0
        %3646 = vmatpush1.msra.mxu0 %v3597
        %3647 = vmatprep.subr.mxu0 0.0
        %3648 = vmatpush1.msra.mxu0 %v3599
        %3649 = vmatprep.subr.mxu0 0.0
        %3650 = vmatpush1.msra.mxu0 %v3601
        %3651 = vmatprep.subr.mxu0 0.0
        %3652 = vmatpush1.msra.mxu0 %v3603
        %3653 = vmatprep.subr.mxu0 0.0
        %3654 = vmatpush1.msra.mxu0 %v3605
        %3655 = vmatprep.subr.mxu0 0.0
        %3656 = vmatpush1.msra.mxu0 %v3639
        %3657 = vmatprep.subr.mxu0 0.0
        %3658 = vmatpush1.msra.mxu0 0.0
        %3659 = vmatprep.subr.mxu0 0.0
        %3660 = vmatpush1.msra.mxu0 0.0
        %3661 = vmatprep.subr.mxu0 0.0
        %3662 = vmatpush1.msra.mxu0 0.0
        %3663 = vmatprep.subr.mxu0 0.0
        %3664 = vmatpush1.msra.mxu0 0.0
        %3665 = vmatprep.subr.mxu0 0.0
        %3666 = vmatpush1.msra.mxu0 0.0
        %3667 = vmatprep.subr.mxu0 0.0
        %3668 = vmatpush1.msra.mxu0 0.0
        %3669 = vmatprep.subr.mxu0 0.0
        %3670 = vmatpush1.msra.mxu0 0.0
        %3671 = vmatprep.subr.mxu0 0.0
        %3672 = vmatpush1.msra.mxu0 0.0
        %3673 = vmatprep.subr.mxu0 0.0
        %3674 = vmatpush1.msra.mxu0 0.0
        %3675 = vmatprep.subr.mxu0 0.0
        %3676 = vmatpush1.msra.mxu0 0.0
        %3677 = vmatprep.subr.mxu0 0.0
        %3678 = vmatpush1.msra.mxu0 0.0
        %3679 = vmatprep.subr.mxu0 0.0
        %3680 = vmatpush1.msra.mxu0 0.0
        %3681 = vmatprep.subr.mxu0 0.0
        %3682 = vmatpush1.msra.mxu0 0.0
        %3683 = vmatprep.subr.mxu0 0.0
        %3684 = vmatpush1.msra.mxu0 0.0
        %3685 = vmatprep.subr.mxu0 0.0
        %3686 = vmatpush1.msra.mxu0 0.0
        %3687 = vmatprep.subr.mxu0 0.0
        %3688 = vmatpush1.msra.mxu0 0.0
        %3689 = vmatprep.subr.mxu0 0.0
        %3690 = vmatpush1.msra.mxu0 0.0
        %3691 = vmatprep.subr.mxu0 0.0
        %3692 = vmatpush1.msra.mxu0 0.0
        %3693 = vmatprep.subr.mxu0 0.0
        %3694 = vmatpush1.msra.mxu0 0.0
        %3695 = vmatprep.subr.mxu0 0.0
        %3696 = vmatpush1.msra.mxu0 0.0
        %3697 = vmatprep.subr.mxu0 0.0
        %3698 = vmatpush1.msra.mxu0 0.0
        %3699 = vmatprep.subr.mxu0 0.0
        %3700 = vmatpush1.msra.mxu0 0.0
        %3701 = vmatprep.subr.mxu0 0.0
        %3702 = vmatpush1.msra.mxu0 0.0
        %3703 = vmatprep.subr.mxu0 0.0
        %3704 = vmatpush1.msra.mxu0 0.0
        %3705 = vmatprep.mubr.f32.mxu0 0.0
        %3706 = vmatmul.mubr.f32.gmra.mrb[0].mxu0 %v3616
        %v3707 = vpop.f32.mrb[0].mxu0
        %v3708 = vadd.f32 0.0, %v3707
        %v3709 = vpop.f32.mrb[0].mxu0
        %3710 = vmatprep.mubr.f32.mxu0 0.0
        %3711 = vmatmul.mubr.f32.gmra.mrb[0].mxu0 %v3619
        %v3712 = vpop.f32.mrb[0].mxu0
        %v3713 = vadd.f32 0.0, %v3712
        %v3714 = vpop.f32.mrb[0].mxu0
        %3715 = vmatprep.mubr.f32.mxu0 0.0
        %3716 = vmatmul.mubr.f32.gmra.mrb[0].mxu0 %v3622
        %v3717 = vpop.f32.mrb[0].mxu0
        %v3718 = vadd.f32 0.0, %v3717
        %v3719 = vpop.f32.mrb[0].mxu0
        %3720 = vmatprep.mubr.f32.mxu0 0.0
        %3721 = vmatmul.mubr.f32.gmra.mrb[0].mxu0 %v3625
        %v3722 = vpop.f32.mrb[0].mxu0
        %v3723 = vadd.f32 0.0, %v3722
        %v3724 = vpop.f32.mrb[0].mxu0
        %3725 = vmatprep.mubr.f32.mxu0 0.0
        %3726 = vmatmul.mubr.f32.gmra.mrb[0].mxu0 %v3628
        %v3727 = vpop.f32.mrb[0].mxu0
        %v3728 = vadd.f32 0.0, %v3727
        %v3729 = vpop.f32.mrb[0].mxu0
        %3730 = vmatprep.mubr.f32.mxu0 0.0
        %3731 = vmatmul.mubr.f32.gmra.mrb[0].mxu0 %v3631
        %v3732 = vpop.f32.mrb[0].mxu0
        %v3733 = vadd.f32 0.0, %v3732
        %v3734 = vpop.f32.mrb[0].mxu0
        %3735 = vmatprep.mubr.f32.mxu0 0.0
        %3736 = vmatmul.mubr.f32.gmra.mrb[0].mxu0 %v3634
        %v3737 = vpop.f32.mrb[0].mxu0
        %v3738 = vadd.f32 0.0, %v3737
        %v3739 = vpop.f32.mrb[0].mxu0
        %3740 = vmatprep.mubr.f32.mxu0 0.0
        %3741 = vmatmul.mubr.f32.gmra.mrb[0].mxu0 %v3637
        %v3742 = vpop.f32.mrb[0].mxu0
        %v3743 = vadd.f32 0.0, %v3742
        %v3744 = vpop.f32.mrb[0].mxu0
        %3745 = vdwg.mxu0
        %3754 = vrot.lane.b32.xlu0 %v2886, 16
        %v3755 = vpop.permute.xlu0 %3754
        %3756 = vrot.lane.b32.xlu0 %v2891, 16
        %v3757 = vpop.permute.xlu0 %3756
        %3758 = vrot.lane.b32.xlu0 %v2896, 16
        %v3759 = vpop.permute.xlu0 %3758
        %3760 = vrot.lane.b32.xlu0 %v2901, 16
        %v3761 = vpop.permute.xlu0 %3760
        %3762 = vrot.lane.b32.xlu0 %v2906, 16
        %v3763 = vpop.permute.xlu0 %3762
        %3764 = vrot.lane.b32.xlu0 %v2911, 16
        %v3765 = vpop.permute.xlu0 %3764
        %3766 = vrot.lane.b32.xlu0 %v2916, 16
        %v3767 = vpop.permute.xlu0 %3766
        %3768 = vrot.lane.b32.xlu0 %v2921, 16
        %v3769 = vpop.permute.xlu0 %3768
        %3786 = vrot.lane.b32.xlu0 %v3297, 32
        %v3787 = vpop.permute.xlu0 %3786
        %3788 = vrot.lane.b32.xlu0 %v3302, 32
        %v3789 = vpop.permute.xlu0 %3788
        %3790 = vrot.lane.b32.xlu0 %v3307, 32
        %v3791 = vpop.permute.xlu0 %3790
        %3792 = vrot.lane.b32.xlu0 %v3312, 32
        %v3793 = vpop.permute.xlu0 %3792
        %3794 = vrot.lane.b32.xlu0 %v3317, 32
        %v3795 = vpop.permute.xlu0 %3794
        %3796 = vrot.lane.b32.xlu0 %v3322, 32
        %v3797 = vpop.permute.xlu0 %3796
        %3798 = vrot.lane.b32.xlu0 %v3327, 32
        %v3799 = vpop.permute.xlu0 %3798
        %3800 = vrot.lane.b32.xlu0 %v3332, 32
        %v3801 = vpop.permute.xlu0 %3800
        %3818 = vrot.lane.b32.xlu0 %v3708, 48
        %v3819 = vpop.permute.xlu0 %3818
        %3820 = vrot.lane.b32.xlu0 %v3713, 48
        %v3821 = vpop.permute.xlu0 %3820
        %3822 = vrot.lane.b32.xlu0 %v3718, 48
        %v3823 = vpop.permute.xlu0 %3822
        %3824 = vrot.lane.b32.xlu0 %v3723, 48
        %v3825 = vpop.permute.xlu0 %3824
        %3826 = vrot.lane.b32.xlu0 %v3728, 48
        %v3827 = vpop.permute.xlu0 %3826
        %3828 = vrot.lane.b32.xlu0 %v3733, 48
        %v3829 = vpop.permute.xlu0 %3828
        %3830 = vrot.lane.b32.xlu0 %v3738, 48
        %v3831 = vpop.permute.xlu0 %3830
        %3832 = vrot.lane.b32.xlu0 %v3743, 48
        %v3833 = vpop.permute.xlu0 %3832
        %v3842 = vsel %vm2138, %v2468, %v3755
        %v3843 = vsel %vm2138, %v2473, %v3757
        %v3844 = vsel %vm2138, %v2478, %v3759
        %v3845 = vsel %vm2138, %v2483, %v3761
        %v3846 = vsel %vm2138, %v2488, %v3763
        %v3847 = vsel %vm2138, %v2493, %v3765
        %v3848 = vsel %vm2138, %v2498, %v3767
        %v3849 = vsel %vm2138, %v2503, %v3769
        %v3850 = vsel %vm707, %v3842, %v3787
        %v3851 = vsel %vm707, %v3843, %v3789
        %v3852 = vsel %vm707, %v3844, %v3791
        %v3853 = vsel %vm707, %v3845, %v3793
        %v3854 = vsel %vm707, %v3846, %v3795
        %v3855 = vsel %vm707, %v3847, %v3797
        %v3856 = vsel %vm707, %v3848, %v3799
        %v3857 = vsel %vm707, %v3849, %v3801
        %vm3858 = vcmask 392192
        %v3859 = vsel %vm3858, %v3850, %v3819
        %v3860 = vsel %vm3858, %v3851, %v3821
        %v3861 = vsel %vm3858, %v3852, %v3823
        %v3862 = vsel %vm3858, %v3853, %v3825
        %v3863 = vsel %vm3858, %v3854, %v3827
        %v3864 = vsel %vm3858, %v3855, %v3829
        %v3865 = vsel %vm3858, %v3856, %v3831
        %v3866 = vsel %vm3858, %v3857, %v3833
        %v3867 = vlaneseq
        %v3868 = vshrl.u32 %v3867, 7
        %v3869 = vsub.s32 1, %v3868
        %v3870 = vrot.slane %v1943, %v3869
        %3879 = vrot.lane.b32.xlu0 %v1920, 64
        %v3880 = vpop.permute.xlu0 %3879
        %3881 = vrot.lane.b32.xlu0 %v1923, 64
        %v3882 = vpop.permute.xlu0 %3881
        %3883 = vrot.lane.b32.xlu0 %v1926, 64
        %v3884 = vpop.permute.xlu0 %3883
        %3885 = vrot.lane.b32.xlu0 %v1929, 64
        %v3886 = vpop.permute.xlu0 %3885
        %3887 = vrot.lane.b32.xlu0 %v1932, 64
        %v3888 = vpop.permute.xlu0 %3887
        %3889 = vrot.lane.b32.xlu0 %v1935, 64
        %v3890 = vpop.permute.xlu0 %3889
        %3891 = vrot.lane.b32.xlu0 %v1938, 64
        %v3892 = vpop.permute.xlu0 %3891
        %3893 = vrot.lane.b32.xlu0 %v1941, 64
        %v3894 = vpop.permute.xlu0 %3893
        %v3904 = vsel %vm1788, %v3859, 0
        %v3907 = vsel %vm1788, %v3860, 0
        %v3910 = vsel %vm1788, %v3861, 0
        %v3913 = vsel %vm1788, %v3862, 0
        %v3916 = vsel %vm1788, %v3863, 0
        %v3919 = vsel %vm1788, %v3864, 0
        %v3922 = vsel %vm1788, %v3865, 0
        %v3925 = vsel %vm1788, %v3866, 0
        %3927 = vmatprep.subr.mxu0 0.0
        %3928 = vmatpush1.msra.mxu0 %v3880
        %3929 = vmatprep.subr.mxu0 0.0
        %3930 = vmatpush1.msra.mxu0 %v3882
        %3931 = vmatprep.subr.mxu0 0.0
        %3932 = vmatpush1.msra.mxu0 %v3884
        %3933 = vmatprep.subr.mxu0 0.0
        %3934 = vmatpush1.msra.mxu0 %v3886
        %3935 = vmatprep.subr.mxu0 0.0
        %3936 = vmatpush1.msra.mxu0 %v3888
        %3937 = vmatprep.subr.mxu0 0.0
        %3938 = vmatpush1.msra.mxu0 %v3890
        %3939 = vmatprep.subr.mxu0 0.0
        %3940 = vmatpush1.msra.mxu0 %v3892
        %3941 = vmatprep.subr.mxu0 0.0
        %3942 = vmatpush1.msra.mxu0 %v3894
        %3943 = vmatprep.subr.mxu0 0.0
        %3944 = vmatpush1.msra.mxu0 0.0
        %3945 = vmatprep.subr.mxu0 0.0
        %3946 = vmatpush1.msra.mxu0 0.0
        %3947 = vmatprep.subr.mxu0 0.0
        %3948 = vmatpush1.msra.mxu0 0.0
        %3949 = vmatprep.subr.mxu0 0.0
        %3950 = vmatpush1.msra.mxu0 0.0
        %3951 = vmatprep.subr.mxu0 0.0
        %3952 = vmatpush1.msra.mxu0 0.0
        %3953 = vmatprep.subr.mxu0 0.0
        %3954 = vmatpush1.msra.mxu0 0.0
        %3955 = vmatprep.subr.mxu0 0.0
        %3956 = vmatpush1.msra.mxu0 0.0
        %3957 = vmatprep.subr.mxu0 0.0
        %3958 = vmatpush1.msra.mxu0 0.0
        %3959 = vmatprep.subr.mxu0 0.0
        %3960 = vmatpush1.msra.mxu0 0.0
        %3961 = vmatprep.subr.mxu0 0.0
        %3962 = vmatpush1.msra.mxu0 0.0
        %3963 = vmatprep.subr.mxu0 0.0
        %3964 = vmatpush1.msra.mxu0 0.0
        %3965 = vmatprep.subr.mxu0 0.0
        %3966 = vmatpush1.msra.mxu0 0.0
        %3967 = vmatprep.subr.mxu0 0.0
        %3968 = vmatpush1.msra.mxu0 0.0
        %3969 = vmatprep.subr.mxu0 0.0
        %3970 = vmatpush1.msra.mxu0 0.0
        %3971 = vmatprep.subr.mxu0 0.0
        %3972 = vmatpush1.msra.mxu0 0.0
        %3973 = vmatprep.subr.mxu0 0.0
        %3974 = vmatpush1.msra.mxu0 0.0
        %3975 = vmatprep.subr.mxu0 0.0
        %3976 = vmatpush1.msra.mxu0 0.0
        %3977 = vmatprep.subr.mxu0 0.0
        %3978 = vmatpush1.msra.mxu0 0.0
        %3979 = vmatprep.subr.mxu0 0.0
        %3980 = vmatpush1.msra.mxu0 0.0
        %3981 = vmatprep.subr.mxu0 0.0
        %3982 = vmatpush1.msra.mxu0 0.0
        %3983 = vmatprep.subr.mxu0 0.0
        %3984 = vmatpush1.msra.mxu0 0.0
        %3985 = vmatprep.subr.mxu0 0.0
        %3986 = vmatpush1.msra.mxu0 0.0
        %3987 = vmatprep.subr.mxu0 0.0
        %3988 = vmatpush1.msra.mxu0 0.0
        %3989 = vmatprep.subr.mxu0 0.0
        %3990 = vmatpush1.msra.mxu0 0.0
        %3991 = vmatprep.mubr.f32.mxu0 0.0
        %3992 = vmatmul.mubr.f32.gmra.mrb[0].mxu0 %v3904
        %v3993 = vpop.f32.mrb[0].mxu0
        %v3994 = vadd.f32 %v3870, %v3993
        %v3995 = vpop.f32.mrb[0].mxu0
        %3996 = vmatprep.mubr.f32.mxu0 0.0
        %3997 = vmatmul.mubr.f32.gmra.mrb[0].mxu0 %v3907
        %v3998 = vpop.f32.mrb[0].mxu0
        %v3999 = vadd.f32 %v3870, %v3998
        %v4000 = vpop.f32.mrb[0].mxu0
        %4001 = vmatprep.mubr.f32.mxu0 0.0
        %4002 = vmatmul.mubr.f32.gmra.mrb[0].mxu0 %v3910
        %v4003 = vpop.f32.mrb[0].mxu0
        %v4004 = vadd.f32 %v3870, %v4003
        %v4005 = vpop.f32.mrb[0].mxu0
        %4006 = vmatprep.mubr.f32.mxu0 0.0
        %4007 = vmatmul.mubr.f32.gmra.mrb[0].mxu0 %v3913
        %v4008 = vpop.f32.mrb[0].mxu0
        %v4009 = vadd.f32 %v3870, %v4008
        %v4010 = vpop.f32.mrb[0].mxu0
        %4011 = vmatprep.mubr.f32.mxu0 0.0
        %4012 = vmatmul.mubr.f32.gmra.mrb[0].mxu0 %v3916
        %v4013 = vpop.f32.mrb[0].mxu0
        %v4014 = vadd.f32 %v3870, %v4013
        %v4015 = vpop.f32.mrb[0].mxu0
        %4016 = vmatprep.mubr.f32.mxu0 0.0
        %4017 = vmatmul.mubr.f32.gmra.mrb[0].mxu0 %v3919
        %v4018 = vpop.f32.mrb[0].mxu0
        %v4019 = vadd.f32 %v3870, %v4018
        %v4020 = vpop.f32.mrb[0].mxu0
        %4021 = vmatprep.mubr.f32.mxu0 0.0
        %4022 = vmatmul.mubr.f32.gmra.mrb[0].mxu0 %v3922
        %v4023 = vpop.f32.mrb[0].mxu0
        %v4024 = vadd.f32 %v3870, %v4023
        %v4025 = vpop.f32.mrb[0].mxu0
        %4026 = vmatprep.mubr.f32.mxu0 0.0
        %4027 = vmatmul.mubr.f32.gmra.mrb[0].mxu0 %v3925
        %v4028 = vpop.f32.mrb[0].mxu0
        %v4029 = vadd.f32 %v3870, %v4028
        %v4030 = vpop.f32.mrb[0].mxu0
        %4031 = vdwg.mxu0
        %v4032 = vadd.f32 %v1911, %v3994
        %v4033 = vadd.f32 %v1912, %v3999
        %v4034 = vadd.f32 %v1913, %v4004
        %v4035 = vadd.f32 %v1914, %v4009
        %v4036 = vadd.f32 %v1915, %v4014
        %v4037 = vadd.f32 %v1916, %v4019
        %v4038 = vadd.f32 %v1917, %v4024
        %v4039 = vadd.f32 %v1918, %v4029
        %v4040 = vsel %vm1788, %v4032, 0.0
        %4041 = vadd.xlane.f32.xlu0 %v4040
        %v4042 = vpop.xlane.xlu0 %4041
        %v4043 = vsel %vm1788, %v4033, 0.0
        %4044 = vadd.xlane.f32.xlu0 %v4043
        %v4045 = vpop.xlane.xlu0 %4044
        %v4046 = vsel %vm1788, %v4034, 0.0
        %4047 = vadd.xlane.f32.xlu0 %v4046
        %v4048 = vpop.xlane.xlu0 %4047
        %v4049 = vsel %vm1788, %v4035, 0.0
        %4050 = vadd.xlane.f32.xlu0 %v4049
        %v4051 = vpop.xlane.xlu0 %4050
        %v4052 = vsel %vm1788, %v4036, 0.0
        %4053 = vadd.xlane.f32.xlu0 %v4052
        %v4054 = vpop.xlane.xlu0 %4053
        %v4055 = vsel %vm1788, %v4037, 0.0
        %4056 = vadd.xlane.f32.xlu0 %v4055
        %v4057 = vpop.xlane.xlu0 %4056
        %v4058 = vsel %vm1788, %v4038, 0.0
        %4059 = vadd.xlane.f32.xlu0 %v4058
        %v4060 = vpop.xlane.xlu0 %4059
        %v4061 = vsel %vm1810, %v4039, 0.0
        %4062 = vadd.xlane.f32.xlu0 %v4061
        %v4063 = vpop.xlane.xlu0 %4062
        %v4064 = vmul.f32 %v4042, %v1814
        %v4065 = vmul.f32 %v4045, %v1814
        %v4066 = vmul.f32 %v4048, %v1814
        %v4067 = vmul.f32 %v4051, %v1814
        %v4068 = vmul.f32 %v4054, %v1814
        %v4069 = vmul.f32 %v4057, %v1814
        %v4070 = vmul.f32 %v4060, %v1814
        %v4071 = vmul.f32 %v4063, %v1814
        %v4072 = vsub.f32 %v4032, %v4064
        %v4073 = vsub.f32 %v4033, %v4065
        %v4074 = vsub.f32 %v4034, %v4066
        %v4075 = vsub.f32 %v4035, %v4067
        %v4076 = vsub.f32 %v4036, %v4068
        %v4077 = vsub.f32 %v4037, %v4069
        %v4078 = vsub.f32 %v4038, %v4070
        %v4079 = vsub.f32 %v4039, %v4071
        %v4080 = vmul.f32 %v4072, %v4072
        %v4081 = vmul.f32 %v4073, %v4073
        %v4082 = vmul.f32 %v4074, %v4074
        %v4083 = vmul.f32 %v4075, %v4075
        %v4084 = vmul.f32 %v4076, %v4076
        %v4085 = vmul.f32 %v4077, %v4077
        %v4086 = vmul.f32 %v4078, %v4078
        %v4087 = vmul.f32 %v4079, %v4079
        %v4088 = vsel %vm1788, %v4080, 0.0
        %4089 = vadd.xlane.f32.xlu0 %v4088
        %v4090 = vpop.xlane.xlu0 %4089
        %v4091 = vsel %vm1788, %v4081, 0.0
        %4092 = vadd.xlane.f32.xlu0 %v4091
        %v4093 = vpop.xlane.xlu0 %4092
        %v4094 = vsel %vm1788, %v4082, 0.0
        %4095 = vadd.xlane.f32.xlu0 %v4094
        %v4096 = vpop.xlane.xlu0 %4095
        %v4097 = vsel %vm1788, %v4083, 0.0
        %4098 = vadd.xlane.f32.xlu0 %v4097
        %v4099 = vpop.xlane.xlu0 %4098
        %v4100 = vsel %vm1788, %v4084, 0.0
        %4101 = vadd.xlane.f32.xlu0 %v4100
        %v4102 = vpop.xlane.xlu0 %4101
        %v4103 = vsel %vm1788, %v4085, 0.0
        %4104 = vadd.xlane.f32.xlu0 %v4103
        %v4105 = vpop.xlane.xlu0 %4104
        %v4106 = vsel %vm1788, %v4086, 0.0
        %4107 = vadd.xlane.f32.xlu0 %v4106
        %v4108 = vpop.xlane.xlu0 %4107
        %v4109 = vsel %vm1810, %v4087, 0.0
        %4110 = vadd.xlane.f32.xlu0 %v4109
        %v4111 = vpop.xlane.xlu0 %4110
        %v4112 = vmul.f32 %v4090, %v1814
        %v4113 = vmul.f32 %v4093, %v1814
        %v4114 = vmul.f32 %v4096, %v1814
        %v4115 = vmul.f32 %v4099, %v1814
        %v4116 = vmul.f32 %v4102, %v1814
        %v4117 = vmul.f32 %v4105, %v1814
        %v4118 = vmul.f32 %v4108, %v1814
        %v4119 = vmul.f32 %v4111, %v1814
        %v4120 = vadd.f32 %v4112, 1e-05
        %v4121 = vadd.f32 %v4113, 1e-05
        %v4122 = vadd.f32 %v4114, 1e-05
        %v4123 = vadd.f32 %v4115, 1e-05
        %v4124 = vadd.f32 %v4116, 1e-05
        %v4125 = vadd.f32 %v4117, 1e-05
        %v4126 = vadd.f32 %v4118, 1e-05
        %v4127 = vadd.f32 %v4119, 1e-05
        %v4128 = vrsqrt.pop %v4120
        %v4129 = vrsqrt.pop %v4121
        %v4130 = vrsqrt.pop %v4122
        %v4131 = vrsqrt.pop %v4123
        %v4132 = vrsqrt.pop %v4124
        %v4133 = vrsqrt.pop %v4125
        %v4134 = vrsqrt.pop %v4126
        %v4135 = vrsqrt.pop %v4127
        %v4136 = vmul.f32 %v4072, %v4128
        %v4137 = vmul.f32 %v4073, %v4129
        %v4138 = vmul.f32 %v4074, %v4130
        %v4139 = vmul.f32 %v4075, %v4131
        %v4140 = vmul.f32 %v4076, %v4132
        %v4141 = vmul.f32 %v4077, %v4133
        %v4142 = vmul.f32 %v4078, %v4134
        %v4143 = vmul.f32 %v4079, %v4135
        %v4144 = vlaneseq
        %v4145 = vshrl.u32 %v4144, 7
        %v4146 = vsub.s32 2, %v4145
        %v4147 = vrot.slane %v1943, %v4146
        %v4148 = vmul.f32 %v4136, %v4147
        %v4149 = vmul.f32 %v4137, %v4147
        %v4150 = vmul.f32 %v4138, %v4147
        %v4151 = vmul.f32 %v4139, %v4147
        %v4152 = vmul.f32 %v4140, %v4147
        %v4153 = vmul.f32 %v4141, %v4147
        %v4154 = vmul.f32 %v4142, %v4147
        %v4155 = vmul.f32 %v4143, %v4147
        %v4156 = vlaneseq
        %v4157 = vshrl.u32 %v4156, 7
        %v4158 = vsub.s32 3, %v4157
        %v4159 = vrot.slane %v1943, %v4158
        %v4160 = vadd.f32 %v4148, %v4159
        %v4161 = vadd.f32 %v4149, %v4159
        %v4162 = vadd.f32 %v4150, %v4159
        %v4163 = vadd.f32 %v4151, %v4159
        %v4164 = vadd.f32 %v4152, %v4159
        %v4165 = vadd.f32 %v4153, %v4159
        %v4166 = vadd.f32 %v4154, %v4159
        %v4167 = vadd.f32 %v4155, %v4159
        %v4168 = vlaneseq
        %v4169 = vshrl.u32 %v4168, 7
        %v4170 = vsub.s32 4, %v4169
        %v4171 = vrot.slane %v1943, %v4170
        %v4173 = vsel %vm1788, %v4160, 0
        %v4176 = vsel %vm1788, %v4161, 0
        %v4179 = vsel %vm1788, %v4162, 0
        %v4182 = vsel %vm1788, %v4163, 0
        %v4185 = vsel %vm1788, %v4164, 0
        %v4188 = vsel %vm1788, %v4165, 0
        %v4191 = vsel %vm1788, %v4166, 0
        %v4194 = vsel %vm1788, %v4167, 0
        %4196 = vmatprep.subr.mxu0 0.0
        %4197 = vmatpush1.msra.mxu0 %v1921
        %4198 = vmatprep.subr.mxu0 0.0
        %4199 = vmatpush1.msra.mxu0 %v1924
        %4200 = vmatprep.subr.mxu0 0.0
        %4201 = vmatpush1.msra.mxu0 %v1927
        %4202 = vmatprep.subr.mxu0 0.0
        %4203 = vmatpush1.msra.mxu0 %v1930
        %4204 = vmatprep.subr.mxu0 0.0
        %4205 = vmatpush1.msra.mxu0 %v1933
        %4206 = vmatprep.subr.mxu0 0.0
        %4207 = vmatpush1.msra.mxu0 %v1936
        %4208 = vmatprep.subr.mxu0 0.0
        %4209 = vmatpush1.msra.mxu0 %v1939
        %4210 = vmatprep.subr.mxu0 0.0
        %4211 = vmatpush1.msra.mxu0 %v1942
        %4212 = vmatprep.subr.mxu0 0.0
        %4213 = vmatpush1.msra.mxu0 0.0
        %4214 = vmatprep.subr.mxu0 0.0
        %4215 = vmatpush1.msra.mxu0 0.0
        %4216 = vmatprep.subr.mxu0 0.0
        %4217 = vmatpush1.msra.mxu0 0.0
        %4218 = vmatprep.subr.mxu0 0.0
        %4219 = vmatpush1.msra.mxu0 0.0
        %4220 = vmatprep.subr.mxu0 0.0
        %4221 = vmatpush1.msra.mxu0 0.0
        %4222 = vmatprep.subr.mxu0 0.0
        %4223 = vmatpush1.msra.mxu0 0.0
        %4224 = vmatprep.subr.mxu0 0.0
        %4225 = vmatpush1.msra.mxu0 0.0
        %4226 = vmatprep.subr.mxu0 0.0
        %4227 = vmatpush1.msra.mxu0 0.0
        %4228 = vmatprep.subr.mxu0 0.0
        %4229 = vmatpush1.msra.mxu0 0.0
        %4230 = vmatprep.subr.mxu0 0.0
        %4231 = vmatpush1.msra.mxu0 0.0
        %4232 = vmatprep.subr.mxu0 0.0
        %4233 = vmatpush1.msra.mxu0 0.0
        %4234 = vmatprep.subr.mxu0 0.0
        %4235 = vmatpush1.msra.mxu0 0.0
        %4236 = vmatprep.subr.mxu0 0.0
        %4237 = vmatpush1.msra.mxu0 0.0
        %4238 = vmatprep.subr.mxu0 0.0
        %4239 = vmatpush1.msra.mxu0 0.0
        %4240 = vmatprep.subr.mxu0 0.0
        %4241 = vmatpush1.msra.mxu0 0.0
        %4242 = vmatprep.subr.mxu0 0.0
        %4243 = vmatpush1.msra.mxu0 0.0
        %4244 = vmatprep.subr.mxu0 0.0
        %4245 = vmatpush1.msra.mxu0 0.0
        %4246 = vmatprep.subr.mxu0 0.0
        %4247 = vmatpush1.msra.mxu0 0.0
        %4248 = vmatprep.subr.mxu0 0.0
        %4249 = vmatpush1.msra.mxu0 0.0
        %4250 = vmatprep.subr.mxu0 0.0
        %4251 = vmatpush1.msra.mxu0 0.0
        %4252 = vmatprep.subr.mxu0 0.0
        %4253 = vmatpush1.msra.mxu0 0.0
        %4254 = vmatprep.subr.mxu0 0.0
        %4255 = vmatpush1.msra.mxu0 0.0
        %4256 = vmatprep.subr.mxu0 0.0
        %4257 = vmatpush1.msra.mxu0 0.0
        %4258 = vmatprep.subr.mxu0 0.0
        %4259 = vmatpush1.msra.mxu0 0.0
        %4260 = vmatprep.mubr.f32.mxu0 0.0
        %4261 = vmatmul.mubr.f32.gmra.mrb[0].mxu0 %v4173
        %v4262 = vpop.f32.mrb[0].mxu0
        %v4263 = vadd.f32 %v4171, %v4262
        %v4264 = vpop.f32.mrb[0].mxu0
        %4265 = vmatprep.mubr.f32.mxu0 0.0
        %4266 = vmatmul.mubr.f32.gmra.mrb[0].mxu0 %v4176
        %v4267 = vpop.f32.mrb[0].mxu0
        %v4268 = vadd.f32 %v4171, %v4267
        %v4269 = vpop.f32.mrb[0].mxu0
        %4270 = vmatprep.mubr.f32.mxu0 0.0
        %4271 = vmatmul.mubr.f32.gmra.mrb[0].mxu0 %v4179
        %v4272 = vpop.f32.mrb[0].mxu0
        %v4273 = vadd.f32 %v4171, %v4272
        %v4274 = vpop.f32.mrb[0].mxu0
        %4275 = vmatprep.mubr.f32.mxu0 0.0
        %4276 = vmatmul.mubr.f32.gmra.mrb[0].mxu0 %v4182
        %v4277 = vpop.f32.mrb[0].mxu0
        %v4278 = vadd.f32 %v4171, %v4277
        %v4279 = vpop.f32.mrb[0].mxu0
        %4280 = vmatprep.mubr.f32.mxu0 0.0
        %4281 = vmatmul.mubr.f32.gmra.mrb[0].mxu0 %v4185
        %v4282 = vpop.f32.mrb[0].mxu0
        %v4283 = vadd.f32 %v4171, %v4282
        %v4284 = vpop.f32.mrb[0].mxu0
        %4285 = vmatprep.mubr.f32.mxu0 0.0
        %4286 = vmatmul.mubr.f32.gmra.mrb[0].mxu0 %v4188
        %v4287 = vpop.f32.mrb[0].mxu0
        %v4288 = vadd.f32 %v4171, %v4287
        %v4289 = vpop.f32.mrb[0].mxu0
        %4290 = vmatprep.mubr.f32.mxu0 0.0
        %4291 = vmatmul.mubr.f32.gmra.mrb[0].mxu0 %v4191
        %v4292 = vpop.f32.mrb[0].mxu0
        %v4293 = vadd.f32 %v4171, %v4292
        %v4294 = vpop.f32.mrb[0].mxu0
        %4295 = vmatprep.mubr.f32.mxu0 0.0
        %4296 = vmatmul.mubr.f32.gmra.mrb[0].mxu0 %v4194
        %v4297 = vpop.f32.mrb[0].mxu0
        %v4298 = vadd.f32 %v4171, %v4297
        %v4299 = vpop.f32.mrb[0].mxu0
        %4300 = vdwg.mxu0
        %v4301 = vmul.f32 %v4263, %v4263
        %v4302 = vmul.f32 %v4268, %v4268
        %v4303 = vmul.f32 %v4273, %v4273
        %v4304 = vmul.f32 %v4278, %v4278
        %v4305 = vmul.f32 %v4283, %v4283
        %v4306 = vmul.f32 %v4288, %v4288
        %v4307 = vmul.f32 %v4293, %v4293
        %v4308 = vmul.f32 %v4298, %v4298
        %v4309 = vmul.f32 %v4263, %v4301
        %v4310 = vmul.f32 %v4268, %v4302
        %v4311 = vmul.f32 %v4273, %v4303
        %v4312 = vmul.f32 %v4278, %v4304
        %v4313 = vmul.f32 %v4283, %v4305
        %v4314 = vmul.f32 %v4288, %v4306
        %v4315 = vmul.f32 %v4293, %v4307
        %v4316 = vmul.f32 %v4298, %v4308
        %v4317 = vmul.f32 %v4309, 0.044715
        %v4318 = vmul.f32 %v4310, 0.044715
        %v4319 = vmul.f32 %v4311, 0.044715
        %v4320 = vmul.f32 %v4312, 0.044715
        %v4321 = vmul.f32 %v4313, 0.044715
        %v4322 = vmul.f32 %v4314, 0.044715
        %v4323 = vmul.f32 %v4315, 0.044715
        %v4324 = vmul.f32 %v4316, 0.044715
        %v4325 = vadd.f32 %v4263, %v4317
        %v4326 = vadd.f32 %v4268, %v4318
        %v4327 = vadd.f32 %v4273, %v4319
        %v4328 = vadd.f32 %v4278, %v4320
        %v4329 = vadd.f32 %v4283, %v4321
        %v4330 = vadd.f32 %v4288, %v4322
        %v4331 = vadd.f32 %v4293, %v4323
        %v4332 = vadd.f32 %v4298, %v4324
        %v4333 = vmul.f32 %v4325, 0.7978846
        %v4334 = vmul.f32 %v4326, 0.7978846
        %v4335 = vmul.f32 %v4327, 0.7978846
        %v4336 = vmul.f32 %v4328, 0.7978846
        %v4337 = vmul.f32 %v4329, 0.7978846
        %v4338 = vmul.f32 %v4330, 0.7978846
        %v4339 = vmul.f32 %v4331, 0.7978846
        %v4340 = vmul.f32 %v4332, 0.7978846
        %v4341 = vtanh.pop %v4333
        %v4342 = vtanh.pop %v4334
        %v4343 = vtanh.pop %v4335
        %v4344 = vtanh.pop %v4336
        %v4345 = vtanh.pop %v4337
        %v4346 = vtanh.pop %v4338
        %v4347 = vtanh.pop %v4339
        %v4348 = vtanh.pop %v4340
        %v4349 = vadd.f32 %v4341, 1.0
        %v4350 = vadd.f32 %v4342, 1.0
        %v4351 = vadd.f32 %v4343, 1.0
        %v4352 = vadd.f32 %v4344, 1.0
        %v4353 = vadd.f32 %v4345, 1.0
        %v4354 = vadd.f32 %v4346, 1.0
        %v4355 = vadd.f32 %v4347, 1.0
        %v4356 = vadd.f32 %v4348, 1.0
        %v4357 = vmul.f32 %v4349, 0.5
        %v4358 = vmul.f32 %v4350, 0.5
        %v4359 = vmul.f32 %v4351, 0.5
        %v4360 = vmul.f32 %v4352, 0.5
        %v4361 = vmul.f32 %v4353, 0.5
        %v4362 = vmul.f32 %v4354, 0.5
        %v4363 = vmul.f32 %v4355, 0.5
        %v4364 = vmul.f32 %v4356, 0.5
        %v4365 = vmul.f32 %v4263, %v4357
        %v4366 = vmul.f32 %v4268, %v4358
        %v4367 = vmul.f32 %v4273, %v4359
        %v4368 = vmul.f32 %v4278, %v4360
        %v4369 = vmul.f32 %v4283, %v4361
        %v4370 = vmul.f32 %v4288, %v4362
        %v4371 = vmul.f32 %v4293, %v4363
        %v4372 = vmul.f32 %v4298, %v4364
        %v4373 = vlaneseq
        %v4374 = vshrl.u32 %v4373, 7
        %v4375 = vsub.s32 5, %v4374
        %v4376 = vrot.slane %v1943, %v4375
        %4377 = vmatprep.subr.mxu0 0.0
        %4378 = vmatpush1.msra.mxu0 %v1945
        %4379 = vmatprep.subr.mxu0 0.0
        %4380 = vmatpush1.msra.mxu0 %v1946
        %4381 = vmatprep.subr.mxu0 0.0
        %4382 = vmatpush1.msra.mxu0 %v1947
        %4383 = vmatprep.subr.mxu0 0.0
        %4384 = vmatpush1.msra.mxu0 %v1948
        %4385 = vmatprep.subr.mxu0 0.0
        %4386 = vmatpush1.msra.mxu0 %v1949
        %4387 = vmatprep.subr.mxu0 0.0
        %4388 = vmatpush1.msra.mxu0 %v1950
        %4389 = vmatprep.subr.mxu0 0.0
        %4390 = vmatpush1.msra.mxu0 %v1951
        %4391 = vmatprep.subr.mxu0 0.0
        %4392 = vmatpush1.msra.mxu0 %v1952
        %4393 = vmatprep.subr.mxu0 0.0
        %4394 = vmatpush1.msra.mxu0 %v1953
        %4395 = vmatprep.subr.mxu0 0.0
        %4396 = vmatpush1.msra.mxu0 %v1954
        %4397 = vmatprep.subr.mxu0 0.0
        %4398 = vmatpush1.msra.mxu0 %v1955
        %4399 = vmatprep.subr.mxu0 0.0
        %4400 = vmatpush1.msra.mxu0 %v1956
        %4401 = vmatprep.subr.mxu0 0.0
        %4402 = vmatpush1.msra.mxu0 %v1957
        %4403 = vmatprep.subr.mxu0 0.0
        %4404 = vmatpush1.msra.mxu0 %v1958
        %4405 = vmatprep.subr.mxu0 0.0
        %4406 = vmatpush1.msra.mxu0 %v1959
        %4407 = vmatprep.subr.mxu0 0.0
        %4408 = vmatpush1.msra.mxu0 %v1960
        %4409 = vmatprep.subr.mxu0 0.0
        %4410 = vmatpush1.msra.mxu0 0.0
        %4411 = vmatprep.subr.mxu0 0.0
        %4412 = vmatpush1.msra.mxu0 0.0
        %4413 = vmatprep.subr.mxu0 0.0
        %4414 = vmatpush1.msra.mxu0 0.0
        %4415 = vmatprep.subr.mxu0 0.0
        %4416 = vmatpush1.msra.mxu0 0.0
        %4417 = vmatprep.subr.mxu0 0.0
        %4418 = vmatpush1.msra.mxu0 0.0
        %4419 = vmatprep.subr.mxu0 0.0
        %4420 = vmatpush1.msra.mxu0 0.0
        %4421 = vmatprep.subr.mxu0 0.0
        %4422 = vmatpush1.msra.mxu0 0.0
        %4423 = vmatprep.subr.mxu0 0.0
        %4424 = vmatpush1.msra.mxu0 0.0
        %4425 = vmatprep.subr.mxu0 0.0
        %4426 = vmatpush1.msra.mxu0 0.0
        %4427 = vmatprep.subr.mxu0 0.0
        %4428 = vmatpush1.msra.mxu0 0.0
        %4429 = vmatprep.subr.mxu0 0.0
        %4430 = vmatpush1.msra.mxu0 0.0
        %4431 = vmatprep.subr.mxu0 0.0
        %4432 = vmatpush1.msra.mxu0 0.0
        %4433 = vmatprep.subr.mxu0 0.0
        %4434 = vmatpush1.msra.mxu0 0.0
        %4435 = vmatprep.subr.mxu0 0.0
        %4436 = vmatpush1.msra.mxu0 0.0
        %4437 = vmatprep.subr.mxu0 0.0
        %4438 = vmatpush1.msra.mxu0 0.0
        %4439 = vmatprep.subr.mxu0 0.0
        %4440 = vmatpush1.msra.mxu0 0.0
        %4441 = vmatprep.mubr.f32.mxu0 0.0
        %4442 = vmatmul.mubr.f32.gmra.mrb[0].mxu0 %v4365
        %v4443 = vpop.f32.mrb[0].mxu0
        %v4444 = vadd.f32 %v4376, %v4443
        %v4445 = vpop.f32.mrb[0].mxu0
        %4446 = vmatprep.mubr.f32.mxu0 0.0
        %4447 = vmatmul.mubr.f32.gmra.mrb[0].mxu0 %v4366
        %v4448 = vpop.f32.mrb[0].mxu0
        %v4449 = vadd.f32 %v4376, %v4448
        %v4450 = vpop.f32.mrb[0].mxu0
        %4451 = vmatprep.mubr.f32.mxu0 0.0
        %4452 = vmatmul.mubr.f32.gmra.mrb[0].mxu0 %v4367
        %v4453 = vpop.f32.mrb[0].mxu0
        %v4454 = vadd.f32 %v4376, %v4453
        %v4455 = vpop.f32.mrb[0].mxu0
        %4456 = vmatprep.mubr.f32.mxu0 0.0
        %4457 = vmatmul.mubr.f32.gmra.mrb[0].mxu0 %v4368
        %v4458 = vpop.f32.mrb[0].mxu0
        %v4459 = vadd.f32 %v4376, %v4458
        %v4460 = vpop.f32.mrb[0].mxu0
        %4461 = vmatprep.mubr.f32.mxu0 0.0
        %4462 = vmatmul.mubr.f32.gmra.mrb[0].mxu0 %v4369
        %v4463 = vpop.f32.mrb[0].mxu0
        %v4464 = vadd.f32 %v4376, %v4463
        %v4465 = vpop.f32.mrb[0].mxu0
        %4466 = vmatprep.mubr.f32.mxu0 0.0
        %4467 = vmatmul.mubr.f32.gmra.mrb[0].mxu0 %v4370
        %v4468 = vpop.f32.mrb[0].mxu0
        %v4469 = vadd.f32 %v4376, %v4468
        %v4470 = vpop.f32.mrb[0].mxu0
        %4471 = vmatprep.mubr.f32.mxu0 0.0
        %4472 = vmatmul.mubr.f32.gmra.mrb[0].mxu0 %v4371
        %v4473 = vpop.f32.mrb[0].mxu0
        %v4474 = vadd.f32 %v4376, %v4473
        %v4475 = vpop.f32.mrb[0].mxu0
        %4476 = vmatprep.mubr.f32.mxu0 0.0
        %4477 = vmatmul.mubr.f32.gmra.mrb[0].mxu0 %v4372
        %v4478 = vpop.f32.mrb[0].mxu0
        %v4479 = vadd.f32 %v4376, %v4478
        %v4480 = vpop.f32.mrb[0].mxu0
        %4481 = vdwg.mxu0
        %v4482 = vadd.f32 %v4160, %v4444
        %v4483 = vadd.f32 %v4161, %v4449
        %v4484 = vadd.f32 %v4162, %v4454
        %v4485 = vadd.f32 %v4163, %v4459
        %v4486 = vadd.f32 %v4164, %v4464
        %v4487 = vadd.f32 %v4165, %v4469
        %v4488 = vadd.f32 %v4166, %v4474
        %v4489 = vadd.f32 %v4167, %v4479
        %v4490 = vsel %vm1788, %v4482, 0.0
        %4491 = vadd.xlane.f32.xlu0 %v4490
        %v4492 = vpop.xlane.xlu0 %4491
        %v4493 = vsel %vm1788, %v4483, 0.0
        %4494 = vadd.xlane.f32.xlu0 %v4493
        %v4495 = vpop.xlane.xlu0 %4494
        %v4496 = vsel %vm1788, %v4484, 0.0
        %4497 = vadd.xlane.f32.xlu0 %v4496
        %v4498 = vpop.xlane.xlu0 %4497
        %v4499 = vsel %vm1788, %v4485, 0.0
        %4500 = vadd.xlane.f32.xlu0 %v4499
        %v4501 = vpop.xlane.xlu0 %4500
        %v4502 = vsel %vm1788, %v4486, 0.0
        %4503 = vadd.xlane.f32.xlu0 %v4502
        %v4504 = vpop.xlane.xlu0 %4503
        %v4505 = vsel %vm1788, %v4487, 0.0
        %4506 = vadd.xlane.f32.xlu0 %v4505
        %v4507 = vpop.xlane.xlu0 %4506
        %v4508 = vsel %vm1788, %v4488, 0.0
        %4509 = vadd.xlane.f32.xlu0 %v4508
        %v4510 = vpop.xlane.xlu0 %4509
        %v4511 = vsel %vm1810, %v4489, 0.0
        %4512 = vadd.xlane.f32.xlu0 %v4511
        %v4513 = vpop.xlane.xlu0 %4512
        %v4514 = vmul.f32 %v4492, %v1814
        %v4515 = vmul.f32 %v4495, %v1814
        %v4516 = vmul.f32 %v4498, %v1814
        %v4517 = vmul.f32 %v4501, %v1814
        %v4518 = vmul.f32 %v4504, %v1814
        %v4519 = vmul.f32 %v4507, %v1814
        %v4520 = vmul.f32 %v4510, %v1814
        %v4521 = vmul.f32 %v4513, %v1814
        %v4522 = vsub.f32 %v4482, %v4514
        %v4523 = vsub.f32 %v4483, %v4515
        %v4524 = vsub.f32 %v4484, %v4516
        %v4525 = vsub.f32 %v4485, %v4517
        %v4526 = vsub.f32 %v4486, %v4518
        %v4527 = vsub.f32 %v4487, %v4519
        %v4528 = vsub.f32 %v4488, %v4520
        %v4529 = vsub.f32 %v4489, %v4521
        %v4530 = vmul.f32 %v4522, %v4522
        %v4531 = vmul.f32 %v4523, %v4523
        %v4532 = vmul.f32 %v4524, %v4524
        %v4533 = vmul.f32 %v4525, %v4525
        %v4534 = vmul.f32 %v4526, %v4526
        %v4535 = vmul.f32 %v4527, %v4527
        %v4536 = vmul.f32 %v4528, %v4528
        %v4537 = vmul.f32 %v4529, %v4529
        %v4538 = vsel %vm1788, %v4530, 0.0
        %4539 = vadd.xlane.f32.xlu0 %v4538
        %v4540 = vpop.xlane.xlu0 %4539
        %v4541 = vsel %vm1788, %v4531, 0.0
        %4542 = vadd.xlane.f32.xlu0 %v4541
        %v4543 = vpop.xlane.xlu0 %4542
        %v4544 = vsel %vm1788, %v4532, 0.0
        %4545 = vadd.xlane.f32.xlu0 %v4544
        %v4546 = vpop.xlane.xlu0 %4545
        %v4547 = vsel %vm1788, %v4533, 0.0
        %4548 = vadd.xlane.f32.xlu0 %v4547
        %v4549 = vpop.xlane.xlu0 %4548
        %v4550 = vsel %vm1788, %v4534, 0.0
        %4551 = vadd.xlane.f32.xlu0 %v4550
        %v4552 = vpop.xlane.xlu0 %4551
        %v4553 = vsel %vm1788, %v4535, 0.0
        %4554 = vadd.xlane.f32.xlu0 %v4553
        %v4555 = vpop.xlane.xlu0 %4554
        %v4556 = vsel %vm1788, %v4536, 0.0
        %4557 = vadd.xlane.f32.xlu0 %v4556
        %v4558 = vpop.xlane.xlu0 %4557
        %v4559 = vsel %vm1810, %v4537, 0.0
        %4560 = vadd.xlane.f32.xlu0 %v4559
        %v4561 = vpop.xlane.xlu0 %4560
        %v4562 = vmul.f32 %v4540, %v1814
        %v4563 = vmul.f32 %v4543, %v1814
        %v4564 = vmul.f32 %v4546, %v1814
        %v4565 = vmul.f32 %v4549, %v1814
        %v4566 = vmul.f32 %v4552, %v1814
        %v4567 = vmul.f32 %v4555, %v1814
        %v4568 = vmul.f32 %v4558, %v1814
        %v4569 = vmul.f32 %v4561, %v1814
        %v4570 = vadd.f32 %v4562, 1e-05
        %v4571 = vadd.f32 %v4563, 1e-05
        %v4572 = vadd.f32 %v4564, 1e-05
        %v4573 = vadd.f32 %v4565, 1e-05
        %v4574 = vadd.f32 %v4566, 1e-05
        %v4575 = vadd.f32 %v4567, 1e-05
        %v4576 = vadd.f32 %v4568, 1e-05
        %v4577 = vadd.f32 %v4569, 1e-05
        %v4578 = vrsqrt.pop %v4570
        %v4579 = vrsqrt.pop %v4571
        %v4580 = vrsqrt.pop %v4572
        %v4581 = vrsqrt.pop %v4573
        %v4582 = vrsqrt.pop %v4574
        %v4583 = vrsqrt.pop %v4575
        %v4584 = vrsqrt.pop %v4576
        %v4585 = vrsqrt.pop %v4577
        %v4586 = vmul.f32 %v4522, %v4578
        %v4587 = vmul.f32 %v4523, %v4579
        %v4588 = vmul.f32 %v4524, %v4580
        %v4589 = vmul.f32 %v4525, %v4581
        %v4590 = vmul.f32 %v4526, %v4582
        %v4591 = vmul.f32 %v4527, %v4583
        %v4592 = vmul.f32 %v4528, %v4584
        %v4593 = vmul.f32 %v4529, %v4585
        %v4594 = vlaneseq
        %v4595 = vshrl.u32 %v4594, 7
        %v4596 = vsub.s32 6, %v4595
        %v4597 = vrot.slane %v1943, %v4596
        %v4598 = vmul.f32 %v4586, %v4597
        %v4599 = vmul.f32 %v4587, %v4597
        %v4600 = vmul.f32 %v4588, %v4597
        %v4601 = vmul.f32 %v4589, %v4597
        %v4602 = vmul.f32 %v4590, %v4597
        %v4603 = vmul.f32 %v4591, %v4597
        %v4604 = vmul.f32 %v4592, %v4597
        %v4605 = vmul.f32 %v4593, %v4597
        %v4606 = vlaneseq
        %v4607 = vshrl.u32 %v4606, 7
        %v4608 = vsub.s32 7, %v4607
        %v4609 = vrot.slane %v1943, %v4608
        %v4610 = vadd.f32 %v4598, %v4609
        %v4611 = vadd.f32 %v4599, %v4609
        %v4612 = vadd.f32 %v4600, %v4609
        %v4613 = vadd.f32 %v4601, %v4609
        %v4614 = vadd.f32 %v4602, %v4609
        %v4615 = vadd.f32 %v4603, %v4609
        %v4616 = vadd.f32 %v4604, %v4609
        %v4617 = vadd.f32 %v4605, %v4609
        %s4618 = scalar_lea.vmem %s4, 192
        %v4619 = vld [vmem:[%s4618] sm:$0xff]
        %v4620 = vld [vmem:[%s4618 + $0x8] sm:$0xff]
        %v4621 = vld [vmem:[%s4618 + $0x10] sm:$0xff]
        %v4622 = vld [vmem:[%s4618 + $0x18] sm:$0xff]
        %v4623 = vld [vmem:[%s4618 + $0x20] sm:$0xff]
        %v4624 = vld [vmem:[%s4618 + $0x28] sm:$0xff]
        %v4625 = vld [vmem:[%s4618 + $0x30] sm:$0xff]
        %v4626 = vld [vmem:[%s4618 + $0x38] sm:$0xff]
        %v4627 = vld [vmem:[%s4618 + $0x40] sm:$0xff]
        %v4628 = vld [vmem:[%s4618 + $0x48] sm:$0xff]
        %v4629 = vld [vmem:[%s4618 + $0x50] sm:$0xff]
        %v4630 = vld [vmem:[%s4618 + $0x58] sm:$0xff]
        %v4631 = vld [vmem:[%s4618 + $0x60] sm:$0xff]
        %v4632 = vld [vmem:[%s4618 + $0x68] sm:$0xff]
        %v4633 = vld [vmem:[%s4618 + $0x70] sm:$0xff]
        %v4634 = vld [vmem:[%s4618 + $0x78] sm:$0xff]
        %v4635 = vld [vmem:[%s4618 + $0x80] sm:$0xff]
        %v4636 = vld [vmem:[%s4618 + $0x88] sm:$0xff]
        %v4637 = vld [vmem:[%s4618 + $0x90] sm:$0xff]
        %v4638 = vld [vmem:[%s4618 + $0x98] sm:$0xff]
        %v4639 = vld [vmem:[%s4618 + $0xa0] sm:$0xff]
        %v4640 = vld [vmem:[%s4618 + $0xa8] sm:$0xff]
        %v4641 = vld [vmem:[%s4618 + $0xb0] sm:$0xff]
        %v4642 = vld [vmem:[%s4618 + $0xb8] sm:$0xff]
        %s4643 = scalar_lea.vmem %s6, 16
        %v4644 = vld [vmem:[%s4643] sm:$0xff]
        %v4645 = vld [vmem:[%s4643 + $0x8] sm:$0xff]
        %s4646 = scalar_lea.vmem %s5, 128
        %v4647 = vld [vmem:[%s4646] sm:$0xff]
        %v4648 = vld [vmem:[%s4646 + $0x8] sm:$0xff]
        %v4649 = vld [vmem:[%s4646 + $0x10] sm:$0xff]
        %v4650 = vld [vmem:[%s4646 + $0x18] sm:$0xff]
        %v4651 = vld [vmem:[%s4646 + $0x20] sm:$0xff]
        %v4652 = vld [vmem:[%s4646 + $0x28] sm:$0xff]
        %v4653 = vld [vmem:[%s4646 + $0x30] sm:$0xff]
        %v4654 = vld [vmem:[%s4646 + $0x38] sm:$0xff]
        %v4655 = vld [vmem:[%s4646 + $0x40] sm:$0xff]
        %v4656 = vld [vmem:[%s4646 + $0x48] sm:$0xff]
        %v4657 = vld [vmem:[%s4646 + $0x50] sm:$0xff]
        %v4658 = vld [vmem:[%s4646 + $0x58] sm:$0xff]
        %v4659 = vld [vmem:[%s4646 + $0x60] sm:$0xff]
        %v4660 = vld [vmem:[%s4646 + $0x68] sm:$0xff]
        %v4661 = vld [vmem:[%s4646 + $0x70] sm:$0xff]
        %v4662 = vld [vmem:[%s4646 + $0x78] sm:$0xff]
        %v4663 = vlaneseq
        %v4664 = vshrl.u32 %v4663, 7
        %v4665 = vsub.s32 0, %v4664
        %v4666 = vrot.slane %v4644, %v4665
        %v4667 = vlaneseq
        %v4668 = vshrl.u32 %v4667, 7
        %v4669 = vsub.s32 0, %v4668
        %v4670 = vrot.slane %v4645, %v4669
        %v4672 = vsel %vm1788, %v4610, 0
        %v4675 = vsel %vm1788, %v4611, 0
        %v4678 = vsel %vm1788, %v4612, 0
        %v4681 = vsel %vm1788, %v4613, 0
        %v4684 = vsel %vm1788, %v4614, 0
        %v4687 = vsel %vm1788, %v4615, 0
        %v4690 = vsel %vm1788, %v4616, 0
        %v4693 = vsel %vm1788, %v4617, 0
        %4695 = vmatprep.subr.mxu0 %v4620
        %4696 = vmatpush1.msra.mxu0 %v4619
        %4697 = vmatprep.subr.mxu0 %v4623
        %4698 = vmatpush1.msra.mxu0 %v4622
        %4699 = vmatprep.subr.mxu0 %v4626
        %4700 = vmatpush1.msra.mxu0 %v4625
        %4701 = vmatprep.subr.mxu0 %v4629
        %4702 = vmatpush1.msra.mxu0 %v4628
        %4703 = vmatprep.subr.mxu0 %v4632
        %4704 = vmatpush1.msra.mxu0 %v4631
        %4705 = vmatprep.subr.mxu0 %v4635
        %4706 = vmatpush1.msra.mxu0 %v4634
        %4707 = vmatprep.subr.mxu0 %v4638
        %4708 = vmatpush1.msra.mxu0 %v4637
        %4709 = vmatprep.subr.mxu0 %v4641
        %4710 = vmatpush1.msra.mxu0 %v4640
        %4711 = vmatprep.subr.mxu0 0.0
        %4712 = vmatpush1.msra.mxu0 0.0
        %4713 = vmatprep.subr.mxu0 0.0
        %4714 = vmatpush1.msra.mxu0 0.0
        %4715 = vmatprep.subr.mxu0 0.0
        %4716 = vmatpush1.msra.mxu0 0.0
        %4717 = vmatprep.subr.mxu0 0.0
        %4718 = vmatpush1.msra.mxu0 0.0
        %4719 = vmatprep.subr.mxu0 0.0
        %4720 = vmatpush1.msra.mxu0 0.0
        %4721 = vmatprep.subr.mxu0 0.0
        %4722 = vmatpush1.msra.mxu0 0.0
        %4723 = vmatprep.subr.mxu0 0.0
        %4724 = vmatpush1.msra.mxu0 0.0
        %4725 = vmatprep.subr.mxu0 0.0
        %4726 = vmatpush1.msra.mxu0 0.0
        %4727 = vmatprep.subr.mxu0 0.0
        %4728 = vmatpush1.msra.mxu0 0.0
        %4729 = vmatprep.subr.mxu0 0.0
        %4730 = vmatpush1.msra.mxu0 0.0
        %4731 = vmatprep.subr.mxu0 0.0
        %4732 = vmatpush1.msra.mxu0 0.0
        %4733 = vmatprep.subr.mxu0 0.0
        %4734 = vmatpush1.msra.mxu0 0.0
        %4735 = vmatprep.subr.mxu0 0.0
        %4736 = vmatpush1.msra.mxu0 0.0
        %4737 = vmatprep.subr.mxu0 0.0
        %4738 = vmatpush1.msra.mxu0 0.0
        %4739 = vmatprep.subr.mxu0 0.0
        %4740 = vmatpush1.msra.mxu0 0.0
        %4741 = vmatprep.subr.mxu0 0.0
        %4742 = vmatpush1.msra.mxu0 0.0
        %4743 = vmatprep.subr.mxu0 0.0
        %4744 = vmatpush1.msra.mxu0 0.0
        %4745 = vmatprep.subr.mxu0 0.0
        %4746 = vmatpush1.msra.mxu0 0.0
        %4747 = vmatprep.subr.mxu0 0.0
        %4748 = vmatpush1.msra.mxu0 0.0
        %4749 = vmatprep.subr.mxu0 0.0
        %4750 = vmatpush1.msra.mxu0 0.0
        %4751 = vmatprep.subr.mxu0 0.0
        %4752 = vmatpush1.msra.mxu0 0.0
        %4753 = vmatprep.subr.mxu0 0.0
        %4754 = vmatpush1.msra.mxu0 0.0
        %4755 = vmatprep.subr.mxu0 0.0
        %4756 = vmatpush1.msra.mxu0 0.0
        %4757 = vmatprep.subr.mxu0 0.0
        %4758 = vmatpush1.msra.mxu0 0.0
        %4759 = vmatprep.mubr.f32.mxu0 0.0
        %4760 = vmatmul.mubr.f32.gmra.mrb[0].mxu0 %v4672
        %v4761 = vpop.f32.mrb[0].mxu0
        %v4762 = vadd.f32 %v4666, %v4761
        %v4763 = vpop.f32.mrb[0].mxu0
        %v4764 = vadd.f32 %v4670, %v4763
        %4765 = vmatprep.mubr.f32.mxu0 0.0
        %4766 = vmatmul.mubr.f32.gmra.mrb[0].mxu0 %v4675
        %v4767 = vpop.f32.mrb[0].mxu0
        %v4768 = vadd.f32 %v4666, %v4767
        %v4769 = vpop.f32.mrb[0].mxu0
        %v4770 = vadd.f32 %v4670, %v4769
        %4771 = vmatprep.mubr.f32.mxu0 0.0
        %4772 = vmatmul.mubr.f32.gmra.mrb[0].mxu0 %v4678
        %v4773 = vpop.f32.mrb[0].mxu0
        %v4774 = vadd.f32 %v4666, %v4773
        %v4775 = vpop.f32.mrb[0].mxu0
        %v4776 = vadd.f32 %v4670, %v4775
        %4777 = vmatprep.mubr.f32.mxu0 0.0
        %4778 = vmatmul.mubr.f32.gmra.mrb[0].mxu0 %v4681
        %v4779 = vpop.f32.mrb[0].mxu0
        %v4780 = vadd.f32 %v4666, %v4779
        %v4781 = vpop.f32.mrb[0].mxu0
        %v4782 = vadd.f32 %v4670, %v4781
        %4783 = vmatprep.mubr.f32.mxu0 0.0
        %4784 = vmatmul.mubr.f32.gmra.mrb[0].mxu0 %v4684
        %v4785 = vpop.f32.mrb[0].mxu0
        %v4786 = vadd.f32 %v4666, %v4785
        %v4787 = vpop.f32.mrb[0].mxu0
        %v4788 = vadd.f32 %v4670, %v4787
        %4789 = vmatprep.mubr.f32.mxu0 0.0
        %4790 = vmatmul.mubr.f32.gmra.mrb[0].mxu0 %v4687
        %v4791 = vpop.f32.mrb[0].mxu0
        %v4792 = vadd.f32 %v4666, %v4791
        %v4793 = vpop.f32.mrb[0].mxu0
        %v4794 = vadd.f32 %v4670, %v4793
        %4795 = vmatprep.mubr.f32.mxu0 0.0
        %4796 = vmatmul.mubr.f32.gmra.mrb[0].mxu0 %v4690
        %v4797 = vpop.f32.mrb[0].mxu0
        %v4798 = vadd.f32 %v4666, %v4797
        %v4799 = vpop.f32.mrb[0].mxu0
        %v4800 = vadd.f32 %v4670, %v4799
        %4801 = vmatprep.mubr.f32.mxu0 0.0
        %4802 = vmatmul.mubr.f32.gmra.mrb[0].mxu0 %v4693
        %v4803 = vpop.f32.mrb[0].mxu0
        %v4804 = vadd.f32 %v4666, %v4803
        %v4805 = vpop.f32.mrb[0].mxu0
        %v4806 = vadd.f32 %v4670, %v4805
        %4807 = vdwg.mxu0
        %v4808 = vmul.f32 %v4762, 0.25
        %v4809 = vmul.f32 %v4768, 0.25
        %v4810 = vmul.f32 %v4774, 0.25
        %v4811 = vmul.f32 %v4780, 0.25
        %v4812 = vmul.f32 %v4786, 0.25
        %v4813 = vmul.f32 %v4792, 0.25
        %v4814 = vmul.f32 %v4798, 0.25
        %v4815 = vmul.f32 %v4804, 0.25
        %4824 = vrot.lane.b32.xlu0 %v4762, 64
        %v4825 = vpop.permute.xlu0 %4824
        %4826 = vrot.lane.b32.xlu0 %v4768, 64
        %v4827 = vpop.permute.xlu0 %4826
        %4828 = vrot.lane.b32.xlu0 %v4774, 64
        %v4829 = vpop.permute.xlu0 %4828
        %4830 = vrot.lane.b32.xlu0 %v4780, 64
        %v4831 = vpop.permute.xlu0 %4830
        %4832 = vrot.lane.b32.xlu0 %v4786, 64
        %v4833 = vpop.permute.xlu0 %4832
        %4834 = vrot.lane.b32.xlu0 %v4792, 64
        %v4835 = vpop.permute.xlu0 %4834
        %4836 = vrot.lane.b32.xlu0 %v4798, 64
        %v4837 = vpop.permute.xlu0 %4836
        %4838 = vrot.lane.b32.xlu0 %v4804, 64
        %v4839 = vpop.permute.xlu0 %4838
        %v4841 = vsel %vm2138, %v4808, 0
        %v4844 = vsel %vm2138, %v4809, 0
        %v4847 = vsel %vm2138, %v4810, 0
        %v4850 = vsel %vm2138, %v4811, 0
        %v4853 = vsel %vm2138, %v4812, 0
        %v4856 = vsel %vm2138, %v4813, 0
        %v4859 = vsel %vm2138, %v4814, 0
        %v4862 = vsel %vm2138, %v4815, 0
        %v4864 = vsel %vm2138, %v4825, 0
        %v4866 = vsel %vm2138, %v4827, 0
        %v4868 = vsel %vm2138, %v4829, 0
        %v4870 = vsel %vm2138, %v4831, 0
        %v4872 = vsel %vm2138, %v4833, 0
        %v4874 = vsel %vm2138, %v4835, 0
        %v4876 = vsel %vm2138, %v4837, 0
        %v4878 = vsel %vm2138, %v4839, 0
        %4880 = vmatprep.subr.mxu0 0.0
        %4881 = vmatpush1.xpose.msra.mxu0 %v4864
        %4882 = vmatprep.subr.mxu0 0.0
        %4883 = vmatpush1.xpose.msra.mxu0 %v4866
        %4884 = vmatprep.subr.mxu0 0.0
        %4885 = vmatpush1.xpose.msra.mxu0 %v4868
        %4886 = vmatprep.subr.mxu0 0.0
        %4887 = vmatpush1.xpose.msra.mxu0 %v4870
        %4888 = vmatprep.subr.mxu0 0.0
        %4889 = vmatpush1.xpose.msra.mxu0 %v4872
        %4890 = vmatprep.subr.mxu0 0.0
        %4891 = vmatpush1.xpose.msra.mxu0 %v4874
        %4892 = vmatprep.subr.mxu0 0.0
        %4893 = vmatpush1.xpose.msra.mxu0 %v4876
        %4894 = vmatprep.subr.mxu0 0.0
        %4895 = vmatpush1.xpose.msra.mxu0 %v4878
        %4896 = vmatprep.subr.mxu0 0.0
        %4897 = vmatpush1.xpose.msra.mxu0 0.0
        %4898 = vmatprep.subr.mxu0 0.0
        %4899 = vmatpush1.xpose.msra.mxu0 0.0
        %4900 = vmatprep.subr.mxu0 0.0
        %4901 = vmatpush1.xpose.msra.mxu0 0.0
        %4902 = vmatprep.subr.mxu0 0.0
        %4903 = vmatpush1.xpose.msra.mxu0 0.0
        %4904 = vmatprep.subr.mxu0 0.0
        %4905 = vmatpush1.xpose.msra.mxu0 0.0
        %4906 = vmatprep.subr.mxu0 0.0
        %4907 = vmatpush1.xpose.msra.mxu0 0.0
        %4908 = vmatprep.subr.mxu0 0.0
        %4909 = vmatpush1.xpose.msra.mxu0 0.0
        %4910 = vmatprep.subr.mxu0 0.0
        %4911 = vmatpush1.xpose.msra.mxu0 0.0
        %4912 = vmatprep.subr.mxu0 0.0
        %4913 = vmatpush1.xpose.msra.mxu0 0.0
        %4914 = vmatprep.subr.mxu0 0.0
        %4915 = vmatpush1.xpose.msra.mxu0 0.0
        %4916 = vmatprep.subr.mxu0 0.0
        %4917 = vmatpush1.xpose.msra.mxu0 0.0
        %4918 = vmatprep.subr.mxu0 0.0
        %4919 = vmatpush1.xpose.msra.mxu0 0.0
        %4920 = vmatprep.subr.mxu0 0.0
        %4921 = vmatpush1.xpose.msra.mxu0 0.0
        %4922 = vmatprep.subr.mxu0 0.0
        %4923 = vmatpush1.xpose.msra.mxu0 0.0
        %4924 = vmatprep.subr.mxu0 0.0
        %4925 = vmatpush1.xpose.msra.mxu0 0.0
        %4926 = vmatprep.subr.mxu0 0.0
        %4927 = vmatpush1.xpose.msra.mxu0 0.0
        %4928 = vmatprep.subr.mxu0 0.0
        %4929 = vmatpush1.xpose.msra.mxu0 0.0
        %4930 = vmatprep.subr.mxu0 0.0
        %4931 = vmatpush1.xpose.msra.mxu0 0.0
        %4932 = vmatprep.subr.mxu0 0.0
        %4933 = vmatpush1.xpose.msra.mxu0 0.0
        %4934 = vmatprep.subr.mxu0 0.0
        %4935 = vmatpush1.xpose.msra.mxu0 0.0
        %4936 = vmatprep.subr.mxu0 0.0
        %4937 = vmatpush1.xpose.msra.mxu0 0.0
        %4938 = vmatprep.subr.mxu0 0.0
        %4939 = vmatpush1.xpose.msra.mxu0 0.0
        %4940 = vmatprep.subr.mxu0 0.0
        %4941 = vmatpush1.xpose.msra.mxu0 0.0
        %4942 = vmatprep.subr.mxu0 0.0
        %4943 = vmatpush1.xpose.msra.mxu0 0.0
        %4944 = vmatprep.mubr.f32.mxu0 0.0
        %4945 = vmatmul.mubr.f32.gmra.mrb[0].mxu0 %v4841
        %v4946 = vpop.f32.mrb[0].mxu0
        %v4947 = vadd.f32 0.0, %v4946
        %v4948 = vpop.f32.mrb[0].mxu0
        %4949 = vmatprep.mubr.f32.mxu0 0.0
        %4950 = vmatmul.mubr.f32.gmra.mrb[0].mxu0 %v4844
        %v4951 = vpop.f32.mrb[0].mxu0
        %v4952 = vadd.f32 0.0, %v4951
        %v4953 = vpop.f32.mrb[0].mxu0
        %4954 = vmatprep.mubr.f32.mxu0 0.0
        %4955 = vmatmul.mubr.f32.gmra.mrb[0].mxu0 %v4847
        %v4956 = vpop.f32.mrb[0].mxu0
        %v4957 = vadd.f32 0.0, %v4956
        %v4958 = vpop.f32.mrb[0].mxu0
        %4959 = vmatprep.mubr.f32.mxu0 0.0
        %4960 = vmatmul.mubr.f32.gmra.mrb[0].mxu0 %v4850
        %v4961 = vpop.f32.mrb[0].mxu0
        %v4962 = vadd.f32 0.0, %v4961
        %v4963 = vpop.f32.mrb[0].mxu0
        %4964 = vmatprep.mubr.f32.mxu0 0.0
        %4965 = vmatmul.mubr.f32.gmra.mrb[0].mxu0 %v4853
        %v4966 = vpop.f32.mrb[0].mxu0
        %v4967 = vadd.f32 0.0, %v4966
        %v4968 = vpop.f32.mrb[0].mxu0
        %4969 = vmatprep.mubr.f32.mxu0 0.0
        %4970 = vmatmul.mubr.f32.gmra.mrb[0].mxu0 %v4856
        %v4971 = vpop.f32.mrb[0].mxu0
        %v4972 = vadd.f32 0.0, %v4971
        %v4973 = vpop.f32.mrb[0].mxu0
        %4974 = vmatprep.mubr.f32.mxu0 0.0
        %4975 = vmatmul.mubr.f32.gmra.mrb[0].mxu0 %v4859
        %v4976 = vpop.f32.mrb[0].mxu0
        %v4977 = vadd.f32 0.0, %v4976
        %v4978 = vpop.f32.mrb[0].mxu0
        %4979 = vmatprep.mubr.f32.mxu0 0.0
        %4980 = vmatmul.mubr.f32.gmra.mrb[0].mxu0 %v4862
        %v4981 = vpop.f32.mrb[0].mxu0
        %v4982 = vadd.f32 0.0, %v4981
        %v4983 = vpop.f32.mrb[0].mxu0
        %4984 = vdwg.mxu0
        %v4985 = vsel %vm2284, %v4947, -inf
        %4986 = vmax.xlane.f32.xlu0 %v4985
        %v4987 = vpop.xlane.xlu0 %4986
        %v4988 = vsel %vm2284, %v4952, -inf
        %4989 = vmax.xlane.f32.xlu0 %v4988
        %v4990 = vpop.xlane.xlu0 %4989
        %v4991 = vsel %vm2284, %v4957, -inf
        %4992 = vmax.xlane.f32.xlu0 %v4991
        %v4993 = vpop.xlane.xlu0 %4992
        %v4994 = vsel %vm2284, %v4962, -inf
        %4995 = vmax.xlane.f32.xlu0 %v4994
        %v4996 = vpop.xlane.xlu0 %4995
        %v4997 = vsel %vm2284, %v4967, -inf
        %4998 = vmax.xlane.f32.xlu0 %v4997
        %v4999 = vpop.xlane.xlu0 %4998
        %v5000 = vsel %vm2284, %v4972, -inf
        %5001 = vmax.xlane.f32.xlu0 %v5000
        %v5002 = vpop.xlane.xlu0 %5001
        %v5003 = vsel %vm2284, %v4977, -inf
        %5004 = vmax.xlane.f32.xlu0 %v5003
        %v5005 = vpop.xlane.xlu0 %5004
        %v5006 = vsel %vm2306, %v4982, -inf
        %5007 = vmax.xlane.f32.xlu0 %v5006
        %v5008 = vpop.xlane.xlu0 %5007
        %v5009 = vsub.f32 %v4947, %v4987
        %v5010 = vsub.f32 %v4952, %v4990
        %v5011 = vsub.f32 %v4957, %v4993
        %v5012 = vsub.f32 %v4962, %v4996
        %v5013 = vsub.f32 %v4967, %v4999
        %v5014 = vsub.f32 %v4972, %v5002
        %v5015 = vsub.f32 %v4977, %v5005
        %v5016 = vsub.f32 %v4982, %v5008
        %v5017 = vmul.f32 %v5009, 1.442695
        %v5018 = vpow.pop %v5017
        %v5019 = vmul.f32 %v5010, 1.442695
        %v5020 = vpow.pop %v5019
        %v5021 = vmul.f32 %v5011, 1.442695
        %v5022 = vpow.pop %v5021
        %v5023 = vmul.f32 %v5012, 1.442695
        %v5024 = vpow.pop %v5023
        %v5025 = vmul.f32 %v5013, 1.442695
        %v5026 = vpow.pop %v5025
        %v5027 = vmul.f32 %v5014, 1.442695
        %v5028 = vpow.pop %v5027
        %v5029 = vmul.f32 %v5015, 1.442695
        %v5030 = vpow.pop %v5029
        %v5031 = vmul.f32 %v5016, 1.442695
        %v5032 = vpow.pop %v5031
        %v5033 = vsel %vm2284, %v5018, 0.0
        %5034 = vadd.xlane.f32.xlu0 %v5033
        %v5035 = vpop.xlane.xlu0 %5034
        %v5036 = vsel %vm2284, %v5020, 0.0
        %5037 = vadd.xlane.f32.xlu0 %v5036
        %v5038 = vpop.xlane.xlu0 %5037
        %v5039 = vsel %vm2284, %v5022, 0.0
        %5040 = vadd.xlane.f32.xlu0 %v5039
        %v5041 = vpop.xlane.xlu0 %5040
        %v5042 = vsel %vm2284, %v5024, 0.0
        %5043 = vadd.xlane.f32.xlu0 %v5042
        %v5044 = vpop.xlane.xlu0 %5043
        %v5045 = vsel %vm2284, %v5026, 0.0
        %5046 = vadd.xlane.f32.xlu0 %v5045
        %v5047 = vpop.xlane.xlu0 %5046
        %v5048 = vsel %vm2284, %v5028, 0.0
        %5049 = vadd.xlane.f32.xlu0 %v5048
        %v5050 = vpop.xlane.xlu0 %5049
        %v5051 = vsel %vm2284, %v5030, 0.0
        %5052 = vadd.xlane.f32.xlu0 %v5051
        %v5053 = vpop.xlane.xlu0 %5052
        %v5054 = vsel %vm2306, %v5032, 0.0
        %5055 = vadd.xlane.f32.xlu0 %v5054
        %v5056 = vpop.xlane.xlu0 %5055
        %v5057 = vrcp.pop %v5035
        %v5058 = vrcp.pop %v5038
        %v5059 = vrcp.pop %v5041
        %v5060 = vrcp.pop %v5044
        %v5061 = vrcp.pop %v5047
        %v5062 = vrcp.pop %v5050
        %v5063 = vrcp.pop %v5053
        %v5064 = vrcp.pop %v5056
        %v5065 = vmul.f32 %v5018, %v5057
        %v5066 = vmul.f32 %v5020, %v5058
        %v5067 = vmul.f32 %v5022, %v5059
        %v5068 = vmul.f32 %v5024, %v5060
        %v5069 = vmul.f32 %v5026, %v5061
        %v5070 = vmul.f32 %v5028, %v5062
        %v5071 = vmul.f32 %v5030, %v5063
        %v5072 = vmul.f32 %v5032, %v5064
        %v5074 = vsel %vm2284, %v5065, 0
        %v5077 = vsel %vm2284, %v5066, 0
        %v5080 = vsel %vm2284, %v5067, 0
        %v5083 = vsel %vm2284, %v5068, 0
        %v5086 = vsel %vm2284, %v5069, 0
        %v5089 = vsel %vm2284, %v5070, 0
        %v5092 = vsel %vm2284, %v5071, 0
        %v5095 = vsel %vm2284, %v5072, 0
        %v5098 = vsel %vm420, %v4806, 0
        %5100 = vmatprep.subr.mxu0 0.0
        %5101 = vmatpush1.msra.mxu0 %v4764
        %5102 = vmatprep.subr.mxu0 0.0
        %5103 = vmatpush1.msra.mxu0 %v4770
        %5104 = vmatprep.subr.mxu0 0.0
        %5105 = vmatpush1.msra.mxu0 %v4776
        %5106 = vmatprep.subr.mxu0 0.0
        %5107 = vmatpush1.msra.mxu0 %v4782
        %5108 = vmatprep.subr.mxu0 0.0
        %5109 = vmatpush1.msra.mxu0 %v4788
        %5110 = vmatprep.subr.mxu0 0.0
        %5111 = vmatpush1.msra.mxu0 %v4794
        %5112 = vmatprep.subr.mxu0 0.0
        %5113 = vmatpush1.msra.mxu0 %v4800
        %5114 = vmatprep.subr.mxu0 0.0
        %5115 = vmatpush1.msra.mxu0 %v5098
        %5116 = vmatprep.subr.mxu0 0.0
        %5117 = vmatpush1.msra.mxu0 0.0
        %5118 = vmatprep.subr.mxu0 0.0
        %5119 = vmatpush1.msra.mxu0 0.0
        %5120 = vmatprep.subr.mxu0 0.0
        %5121 = vmatpush1.msra.mxu0 0.0
        %5122 = vmatprep.subr.mxu0 0.0
        %5123 = vmatpush1.msra.mxu0 0.0
        %5124 = vmatprep.subr.mxu0 0.0
        %5125 = vmatpush1.msra.mxu0 0.0
        %5126 = vmatprep.subr.mxu0 0.0
        %5127 = vmatpush1.msra.mxu0 0.0
        %5128 = vmatprep.subr.mxu0 0.0
        %5129 = vmatpush1.msra.mxu0 0.0
        %5130 = vmatprep.subr.mxu0 0.0
        %5131 = vmatpush1.msra.mxu0 0.0
        %5132 = vmatprep.subr.mxu0 0.0
        %5133 = vmatpush1.msra.mxu0 0.0
        %5134 = vmatprep.subr.mxu0 0.0
        %5135 = vmatpush1.msra.mxu0 0.0
        %5136 = vmatprep.subr.mxu0 0.0
        %5137 = vmatpush1.msra.mxu0 0.0
        %5138 = vmatprep.subr.mxu0 0.0
        %5139 = vmatpush1.msra.mxu0 0.0
        %5140 = vmatprep.subr.mxu0 0.0
        %5141 = vmatpush1.msra.mxu0 0.0
        %5142 = vmatprep.subr.mxu0 0.0
        %5143 = vmatpush1.msra.mxu0 0.0
        %5144 = vmatprep.subr.mxu0 0.0
        %5145 = vmatpush1.msra.mxu0 0.0
        %5146 = vmatprep.subr.mxu0 0.0
        %5147 = vmatpush1.msra.mxu0 0.0
        %5148 = vmatprep.subr.mxu0 0.0
        %5149 = vmatpush1.msra.mxu0 0.0
        %5150 = vmatprep.subr.mxu0 0.0
        %5151 = vmatpush1.msra.mxu0 0.0
        %5152 = vmatprep.subr.mxu0 0.0
        %5153 = vmatpush1.msra.mxu0 0.0
        %5154 = vmatprep.subr.mxu0 0.0
        %5155 = vmatpush1.msra.mxu0 0.0
        %5156 = vmatprep.subr.mxu0 0.0
        %5157 = vmatpush1.msra.mxu0 0.0
        %5158 = vmatprep.subr.mxu0 0.0
        %5159 = vmatpush1.msra.mxu0 0.0
        %5160 = vmatprep.subr.mxu0 0.0
        %5161 = vmatpush1.msra.mxu0 0.0
        %5162 = vmatprep.subr.mxu0 0.0
        %5163 = vmatpush1.msra.mxu0 0.0
        %5164 = vmatprep.mubr.f32.mxu0 0.0
        %5165 = vmatmul.mubr.f32.gmra.mrb[0].mxu0 %v5074
        %v5166 = vpop.f32.mrb[0].mxu0
        %v5167 = vadd.f32 0.0, %v5166
        %v5168 = vpop.f32.mrb[0].mxu0
        %5169 = vmatprep.mubr.f32.mxu0 0.0
        %5170 = vmatmul.mubr.f32.gmra.mrb[0].mxu0 %v5077
        %v5171 = vpop.f32.mrb[0].mxu0
        %v5172 = vadd.f32 0.0, %v5171
        %v5173 = vpop.f32.mrb[0].mxu0
        %5174 = vmatprep.mubr.f32.mxu0 0.0
        %5175 = vmatmul.mubr.f32.gmra.mrb[0].mxu0 %v5080
        %v5176 = vpop.f32.mrb[0].mxu0
        %v5177 = vadd.f32 0.0, %v5176
        %v5178 = vpop.f32.mrb[0].mxu0
        %5179 = vmatprep.mubr.f32.mxu0 0.0
        %5180 = vmatmul.mubr.f32.gmra.mrb[0].mxu0 %v5083
        %v5181 = vpop.f32.mrb[0].mxu0
        %v5182 = vadd.f32 0.0, %v5181
        %v5183 = vpop.f32.mrb[0].mxu0
        %5184 = vmatprep.mubr.f32.mxu0 0.0
        %5185 = vmatmul.mubr.f32.gmra.mrb[0].mxu0 %v5086
        %v5186 = vpop.f32.mrb[0].mxu0
        %v5187 = vadd.f32 0.0, %v5186
        %v5188 = vpop.f32.mrb[0].mxu0
        %5189 = vmatprep.mubr.f32.mxu0 0.0
        %5190 = vmatmul.mubr.f32.gmra.mrb[0].mxu0 %v5089
        %v5191 = vpop.f32.mrb[0].mxu0
        %v5192 = vadd.f32 0.0, %v5191
        %v5193 = vpop.f32.mrb[0].mxu0
        %5194 = vmatprep.mubr.f32.mxu0 0.0
        %5195 = vmatmul.mubr.f32.gmra.mrb[0].mxu0 %v5092
        %v5196 = vpop.f32.mrb[0].mxu0
        %v5197 = vadd.f32 0.0, %v5196
        %v5198 = vpop.f32.mrb[0].mxu0
        %5199 = vmatprep.mubr.f32.mxu0 0.0
        %5200 = vmatmul.mubr.f32.gmra.mrb[0].mxu0 %v5095
        %v5201 = vpop.f32.mrb[0].mxu0
        %v5202 = vadd.f32 0.0, %v5201
        %v5203 = vpop.f32.mrb[0].mxu0
        %5204 = vdwg.mxu0
        %5205 = vrot.lane.b32.xlu0 %v4808, 112
        %v5206 = vpop.permute.xlu0 %5205
        %5207 = vrot.lane.b32.xlu0 %v4809, 112
        %v5208 = vpop.permute.xlu0 %5207
        %5209 = vrot.lane.b32.xlu0 %v4810, 112
        %v5210 = vpop.permute.xlu0 %5209
        %5211 = vrot.lane.b32.xlu0 %v4811, 112
        %v5212 = vpop.permute.xlu0 %5211
        %5213 = vrot.lane.b32.xlu0 %v4812, 112
        %v5214 = vpop.permute.xlu0 %5213
        %5215 = vrot.lane.b32.xlu0 %v4813, 112
        %v5216 = vpop.permute.xlu0 %5215
        %5217 = vrot.lane.b32.xlu0 %v4814, 112
        %v5218 = vpop.permute.xlu0 %5217
        %5219 = vrot.lane.b32.xlu0 %v4815, 112
        %v5220 = vpop.permute.xlu0 %5219
        %5221 = vrot.lane.b32.xlu0 %v4762, 48
        %v5222 = vpop.permute.xlu0 %5221
        %5223 = vrot.lane.b32.xlu0 %v4768, 48
        %v5224 = vpop.permute.xlu0 %5223
        %5225 = vrot.lane.b32.xlu0 %v4774, 48
        %v5226 = vpop.permute.xlu0 %5225
        %5227 = vrot.lane.b32.xlu0 %v4780, 48
        %v5228 = vpop.permute.xlu0 %5227
        %5229 = vrot.lane.b32.xlu0 %v4786, 48
        %v5230 = vpop.permute.xlu0 %5229
        %5231 = vrot.lane.b32.xlu0 %v4792, 48
        %v5232 = vpop.permute.xlu0 %5231
        %5233 = vrot.lane.b32.xlu0 %v4798, 48
        %v5234 = vpop.permute.xlu0 %5233
        %5235 = vrot.lane.b32.xlu0 %v4804, 48
        %v5236 = vpop.permute.xlu0 %5235
        %v5237 = vsel %vm2138, %v5206, 0
        %v5239 = vsel %vm2138, %v5208, 0
        %v5241 = vsel %vm2138, %v5210, 0
        %v5243 = vsel %vm2138, %v5212, 0
        %v5245 = vsel %vm2138, %v5214, 0
        %v5247 = vsel %vm2138, %v5216, 0
        %v5249 = vsel %vm2138, %v5218, 0
        %v5251 = vsel %vm2138, %v5220, 0
        %v5253 = vsel %vm2138, %v5222, 0
        %v5255 = vsel %vm2138, %v5224, 0
        %v5257 = vsel %vm2138, %v5226, 0
        %v5259 = vsel %vm2138, %v5228, 0
        %v5261 = vsel %vm2138, %v5230, 0
        %v5263 = vsel %vm2138, %v5232, 0
        %v5265 = vsel %vm2138, %v5234, 0
        %v5267 = vsel %vm2138, %v5236, 0
        %5269 = vmatprep.subr.mxu0 0.0
        %5270 = vmatpush1.xpose.msra.mxu0 %v5253
        %5271 = vmatprep.subr.mxu0 0.0
        %5272 = vmatpush1.xpose.msra.mxu0 %v5255
        %5273 = vmatprep.subr.mxu0 0.0
        %5274 = vmatpush1.xpose.msra.mxu0 %v5257
        %5275 = vmatprep.subr.mxu0 0.0
        %5276 = vmatpush1.xpose.msra.mxu0 %v5259
        %5277 = vmatprep.subr.mxu0 0.0
        %5278 = vmatpush1.xpose.msra.mxu0 %v5261
        %5279 = vmatprep.subr.mxu0 0.0
        %5280 = vmatpush1.xpose.msra.mxu0 %v5263
        %5281 = vmatprep.subr.mxu0 0.0
        %5282 = vmatpush1.xpose.msra.mxu0 %v5265
        %5283 = vmatprep.subr.mxu0 0.0
        %5284 = vmatpush1.xpose.msra.mxu0 %v5267
        %5285 = vmatprep.subr.mxu0 0.0
        %5286 = vmatpush1.xpose.msra.mxu0 0.0
        %5287 = vmatprep.subr.mxu0 0.0
        %5288 = vmatpush1.xpose.msra.mxu0 0.0
        %5289 = vmatprep.subr.mxu0 0.0
        %5290 = vmatpush1.xpose.msra.mxu0 0.0
        %5291 = vmatprep.subr.mxu0 0.0
        %5292 = vmatpush1.xpose.msra.mxu0 0.0
        %5293 = vmatprep.subr.mxu0 0.0
        %5294 = vmatpush1.xpose.msra.mxu0 0.0
        %5295 = vmatprep.subr.mxu0 0.0
        %5296 = vmatpush1.xpose.msra.mxu0 0.0
        %5297 = vmatprep.subr.mxu0 0.0
        %5298 = vmatpush1.xpose.msra.mxu0 0.0
        %5299 = vmatprep.subr.mxu0 0.0
        %5300 = vmatpush1.xpose.msra.mxu0 0.0
        %5301 = vmatprep.subr.mxu0 0.0
        %5302 = vmatpush1.xpose.msra.mxu0 0.0
        %5303 = vmatprep.subr.mxu0 0.0
        %5304 = vmatpush1.xpose.msra.mxu0 0.0
        %5305 = vmatprep.subr.mxu0 0.0
        %5306 = vmatpush1.xpose.msra.mxu0 0.0
        %5307 = vmatprep.subr.mxu0 0.0
        %5308 = vmatpush1.xpose.msra.mxu0 0.0
        %5309 = vmatprep.subr.mxu0 0.0
        %5310 = vmatpush1.xpose.msra.mxu0 0.0
        %5311 = vmatprep.subr.mxu0 0.0
        %5312 = vmatpush1.xpose.msra.mxu0 0.0
        %5313 = vmatprep.subr.mxu0 0.0
        %5314 = vmatpush1.xpose.msra.mxu0 0.0
        %5315 = vmatprep.subr.mxu0 0.0
        %5316 = vmatpush1.xpose.msra.mxu0 0.0
        %5317 = vmatprep.subr.mxu0 0.0
        %5318 = vmatpush1.xpose.msra.mxu0 0.0
        %5319 = vmatprep.subr.mxu0 0.0
        %5320 = vmatpush1.xpose.msra.mxu0 0.0
        %5321 = vmatprep.subr.mxu0 0.0
        %5322 = vmatpush1.xpose.msra.mxu0 0.0
        %5323 = vmatprep.subr.mxu0 0.0
        %5324 = vmatpush1.xpose.msra.mxu0 0.0
        %5325 = vmatprep.subr.mxu0 0.0
        %5326 = vmatpush1.xpose.msra.mxu0 0.0
        %5327 = vmatprep.subr.mxu0 0.0
        %5328 = vmatpush1.xpose.msra.mxu0 0.0
        %5329 = vmatprep.subr.mxu0 0.0
        %5330 = vmatpush1.xpose.msra.mxu0 0.0
        %5331 = vmatprep.subr.mxu0 0.0
        %5332 = vmatpush1.xpose.msra.mxu0 0.0
        %5333 = vmatprep.mubr.f32.mxu0 0.0
        %5334 = vmatmul.mubr.f32.gmra.mrb[0].mxu0 %v5237
        %v5335 = vpop.f32.mrb[0].mxu0
        %v5336 = vadd.f32 0.0, %v5335
        %v5337 = vpop.f32.mrb[0].mxu0
        %5338 = vmatprep.mubr.f32.mxu0 0.0
        %5339 = vmatmul.mubr.f32.gmra.mrb[0].mxu0 %v5239
        %v5340 = vpop.f32.mrb[0].mxu0
        %v5341 = vadd.f32 0.0, %v5340
        %v5342 = vpop.f32.mrb[0].mxu0
        %5343 = vmatprep.mubr.f32.mxu0 0.0
        %5344 = vmatmul.mubr.f32.gmra.mrb[0].mxu0 %v5241
        %v5345 = vpop.f32.mrb[0].mxu0
        %v5346 = vadd.f32 0.0, %v5345
        %v5347 = vpop.f32.mrb[0].mxu0
        %5348 = vmatprep.mubr.f32.mxu0 0.0
        %5349 = vmatmul.mubr.f32.gmra.mrb[0].mxu0 %v5243
        %v5350 = vpop.f32.mrb[0].mxu0
        %v5351 = vadd.f32 0.0, %v5350
        %v5352 = vpop.f32.mrb[0].mxu0
        %5353 = vmatprep.mubr.f32.mxu0 0.0
        %5354 = vmatmul.mubr.f32.gmra.mrb[0].mxu0 %v5245
        %v5355 = vpop.f32.mrb[0].mxu0
        %v5356 = vadd.f32 0.0, %v5355
        %v5357 = vpop.f32.mrb[0].mxu0
        %5358 = vmatprep.mubr.f32.mxu0 0.0
        %5359 = vmatmul.mubr.f32.gmra.mrb[0].mxu0 %v5247
        %v5360 = vpop.f32.mrb[0].mxu0
        %v5361 = vadd.f32 0.0, %v5360
        %v5362 = vpop.f32.mrb[0].mxu0
        %5363 = vmatprep.mubr.f32.mxu0 0.0
        %5364 = vmatmul.mubr.f32.gmra.mrb[0].mxu0 %v5249
        %v5365 = vpop.f32.mrb[0].mxu0
        %v5366 = vadd.f32 0.0, %v5365
        %v5367 = vpop.f32.mrb[0].mxu0
        %5368 = vmatprep.mubr.f32.mxu0 0.0
        %5369 = vmatmul.mubr.f32.gmra.mrb[0].mxu0 %v5251
        %v5370 = vpop.f32.mrb[0].mxu0
        %v5371 = vadd.f32 0.0, %v5370
        %v5372 = vpop.f32.mrb[0].mxu0
        %5373 = vdwg.mxu0
        %v5374 = vsel %vm2284, %v5336, -inf
        %5375 = vmax.xlane.f32.xlu0 %v5374
        %v5376 = vpop.xlane.xlu0 %5375
        %v5377 = vsel %vm2284, %v5341, -inf
        %5378 = vmax.xlane.f32.xlu0 %v5377
        %v5379 = vpop.xlane.xlu0 %5378
        %v5380 = vsel %vm2284, %v5346, -inf
        %5381 = vmax.xlane.f32.xlu0 %v5380
        %v5382 = vpop.xlane.xlu0 %5381
        %v5383 = vsel %vm2284, %v5351, -inf
        %5384 = vmax.xlane.f32.xlu0 %v5383
        %v5385 = vpop.xlane.xlu0 %5384
        %v5386 = vsel %vm2284, %v5356, -inf
        %5387 = vmax.xlane.f32.xlu0 %v5386
        %v5388 = vpop.xlane.xlu0 %5387
        %v5389 = vsel %vm2284, %v5361, -inf
        %5390 = vmax.xlane.f32.xlu0 %v5389
        %v5391 = vpop.xlane.xlu0 %5390
        %v5392 = vsel %vm2284, %v5366, -inf
        %5393 = vmax.xlane.f32.xlu0 %v5392
        %v5394 = vpop.xlane.xlu0 %5393
        %v5395 = vsel %vm2306, %v5371, -inf
        %5396 = vmax.xlane.f32.xlu0 %v5395
        %v5397 = vpop.xlane.xlu0 %5396
        %v5398 = vsub.f32 %v5336, %v5376
        %v5399 = vsub.f32 %v5341, %v5379
        %v5400 = vsub.f32 %v5346, %v5382
        %v5401 = vsub.f32 %v5351, %v5385
        %v5402 = vsub.f32 %v5356, %v5388
        %v5403 = vsub.f32 %v5361, %v5391
        %v5404 = vsub.f32 %v5366, %v5394
        %v5405 = vsub.f32 %v5371, %v5397
        %v5406 = vmul.f32 %v5398, 1.442695
        %v5407 = vpow.pop %v5406
        %v5408 = vmul.f32 %v5399, 1.442695
        %v5409 = vpow.pop %v5408
        %v5410 = vmul.f32 %v5400, 1.442695
        %v5411 = vpow.pop %v5410
        %v5412 = vmul.f32 %v5401, 1.442695
        %v5413 = vpow.pop %v5412
        %v5414 = vmul.f32 %v5402, 1.442695
        %v5415 = vpow.pop %v5414
        %v5416 = vmul.f32 %v5403, 1.442695
        %v5417 = vpow.pop %v5416
        %v5418 = vmul.f32 %v5404, 1.442695
        %v5419 = vpow.pop %v5418
        %v5420 = vmul.f32 %v5405, 1.442695
        %v5421 = vpow.pop %v5420
        %v5422 = vsel %vm2284, %v5407, 0.0
        %5423 = vadd.xlane.f32.xlu0 %v5422
        %v5424 = vpop.xlane.xlu0 %5423
        %v5425 = vsel %vm2284, %v5409, 0.0
        %5426 = vadd.xlane.f32.xlu0 %v5425
        %v5427 = vpop.xlane.xlu0 %5426
        %v5428 = vsel %vm2284, %v5411, 0.0
        %5429 = vadd.xlane.f32.xlu0 %v5428
        %v5430 = vpop.xlane.xlu0 %5429
        %v5431 = vsel %vm2284, %v5413, 0.0
        %5432 = vadd.xlane.f32.xlu0 %v5431
        %v5433 = vpop.xlane.xlu0 %5432
        %v5434 = vsel %vm2284, %v5415, 0.0
        %5435 = vadd.xlane.f32.xlu0 %v5434
        %v5436 = vpop.xlane.xlu0 %5435
        %v5437 = vsel %vm2284, %v5417, 0.0
        %5438 = vadd.xlane.f32.xlu0 %v5437
        %v5439 = vpop.xlane.xlu0 %5438
        %v5440 = vsel %vm2284, %v5419, 0.0
        %5441 = vadd.xlane.f32.xlu0 %v5440
        %v5442 = vpop.xlane.xlu0 %5441
        %v5443 = vsel %vm2306, %v5421, 0.0
        %5444 = vadd.xlane.f32.xlu0 %v5443
        %v5445 = vpop.xlane.xlu0 %5444
        %v5446 = vrcp.pop %v5424
        %v5447 = vrcp.pop %v5427
        %v5448 = vrcp.pop %v5430
        %v5449 = vrcp.pop %v5433
        %v5450 = vrcp.pop %v5436
        %v5451 = vrcp.pop %v5439
        %v5452 = vrcp.pop %v5442
        %v5453 = vrcp.pop %v5445
        %v5454 = vmul.f32 %v5407, %v5446
        %v5455 = vmul.f32 %v5409, %v5447
        %v5456 = vmul.f32 %v5411, %v5448
        %v5457 = vmul.f32 %v5413, %v5449
        %v5458 = vmul.f32 %v5415, %v5450
        %v5459 = vmul.f32 %v5417, %v5451
        %v5460 = vmul.f32 %v5419, %v5452
        %v5461 = vmul.f32 %v5421, %v5453
        %5469 = vrot.lane.b32.xlu0 %v4764, 112
        %v5470 = vpop.permute.xlu0 %5469
        %5471 = vrot.lane.b32.xlu0 %v4770, 112
        %v5472 = vpop.permute.xlu0 %5471
        %5473 = vrot.lane.b32.xlu0 %v4776, 112
        %v5474 = vpop.permute.xlu0 %5473
        %5475 = vrot.lane.b32.xlu0 %v4782, 112
        %v5476 = vpop.permute.xlu0 %5475
        %5477 = vrot.lane.b32.xlu0 %v4788, 112
        %v5478 = vpop.permute.xlu0 %5477
        %5479 = vrot.lane.b32.xlu0 %v4794, 112
        %v5480 = vpop.permute.xlu0 %5479
        %5481 = vrot.lane.b32.xlu0 %v4800, 112
        %v5482 = vpop.permute.xlu0 %5481
        %5483 = vrot.lane.b32.xlu0 %v4806, 112
        %v5484 = vpop.permute.xlu0 %5483
        %v5493 = vsel %vm2284, %v5454, 0
        %v5496 = vsel %vm2284, %v5455, 0
        %v5499 = vsel %vm2284, %v5456, 0
        %v5502 = vsel %vm2284, %v5457, 0
        %v5505 = vsel %vm2284, %v5458, 0
        %v5508 = vsel %vm2284, %v5459, 0
        %v5511 = vsel %vm2284, %v5460, 0
        %v5514 = vsel %vm2284, %v5461, 0
        %v5516 = vsel %vm420, %v5484, 0
        %5518 = vmatprep.subr.mxu0 0.0
        %5519 = vmatpush1.msra.mxu0 %v5470
        %5520 = vmatprep.subr.mxu0 0.0
        %5521 = vmatpush1.msra.mxu0 %v5472
        %5522 = vmatprep.subr.mxu0 0.0
        %5523 = vmatpush1.msra.mxu0 %v5474
        %5524 = vmatprep.subr.mxu0 0.0
        %5525 = vmatpush1.msra.mxu0 %v5476
        %5526 = vmatprep.subr.mxu0 0.0
        %5527 = vmatpush1.msra.mxu0 %v5478
        %5528 = vmatprep.subr.mxu0 0.0
        %5529 = vmatpush1.msra.mxu0 %v5480
        %5530 = vmatprep.subr.mxu0 0.0
        %5531 = vmatpush1.msra.mxu0 %v5482
        %5532 = vmatprep.subr.mxu0 0.0
        %5533 = vmatpush1.msra.mxu0 %v5516
        %5534 = vmatprep.subr.mxu0 0.0
        %5535 = vmatpush1.msra.mxu0 0.0
        %5536 = vmatprep.subr.mxu0 0.0
        %5537 = vmatpush1.msra.mxu0 0.0
        %5538 = vmatprep.subr.mxu0 0.0
        %5539 = vmatpush1.msra.mxu0 0.0
        %5540 = vmatprep.subr.mxu0 0.0
        %5541 = vmatpush1.msra.mxu0 0.0
        %5542 = vmatprep.subr.mxu0 0.0
        %5543 = vmatpush1.msra.mxu0 0.0
        %5544 = vmatprep.subr.mxu0 0.0
        %5545 = vmatpush1.msra.mxu0 0.0
        %5546 = vmatprep.subr.mxu0 0.0
        %5547 = vmatpush1.msra.mxu0 0.0
        %5548 = vmatprep.subr.mxu0 0.0
        %5549 = vmatpush1.msra.mxu0 0.0
        %5550 = vmatprep.subr.mxu0 0.0
        %5551 = vmatpush1.msra.mxu0 0.0
        %5552 = vmatprep.subr.mxu0 0.0
        %5553 = vmatpush1.msra.mxu0 0.0
        %5554 = vmatprep.subr.mxu0 0.0
        %5555 = vmatpush1.msra.mxu0 0.0
        %5556 = vmatprep.subr.mxu0 0.0
        %5557 = vmatpush1.msra.mxu0 0.0
        %5558 = vmatprep.subr.mxu0 0.0
        %5559 = vmatpush1.msra.mxu0 0.0
        %5560 = vmatprep.subr.mxu0 0.0
        %5561 = vmatpush1.msra.mxu0 0.0
        %5562 = vmatprep.subr.mxu0 0.0
        %5563 = vmatpush1.msra.mxu0 0.0
        %5564 = vmatprep.subr.mxu0 0.0
        %5565 = vmatpush1.msra.mxu0 0.0
        %5566 = vmatprep.subr.mxu0 0.0
        %5567 = vmatpush1.msra.mxu0 0.0
        %5568 = vmatprep.subr.mxu0 0.0
        %5569 = vmatpush1.msra.mxu0 0.0
        %5570 = vmatprep.subr.mxu0 0.0
        %5571 = vmatpush1.msra.mxu0 0.0
        %5572 = vmatprep.subr.mxu0 0.0
        %5573 = vmatpush1.msra.mxu0 0.0
        %5574 = vmatprep.subr.mxu0 0.0
        %5575 = vmatpush1.msra.mxu0 0.0
        %5576 = vmatprep.subr.mxu0 0.0
        %5577 = vmatpush1.msra.mxu0 0.0
        %5578 = vmatprep.subr.mxu0 0.0
        %5579 = vmatpush1.msra.mxu0 0.0
        %5580 = vmatprep.subr.mxu0 0.0
        %5581 = vmatpush1.msra.mxu0 0.0
        %5582 = vmatprep.mubr.f32.mxu0 0.0
        %5583 = vmatmul.mubr.f32.gmra.mrb[0].mxu0 %v5493
        %v5584 = vpop.f32.mrb[0].mxu0
        %v5585 = vadd.f32 0.0, %v5584
        %v5586 = vpop.f32.mrb[0].mxu0
        %5587 = vmatprep.mubr.f32.mxu0 0.0
        %5588 = vmatmul.mubr.f32.gmra.mrb[0].mxu0 %v5496
        %v5589 = vpop.f32.mrb[0].mxu0
        %v5590 = vadd.f32 0.0, %v5589
        %v5591 = vpop.f32.mrb[0].mxu0
        %5592 = vmatprep.mubr.f32.mxu0 0.0
        %5593 = vmatmul.mubr.f32.gmra.mrb[0].mxu0 %v5499
        %v5594 = vpop.f32.mrb[0].mxu0
        %v5595 = vadd.f32 0.0, %v5594
        %v5596 = vpop.f32.mrb[0].mxu0
        %5597 = vmatprep.mubr.f32.mxu0 0.0
        %5598 = vmatmul.mubr.f32.gmra.mrb[0].mxu0 %v5502
        %v5599 = vpop.f32.mrb[0].mxu0
        %v5600 = vadd.f32 0.0, %v5599
        %v5601 = vpop.f32.mrb[0].mxu0
        %5602 = vmatprep.mubr.f32.mxu0 0.0
        %5603 = vmatmul.mubr.f32.gmra.mrb[0].mxu0 %v5505
        %v5604 = vpop.f32.mrb[0].mxu0
        %v5605 = vadd.f32 0.0, %v5604
        %v5606 = vpop.f32.mrb[0].mxu0
        %5607 = vmatprep.mubr.f32.mxu0 0.0
        %5608 = vmatmul.mubr.f32.gmra.mrb[0].mxu0 %v5508
        %v5609 = vpop.f32.mrb[0].mxu0
        %v5610 = vadd.f32 0.0, %v5609
        %v5611 = vpop.f32.mrb[0].mxu0
        %5612 = vmatprep.mubr.f32.mxu0 0.0
        %5613 = vmatmul.mubr.f32.gmra.mrb[0].mxu0 %v5511
        %v5614 = vpop.f32.mrb[0].mxu0
        %v5615 = vadd.f32 0.0, %v5614
        %v5616 = vpop.f32.mrb[0].mxu0
        %5617 = vmatprep.mubr.f32.mxu0 0.0
        %5618 = vmatmul.mubr.f32.gmra.mrb[0].mxu0 %v5514
        %v5619 = vpop.f32.mrb[0].mxu0
        %v5620 = vadd.f32 0.0, %v5619
        %v5621 = vpop.f32.mrb[0].mxu0
        %5622 = vdwg.mxu0
        %5623 = vrot.lane.b32.xlu0 %v4808, 96
        %v5624 = vpop.permute.xlu0 %5623
        %5625 = vrot.lane.b32.xlu0 %v4809, 96
        %v5626 = vpop.permute.xlu0 %5625
        %5627 = vrot.lane.b32.xlu0 %v4810, 96
        %v5628 = vpop.permute.xlu0 %5627
        %5629 = vrot.lane.b32.xlu0 %v4811, 96
        %v5630 = vpop.permute.xlu0 %5629
        %5631 = vrot.lane.b32.xlu0 %v4812, 96
        %v5632 = vpop.permute.xlu0 %5631
        %5633 = vrot.lane.b32.xlu0 %v4813, 96
        %v5634 = vpop.permute.xlu0 %5633
        %5635 = vrot.lane.b32.xlu0 %v4814, 96
        %v5636 = vpop.permute.xlu0 %5635
        %5637 = vrot.lane.b32.xlu0 %v4815, 96
        %v5638 = vpop.permute.xlu0 %5637
        %5639 = vrot.lane.b32.xlu0 %v4762, 32
        %v5640 = vpop.permute.xlu0 %5639
        %5641 = vrot.lane.b32.xlu0 %v4768, 32
        %v5642 = vpop.permute.xlu0 %5641
        %5643 = vrot.lane.b32.xlu0 %v4774, 32
        %v5644 = vpop.permute.xlu0 %5643
        %5645 = vrot.lane.b32.xlu0 %v4780, 32
        %v5646 = vpop.permute.xlu0 %5645
        %5647 = vrot.lane.b32.xlu0 %v4786, 32
        %v5648 = vpop.permute.xlu0 %5647
        %5649 = vrot.lane.b32.xlu0 %v4792, 32
        %v5650 = vpop.permute.xlu0 %5649
        %5651 = vrot.lane.b32.xlu0 %v4798, 32
        %v5652 = vpop.permute.xlu0 %5651
        %5653 = vrot.lane.b32.xlu0 %v4804, 32
        %v5654 = vpop.permute.xlu0 %5653
        %v5655 = vsel %vm2138, %v5624, 0
        %v5657 = vsel %vm2138, %v5626, 0
        %v5659 = vsel %vm2138, %v5628, 0
        %v5661 = vsel %vm2138, %v5630, 0
        %v5663 = vsel %vm2138, %v5632, 0
        %v5665 = vsel %vm2138, %v5634, 0
        %v5667 = vsel %vm2138, %v5636, 0
        %v5669 = vsel %vm2138, %v5638, 0
        %v5671 = vsel %vm2138, %v5640, 0
        %v5673 = vsel %vm2138, %v5642, 0
        %v5675 = vsel %vm2138, %v5644, 0
        %v5677 = vsel %vm2138, %v5646, 0
        %v5679 = vsel %vm2138, %v5648, 0
        %v5681 = vsel %vm2138, %v5650, 0
        %v5683 = vsel %vm2138, %v5652, 0
        %v5685 = vsel %vm2138, %v5654, 0
        %5687 = vmatprep.subr.mxu0 0.0
        %5688 = vmatpush1.xpose.msra.mxu0 %v5671
        %5689 = vmatprep.subr.mxu0 0.0
        %5690 = vmatpush1.xpose.msra.mxu0 %v5673
        %5691 = vmatprep.subr.mxu0 0.0
        %5692 = vmatpush1.xpose.msra.mxu0 %v5675
        %5693 = vmatprep.subr.mxu0 0.0
        %5694 = vmatpush1.xpose.msra.mxu0 %v5677
        %5695 = vmatprep.subr.mxu0 0.0
        %5696 = vmatpush1.xpose.msra.mxu0 %v5679
        %5697 = vmatprep.subr.mxu0 0.0
        %5698 = vmatpush1.xpose.msra.mxu0 %v5681
        %5699 = vmatprep.subr.mxu0 0.0
        %5700 = vmatpush1.xpose.msra.mxu0 %v5683
        %5701 = vmatprep.subr.mxu0 0.0
        %5702 = vmatpush1.xpose.msra.mxu0 %v5685
        %5703 = vmatprep.subr.mxu0 0.0
        %5704 = vmatpush1.xpose.msra.mxu0 0.0
        %5705 = vmatprep.subr.mxu0 0.0
        %5706 = vmatpush1.xpose.msra.mxu0 0.0
        %5707 = vmatprep.subr.mxu0 0.0
        %5708 = vmatpush1.xpose.msra.mxu0 0.0
        %5709 = vmatprep.subr.mxu0 0.0
        %5710 = vmatpush1.xpose.msra.mxu0 0.0
        %5711 = vmatprep.subr.mxu0 0.0
        %5712 = vmatpush1.xpose.msra.mxu0 0.0
        %5713 = vmatprep.subr.mxu0 0.0
        %5714 = vmatpush1.xpose.msra.mxu0 0.0
        %5715 = vmatprep.subr.mxu0 0.0
        %5716 = vmatpush1.xpose.msra.mxu0 0.0
        %5717 = vmatprep.subr.mxu0 0.0
        %5718 = vmatpush1.xpose.msra.mxu0 0.0
        %5719 = vmatprep.subr.mxu0 0.0
        %5720 = vmatpush1.xpose.msra.mxu0 0.0
        %5721 = vmatprep.subr.mxu0 0.0
        %5722 = vmatpush1.xpose.msra.mxu0 0.0
        %5723 = vmatprep.subr.mxu0 0.0
        %5724 = vmatpush1.xpose.msra.mxu0 0.0
        %5725 = vmatprep.subr.mxu0 0.0
        %5726 = vmatpush1.xpose.msra.mxu0 0.0
        %5727 = vmatprep.subr.mxu0 0.0
        %5728 = vmatpush1.xpose.msra.mxu0 0.0
        %5729 = vmatprep.subr.mxu0 0.0
        %5730 = vmatpush1.xpose.msra.mxu0 0.0
        %5731 = vmatprep.subr.mxu0 0.0
        %5732 = vmatpush1.xpose.msra.mxu0 0.0
        %5733 = vmatprep.subr.mxu0 0.0
        %5734 = vmatpush1.xpose.msra.mxu0 0.0
        %5735 = vmatprep.subr.mxu0 0.0
        %5736 = vmatpush1.xpose.msra.mxu0 0.0
        %5737 = vmatprep.subr.mxu0 0.0
        %5738 = vmatpush1.xpose.msra.mxu0 0.0
        %5739 = vmatprep.subr.mxu0 0.0
        %5740 = vmatpush1.xpose.msra.mxu0 0.0
        %5741 = vmatprep.subr.mxu0 0.0
        %5742 = vmatpush1.xpose.msra.mxu0 0.0
        %5743 = vmatprep.subr.mxu0 0.0
        %5744 = vmatpush1.xpose.msra.mxu0 0.0
        %5745 = vmatprep.subr.mxu0 0.0
        %5746 = vmatpush1.xpose.msra.mxu0 0.0
        %5747 = vmatprep.subr.mxu0 0.0
        %5748 = vmatpush1.xpose.msra.mxu0 0.0
        %5749 = vmatprep.subr.mxu0 0.0
        %5750 = vmatpush1.xpose.msra.mxu0 0.0
        %5751 = vmatprep.mubr.f32.mxu0 0.0
        %5752 = vmatmul.mubr.f32.gmra.mrb[0].mxu0 %v5655
        %v5753 = vpop.f32.mrb[0].mxu0
        %v5754 = vadd.f32 0.0, %v5753
        %v5755 = vpop.f32.mrb[0].mxu0
        %5756 = vmatprep.mubr.f32.mxu0 0.0
        %5757 = vmatmul.mubr.f32.gmra.mrb[0].mxu0 %v5657
        %v5758 = vpop.f32.mrb[0].mxu0
        %v5759 = vadd.f32 0.0, %v5758
        %v5760 = vpop.f32.mrb[0].mxu0
        %5761 = vmatprep.mubr.f32.mxu0 0.0
        %5762 = vmatmul.mubr.f32.gmra.mrb[0].mxu0 %v5659
        %v5763 = vpop.f32.mrb[0].mxu0
        %v5764 = vadd.f32 0.0, %v5763
        %v5765 = vpop.f32.mrb[0].mxu0
        %5766 = vmatprep.mubr.f32.mxu0 0.0
        %5767 = vmatmul.mubr.f32.gmra.mrb[0].mxu0 %v5661
        %v5768 = vpop.f32.mrb[0].mxu0
        %v5769 = vadd.f32 0.0, %v5768
        %v5770 = vpop.f32.mrb[0].mxu0
        %5771 = vmatprep.mubr.f32.mxu0 0.0
        %5772 = vmatmul.mubr.f32.gmra.mrb[0].mxu0 %v5663
        %v5773 = vpop.f32.mrb[0].mxu0
        %v5774 = vadd.f32 0.0, %v5773
        %v5775 = vpop.f32.mrb[0].mxu0
        %5776 = vmatprep.mubr.f32.mxu0 0.0
        %5777 = vmatmul.mubr.f32.gmra.mrb[0].mxu0 %v5665
        %v5778 = vpop.f32.mrb[0].mxu0
        %v5779 = vadd.f32 0.0, %v5778
        %v5780 = vpop.f32.mrb[0].mxu0
        %5781 = vmatprep.mubr.f32.mxu0 0.0
        %5782 = vmatmul.mubr.f32.gmra.mrb[0].mxu0 %v5667
        %v5783 = vpop.f32.mrb[0].mxu0
        %v5784 = vadd.f32 0.0, %v5783
        %v5785 = vpop.f32.mrb[0].mxu0
        %5786 = vmatprep.mubr.f32.mxu0 0.0
        %5787 = vmatmul.mubr.f32.gmra.mrb[0].mxu0 %v5669
        %v5788 = vpop.f32.mrb[0].mxu0
        %v5789 = vadd.f32 0.0, %v5788
        %v5790 = vpop.f32.mrb[0].mxu0
        %5791 = vdwg.mxu0
        %v5792 = vsel %vm2284, %v5754, -inf
        %5793 = vmax.xlane.f32.xlu0 %v5792
        %v5794 = vpop.xlane.xlu0 %5793
        %v5795 = vsel %vm2284, %v5759, -inf
        %5796 = vmax.xlane.f32.xlu0 %v5795
        %v5797 = vpop.xlane.xlu0 %5796
        %v5798 = vsel %vm2284, %v5764, -inf
        %5799 = vmax.xlane.f32.xlu0 %v5798
        %v5800 = vpop.xlane.xlu0 %5799
        %v5801 = vsel %vm2284, %v5769, -inf
        %5802 = vmax.xlane.f32.xlu0 %v5801
        %v5803 = vpop.xlane.xlu0 %5802
        %v5804 = vsel %vm2284, %v5774, -inf
        %5805 = vmax.xlane.f32.xlu0 %v5804
        %v5806 = vpop.xlane.xlu0 %5805
        %v5807 = vsel %vm2284, %v5779, -inf
        %5808 = vmax.xlane.f32.xlu0 %v5807
        %v5809 = vpop.xlane.xlu0 %5808
        %v5810 = vsel %vm2284, %v5784, -inf
        %5811 = vmax.xlane.f32.xlu0 %v5810
        %v5812 = vpop.xlane.xlu0 %5811
        %v5813 = vsel %vm2306, %v5789, -inf
        %5814 = vmax.xlane.f32.xlu0 %v5813
        %v5815 = vpop.xlane.xlu0 %5814
        %v5816 = vsub.f32 %v5754, %v5794
        %v5817 = vsub.f32 %v5759, %v5797
        %v5818 = vsub.f32 %v5764, %v5800
        %v5819 = vsub.f32 %v5769, %v5803
        %v5820 = vsub.f32 %v5774, %v5806
        %v5821 = vsub.f32 %v5779, %v5809
        %v5822 = vsub.f32 %v5784, %v5812
        %v5823 = vsub.f32 %v5789, %v5815
        %v5824 = vmul.f32 %v5816, 1.442695
        %v5825 = vpow.pop %v5824
        %v5826 = vmul.f32 %v5817, 1.442695
        %v5827 = vpow.pop %v5826
        %v5828 = vmul.f32 %v5818, 1.442695
        %v5829 = vpow.pop %v5828
        %v5830 = vmul.f32 %v5819, 1.442695
        %v5831 = vpow.pop %v5830
        %v5832 = vmul.f32 %v5820, 1.442695
        %v5833 = vpow.pop %v5832
        %v5834 = vmul.f32 %v5821, 1.442695
        %v5835 = vpow.pop %v5834
        %v5836 = vmul.f32 %v5822, 1.442695
        %v5837 = vpow.pop %v5836
        %v5838 = vmul.f32 %v5823, 1.442695
        %v5839 = vpow.pop %v5838
        %v5840 = vsel %vm2284, %v5825, 0.0
        %5841 = vadd.xlane.f32.xlu0 %v5840
        %v5842 = vpop.xlane.xlu0 %5841
        %v5843 = vsel %vm2284, %v5827, 0.0
        %5844 = vadd.xlane.f32.xlu0 %v5843
        %v5845 = vpop.xlane.xlu0 %5844
        %v5846 = vsel %vm2284, %v5829, 0.0
        %5847 = vadd.xlane.f32.xlu0 %v5846
        %v5848 = vpop.xlane.xlu0 %5847
        %v5849 = vsel %vm2284, %v5831, 0.0
        %5850 = vadd.xlane.f32.xlu0 %v5849
        %v5851 = vpop.xlane.xlu0 %5850
        %v5852 = vsel %vm2284, %v5833, 0.0
        %5853 = vadd.xlane.f32.xlu0 %v5852
        %v5854 = vpop.xlane.xlu0 %5853
        %v5855 = vsel %vm2284, %v5835, 0.0
        %5856 = vadd.xlane.f32.xlu0 %v5855
        %v5857 = vpop.xlane.xlu0 %5856
        %v5858 = vsel %vm2284, %v5837, 0.0
        %5859 = vadd.xlane.f32.xlu0 %v5858
        %v5860 = vpop.xlane.xlu0 %5859
        %v5861 = vsel %vm2306, %v5839, 0.0
        %5862 = vadd.xlane.f32.xlu0 %v5861
        %v5863 = vpop.xlane.xlu0 %5862
        %v5864 = vrcp.pop %v5842
        %v5865 = vrcp.pop %v5845
        %v5866 = vrcp.pop %v5848
        %v5867 = vrcp.pop %v5851
        %v5868 = vrcp.pop %v5854
        %v5869 = vrcp.pop %v5857
        %v5870 = vrcp.pop %v5860
        %v5871 = vrcp.pop %v5863
        %v5872 = vmul.f32 %v5825, %v5864
        %v5873 = vmul.f32 %v5827, %v5865
        %v5874 = vmul.f32 %v5829, %v5866
        %v5875 = vmul.f32 %v5831, %v5867
        %v5876 = vmul.f32 %v5833, %v5868
        %v5877 = vmul.f32 %v5835, %v5869
        %v5878 = vmul.f32 %v5837, %v5870
        %v5879 = vmul.f32 %v5839, %v5871
        %5880 = vrot.lane.b32.xlu0 %v4764, 96
        %v5881 = vpop.permute.xlu0 %5880
        %5882 = vrot.lane.b32.xlu0 %v4770, 96
        %v5883 = vpop.permute.xlu0 %5882
        %5884 = vrot.lane.b32.xlu0 %v4776, 96
        %v5885 = vpop.permute.xlu0 %5884
        %5886 = vrot.lane.b32.xlu0 %v4782, 96
        %v5887 = vpop.permute.xlu0 %5886
        %5888 = vrot.lane.b32.xlu0 %v4788, 96
        %v5889 = vpop.permute.xlu0 %5888
        %5890 = vrot.lane.b32.xlu0 %v4794, 96
        %v5891 = vpop.permute.xlu0 %5890
        %5892 = vrot.lane.b32.xlu0 %v4800, 96
        %v5893 = vpop.permute.xlu0 %5892
        %5894 = vrot.lane.b32.xlu0 %v4806, 96
        %v5895 = vpop.permute.xlu0 %5894
        %v5904 = vsel %vm2284, %v5872, 0
        %v5907 = vsel %vm2284, %v5873, 0
        %v5910 = vsel %vm2284, %v5874, 0
        %v5913 = vsel %vm2284, %v5875, 0
        %v5916 = vsel %vm2284, %v5876, 0
        %v5919 = vsel %vm2284, %v5877, 0
        %v5922 = vsel %vm2284, %v5878, 0
        %v5925 = vsel %vm2284, %v5879, 0
        %v5927 = vsel %vm420, %v5895, 0
        %5929 = vmatprep.subr.mxu0 0.0
        %5930 = vmatpush1.msra.mxu0 %v5881
        %5931 = vmatprep.subr.mxu0 0.0
        %5932 = vmatpush1.msra.mxu0 %v5883
        %5933 = vmatprep.subr.mxu0 0.0
        %5934 = vmatpush1.msra.mxu0 %v5885
        %5935 = vmatprep.subr.mxu0 0.0
        %5936 = vmatpush1.msra.mxu0 %v5887
        %5937 = vmatprep.subr.mxu0 0.0
        %5938 = vmatpush1.msra.mxu0 %v5889
        %5939 = vmatprep.subr.mxu0 0.0
        %5940 = vmatpush1.msra.mxu0 %v5891
        %5941 = vmatprep.subr.mxu0 0.0
        %5942 = vmatpush1.msra.mxu0 %v5893
        %5943 = vmatprep.subr.mxu0 0.0
        %5944 = vmatpush1.msra.mxu0 %v5927
        %5945 = vmatprep.subr.mxu0 0.0
        %5946 = vmatpush1.msra.mxu0 0.0
        %5947 = vmatprep.subr.mxu0 0.0
        %5948 = vmatpush1.msra.mxu0 0.0
        %5949 = vmatprep.subr.mxu0 0.0
        %5950 = vmatpush1.msra.mxu0 0.0
        %5951 = vmatprep.subr.mxu0 0.0
        %5952 = vmatpush1.msra.mxu0 0.0
        %5953 = vmatprep.subr.mxu0 0.0
        %5954 = vmatpush1.msra.mxu0 0.0
        %5955 = vmatprep.subr.mxu0 0.0
        %5956 = vmatpush1.msra.mxu0 0.0
        %5957 = vmatprep.subr.mxu0 0.0
        %5958 = vmatpush1.msra.mxu0 0.0
        %5959 = vmatprep.subr.mxu0 0.0
        %5960 = vmatpush1.msra.mxu0 0.0
        %5961 = vmatprep.subr.mxu0 0.0
        %5962 = vmatpush1.msra.mxu0 0.0
        %5963 = vmatprep.subr.mxu0 0.0
        %5964 = vmatpush1.msra.mxu0 0.0
        %5965 = vmatprep.subr.mxu0 0.0
        %5966 = vmatpush1.msra.mxu0 0.0
        %5967 = vmatprep.subr.mxu0 0.0
        %5968 = vmatpush1.msra.mxu0 0.0
        %5969 = vmatprep.subr.mxu0 0.0
        %5970 = vmatpush1.msra.mxu0 0.0
        %5971 = vmatprep.subr.mxu0 0.0
        %5972 = vmatpush1.msra.mxu0 0.0
        %5973 = vmatprep.subr.mxu0 0.0
        %5974 = vmatpush1.msra.mxu0 0.0
        %5975 = vmatprep.subr.mxu0 0.0
        %5976 = vmatpush1.msra.mxu0 0.0
        %5977 = vmatprep.subr.mxu0 0.0
        %5978 = vmatpush1.msra.mxu0 0.0
        %5979 = vmatprep.subr.mxu0 0.0
        %5980 = vmatpush1.msra.mxu0 0.0
        %5981 = vmatprep.subr.mxu0 0.0
        %5982 = vmatpush1.msra.mxu0 0.0
        %5983 = vmatprep.subr.mxu0 0.0
        %5984 = vmatpush1.msra.mxu0 0.0
        %5985 = vmatprep.subr.mxu0 0.0
        %5986 = vmatpush1.msra.mxu0 0.0
        %5987 = vmatprep.subr.mxu0 0.0
        %5988 = vmatpush1.msra.mxu0 0.0
        %5989 = vmatprep.subr.mxu0 0.0
        %5990 = vmatpush1.msra.mxu0 0.0
        %5991 = vmatprep.subr.mxu0 0.0
        %5992 = vmatpush1.msra.mxu0 0.0
        %5993 = vmatprep.mubr.f32.mxu0 0.0
        %5994 = vmatmul.mubr.f32.gmra.mrb[0].mxu0 %v5904
        %v5995 = vpop.f32.mrb[0].mxu0
        %v5996 = vadd.f32 0.0, %v5995
        %v5997 = vpop.f32.mrb[0].mxu0
        %5998 = vmatprep.mubr.f32.mxu0 0.0
        %5999 = vmatmul.mubr.f32.gmra.mrb[0].mxu0 %v5907
        %v6000 = vpop.f32.mrb[0].mxu0
        %v6001 = vadd.f32 0.0, %v6000
        %v6002 = vpop.f32.mrb[0].mxu0
        %6003 = vmatprep.mubr.f32.mxu0 0.0
        %6004 = vmatmul.mubr.f32.gmra.mrb[0].mxu0 %v5910
        %v6005 = vpop.f32.mrb[0].mxu0
        %v6006 = vadd.f32 0.0, %v6005
        %v6007 = vpop.f32.mrb[0].mxu0
        %6008 = vmatprep.mubr.f32.mxu0 0.0
        %6009 = vmatmul.mubr.f32.gmra.mrb[0].mxu0 %v5913
        %v6010 = vpop.f32.mrb[0].mxu0
        %v6011 = vadd.f32 0.0, %v6010
        %v6012 = vpop.f32.mrb[0].mxu0
        %6013 = vmatprep.mubr.f32.mxu0 0.0
        %6014 = vmatmul.mubr.f32.gmra.mrb[0].mxu0 %v5916
        %v6015 = vpop.f32.mrb[0].mxu0
        %v6016 = vadd.f32 0.0, %v6015
        %v6017 = vpop.f32.mrb[0].mxu0
        %6018 = vmatprep.mubr.f32.mxu0 0.0
        %6019 = vmatmul.mubr.f32.gmra.mrb[0].mxu0 %v5919
        %v6020 = vpop.f32.mrb[0].mxu0
        %v6021 = vadd.f32 0.0, %v6020
        %v6022 = vpop.f32.mrb[0].mxu0
        %6023 = vmatprep.mubr.f32.mxu0 0.0
        %6024 = vmatmul.mubr.f32.gmra.mrb[0].mxu0 %v5922
        %v6025 = vpop.f32.mrb[0].mxu0
        %v6026 = vadd.f32 0.0, %v6025
        %v6027 = vpop.f32.mrb[0].mxu0
        %6028 = vmatprep.mubr.f32.mxu0 0.0
        %6029 = vmatmul.mubr.f32.gmra.mrb[0].mxu0 %v5925
        %v6030 = vpop.f32.mrb[0].mxu0
        %v6031 = vadd.f32 0.0, %v6030
        %v6032 = vpop.f32.mrb[0].mxu0
        %6033 = vdwg.mxu0
        %6034 = vrot.lane.b32.xlu0 %v4808, 80
        %v6035 = vpop.permute.xlu0 %6034
        %6036 = vrot.lane.b32.xlu0 %v4809, 80
        %v6037 = vpop.permute.xlu0 %6036
        %6038 = vrot.lane.b32.xlu0 %v4810, 80
        %v6039 = vpop.permute.xlu0 %6038
        %6040 = vrot.lane.b32.xlu0 %v4811, 80
        %v6041 = vpop.permute.xlu0 %6040
        %6042 = vrot.lane.b32.xlu0 %v4812, 80
        %v6043 = vpop.permute.xlu0 %6042
        %6044 = vrot.lane.b32.xlu0 %v4813, 80
        %v6045 = vpop.permute.xlu0 %6044
        %6046 = vrot.lane.b32.xlu0 %v4814, 80
        %v6047 = vpop.permute.xlu0 %6046
        %6048 = vrot.lane.b32.xlu0 %v4815, 80
        %v6049 = vpop.permute.xlu0 %6048
        %6050 = vrot.lane.b32.xlu0 %v4762, 16
        %v6051 = vpop.permute.xlu0 %6050
        %6052 = vrot.lane.b32.xlu0 %v4768, 16
        %v6053 = vpop.permute.xlu0 %6052
        %6054 = vrot.lane.b32.xlu0 %v4774, 16
        %v6055 = vpop.permute.xlu0 %6054
        %6056 = vrot.lane.b32.xlu0 %v4780, 16
        %v6057 = vpop.permute.xlu0 %6056
        %6058 = vrot.lane.b32.xlu0 %v4786, 16
        %v6059 = vpop.permute.xlu0 %6058
        %6060 = vrot.lane.b32.xlu0 %v4792, 16
        %v6061 = vpop.permute.xlu0 %6060
        %6062 = vrot.lane.b32.xlu0 %v4798, 16
        %v6063 = vpop.permute.xlu0 %6062
        %6064 = vrot.lane.b32.xlu0 %v4804, 16
        %v6065 = vpop.permute.xlu0 %6064
        %v6066 = vsel %vm2138, %v6035, 0
        %v6068 = vsel %vm2138, %v6037, 0
        %v6070 = vsel %vm2138, %v6039, 0
        %v6072 = vsel %vm2138, %v6041, 0
        %v6074 = vsel %vm2138, %v6043, 0
        %v6076 = vsel %vm2138, %v6045, 0
        %v6078 = vsel %vm2138, %v6047, 0
        %v6080 = vsel %vm2138, %v6049, 0
        %v6082 = vsel %vm2138, %v6051, 0
        %v6084 = vsel %vm2138, %v6053, 0
        %v6086 = vsel %vm2138, %v6055, 0
        %v6088 = vsel %vm2138, %v6057, 0
        %v6090 = vsel %vm2138, %v6059, 0
        %v6092 = vsel %vm2138, %v6061, 0
        %v6094 = vsel %vm2138, %v6063, 0
        %v6096 = vsel %vm2138, %v6065, 0
        %6098 = vmatprep.subr.mxu0 0.0
        %6099 = vmatpush1.xpose.msra.mxu0 %v6082
        %6100 = vmatprep.subr.mxu0 0.0
        %6101 = vmatpush1.xpose.msra.mxu0 %v6084
        %6102 = vmatprep.subr.mxu0 0.0
        %6103 = vmatpush1.xpose.msra.mxu0 %v6086
        %6104 = vmatprep.subr.mxu0 0.0
        %6105 = vmatpush1.xpose.msra.mxu0 %v6088
        %6106 = vmatprep.subr.mxu0 0.0
        %6107 = vmatpush1.xpose.msra.mxu0 %v6090
        %6108 = vmatprep.subr.mxu0 0.0
        %6109 = vmatpush1.xpose.msra.mxu0 %v6092
        %6110 = vmatprep.subr.mxu0 0.0
        %6111 = vmatpush1.xpose.msra.mxu0 %v6094
        %6112 = vmatprep.subr.mxu0 0.0
        %6113 = vmatpush1.xpose.msra.mxu0 %v6096
        %6114 = vmatprep.subr.mxu0 0.0
        %6115 = vmatpush1.xpose.msra.mxu0 0.0
        %6116 = vmatprep.subr.mxu0 0.0
        %6117 = vmatpush1.xpose.msra.mxu0 0.0
        %6118 = vmatprep.subr.mxu0 0.0
        %6119 = vmatpush1.xpose.msra.mxu0 0.0
        %6120 = vmatprep.subr.mxu0 0.0
        %6121 = vmatpush1.xpose.msra.mxu0 0.0
        %6122 = vmatprep.subr.mxu0 0.0
        %6123 = vmatpush1.xpose.msra.mxu0 0.0
        %6124 = vmatprep.subr.mxu0 0.0
        %6125 = vmatpush1.xpose.msra.mxu0 0.0
        %6126 = vmatprep.subr.mxu0 0.0
        %6127 = vmatpush1.xpose.msra.mxu0 0.0
        %6128 = vmatprep.subr.mxu0 0.0
        %6129 = vmatpush1.xpose.msra.mxu0 0.0
        %6130 = vmatprep.subr.mxu0 0.0
        %6131 = vmatpush1.xpose.msra.mxu0 0.0
        %6132 = vmatprep.subr.mxu0 0.0
        %6133 = vmatpush1.xpose.msra.mxu0 0.0
        %6134 = vmatprep.subr.mxu0 0.0
        %6135 = vmatpush1.xpose.msra.mxu0 0.0
        %6136 = vmatprep.subr.mxu0 0.0
        %6137 = vmatpush1.xpose.msra.mxu0 0.0
        %6138 = vmatprep.subr.mxu0 0.0
        %6139 = vmatpush1.xpose.msra.mxu0 0.0
        %6140 = vmatprep.subr.mxu0 0.0
        %6141 = vmatpush1.xpose.msra.mxu0 0.0
        %6142 = vmatprep.subr.mxu0 0.0
        %6143 = vmatpush1.xpose.msra.mxu0 0.0
        %6144 = vmatprep.subr.mxu0 0.0
        %6145 = vmatpush1.xpose.msra.mxu0 0.0
        %6146 = vmatprep.subr.mxu0 0.0
        %6147 = vmatpush1.xpose.msra.mxu0 0.0
        %6148 = vmatprep.subr.mxu0 0.0
        %6149 = vmatpush1.xpose.msra.mxu0 0.0
        %6150 = vmatprep.subr.mxu0 0.0
        %6151 = vmatpush1.xpose.msra.mxu0 0.0
        %6152 = vmatprep.subr.mxu0 0.0
        %6153 = vmatpush1.xpose.msra.mxu0 0.0
        %6154 = vmatprep.subr.mxu0 0.0
        %6155 = vmatpush1.xpose.msra.mxu0 0.0
        %6156 = vmatprep.subr.mxu0 0.0
        %6157 = vmatpush1.xpose.msra.mxu0 0.0
        %6158 = vmatprep.subr.mxu0 0.0
        %6159 = vmatpush1.xpose.msra.mxu0 0.0
        %6160 = vmatprep.subr.mxu0 0.0
        %6161 = vmatpush1.xpose.msra.mxu0 0.0
        %6162 = vmatprep.mubr.f32.mxu0 0.0
        %6163 = vmatmul.mubr.f32.gmra.mrb[0].mxu0 %v6066
        %v6164 = vpop.f32.mrb[0].mxu0
        %v6165 = vadd.f32 0.0, %v6164
        %v6166 = vpop.f32.mrb[0].mxu0
        %6167 = vmatprep.mubr.f32.mxu0 0.0
        %6168 = vmatmul.mubr.f32.gmra.mrb[0].mxu0 %v6068
        %v6169 = vpop.f32.mrb[0].mxu0
        %v6170 = vadd.f32 0.0, %v6169
        %v6171 = vpop.f32.mrb[0].mxu0
        %6172 = vmatprep.mubr.f32.mxu0 0.0
        %6173 = vmatmul.mubr.f32.gmra.mrb[0].mxu0 %v6070
        %v6174 = vpop.f32.mrb[0].mxu0
        %v6175 = vadd.f32 0.0, %v6174
        %v6176 = vpop.f32.mrb[0].mxu0
        %6177 = vmatprep.mubr.f32.mxu0 0.0
        %6178 = vmatmul.mubr.f32.gmra.mrb[0].mxu0 %v6072
        %v6179 = vpop.f32.mrb[0].mxu0
        %v6180 = vadd.f32 0.0, %v6179
        %v6181 = vpop.f32.mrb[0].mxu0
        %6182 = vmatprep.mubr.f32.mxu0 0.0
        %6183 = vmatmul.mubr.f32.gmra.mrb[0].mxu0 %v6074
        %v6184 = vpop.f32.mrb[0].mxu0
        %v6185 = vadd.f32 0.0, %v6184
        %v6186 = vpop.f32.mrb[0].mxu0
        %6187 = vmatprep.mubr.f32.mxu0 0.0
        %6188 = vmatmul.mubr.f32.gmra.mrb[0].mxu0 %v6076
        %v6189 = vpop.f32.mrb[0].mxu0
        %v6190 = vadd.f32 0.0, %v6189
        %v6191 = vpop.f32.mrb[0].mxu0
        %6192 = vmatprep.mubr.f32.mxu0 0.0
        %6193 = vmatmul.mubr.f32.gmra.mrb[0].mxu0 %v6078
        %v6194 = vpop.f32.mrb[0].mxu0
        %v6195 = vadd.f32 0.0, %v6194
        %v6196 = vpop.f32.mrb[0].mxu0
        %6197 = vmatprep.mubr.f32.mxu0 0.0
        %6198 = vmatmul.mubr.f32.gmra.mrb[0].mxu0 %v6080
        %v6199 = vpop.f32.mrb[0].mxu0
        %v6200 = vadd.f32 0.0, %v6199
        %v6201 = vpop.f32.mrb[0].mxu0
        %6202 = vdwg.mxu0
        %v6203 = vsel %vm2284, %v6165, -inf
        %6204 = vmax.xlane.f32.xlu0 %v6203
        %v6205 = vpop.xlane.xlu0 %6204
        %v6206 = vsel %vm2284, %v6170, -inf
        %6207 = vmax.xlane.f32.xlu0 %v6206
        %v6208 = vpop.xlane.xlu0 %6207
        %v6209 = vsel %vm2284, %v6175, -inf
        %6210 = vmax.xlane.f32.xlu0 %v6209
        %v6211 = vpop.xlane.xlu0 %6210
        %v6212 = vsel %vm2284, %v6180, -inf
        %6213 = vmax.xlane.f32.xlu0 %v6212
        %v6214 = vpop.xlane.xlu0 %6213
        %v6215 = vsel %vm2284, %v6185, -inf
        %6216 = vmax.xlane.f32.xlu0 %v6215
        %v6217 = vpop.xlane.xlu0 %6216
        %v6218 = vsel %vm2284, %v6190, -inf
        %6219 = vmax.xlane.f32.xlu0 %v6218
        %v6220 = vpop.xlane.xlu0 %6219
        %v6221 = vsel %vm2284, %v6195, -inf
        %6222 = vmax.xlane.f32.xlu0 %v6221
        %v6223 = vpop.xlane.xlu0 %6222
        %v6224 = vsel %vm2306, %v6200, -inf
        %6225 = vmax.xlane.f32.xlu0 %v6224
        %v6226 = vpop.xlane.xlu0 %6225
        %v6227 = vsub.f32 %v6165, %v6205
        %v6228 = vsub.f32 %v6170, %v6208
        %v6229 = vsub.f32 %v6175, %v6211
        %v6230 = vsub.f32 %v6180, %v6214
        %v6231 = vsub.f32 %v6185, %v6217
        %v6232 = vsub.f32 %v6190, %v6220
        %v6233 = vsub.f32 %v6195, %v6223
        %v6234 = vsub.f32 %v6200, %v6226
        %v6235 = vmul.f32 %v6227, 1.442695
        %v6236 = vpow.pop %v6235
        %v6237 = vmul.f32 %v6228, 1.442695
        %v6238 = vpow.pop %v6237
        %v6239 = vmul.f32 %v6229, 1.442695
        %v6240 = vpow.pop %v6239
        %v6241 = vmul.f32 %v6230, 1.442695
        %v6242 = vpow.pop %v6241
        %v6243 = vmul.f32 %v6231, 1.442695
        %v6244 = vpow.pop %v6243
        %v6245 = vmul.f32 %v6232, 1.442695
        %v6246 = vpow.pop %v6245
        %v6247 = vmul.f32 %v6233, 1.442695
        %v6248 = vpow.pop %v6247
        %v6249 = vmul.f32 %v6234, 1.442695
        %v6250 = vpow.pop %v6249
        %v6251 = vsel %vm2284, %v6236, 0.0
        %6252 = vadd.xlane.f32.xlu0 %v6251
        %v6253 = vpop.xlane.xlu0 %6252
        %v6254 = vsel %vm2284, %v6238, 0.0
        %6255 = vadd.xlane.f32.xlu0 %v6254
        %v6256 = vpop.xlane.xlu0 %6255
        %v6257 = vsel %vm2284, %v6240, 0.0
        %6258 = vadd.xlane.f32.xlu0 %v6257
        %v6259 = vpop.xlane.xlu0 %6258
        %v6260 = vsel %vm2284, %v6242, 0.0
        %6261 = vadd.xlane.f32.xlu0 %v6260
        %v6262 = vpop.xlane.xlu0 %6261
        %v6263 = vsel %vm2284, %v6244, 0.0
        %6264 = vadd.xlane.f32.xlu0 %v6263
        %v6265 = vpop.xlane.xlu0 %6264
        %v6266 = vsel %vm2284, %v6246, 0.0
        %6267 = vadd.xlane.f32.xlu0 %v6266
        %v6268 = vpop.xlane.xlu0 %6267
        %v6269 = vsel %vm2284, %v6248, 0.0
        %6270 = vadd.xlane.f32.xlu0 %v6269
        %v6271 = vpop.xlane.xlu0 %6270
        %v6272 = vsel %vm2306, %v6250, 0.0
        %6273 = vadd.xlane.f32.xlu0 %v6272
        %v6274 = vpop.xlane.xlu0 %6273
        %v6275 = vrcp.pop %v6253
        %v6276 = vrcp.pop %v6256
        %v6277 = vrcp.pop %v6259
        %v6278 = vrcp.pop %v6262
        %v6279 = vrcp.pop %v6265
        %v6280 = vrcp.pop %v6268
        %v6281 = vrcp.pop %v6271
        %v6282 = vrcp.pop %v6274
        %v6283 = vmul.f32 %v6236, %v6275
        %v6284 = vmul.f32 %v6238, %v6276
        %v6285 = vmul.f32 %v6240, %v6277
        %v6286 = vmul.f32 %v6242, %v6278
        %v6287 = vmul.f32 %v6244, %v6279
        %v6288 = vmul.f32 %v6246, %v6280
        %v6289 = vmul.f32 %v6248, %v6281
        %v6290 = vmul.f32 %v6250, %v6282
        %6291 = vrot.lane.b32.xlu0 %v4764, 80
        %v6292 = vpop.permute.xlu0 %6291
        %6293 = vrot.lane.b32.xlu0 %v4770, 80
        %v6294 = vpop.permute.xlu0 %6293
        %6295 = vrot.lane.b32.xlu0 %v4776, 80
        %v6296 = vpop.permute.xlu0 %6295
        %6297 = vrot.lane.b32.xlu0 %v4782, 80
        %v6298 = vpop.permute.xlu0 %6297
        %6299 = vrot.lane.b32.xlu0 %v4788, 80
        %v6300 = vpop.permute.xlu0 %6299
        %6301 = vrot.lane.b32.xlu0 %v4794, 80
        %v6302 = vpop.permute.xlu0 %6301
        %6303 = vrot.lane.b32.xlu0 %v4800, 80
        %v6304 = vpop.permute.xlu0 %6303
        %6305 = vrot.lane.b32.xlu0 %v4806, 80
        %v6306 = vpop.permute.xlu0 %6305
        %v6315 = vsel %vm2284, %v6283, 0
        %v6318 = vsel %vm2284, %v6284, 0
        %v6321 = vsel %vm2284, %v6285, 0
        %v6324 = vsel %vm2284, %v6286, 0
        %v6327 = vsel %vm2284, %v6287, 0
        %v6330 = vsel %vm2284, %v6288, 0
        %v6333 = vsel %vm2284, %v6289, 0
        %v6336 = vsel %vm2284, %v6290, 0
        %v6338 = vsel %vm420, %v6306, 0
        %6340 = vmatprep.subr.mxu0 0.0
        %6341 = vmatpush1.msra.mxu0 %v6292
        %6342 = vmatprep.subr.mxu0 0.0
        %6343 = vmatpush1.msra.mxu0 %v6294
        %6344 = vmatprep.subr.mxu0 0.0
        %6345 = vmatpush1.msra.mxu0 %v6296
        %6346 = vmatprep.subr.mxu0 0.0
        %6347 = vmatpush1.msra.mxu0 %v6298
        %6348 = vmatprep.subr.mxu0 0.0
        %6349 = vmatpush1.msra.mxu0 %v6300
        %6350 = vmatprep.subr.mxu0 0.0
        %6351 = vmatpush1.msra.mxu0 %v6302
        %6352 = vmatprep.subr.mxu0 0.0
        %6353 = vmatpush1.msra.mxu0 %v6304
        %6354 = vmatprep.subr.mxu0 0.0
        %6355 = vmatpush1.msra.mxu0 %v6338
        %6356 = vmatprep.subr.mxu0 0.0
        %6357 = vmatpush1.msra.mxu0 0.0
        %6358 = vmatprep.subr.mxu0 0.0
        %6359 = vmatpush1.msra.mxu0 0.0
        %6360 = vmatprep.subr.mxu0 0.0
        %6361 = vmatpush1.msra.mxu0 0.0
        %6362 = vmatprep.subr.mxu0 0.0
        %6363 = vmatpush1.msra.mxu0 0.0
        %6364 = vmatprep.subr.mxu0 0.0
        %6365 = vmatpush1.msra.mxu0 0.0
        %6366 = vmatprep.subr.mxu0 0.0
        %6367 = vmatpush1.msra.mxu0 0.0
        %6368 = vmatprep.subr.mxu0 0.0
        %6369 = vmatpush1.msra.mxu0 0.0
        %6370 = vmatprep.subr.mxu0 0.0
        %6371 = vmatpush1.msra.mxu0 0.0
        %6372 = vmatprep.subr.mxu0 0.0
        %6373 = vmatpush1.msra.mxu0 0.0
        %6374 = vmatprep.subr.mxu0 0.0
        %6375 = vmatpush1.msra.mxu0 0.0
        %6376 = vmatprep.subr.mxu0 0.0
        %6377 = vmatpush1.msra.mxu0 0.0
        %6378 = vmatprep.subr.mxu0 0.0
        %6379 = vmatpush1.msra.mxu0 0.0
        %6380 = vmatprep.subr.mxu0 0.0
        %6381 = vmatpush1.msra.mxu0 0.0
        %6382 = vmatprep.subr.mxu0 0.0
        %6383 = vmatpush1.msra.mxu0 0.0
        %6384 = vmatprep.subr.mxu0 0.0
        %6385 = vmatpush1.msra.mxu0 0.0
        %6386 = vmatprep.subr.mxu0 0.0
        %6387 = vmatpush1.msra.mxu0 0.0
        %6388 = vmatprep.subr.mxu0 0.0
        %6389 = vmatpush1.msra.mxu0 0.0
        %6390 = vmatprep.subr.mxu0 0.0
        %6391 = vmatpush1.msra.mxu0 0.0
        %6392 = vmatprep.subr.mxu0 0.0
        %6393 = vmatpush1.msra.mxu0 0.0
        %6394 = vmatprep.subr.mxu0 0.0
        %6395 = vmatpush1.msra.mxu0 0.0
        %6396 = vmatprep.subr.mxu0 0.0
        %6397 = vmatpush1.msra.mxu0 0.0
        %6398 = vmatprep.subr.mxu0 0.0
        %6399 = vmatpush1.msra.mxu0 0.0
        %6400 = vmatprep.subr.mxu0 0.0
        %6401 = vmatpush1.msra.mxu0 0.0
        %6402 = vmatprep.subr.mxu0 0.0
        %6403 = vmatpush1.msra.mxu0 0.0
        %6404 = vmatprep.mubr.f32.mxu0 0.0
        %6405 = vmatmul.mubr.f32.gmra.mrb[0].mxu0 %v6315
        %v6406 = vpop.f32.mrb[0].mxu0
        %v6407 = vadd.f32 0.0, %v6406
        %v6408 = vpop.f32.mrb[0].mxu0
        %6409 = vmatprep.mubr.f32.mxu0 0.0
        %6410 = vmatmul.mubr.f32.gmra.mrb[0].mxu0 %v6318
        %v6411 = vpop.f32.mrb[0].mxu0
        %v6412 = vadd.f32 0.0, %v6411
        %v6413 = vpop.f32.mrb[0].mxu0
        %6414 = vmatprep.mubr.f32.mxu0 0.0
        %6415 = vmatmul.mubr.f32.gmra.mrb[0].mxu0 %v6321
        %v6416 = vpop.f32.mrb[0].mxu0
        %v6417 = vadd.f32 0.0, %v6416
        %v6418 = vpop.f32.mrb[0].mxu0
        %6419 = vmatprep.mubr.f32.mxu0 0.0
        %6420 = vmatmul.mubr.f32.gmra.mrb[0].mxu0 %v6324
        %v6421 = vpop.f32.mrb[0].mxu0
        %v6422 = vadd.f32 0.0, %v6421
        %v6423 = vpop.f32.mrb[0].mxu0
        %6424 = vmatprep.mubr.f32.mxu0 0.0
        %6425 = vmatmul.mubr.f32.gmra.mrb[0].mxu0 %v6327
        %v6426 = vpop.f32.mrb[0].mxu0
        %v6427 = vadd.f32 0.0, %v6426
        %v6428 = vpop.f32.mrb[0].mxu0
        %6429 = vmatprep.mubr.f32.mxu0 0.0
        %6430 = vmatmul.mubr.f32.gmra.mrb[0].mxu0 %v6330
        %v6431 = vpop.f32.mrb[0].mxu0
        %v6432 = vadd.f32 0.0, %v6431
        %v6433 = vpop.f32.mrb[0].mxu0
        %6434 = vmatprep.mubr.f32.mxu0 0.0
        %6435 = vmatmul.mubr.f32.gmra.mrb[0].mxu0 %v6333
        %v6436 = vpop.f32.mrb[0].mxu0
        %v6437 = vadd.f32 0.0, %v6436
        %v6438 = vpop.f32.mrb[0].mxu0
        %6439 = vmatprep.mubr.f32.mxu0 0.0
        %6440 = vmatmul.mubr.f32.gmra.mrb[0].mxu0 %v6336
        %v6441 = vpop.f32.mrb[0].mxu0
        %v6442 = vadd.f32 0.0, %v6441
        %v6443 = vpop.f32.mrb[0].mxu0
        %6444 = vdwg.mxu0
        %6453 = vrot.lane.b32.xlu0 %v5585, 16
        %v6454 = vpop.permute.xlu0 %6453
        %6455 = vrot.lane.b32.xlu0 %v5590, 16
        %v6456 = vpop.permute.xlu0 %6455
        %6457 = vrot.lane.b32.xlu0 %v5595, 16
        %v6458 = vpop.permute.xlu0 %6457
        %6459 = vrot.lane.b32.xlu0 %v5600, 16
        %v6460 = vpop.permute.xlu0 %6459
        %6461 = vrot.lane.b32.xlu0 %v5605, 16
        %v6462 = vpop.permute.xlu0 %6461
        %6463 = vrot.lane.b32.xlu0 %v5610, 16
        %v6464 = vpop.permute.xlu0 %6463
        %6465 = vrot.lane.b32.xlu0 %v5615, 16
        %v6466 = vpop.permute.xlu0 %6465
        %6467 = vrot.lane.b32.xlu0 %v5620, 16
        %v6468 = vpop.permute.xlu0 %6467
        %6485 = vrot.lane.b32.xlu0 %v5996, 32
        %v6486 = vpop.permute.xlu0 %6485
        %6487 = vrot.lane.b32.xlu0 %v6001, 32
        %v6488 = vpop.permute.xlu0 %6487
        %6489 = vrot.lane.b32.xlu0 %v6006, 32
        %v6490 = vpop.permute.xlu0 %6489
        %6491 = vrot.lane.b32.xlu0 %v6011, 32
        %v6492 = vpop.permute.xlu0 %6491
        %6493 = vrot.lane.b32.xlu0 %v6016, 32
        %v6494 = vpop.permute.xlu0 %6493
        %6495 = vrot.lane.b32.xlu0 %v6021, 32
        %v6496 = vpop.permute.xlu0 %6495
        %6497 = vrot.lane.b32.xlu0 %v6026, 32
        %v6498 = vpop.permute.xlu0 %6497
        %6499 = vrot.lane.b32.xlu0 %v6031, 32
        %v6500 = vpop.permute.xlu0 %6499
        %6517 = vrot.lane.b32.xlu0 %v6407, 48
        %v6518 = vpop.permute.xlu0 %6517
        %6519 = vrot.lane.b32.xlu0 %v6412, 48
        %v6520 = vpop.permute.xlu0 %6519
        %6521 = vrot.lane.b32.xlu0 %v6417, 48
        %v6522 = vpop.permute.xlu0 %6521
        %6523 = vrot.lane.b32.xlu0 %v6422, 48
        %v6524 = vpop.permute.xlu0 %6523
        %6525 = vrot.lane.b32.xlu0 %v6427, 48
        %v6526 = vpop.permute.xlu0 %6525
        %6527 = vrot.lane.b32.xlu0 %v6432, 48
        %v6528 = vpop.permute.xlu0 %6527
        %6529 = vrot.lane.b32.xlu0 %v6437, 48
        %v6530 = vpop.permute.xlu0 %6529
        %6531 = vrot.lane.b32.xlu0 %v6442, 48
        %v6532 = vpop.permute.xlu0 %6531
        %v6541 = vsel %vm2138, %v5167, %v6454
        %v6542 = vsel %vm2138, %v5172, %v6456
        %v6543 = vsel %vm2138, %v5177, %v6458
        %v6544 = vsel %vm2138, %v5182, %v6460
        %v6545 = vsel %vm2138, %v5187, %v6462
        %v6546 = vsel %vm2138, %v5192, %v6464
        %v6547 = vsel %vm2138, %v5197, %v6466
        %v6548 = vsel %vm2138, %v5202, %v6468
        %v6549 = vsel %vm707, %v6541, %v6486
        %v6550 = vsel %vm707, %v6542, %v6488
        %v6551 = vsel %vm707, %v6543, %v6490
        %v6552 = vsel %vm707, %v6544, %v6492
        %v6553 = vsel %vm707, %v6545, %v6494
        %v6554 = vsel %vm707, %v6546, %v6496
        %v6555 = vsel %vm707, %v6547, %v6498
        %v6556 = vsel %vm707, %v6548, %v6500
        %v6557 = vsel %vm3858, %v6549, %v6518
        %v6558 = vsel %vm3858, %v6550, %v6520
        %v6559 = vsel %vm3858, %v6551, %v6522
        %v6560 = vsel %vm3858, %v6552, %v6524
        %v6561 = vsel %vm3858, %v6553, %v6526
        %v6562 = vsel %vm3858, %v6554, %v6528
        %v6563 = vsel %vm3858, %v6555, %v6530
        %v6564 = vsel %vm3858, %v6556, %v6532
        %v6565 = vlaneseq
        %v6566 = vshrl.u32 %v6565, 7
        %v6567 = vsub.s32 1, %v6566
        %v6568 = vrot.slane %v4644, %v6567
        %6577 = vrot.lane.b32.xlu0 %v4620, 64
        %v6578 = vpop.permute.xlu0 %6577
        %6579 = vrot.lane.b32.xlu0 %v4623, 64
        %v6580 = vpop.permute.xlu0 %6579
        %6581 = vrot.lane.b32.xlu0 %v4626, 64
        %v6582 = vpop.permute.xlu0 %6581
        %6583 = vrot.lane.b32.xlu0 %v4629, 64
        %v6584 = vpop.permute.xlu0 %6583
        %6585 = vrot.lane.b32.xlu0 %v4632, 64
        %v6586 = vpop.permute.xlu0 %6585
        %6587 = vrot.lane.b32.xlu0 %v4635, 64
        %v6588 = vpop.permute.xlu0 %6587
        %6589 = vrot.lane.b32.xlu0 %v4638, 64
        %v6590 = vpop.permute.xlu0 %6589
        %6591 = vrot.lane.b32.xlu0 %v4641, 64
        %v6592 = vpop.permute.xlu0 %6591
        %v6602 = vsel %vm1788, %v6557, 0
        %v6605 = vsel %vm1788, %v6558, 0
        %v6608 = vsel %vm1788, %v6559, 0
        %v6611 = vsel %vm1788, %v6560, 0
        %v6614 = vsel %vm1788, %v6561, 0
        %v6617 = vsel %vm1788, %v6562, 0
        %v6620 = vsel %vm1788, %v6563, 0
        %v6623 = vsel %vm1788, %v6564, 0
        %6625 = vmatprep.subr.mxu0 0.0
        %6626 = vmatpush1.msra.mxu0 %v6578
        %6627 = vmatprep.subr.mxu0 0.0
        %6628 = vmatpush1.msra.mxu0 %v6580
        %6629 = vmatprep.subr.mxu0 0.0
        %6630 = vmatpush1.msra.mxu0 %v6582
        %6631 = vmatprep.subr.mxu0 0.0
        %6632 = vmatpush1.msra.mxu0 %v6584
        %6633 = vmatprep.subr.mxu0 0.0
        %6634 = vmatpush1.msra.mxu0 %v6586
        %6635 = vmatprep.subr.mxu0 0.0
        %6636 = vmatpush1.msra.mxu0 %v6588
        %6637 = vmatprep.subr.mxu0 0.0
        %6638 = vmatpush1.msra.mxu0 %v6590
        %6639 = vmatprep.subr.mxu0 0.0
        %6640 = vmatpush1.msra.mxu0 %v6592
        %6641 = vmatprep.subr.mxu0 0.0
        %6642 = vmatpush1.msra.mxu0 0.0
        %6643 = vmatprep.subr.mxu0 0.0
        %6644 = vmatpush1.msra.mxu0 0.0
        %6645 = vmatprep.subr.mxu0 0.0
        %6646 = vmatpush1.msra.mxu0 0.0
        %6647 = vmatprep.subr.mxu0 0.0
        %6648 = vmatpush1.msra.mxu0 0.0
        %6649 = vmatprep.subr.mxu0 0.0
        %6650 = vmatpush1.msra.mxu0 0.0
        %6651 = vmatprep.subr.mxu0 0.0
        %6652 = vmatpush1.msra.mxu0 0.0
        %6653 = vmatprep.subr.mxu0 0.0
        %6654 = vmatpush1.msra.mxu0 0.0
        %6655 = vmatprep.subr.mxu0 0.0
        %6656 = vmatpush1.msra.mxu0 0.0
        %6657 = vmatprep.subr.mxu0 0.0
        %6658 = vmatpush1.msra.mxu0 0.0
        %6659 = vmatprep.subr.mxu0 0.0
        %6660 = vmatpush1.msra.mxu0 0.0
        %6661 = vmatprep.subr.mxu0 0.0
        %6662 = vmatpush1.msra.mxu0 0.0
        %6663 = vmatprep.subr.mxu0 0.0
        %6664 = vmatpush1.msra.mxu0 0.0
        %6665 = vmatprep.subr.mxu0 0.0
        %6666 = vmatpush1.msra.mxu0 0.0
        %6667 = vmatprep.subr.mxu0 0.0
        %6668 = vmatpush1.msra.mxu0 0.0
        %6669 = vmatprep.subr.mxu0 0.0
        %6670 = vmatpush1.msra.mxu0 0.0
        %6671 = vmatprep.subr.mxu0 0.0
        %6672 = vmatpush1.msra.mxu0 0.0
        %6673 = vmatprep.subr.mxu0 0.0
        %6674 = vmatpush1.msra.mxu0 0.0
        %6675 = vmatprep.subr.mxu0 0.0
        %6676 = vmatpush1.msra.mxu0 0.0
        %6677 = vmatprep.subr.mxu0 0.0
        %6678 = vmatpush1.msra.mxu0 0.0
        %6679 = vmatprep.subr.mxu0 0.0
        %6680 = vmatpush1.msra.mxu0 0.0
        %6681 = vmatprep.subr.mxu0 0.0
        %6682 = vmatpush1.msra.mxu0 0.0
        %6683 = vmatprep.subr.mxu0 0.0
        %6684 = vmatpush1.msra.mxu0 0.0
        %6685 = vmatprep.subr.mxu0 0.0
        %6686 = vmatpush1.msra.mxu0 0.0
        %6687 = vmatprep.subr.mxu0 0.0
        %6688 = vmatpush1.msra.mxu0 0.0
        %6689 = vmatprep.mubr.f32.mxu0 0.0
        %6690 = vmatmul.mubr.f32.gmra.mrb[0].mxu0 %v6602
        %v6691 = vpop.f32.mrb[0].mxu0
        %v6692 = vadd.f32 %v6568, %v6691
        %v6693 = vpop.f32.mrb[0].mxu0
        %6694 = vmatprep.mubr.f32.mxu0 0.0
        %6695 = vmatmul.mubr.f32.gmra.mrb[0].mxu0 %v6605
        %v6696 = vpop.f32.mrb[0].mxu0
        %v6697 = vadd.f32 %v6568, %v6696
        %v6698 = vpop.f32.mrb[0].mxu0
        %6699 = vmatprep.mubr.f32.mxu0 0.0
        %6700 = vmatmul.mubr.f32.gmra.mrb[0].mxu0 %v6608
        %v6701 = vpop.f32.mrb[0].mxu0
        %v6702 = vadd.f32 %v6568, %v6701
        %v6703 = vpop.f32.mrb[0].mxu0
        %6704 = vmatprep.mubr.f32.mxu0 0.0
        %6705 = vmatmul.mubr.f32.gmra.mrb[0].mxu0 %v6611
        %v6706 = vpop.f32.mrb[0].mxu0
        %v6707 = vadd.f32 %v6568, %v6706
        %v6708 = vpop.f32.mrb[0].mxu0
        %6709 = vmatprep.mubr.f32.mxu0 0.0
        %6710 = vmatmul.mubr.f32.gmra.mrb[0].mxu0 %v6614
        %v6711 = vpop.f32.mrb[0].mxu0
        %v6712 = vadd.f32 %v6568, %v6711
        %v6713 = vpop.f32.mrb[0].mxu0
        %6714 = vmatprep.mubr.f32.mxu0 0.0
        %6715 = vmatmul.mubr.f32.gmra.mrb[0].mxu0 %v6617
        %v6716 = vpop.f32.mrb[0].mxu0
        %v6717 = vadd.f32 %v6568, %v6716
        %v6718 = vpop.f32.mrb[0].mxu0
        %6719 = vmatprep.mubr.f32.mxu0 0.0
        %6720 = vmatmul.mubr.f32.gmra.mrb[0].mxu0 %v6620
        %v6721 = vpop.f32.mrb[0].mxu0
        %v6722 = vadd.f32 %v6568, %v6721
        %v6723 = vpop.f32.mrb[0].mxu0
        %6724 = vmatprep.mubr.f32.mxu0 0.0
        %6725 = vmatmul.mubr.f32.gmra.mrb[0].mxu0 %v6623
        %v6726 = vpop.f32.mrb[0].mxu0
        %v6727 = vadd.f32 %v6568, %v6726
        %v6728 = vpop.f32.mrb[0].mxu0
        %6729 = vdwg.mxu0
        %v6730 = vadd.f32 %v4610, %v6692
        %v6731 = vadd.f32 %v4611, %v6697
        %v6732 = vadd.f32 %v4612, %v6702
        %v6733 = vadd.f32 %v4613, %v6707
        %v6734 = vadd.f32 %v4614, %v6712
        %v6735 = vadd.f32 %v4615, %v6717
        %v6736 = vadd.f32 %v4616, %v6722
        %v6737 = vadd.f32 %v4617, %v6727
        %v6738 = vsel %vm1788, %v6730, 0.0
        %6739 = vadd.xlane.f32.xlu0 %v6738
        %v6740 = vpop.xlane.xlu0 %6739
        %v6741 = vsel %vm1788, %v6731, 0.0
        %6742 = vadd.xlane.f32.xlu0 %v6741
        %v6743 = vpop.xlane.xlu0 %6742
        %v6744 = vsel %vm1788, %v6732, 0.0
        %6745 = vadd.xlane.f32.xlu0 %v6744
        %v6746 = vpop.xlane.xlu0 %6745
        %v6747 = vsel %vm1788, %v6733, 0.0
        %6748 = vadd.xlane.f32.xlu0 %v6747
        %v6749 = vpop.xlane.xlu0 %6748
        %v6750 = vsel %vm1788, %v6734, 0.0
        %6751 = vadd.xlane.f32.xlu0 %v6750
        %v6752 = vpop.xlane.xlu0 %6751
        %v6753 = vsel %vm1788, %v6735, 0.0
        %6754 = vadd.xlane.f32.xlu0 %v6753
        %v6755 = vpop.xlane.xlu0 %6754
        %v6756 = vsel %vm1788, %v6736, 0.0
        %6757 = vadd.xlane.f32.xlu0 %v6756
        %v6758 = vpop.xlane.xlu0 %6757
        %v6759 = vsel %vm1810, %v6737, 0.0
        %6760 = vadd.xlane.f32.xlu0 %v6759
        %v6761 = vpop.xlane.xlu0 %6760
        %v6762 = vmul.f32 %v6740, %v1814
        %v6763 = vmul.f32 %v6743, %v1814
        %v6764 = vmul.f32 %v6746, %v1814
        %v6765 = vmul.f32 %v6749, %v1814
        %v6766 = vmul.f32 %v6752, %v1814
        %v6767 = vmul.f32 %v6755, %v1814
        %v6768 = vmul.f32 %v6758, %v1814
        %v6769 = vmul.f32 %v6761, %v1814
        %v6770 = vsub.f32 %v6730, %v6762
        %v6771 = vsub.f32 %v6731, %v6763
        %v6772 = vsub.f32 %v6732, %v6764
        %v6773 = vsub.f32 %v6733, %v6765
        %v6774 = vsub.f32 %v6734, %v6766
        %v6775 = vsub.f32 %v6735, %v6767
        %v6776 = vsub.f32 %v6736, %v6768
        %v6777 = vsub.f32 %v6737, %v6769
        %v6778 = vmul.f32 %v6770, %v6770
        %v6779 = vmul.f32 %v6771, %v6771
        %v6780 = vmul.f32 %v6772, %v6772
        %v6781 = vmul.f32 %v6773, %v6773
        %v6782 = vmul.f32 %v6774, %v6774
        %v6783 = vmul.f32 %v6775, %v6775
        %v6784 = vmul.f32 %v6776, %v6776
        %v6785 = vmul.f32 %v6777, %v6777
        %v6786 = vsel %vm1788, %v6778, 0.0
        %6787 = vadd.xlane.f32.xlu0 %v6786
        %v6788 = vpop.xlane.xlu0 %6787
        %v6789 = vsel %vm1788, %v6779, 0.0
        %6790 = vadd.xlane.f32.xlu0 %v6789
        %v6791 = vpop.xlane.xlu0 %6790
        %v6792 = vsel %vm1788, %v6780, 0.0
        %6793 = vadd.xlane.f32.xlu0 %v6792
        %v6794 = vpop.xlane.xlu0 %6793
        %v6795 = vsel %vm1788, %v6781, 0.0
        %6796 = vadd.xlane.f32.xlu0 %v6795
        %v6797 = vpop.xlane.xlu0 %6796
        %v6798 = vsel %vm1788, %v6782, 0.0
        %6799 = vadd.xlane.f32.xlu0 %v6798
        %v6800 = vpop.xlane.xlu0 %6799
        %v6801 = vsel %vm1788, %v6783, 0.0
        %6802 = vadd.xlane.f32.xlu0 %v6801
        %v6803 = vpop.xlane.xlu0 %6802
        %v6804 = vsel %vm1788, %v6784, 0.0
        %6805 = vadd.xlane.f32.xlu0 %v6804
        %v6806 = vpop.xlane.xlu0 %6805
        %v6807 = vsel %vm1810, %v6785, 0.0
        %6808 = vadd.xlane.f32.xlu0 %v6807
        %v6809 = vpop.xlane.xlu0 %6808
        %v6810 = vmul.f32 %v6788, %v1814
        %v6811 = vmul.f32 %v6791, %v1814
        %v6812 = vmul.f32 %v6794, %v1814
        %v6813 = vmul.f32 %v6797, %v1814
        %v6814 = vmul.f32 %v6800, %v1814
        %v6815 = vmul.f32 %v6803, %v1814
        %v6816 = vmul.f32 %v6806, %v1814
        %v6817 = vmul.f32 %v6809, %v1814
        %v6818 = vadd.f32 %v6810, 1e-05
        %v6819 = vadd.f32 %v6811, 1e-05
        %v6820 = vadd.f32 %v6812, 1e-05
        %v6821 = vadd.f32 %v6813, 1e-05
        %v6822 = vadd.f32 %v6814, 1e-05
        %v6823 = vadd.f32 %v6815, 1e-05
        %v6824 = vadd.f32 %v6816, 1e-05
        %v6825 = vadd.f32 %v6817, 1e-05
        %v6826 = vrsqrt.pop %v6818
        %v6827 = vrsqrt.pop %v6819
        %v6828 = vrsqrt.pop %v6820
        %v6829 = vrsqrt.pop %v6821
        %v6830 = vrsqrt.pop %v6822
        %v6831 = vrsqrt.pop %v6823
        %v6832 = vrsqrt.pop %v6824
        %v6833 = vrsqrt.pop %v6825
        %v6834 = vmul.f32 %v6770, %v6826
        %v6835 = vmul.f32 %v6771, %v6827
        %v6836 = vmul.f32 %v6772, %v6828
        %v6837 = vmul.f32 %v6773, %v6829
        %v6838 = vmul.f32 %v6774, %v6830
        %v6839 = vmul.f32 %v6775, %v6831
        %v6840 = vmul.f32 %v6776, %v6832
        %v6841 = vmul.f32 %v6777, %v6833
        %v6842 = vlaneseq
        %v6843 = vshrl.u32 %v6842, 7
        %v6844 = vsub.s32 2, %v6843
        %v6845 = vrot.slane %v4644, %v6844
        %v6846 = vmul.f32 %v6834, %v6845
        %v6847 = vmul.f32 %v6835, %v6845
        %v6848 = vmul.f32 %v6836, %v6845
        %v6849 = vmul.f32 %v6837, %v6845
        %v6850 = vmul.f32 %v6838, %v6845
        %v6851 = vmul.f32 %v6839, %v6845
        %v6852 = vmul.f32 %v6840, %v6845
        %v6853 = vmul.f32 %v6841, %v6845
        %v6854 = vlaneseq
        %v6855 = vshrl.u32 %v6854, 7
        %v6856 = vsub.s32 3, %v6855
        %v6857 = vrot.slane %v4644, %v6856
        %v6858 = vadd.f32 %v6846, %v6857
        %v6859 = vadd.f32 %v6847, %v6857
        %v6860 = vadd.f32 %v6848, %v6857
        %v6861 = vadd.f32 %v6849, %v6857
        %v6862 = vadd.f32 %v6850, %v6857
        %v6863 = vadd.f32 %v6851, %v6857
        %v6864 = vadd.f32 %v6852, %v6857
        %v6865 = vadd.f32 %v6853, %v6857
        %v6866 = vlaneseq
        %v6867 = vshrl.u32 %v6866, 7
        %v6868 = vsub.s32 4, %v6867
        %v6869 = vrot.slane %v4644, %v6868
        %v6871 = vsel %vm1788, %v6858, 0
        %v6874 = vsel %vm1788, %v6859, 0
        %v6877 = vsel %vm1788, %v6860, 0
        %v6880 = vsel %vm1788, %v6861, 0
        %v6883 = vsel %vm1788, %v6862, 0
        %v6886 = vsel %vm1788, %v6863, 0
        %v6889 = vsel %vm1788, %v6864, 0
        %v6892 = vsel %vm1788, %v6865, 0
        %6894 = vmatprep.subr.mxu0 0.0
        %6895 = vmatpush1.msra.mxu0 %v4621
        %6896 = vmatprep.subr.mxu0 0.0
        %6897 = vmatpush1.msra.mxu0 %v4624
        %6898 = vmatprep.subr.mxu0 0.0
        %6899 = vmatpush1.msra.mxu0 %v4627
        %6900 = vmatprep.subr.mxu0 0.0
        %6901 = vmatpush1.msra.mxu0 %v4630
        %6902 = vmatprep.subr.mxu0 0.0
        %6903 = vmatpush1.msra.mxu0 %v4633
        %6904 = vmatprep.subr.mxu0 0.0
        %6905 = vmatpush1.msra.mxu0 %v4636
        %6906 = vmatprep.subr.mxu0 0.0
        %6907 = vmatpush1.msra.mxu0 %v4639
        %6908 = vmatprep.subr.mxu0 0.0
        %6909 = vmatpush1.msra.mxu0 %v4642
        %6910 = vmatprep.subr.mxu0 0.0
        %6911 = vmatpush1.msra.mxu0 0.0
        %6912 = vmatprep.subr.mxu0 0.0
        %6913 = vmatpush1.msra.mxu0 0.0
        %6914 = vmatprep.subr.mxu0 0.0
        %6915 = vmatpush1.msra.mxu0 0.0
        %6916 = vmatprep.subr.mxu0 0.0
        %6917 = vmatpush1.msra.mxu0 0.0
        %6918 = vmatprep.subr.mxu0 0.0
        %6919 = vmatpush1.msra.mxu0 0.0
        %6920 = vmatprep.subr.mxu0 0.0
        %6921 = vmatpush1.msra.mxu0 0.0
        %6922 = vmatprep.subr.mxu0 0.0
        %6923 = vmatpush1.msra.mxu0 0.0
        %6924 = vmatprep.subr.mxu0 0.0
        %6925 = vmatpush1.msra.mxu0 0.0
        %6926 = vmatprep.subr.mxu0 0.0
        %6927 = vmatpush1.msra.mxu0 0.0
        %6928 = vmatprep.subr.mxu0 0.0
        %6929 = vmatpush1.msra.mxu0 0.0
        %6930 = vmatprep.subr.mxu0 0.0
        %6931 = vmatpush1.msra.mxu0 0.0
        %6932 = vmatprep.subr.mxu0 0.0
        %6933 = vmatpush1.msra.mxu0 0.0
        %6934 = vmatprep.subr.mxu0 0.0
        %6935 = vmatpush1.msra.mxu0 0.0
        %6936 = vmatprep.subr.mxu0 0.0
        %6937 = vmatpush1.msra.mxu0 0.0
        %6938 = vmatprep.subr.mxu0 0.0
        %6939 = vmatpush1.msra.mxu0 0.0
        %6940 = vmatprep.subr.mxu0 0.0
        %6941 = vmatpush1.msra.mxu0 0.0
        %6942 = vmatprep.subr.mxu0 0.0
        %6943 = vmatpush1.msra.mxu0 0.0
        %6944 = vmatprep.subr.mxu0 0.0
        %6945 = vmatpush1.msra.mxu0 0.0
        %6946 = vmatprep.subr.mxu0 0.0
        %6947 = vmatpush1.msra.mxu0 0.0
        %6948 = vmatprep.subr.mxu0 0.0
        %6949 = vmatpush1.msra.mxu0 0.0
        %6950 = vmatprep.subr.mxu0 0.0
        %6951 = vmatpush1.msra.mxu0 0.0
        %6952 = vmatprep.subr.mxu0 0.0
        %6953 = vmatpush1.msra.mxu0 0.0
        %6954 = vmatprep.subr.mxu0 0.0
        %6955 = vmatpush1.msra.mxu0 0.0
        %6956 = vmatprep.subr.mxu0 0.0
        %6957 = vmatpush1.msra.mxu0 0.0
        %6958 = vmatprep.mubr.f32.mxu0 0.0
        %6959 = vmatmul.mubr.f32.gmra.mrb[0].mxu0 %v6871
        %v6960 = vpop.f32.mrb[0].mxu0
        %v6961 = vadd.f32 %v6869, %v6960
        %v6962 = vpop.f32.mrb[0].mxu0
        %6963 = vmatprep.mubr.f32.mxu0 0.0
        %6964 = vmatmul.mubr.f32.gmra.mrb[0].mxu0 %v6874
        %v6965 = vpop.f32.mrb[0].mxu0
        %v6966 = vadd.f32 %v6869, %v6965
        %v6967 = vpop.f32.mrb[0].mxu0
        %6968 = vmatprep.mubr.f32.mxu0 0.0
        %6969 = vmatmul.mubr.f32.gmra.mrb[0].mxu0 %v6877
        %v6970 = vpop.f32.mrb[0].mxu0
        %v6971 = vadd.f32 %v6869, %v6970
        %v6972 = vpop.f32.mrb[0].mxu0
        %6973 = vmatprep.mubr.f32.mxu0 0.0
        %6974 = vmatmul.mubr.f32.gmra.mrb[0].mxu0 %v6880
        %v6975 = vpop.f32.mrb[0].mxu0
        %v6976 = vadd.f32 %v6869, %v6975
        %v6977 = vpop.f32.mrb[0].mxu0
        %6978 = vmatprep.mubr.f32.mxu0 0.0
        %6979 = vmatmul.mubr.f32.gmra.mrb[0].mxu0 %v6883
        %v6980 = vpop.f32.mrb[0].mxu0
        %v6981 = vadd.f32 %v6869, %v6980
        %v6982 = vpop.f32.mrb[0].mxu0
        %6983 = vmatprep.mubr.f32.mxu0 0.0
        %6984 = vmatmul.mubr.f32.gmra.mrb[0].mxu0 %v6886
        %v6985 = vpop.f32.mrb[0].mxu0
        %v6986 = vadd.f32 %v6869, %v6985
        %v6987 = vpop.f32.mrb[0].mxu0
        %6988 = vmatprep.mubr.f32.mxu0 0.0
        %6989 = vmatmul.mubr.f32.gmra.mrb[0].mxu0 %v6889
        %v6990 = vpop.f32.mrb[0].mxu0
        %v6991 = vadd.f32 %v6869, %v6990
        %v6992 = vpop.f32.mrb[0].mxu0
        %6993 = vmatprep.mubr.f32.mxu0 0.0
        %6994 = vmatmul.mubr.f32.gmra.mrb[0].mxu0 %v6892
        %v6995 = vpop.f32.mrb[0].mxu0
        %v6996 = vadd.f32 %v6869, %v6995
        %v6997 = vpop.f32.mrb[0].mxu0
        %6998 = vdwg.mxu0
        %v6999 = vmul.f32 %v6961, %v6961
        %v7000 = vmul.f32 %v6966, %v6966
        %v7001 = vmul.f32 %v6971, %v6971
        %v7002 = vmul.f32 %v6976, %v6976
        %v7003 = vmul.f32 %v6981, %v6981
        %v7004 = vmul.f32 %v6986, %v6986
        %v7005 = vmul.f32 %v6991, %v6991
        %v7006 = vmul.f32 %v6996, %v6996
        %v7007 = vmul.f32 %v6961, %v6999
        %v7008 = vmul.f32 %v6966, %v7000
        %v7009 = vmul.f32 %v6971, %v7001
        %v7010 = vmul.f32 %v6976, %v7002
        %v7011 = vmul.f32 %v6981, %v7003
        %v7012 = vmul.f32 %v6986, %v7004
        %v7013 = vmul.f32 %v6991, %v7005
        %v7014 = vmul.f32 %v6996, %v7006
        %v7015 = vmul.f32 %v7007, 0.044715
        %v7016 = vmul.f32 %v7008, 0.044715
        %v7017 = vmul.f32 %v7009, 0.044715
        %v7018 = vmul.f32 %v7010, 0.044715
        %v7019 = vmul.f32 %v7011, 0.044715
        %v7020 = vmul.f32 %v7012, 0.044715
        %v7021 = vmul.f32 %v7013, 0.044715
        %v7022 = vmul.f32 %v7014, 0.044715
        %v7023 = vadd.f32 %v6961, %v7015
        %v7024 = vadd.f32 %v6966, %v7016
        %v7025 = vadd.f32 %v6971, %v7017
        %v7026 = vadd.f32 %v6976, %v7018
        %v7027 = vadd.f32 %v6981, %v7019
        %v7028 = vadd.f32 %v6986, %v7020
        %v7029 = vadd.f32 %v6991, %v7021
        %v7030 = vadd.f32 %v6996, %v7022
        %v7031 = vmul.f32 %v7023, 0.7978846
        %v7032 = vmul.f32 %v7024, 0.7978846
        %v7033 = vmul.f32 %v7025, 0.7978846
        %v7034 = vmul.f32 %v7026, 0.7978846
        %v7035 = vmul.f32 %v7027, 0.7978846
        %v7036 = vmul.f32 %v7028, 0.7978846
        %v7037 = vmul.f32 %v7029, 0.7978846
        %v7038 = vmul.f32 %v7030, 0.7978846
        %v7039 = vtanh.pop %v7031
        %v7040 = vtanh.pop %v7032
        %v7041 = vtanh.pop %v7033
        %v7042 = vtanh.pop %v7034
        %v7043 = vtanh.pop %v7035
        %v7044 = vtanh.pop %v7036
        %v7045 = vtanh.pop %v7037
        %v7046 = vtanh.pop %v7038
        %v7047 = vadd.f32 %v7039, 1.0
        %v7048 = vadd.f32 %v7040, 1.0
        %v7049 = vadd.f32 %v7041, 1.0
        %v7050 = vadd.f32 %v7042, 1.0
        %v7051 = vadd.f32 %v7043, 1.0
        %v7052 = vadd.f32 %v7044, 1.0
        %v7053 = vadd.f32 %v7045, 1.0
        %v7054 = vadd.f32 %v7046, 1.0
        %v7055 = vmul.f32 %v7047, 0.5
        %v7056 = vmul.f32 %v7048, 0.5
        %v7057 = vmul.f32 %v7049, 0.5
        %v7058 = vmul.f32 %v7050, 0.5
        %v7059 = vmul.f32 %v7051, 0.5
        %v7060 = vmul.f32 %v7052, 0.5
        %v7061 = vmul.f32 %v7053, 0.5
        %v7062 = vmul.f32 %v7054, 0.5
        %v7063 = vmul.f32 %v6961, %v7055
        %v7064 = vmul.f32 %v6966, %v7056
        %v7065 = vmul.f32 %v6971, %v7057
        %v7066 = vmul.f32 %v6976, %v7058
        %v7067 = vmul.f32 %v6981, %v7059
        %v7068 = vmul.f32 %v6986, %v7060
        %v7069 = vmul.f32 %v6991, %v7061
        %v7070 = vmul.f32 %v6996, %v7062
        %v7071 = vlaneseq
        %v7072 = vshrl.u32 %v7071, 7
        %v7073 = vsub.s32 5, %v7072
        %v7074 = vrot.slane %v4644, %v7073
        %7075 = vmatprep.subr.mxu0 0.0
        %7076 = vmatpush1.msra.mxu0 %v4647
        %7077 = vmatprep.subr.mxu0 0.0
        %7078 = vmatpush1.msra.mxu0 %v4648
        %7079 = vmatprep.subr.mxu0 0.0
        %7080 = vmatpush1.msra.mxu0 %v4649
        %7081 = vmatprep.subr.mxu0 0.0
        %7082 = vmatpush1.msra.mxu0 %v4650
        %7083 = vmatprep.subr.mxu0 0.0
        %7084 = vmatpush1.msra.mxu0 %v4651
        %7085 = vmatprep.subr.mxu0 0.0
        %7086 = vmatpush1.msra.mxu0 %v4652
        %7087 = vmatprep.subr.mxu0 0.0
        %7088 = vmatpush1.msra.mxu0 %v4653
        %7089 = vmatprep.subr.mxu0 0.0
        %7090 = vmatpush1.msra.mxu0 %v4654
        %7091 = vmatprep.subr.mxu0 0.0
        %7092 = vmatpush1.msra.mxu0 %v4655
        %7093 = vmatprep.subr.mxu0 0.0
        %7094 = vmatpush1.msra.mxu0 %v4656
        %7095 = vmatprep.subr.mxu0 0.0
        %7096 = vmatpush1.msra.mxu0 %v4657
        %7097 = vmatprep.subr.mxu0 0.0
        %7098 = vmatpush1.msra.mxu0 %v4658
        %7099 = vmatprep.subr.mxu0 0.0
        %7100 = vmatpush1.msra.mxu0 %v4659
        %7101 = vmatprep.subr.mxu0 0.0
        %7102 = vmatpush1.msra.mxu0 %v4660
        %7103 = vmatprep.subr.mxu0 0.0
        %7104 = vmatpush1.msra.mxu0 %v4661
        %7105 = vmatprep.subr.mxu0 0.0
        %7106 = vmatpush1.msra.mxu0 %v4662
        %7107 = vmatprep.subr.mxu0 0.0
        %7108 = vmatpush1.msra.mxu0 0.0
        %7109 = vmatprep.subr.mxu0 0.0
        %7110 = vmatpush1.msra.mxu0 0.0
        %7111 = vmatprep.subr.mxu0 0.0
        %7112 = vmatpush1.msra.mxu0 0.0
        %7113 = vmatprep.subr.mxu0 0.0
        %7114 = vmatpush1.msra.mxu0 0.0
        %7115 = vmatprep.subr.mxu0 0.0
        %7116 = vmatpush1.msra.mxu0 0.0
        %7117 = vmatprep.subr.mxu0 0.0
        %7118 = vmatpush1.msra.mxu0 0.0
        %7119 = vmatprep.subr.mxu0 0.0
        %7120 = vmatpush1.msra.mxu0 0.0
        %7121 = vmatprep.subr.mxu0 0.0
        %7122 = vmatpush1.msra.mxu0 0.0
        %7123 = vmatprep.subr.mxu0 0.0
        %7124 = vmatpush1.msra.mxu0 0.0
        %7125 = vmatprep.subr.mxu0 0.0
        %7126 = vmatpush1.msra.mxu0 0.0
        %7127 = vmatprep.subr.mxu0 0.0
        %7128 = vmatpush1.msra.mxu0 0.0
        %7129 = vmatprep.subr.mxu0 0.0
        %7130 = vmatpush1.msra.mxu0 0.0
        %7131 = vmatprep.subr.mxu0 0.0
        %7132 = vmatpush1.msra.mxu0 0.0
        %7133 = vmatprep.subr.mxu0 0.0
        %7134 = vmatpush1.msra.mxu0 0.0
        %7135 = vmatprep.subr.mxu0 0.0
        %7136 = vmatpush1.msra.mxu0 0.0
        %7137 = vmatprep.subr.mxu0 0.0
        %7138 = vmatpush1.msra.mxu0 0.0
        %7139 = vmatprep.mubr.f32.mxu0 0.0
        %7140 = vmatmul.mubr.f32.gmra.mrb[0].mxu0 %v7063
        %v7141 = vpop.f32.mrb[0].mxu0
        %v7142 = vadd.f32 %v7074, %v7141
        %v7143 = vpop.f32.mrb[0].mxu0
        %7144 = vmatprep.mubr.f32.mxu0 0.0
        %7145 = vmatmul.mubr.f32.gmra.mrb[0].mxu0 %v7064
        %v7146 = vpop.f32.mrb[0].mxu0
        %v7147 = vadd.f32 %v7074, %v7146
        %v7148 = vpop.f32.mrb[0].mxu0
        %7149 = vmatprep.mubr.f32.mxu0 0.0
        %7150 = vmatmul.mubr.f32.gmra.mrb[0].mxu0 %v7065
        %v7151 = vpop.f32.mrb[0].mxu0
        %v7152 = vadd.f32 %v7074, %v7151
        %v7153 = vpop.f32.mrb[0].mxu0
        %7154 = vmatprep.mubr.f32.mxu0 0.0
        %7155 = vmatmul.mubr.f32.gmra.mrb[0].mxu0 %v7066
        %v7156 = vpop.f32.mrb[0].mxu0
        %v7157 = vadd.f32 %v7074, %v7156
        %v7158 = vpop.f32.mrb[0].mxu0
        %7159 = vmatprep.mubr.f32.mxu0 0.0
        %7160 = vmatmul.mubr.f32.gmra.mrb[0].mxu0 %v7067
        %v7161 = vpop.f32.mrb[0].mxu0
        %v7162 = vadd.f32 %v7074, %v7161
        %v7163 = vpop.f32.mrb[0].mxu0
        %7164 = vmatprep.mubr.f32.mxu0 0.0
        %7165 = vmatmul.mubr.f32.gmra.mrb[0].mxu0 %v7068
        %v7166 = vpop.f32.mrb[0].mxu0
        %v7167 = vadd.f32 %v7074, %v7166
        %v7168 = vpop.f32.mrb[0].mxu0
        %7169 = vmatprep.mubr.f32.mxu0 0.0
        %7170 = vmatmul.mubr.f32.gmra.mrb[0].mxu0 %v7069
        %v7171 = vpop.f32.mrb[0].mxu0
        %v7172 = vadd.f32 %v7074, %v7171
        %v7173 = vpop.f32.mrb[0].mxu0
        %7174 = vmatprep.mubr.f32.mxu0 0.0
        %7175 = vmatmul.mubr.f32.gmra.mrb[0].mxu0 %v7070
        %v7176 = vpop.f32.mrb[0].mxu0
        %v7177 = vadd.f32 %v7074, %v7176
        %v7178 = vpop.f32.mrb[0].mxu0
        %7179 = vdwg.mxu0
        %v7180 = vadd.f32 %v6858, %v7142
        %v7181 = vadd.f32 %v6859, %v7147
        %v7182 = vadd.f32 %v6860, %v7152
        %v7183 = vadd.f32 %v6861, %v7157
        %v7184 = vadd.f32 %v6862, %v7162
        %v7185 = vadd.f32 %v6863, %v7167
        %v7186 = vadd.f32 %v6864, %v7172
        %v7187 = vadd.f32 %v6865, %v7177
        %v7188 = vsel %vm1788, %v7180, 0.0
        %7189 = vadd.xlane.f32.xlu0 %v7188
        %v7190 = vpop.xlane.xlu0 %7189
        %v7191 = vsel %vm1788, %v7181, 0.0
        %7192 = vadd.xlane.f32.xlu0 %v7191
        %v7193 = vpop.xlane.xlu0 %7192
        %v7194 = vsel %vm1788, %v7182, 0.0
        %7195 = vadd.xlane.f32.xlu0 %v7194
        %v7196 = vpop.xlane.xlu0 %7195
        %v7197 = vsel %vm1788, %v7183, 0.0
        %7198 = vadd.xlane.f32.xlu0 %v7197
        %v7199 = vpop.xlane.xlu0 %7198
        %v7200 = vsel %vm1788, %v7184, 0.0
        %7201 = vadd.xlane.f32.xlu0 %v7200
        %v7202 = vpop.xlane.xlu0 %7201
        %v7203 = vsel %vm1788, %v7185, 0.0
        %7204 = vadd.xlane.f32.xlu0 %v7203
        %v7205 = vpop.xlane.xlu0 %7204
        %v7206 = vsel %vm1788, %v7186, 0.0
        %7207 = vadd.xlane.f32.xlu0 %v7206
        %v7208 = vpop.xlane.xlu0 %7207
        %v7209 = vsel %vm1810, %v7187, 0.0
        %7210 = vadd.xlane.f32.xlu0 %v7209
        %v7211 = vpop.xlane.xlu0 %7210
        %v7212 = vmul.f32 %v7190, %v1814
        %v7213 = vmul.f32 %v7193, %v1814
        %v7214 = vmul.f32 %v7196, %v1814
        %v7215 = vmul.f32 %v7199, %v1814
        %v7216 = vmul.f32 %v7202, %v1814
        %v7217 = vmul.f32 %v7205, %v1814
        %v7218 = vmul.f32 %v7208, %v1814
        %v7219 = vmul.f32 %v7211, %v1814
        %v7220 = vsub.f32 %v7180, %v7212
        %v7221 = vsub.f32 %v7181, %v7213
        %v7222 = vsub.f32 %v7182, %v7214
        %v7223 = vsub.f32 %v7183, %v7215
        %v7224 = vsub.f32 %v7184, %v7216
        %v7225 = vsub.f32 %v7185, %v7217
        %v7226 = vsub.f32 %v7186, %v7218
        %v7227 = vsub.f32 %v7187, %v7219
        %v7228 = vmul.f32 %v7220, %v7220
        %v7229 = vmul.f32 %v7221, %v7221
        %v7230 = vmul.f32 %v7222, %v7222
        %v7231 = vmul.f32 %v7223, %v7223
        %v7232 = vmul.f32 %v7224, %v7224
        %v7233 = vmul.f32 %v7225, %v7225
        %v7234 = vmul.f32 %v7226, %v7226
        %v7235 = vmul.f32 %v7227, %v7227
        %v7236 = vsel %vm1788, %v7228, 0.0
        %7237 = vadd.xlane.f32.xlu0 %v7236
        %v7238 = vpop.xlane.xlu0 %7237
        %v7239 = vsel %vm1788, %v7229, 0.0
        %7240 = vadd.xlane.f32.xlu0 %v7239
        %v7241 = vpop.xlane.xlu0 %7240
        %v7242 = vsel %vm1788, %v7230, 0.0
        %7243 = vadd.xlane.f32.xlu0 %v7242
        %v7244 = vpop.xlane.xlu0 %7243
        %v7245 = vsel %vm1788, %v7231, 0.0
        %7246 = vadd.xlane.f32.xlu0 %v7245
        %v7247 = vpop.xlane.xlu0 %7246
        %v7248 = vsel %vm1788, %v7232, 0.0
        %7249 = vadd.xlane.f32.xlu0 %v7248
        %v7250 = vpop.xlane.xlu0 %7249
        %v7251 = vsel %vm1788, %v7233, 0.0
        %7252 = vadd.xlane.f32.xlu0 %v7251
        %v7253 = vpop.xlane.xlu0 %7252
        %v7254 = vsel %vm1788, %v7234, 0.0
        %7255 = vadd.xlane.f32.xlu0 %v7254
        %v7256 = vpop.xlane.xlu0 %7255
        %v7257 = vsel %vm1810, %v7235, 0.0
        %7258 = vadd.xlane.f32.xlu0 %v7257
        %v7259 = vpop.xlane.xlu0 %7258
        %v7260 = vmul.f32 %v7238, %v1814
        %v7261 = vmul.f32 %v7241, %v1814
        %v7262 = vmul.f32 %v7244, %v1814
        %v7263 = vmul.f32 %v7247, %v1814
        %v7264 = vmul.f32 %v7250, %v1814
        %v7265 = vmul.f32 %v7253, %v1814
        %v7266 = vmul.f32 %v7256, %v1814
        %v7267 = vmul.f32 %v7259, %v1814
        %v7268 = vadd.f32 %v7260, 1e-05
        %v7269 = vadd.f32 %v7261, 1e-05
        %v7270 = vadd.f32 %v7262, 1e-05
        %v7271 = vadd.f32 %v7263, 1e-05
        %v7272 = vadd.f32 %v7264, 1e-05
        %v7273 = vadd.f32 %v7265, 1e-05
        %v7274 = vadd.f32 %v7266, 1e-05
        %v7275 = vadd.f32 %v7267, 1e-05
        %v7276 = vrsqrt.pop %v7268
        %v7277 = vrsqrt.pop %v7269
        %v7278 = vrsqrt.pop %v7270
        %v7279 = vrsqrt.pop %v7271
        %v7280 = vrsqrt.pop %v7272
        %v7281 = vrsqrt.pop %v7273
        %v7282 = vrsqrt.pop %v7274
        %v7283 = vrsqrt.pop %v7275
        %v7284 = vmul.f32 %v7220, %v7276
        %v7285 = vmul.f32 %v7221, %v7277
        %v7286 = vmul.f32 %v7222, %v7278
        %v7287 = vmul.f32 %v7223, %v7279
        %v7288 = vmul.f32 %v7224, %v7280
        %v7289 = vmul.f32 %v7225, %v7281
        %v7290 = vmul.f32 %v7226, %v7282
        %v7291 = vmul.f32 %v7227, %v7283
        %v7292 = vlaneseq
        %v7293 = vshrl.u32 %v7292, 7
        %v7294 = vsub.s32 6, %v7293
        %v7295 = vrot.slane %v4644, %v7294
        %v7296 = vmul.f32 %v7284, %v7295
        %v7297 = vmul.f32 %v7285, %v7295
        %v7298 = vmul.f32 %v7286, %v7295
        %v7299 = vmul.f32 %v7287, %v7295
        %v7300 = vmul.f32 %v7288, %v7295
        %v7301 = vmul.f32 %v7289, %v7295
        %v7302 = vmul.f32 %v7290, %v7295
        %v7303 = vmul.f32 %v7291, %v7295
        %v7304 = vlaneseq
        %v7305 = vshrl.u32 %v7304, 7
        %v7306 = vsub.s32 7, %v7305
        %v7307 = vrot.slane %v4644, %v7306
        %v7308 = vadd.f32 %v7296, %v7307
        %v7309 = vadd.f32 %v7297, %v7307
        %v7310 = vadd.f32 %v7298, %v7307
        %v7311 = vadd.f32 %v7299, %v7307
        %v7312 = vadd.f32 %v7300, %v7307
        %v7313 = vadd.f32 %v7301, %v7307
        %v7314 = vadd.f32 %v7302, %v7307
        %v7315 = vadd.f32 %v7303, %v7307
        %v7316 = vsel %vm1788, %v7308, 0.0
        %v7317 = vsel %vm1788, %v7309, 0.0
        %v7318 = vadd.f32 %v7316, %v7317
        %v7319 = vsel %vm1788, %v7310, 0.0
        %v7320 = vadd.f32 %v7318, %v7319
        %v7321 = vsel %vm1788, %v7311, 0.0
        %v7322 = vadd.f32 %v7320, %v7321
        %v7323 = vsel %vm1788, %v7312, 0.0
        %v7324 = vadd.f32 %v7322, %v7323
        %v7325 = vsel %vm1788, %v7313, 0.0
        %v7326 = vadd.f32 %v7324, %v7325
        %v7327 = vsel %vm1788, %v7314, 0.0
        %v7328 = vadd.f32 %v7326, %v7327
        %v7329 = vsel %vm1810, %v7315, 0.0
        %v7330 = vadd.f32 %v7328, %v7329
        %v7331 = vrot.slane %v7330, 4
        %v7332 = vadd.f32 %v7330, %v7331
        %v7333 = vrot.slane %v7332, 2
        %v7334 = vadd.f32 %v7332, %v7333
        %v7335 = vrot.slane %v7334, 1
        %v7336 = vadd.f32 %v7334, %v7335
        %v7337 = vrcp.pop 63.0
        %v7338 = vmul.f32 %v7336, %v7337
        %vm7339 = vcmask 516096
        %7340 = vst.msk [vmem:[%s270] sm:$0x1] %vm7339, %v7338
        %s7341 = sand.u32 %s181, 1
        %s7342 = scalar_lea.sflag [#allocation3], %s7341
        %s7343 = sand.u32 %s181, 1
        %s7344 = scalar_lea.vmem [#allocation2], %s7343
        // Predicated region
        $region49: #{audio_encoder_forward.1} parent=47 // pred_check
          %p7345 = pneg %p191
        $region50: #{audio_encoder_forward.1} parent=47 // pred_check_branch
          %7347 = sbr.rel (%p7345) target = $region52
        $region51: #{audio_encoder_forward.1} parent=47 // pred_region
          %s7349 = ssub.s32 16, 16
          %7350 = vsyncadd %s7342, %s7349
          %s7351 = smul.addr %s21, 16
          %s7352 = scalar_lea.hbm %s7, %s7351
          %s7354 = sshll.u32 %s7344, 4
          %s7355 = int_to_ptr.vmem [resolvable:$true] %s7354
          %7357 = dma.vmem_to_hbm [thread:$0]  %s7355, 16, %s7352, %s7342
        $region52: #{audio_encoder_forward.1} parent=47 // pred_fallthru
          _
      $region48: #{audio_encoder_forward.1} parent=5 // pred_fallthru
        _
      %p7358 = scmp.le.s32.totalorder 2, %s16
      // Predicated region
      $region53: #{audio_encoder_forward.1} parent=5 // pred_check
        %p7359 = pneg %p7358
      $region54: #{audio_encoder_forward.1} parent=5 // pred_check_branch
        %7361 = sbr.rel (%p7359) target = $region56
      $region55: #{audio_encoder_forward.1} parent=5 // pred_region
        %s7362 = ssub.s32 %s16, 2
        // Predicated region
        $region57: #{audio_encoder_forward.1} parent=55 // pred_check
          %p7363 = pneg %p197
        $region58: #{audio_encoder_forward.1} parent=55 // pred_check_branch
          %7365 = sbr.rel (%p7363) target = $region60
        $region59: #{audio_encoder_forward.1} parent=55 // pred_region
          %s7366 = sand.u32 %s182, 1
          %s7367 = scalar_lea.sflag [#allocation3], %s7366
          %s7368 = sand.u32 %s182, 1
          %s7369 = scalar_lea.vmem [#allocation2], %s7368
          %7370 = dma.done %s7367, 16
        $region60: #{audio_encoder_forward.1} parent=55 // pred_fallthru
          _
      $region56: #{audio_encoder_forward.1} parent=5 // pred_fallthru
        _
    $region6: #{audio_encoder_forward.1} parent=1 // loop_footer
      %s20 = sadd.s32 1, %s16
    $region7: #{audio_encoder_forward.1} parent=1 // loop_footer_branch
      %15 = sbr.rel target = $region3
    $region8: #{audio_encoder_forward.1} parent=1 // loop_exit
      _
    %7371 = vsyncpa [#allocation3], 1
    %s7372 = scalar_lea.sflag [#allocation3], 1
    %7373 = vsyncpa %s7372, 1

</llo_original>
